<compile_context>
chip_gen: v7x
topology: tpu7x:2x2x1
jax: 0.10.0
libtpu: 0.0.40
codegen_flags: <defaults>
</compile_context>

<pallas_src>
import jax
import jax.numpy as jnp
from jax.experimental import pallas as pl
from jax.experimental.pallas import tpu as pltpu

N_EMBD = 64
BLOCK_SIZE = 16
N_HEAD = 4
HEAD_SIZE = N_EMBD // N_HEAD
EPS = 1e-5
NEG_INF = -1e30           # finite "masked" value (avoids inf-inf -> NaN)


def _layernorm(x, g, b):
    mu = jnp.mean(x, axis=-1, keepdims=True)
    var = jnp.mean((x - mu) ** 2, axis=-1, keepdims=True)   # biased, like PyTorch
    return (x - mu) * jax.lax.rsqrt(var + EPS) * g + b


def block_kernel(x_ref, mask_ref,
                 ln1g_ref, ln1b_ref,
                 wq_ref, wk_ref, wv_ref, wp_ref, bp_ref,
                 ln2g_ref, ln2b_ref,
                 w1_ref, b1_ref, w2_ref, b2_ref,
                 out_ref):
    BB, T, C = x_ref.shape
    H, _, D = wq_ref.shape
    R = BB * T
    cdt = wq_ref.dtype        # matmul operand dtype (f32 default, bf16 optional)

    x = x_ref[...].astype(jnp.float32).reshape(R, C)         # (R, C)

    # ----- self-attention branch: x + proj(heads(attn(ln1(x)))) -----
    xn = _layernorm(x, ln1g_ref[...], ln1b_ref[...])
    xn_c = xn.astype(cdt)
    addmask = mask_ref[...]                                   # (T, T), 0 / -1e30

    sa = jnp.zeros((R, C), jnp.float32)
    for h in range(H):
        # Per-head weights are statically indexed refs -> no in-kernel
        # lane-offset slicing of activations (XLU was the binding unit).
        qh = jnp.dot(xn_c, wq_ref[h], preferred_element_type=jnp.float32)
        kh = jnp.dot(xn_c, wk_ref[h], preferred_element_type=jnp.float32)
        vh = jnp.dot(xn_c, wv_ref[h], preferred_element_type=jnp.float32)
        qh = qh.reshape(BB, T, D)
        kh = kh.reshape(BB, T, D)
        vh = vh.reshape(BB, T, D)

        # Scores: contract on the last dim (no materialized K transpose).
        # Scale (n_embd**-0.5) already folded into wq; mask is additive.
        s = jnp.einsum('btd,bsd->bts', qh, kh,
                       preferred_element_type=jnp.float32) + addmask
        s = s - jnp.max(s, axis=-1, keepdims=True)
        p = jnp.exp(s)
        p = p / jnp.sum(p, axis=-1, keepdims=True)   # exact softmax
        # attention dropout: identity (eval mode)
        oh = jnp.einsum('bts,bsd->btd', p, vh,
                        preferred_element_type=jnp.float32).reshape(R, D)
        # Project-and-accumulate per head (replaces lane-dim concat + big proj).
        sa = sa + jnp.dot(oh.astype(cdt), wp_ref[h],
                          preferred_element_type=jnp.float32)
    # proj dropout: identity (eval mode)
    x = x + sa + bp_ref[...]

    # ----- feed-forward branch: x + W2(relu(W1(ln2(x)))) -----
    xn2 = _layernorm(x, ln2g_ref[...], ln2b_ref[...])
    h1 = jnp.dot(xn2.astype(cdt), w1_ref[...],
                 preferred_element_type=jnp.float32) + b1_ref[...]
    h1 = jnp.maximum(h1, 0.0)
    h2 = jnp.dot(h1.astype(cdt), w2_ref[...],
                 preferred_element_type=jnp.float32) + b2_ref[...]
    # ffwd dropout: identity (eval mode)
    x = x + h2

    out_ref[...] = x.reshape(BB, T, C).astype(out_ref.dtype)


def _pick_bb(B, T, C, n_head, vmem_budget_bytes=8 << 20):
    """Largest divisor of B whose per-step working set fits the VMEM budget.

    No artificial 'desired=8' cap and no forced 2-step grid: on single-TC
    v5e/v6e extra grid steps are pure overhead.  Only if the grid collapses to
    1 AND each half would still feed the MXU with >= 256 rows do we split in
    two so the 'parallel' axis can shard across v7x's 2 TensorCores.
    """
    # rough f32 bytes per (batch*seq) row resident at once:
    # x/out double-buffered + LN/QKV/FFN intermediates + attention probs
    per_row_bytes = (2 * 2 * C + 6 * C + 4 * C + n_head * T) * 4
    bb = 1
    for d in range(1, B + 1):
        if B % d == 0 and d * T * per_row_bytes <= vmem_budget_bytes:
            bb = d
    if B // bb == 1 and bb % 2 == 0 and (bb // 2) * T >= 256:
        bb //= 2
    return bb


def block_forward(x, params, *, compute_dtype=jnp.float32):
    B, T, C = x.shape
    H, D = N_HEAD, HEAD_SIZE
    BB = _pick_bb(B, T, C, H)
    scale = jnp.float32(C) ** -0.5        # PyTorch scales by n_embd**-0.5

    def heads_of(w):                       # (C, H*D) -> (H, C, D)
        return jnp.transpose(w.reshape(C, H, D), (1, 0, 2))

    # Trace-time packing (jit block_forward so this constant-folds per compile).
    wq_h = heads_of(params["wq"] * scale).astype(compute_dtype)
    wk_h = heads_of(params["wk"]).astype(compute_dtype)
    wv_h = heads_of(params["wv"]).astype(compute_dtype)
    wp_h = params["wp"].reshape(H, D, C).astype(compute_dtype)   # rows h*D:(h+1)*D
    w1 = params["w1"].astype(compute_dtype)
    w2 = params["w2"].astype(compute_dtype)
    addmask = jnp.where(jnp.tril(jnp.ones((T, T), bool)),
                        jnp.float32(0.0), jnp.float32(NEG_INF))

    weights = [addmask,
               params["ln1_g"], params["ln1_b"],
               wq_h, wk_h, wv_h, wp_h, params["bp"],
               params["ln2_g"], params["ln2_b"],
               w1, params["b1"], w2, params["b2"]]

    def full_spec(a):
        return pl.BlockSpec(a.shape, lambda b, _n=a.ndim: (0,) * _n)

    in_specs = [pl.BlockSpec((BB, T, C), lambda b: (b, 0, 0))] + \
               [full_spec(w) for w in weights]

    return pl.pallas_call(
        block_kernel,
        out_shape=jax.ShapeDtypeStruct((B, T, C), x.dtype),
        grid_spec=pl.GridSpec(
            grid=(B // BB,),
            in_specs=in_specs,
            out_specs=pl.BlockSpec((BB, T, C), lambda b: (b, 0, 0)),
        ),
        compiler_params=pltpu.CompilerParams(
            dimension_semantics=("parallel",)),
    )(x, *weights)


def init_params(key):
    ks = jax.random.split(key, 8)
    C, Hid = N_EMBD, 4 * N_EMBD

    def lin(k, fan_in, fan_out):
        return (jax.random.normal(k, (fan_in, fan_out), jnp.float32)
                / jnp.sqrt(jnp.float32(fan_in)))

    return {
        "ln1_g": jnp.ones((1, C), jnp.float32),
        "ln1_b": jnp.zeros((1, C), jnp.float32),
        "wq": lin(ks[0], C, C),   # n_head heads of (C, head_size), concatenated
        "wk": lin(ks[1], C, C),
        "wv": lin(ks[2], C, C),
        "wp": lin(ks[3], C, C),
        "bp": jnp.zeros((1, C), jnp.float32),
        "ln2_g": jnp.ones((1, C), jnp.float32),
        "ln2_b": jnp.zeros((1, C), jnp.float32),
        "w1": lin(ks[4], C, Hid),
        "b1": jnp.zeros((1, Hid), jnp.float32),
        "w2": lin(ks[5], Hid, C),
        "b2": jnp.zeros((1, C), jnp.float32),
    }


def block_reference(x, params):
    """Pure-JAX reference mirroring the PyTorch forward (eval mode)."""
    B, T, C = x.shape
    xn = _layernorm(x, params["ln1_g"], params["ln1_b"])
    q = xn @ params["wq"]
    k = xn @ params["wk"]
    v = xn @ params["wv"]
    causal = jnp.tril(jnp.ones((T, T), bool))
    outs = []
    for h in range(N_HEAD):
        sl = slice(h * HEAD_SIZE, (h + 1) * HEAD_SIZE)
        wei = jnp.einsum("btd,bsd->bts", q[..., sl], k[..., sl]) * (C ** -0.5)
        wei = jnp.where(causal, wei, -jnp.inf)
        wei = jax.nn.softmax(wei, axis=-1)
        outs.append(jnp.einsum("bts,bsd->btd", wei, v[..., sl]))
    sa = jnp.concatenate(outs, axis=-1) @ params["wp"] + params["bp"]
    x = x + sa
    xn2 = _layernorm(x, params["ln2_g"], params["ln2_b"])
    h1 = jnp.maximum(xn2 @ params["w1"] + params["b1"], 0.0)
    x = x + (h1 @ params["w2"] + params["b2"])
    return x


if __name__ == "__main__":
    key = jax.random.PRNGKey(0)
    kx, kp = jax.random.split(key)

    B, T, C = 8, BLOCK_SIZE, N_EMBD       # B=8 -> BB=8, grid=(1,)
    x = jax.random.normal(kx, (B, T, C), jnp.float32)
    params = init_params(kp)

    fwd = jax.jit(block_forward)          # jit so weight packing constant-folds
    out = fwd(x, params)
    jax.block_until_ready(out)

    ref = block_reference(x, params)
    assert out.shape == (B, T, C)
    # All math is exact f32 now (approx reciprocal removed), so tolerance is
    # just fp-reassociation slack.
    assert jnp.allclose(out, ref, atol=1e-4, rtol=1e-4), "mismatch vs reference"

    print("KERNEL_OK")
</pallas_src>

<mosaic_0001>
module attributes {stable_mosaic.version = 11 : i64} {
  func.func @block_kernel(%arg0: i32, %arg1: memref<8x16x64xf32, #tpu.memory_space<vmem>>, %arg2: memref<16x16xf32, #tpu.memory_space<vmem>>, %arg3: memref<1x64xf32, #tpu.memory_space<vmem>>, %arg4: memref<1x64xf32, #tpu.memory_space<vmem>>, %arg5: memref<4x64x16xf32, #tpu.memory_space<vmem>>, %arg6: memref<4x64x16xf32, #tpu.memory_space<vmem>>, %arg7: memref<4x64x16xf32, #tpu.memory_space<vmem>>, %arg8: memref<4x16x64xf32, #tpu.memory_space<vmem>>, %arg9: memref<1x64xf32, #tpu.memory_space<vmem>>, %arg10: memref<1x64xf32, #tpu.memory_space<vmem>>, %arg11: memref<1x64xf32, #tpu.memory_space<vmem>>, %arg12: memref<64x256xf32, #tpu.memory_space<vmem>>, %arg13: memref<1x256xf32, #tpu.memory_space<vmem>>, %arg14: memref<256x64xf32, #tpu.memory_space<vmem>>, %arg15: memref<1x64xf32, #tpu.memory_space<vmem>>, %arg16: memref<8x16x64xf32, #tpu.memory_space<vmem>>) attributes {dimension_semantics = [#tpu.dimension_semantics<parallel>], iteration_bounds = array<i64: 1>, scalar_prefetch = 0 : i64, scratch_operands = 0 : i64, tpu.core_type = #tpu.core_type<tc>, window_params = [{transform_indices = @transform_0, window_bounds = array<i64: 8, 16, 64>}, {pipeline_mode = #tpu.pipeline_mode<synchronous>, transform_indices = @transform_1, window_bounds = array<i64: 16, 16>}, {pipeline_mode = #tpu.pipeline_mode<synchronous>, transform_indices = @transform_2, window_bounds = array<i64: 1, 64>}, {pipeline_mode = #tpu.pipeline_mode<synchronous>, transform_indices = @transform_3, window_bounds = array<i64: 1, 64>}, {pipeline_mode = #tpu.pipeline_mode<synchronous>, transform_indices = @transform_4, window_bounds = array<i64: 4, 64, 16>}, {pipeline_mode = #tpu.pipeline_mode<synchronous>, transform_indices = @transform_5, window_bounds = array<i64: 4, 64, 16>}, {pipeline_mode = #tpu.pipeline_mode<synchronous>, transform_indices = @transform_6, window_bounds = array<i64: 4, 64, 16>}, {pipeline_mode = #tpu.pipeline_mode<synchronous>, transform_indices = @transform_7, window_bounds = array<i64: 4, 16, 64>}, {pipeline_mode = #tpu.pipeline_mode<synchronous>, transform_indices = @transform_8, window_bounds = array<i64: 1, 64>}, {pipeline_mode = #tpu.pipeline_mode<synchronous>, transform_indices = @transform_9, window_bounds = array<i64: 1, 64>}, {pipeline_mode = #tpu.pipeline_mode<synchronous>, transform_indices = @transform_10, window_bounds = array<i64: 1, 64>}, {pipeline_mode = #tpu.pipeline_mode<synchronous>, transform_indices = @transform_11, window_bounds = array<i64: 64, 256>}, {pipeline_mode = #tpu.pipeline_mode<synchronous>, transform_indices = @transform_12, window_bounds = array<i64: 1, 256>}, {pipeline_mode = #tpu.pipeline_mode<synchronous>, transform_indices = @transform_13, window_bounds = array<i64: 256, 64>}, {pipeline_mode = #tpu.pipeline_mode<synchronous>, transform_indices = @transform_14, window_bounds = array<i64: 1, 64>}, {transform_indices = @transform_15, window_bounds = array<i64: 8, 16, 64>}]} {
    %c0 = arith.constant 0 : index
    %c0_0 = arith.constant 0 : index
    %c0_1 = arith.constant 0 : index
    %0 = vector.load %arg1[%c0, %c0_0, %c0_1] : memref<8x16x64xf32, #tpu.memory_space<vmem>>, vector<8x16x64xf32>
    %1 = vector.shape_cast %0 : vector<8x16x64xf32> to vector<128x64xf32>
    %c0_2 = arith.constant 0 : index
    %c0_3 = arith.constant 0 : index
    %2 = vector.load %arg3[%c0_2, %c0_3] : memref<1x64xf32, #tpu.memory_space<vmem>>, vector<1x64xf32>
    %c0_4 = arith.constant 0 : index
    %c0_5 = arith.constant 0 : index
    %3 = vector.load %arg4[%c0_4, %c0_5] : memref<1x64xf32, #tpu.memory_space<vmem>>, vector<1x64xf32>
    %cst = arith.constant dense<0.000000e+00> : vector<128xf32>
    %4 = vector.multi_reduction <add>, %1, %cst [1] : vector<128x64xf32> to vector<128xf32>
    %5 = vector.shape_cast %4 : vector<128xf32> to vector<128x1xf32>
    %cst_6 = arith.constant 6.400000e+01 : f32
    %6 = vector.broadcast %cst_6 : f32 to vector<128x1xf32>
    %7 = arith.divf %5, %6 : vector<128x1xf32>
    %8 = vector.broadcast %7 : vector<128x1xf32> to vector<128x64xf32>
    %9 = arith.subf %1, %8 : vector<128x64xf32>
    %10 = arith.mulf %9, %9 : vector<128x64xf32>
    %cst_7 = arith.constant dense<0.000000e+00> : vector<128xf32>
    %11 = vector.multi_reduction <add>, %10, %cst_7 [1] : vector<128x64xf32> to vector<128xf32>
    %12 = vector.shape_cast %11 : vector<128xf32> to vector<128x1xf32>
    %cst_8 = arith.constant 6.400000e+01 : f32
    %13 = vector.broadcast %cst_8 : f32 to vector<128x1xf32>
    %14 = arith.divf %12, %13 : vector<128x1xf32>
    %15 = vector.broadcast %7 : vector<128x1xf32> to vector<128x64xf32>
    %16 = arith.subf %1, %15 : vector<128x64xf32>
    %cst_9 = arith.constant 9.99999974E-6 : f32
    %17 = vector.broadcast %cst_9 : f32 to vector<128x1xf32>
    %18 = arith.addf %14, %17 : vector<128x1xf32>
    %19 = math.rsqrt %18 : vector<128x1xf32>
    %20 = vector.broadcast %19 : vector<128x1xf32> to vector<128x64xf32>
    %21 = arith.mulf %16, %20 : vector<128x64xf32>
    %22 = vector.broadcast %2 : vector<1x64xf32> to vector<128x64xf32>
    %23 = arith.mulf %21, %22 : vector<128x64xf32>
    %24 = vector.broadcast %3 : vector<1x64xf32> to vector<128x64xf32>
    %25 = arith.addf %23, %24 : vector<128x64xf32>
    %c0_10 = arith.constant 0 : index
    %c0_11 = arith.constant 0 : index
    %26 = vector.load %arg2[%c0_10, %c0_11] : memref<16x16xf32, #tpu.memory_space<vmem>>, vector<16x16xf32>
    %cst_12 = arith.constant 0.000000e+00 : f32
    %27 = vector.broadcast %cst_12 : f32 to vector<128x64xf32>
    %c0_13 = arith.constant 0 : index
    %c0_14 = arith.constant 0 : index
    %c0_15 = arith.constant 0 : index
    %28 = vector.load %arg5[%c0_13, %c0_14, %c0_15] : memref<4x64x16xf32, #tpu.memory_space<vmem>>, vector<1x64x16xf32>
    %29 = vector.shape_cast %28 : vector<1x64x16xf32> to vector<64x16xf32>
    %cst_16 = arith.constant dense<0.000000e+00> : vector<128x16xf32>
    %30 = tpu.matmul %25, %29, %cst_16 {dimension_numbers = #tpu.dot_dimension_numbers<[1], [0], [0], [1], [0, 0, 1, 1], [], []>} : vector<128x64xf32>, vector<64x16xf32>, vector<128x16xf32> -> vector<128x16xf32>
    %c0_17 = arith.constant 0 : index
    %c0_18 = arith.constant 0 : index
    %c0_19 = arith.constant 0 : index
    %31 = vector.load %arg6[%c0_17, %c0_18, %c0_19] : memref<4x64x16xf32, #tpu.memory_space<vmem>>, vector<1x64x16xf32>
    %32 = vector.shape_cast %31 : vector<1x64x16xf32> to vector<64x16xf32>
    %cst_20 = arith.constant dense<0.000000e+00> : vector<128x16xf32>
    %33 = tpu.matmul %25, %32, %cst_20 {dimension_numbers = #tpu.dot_dimension_numbers<[1], [0], [0], [1], [0, 0, 1, 1], [], []>} : vector<128x64xf32>, vector<64x16xf32>, vector<128x16xf32> -> vector<128x16xf32>
    %c0_21 = arith.constant 0 : index
    %c0_22 = arith.constant 0 : index
    %c0_23 = arith.constant 0 : index
    %34 = vector.load %arg7[%c0_21, %c0_22, %c0_23] : memref<4x64x16xf32, #tpu.memory_space<vmem>>, vector<1x64x16xf32>
    %35 = vector.shape_cast %34 : vector<1x64x16xf32> to vector<64x16xf32>
    %cst_24 = arith.constant dense<0.000000e+00> : vector<128x16xf32>
    %36 = tpu.matmul %25, %35, %cst_24 {dimension_numbers = #tpu.dot_dimension_numbers<[1], [0], [0], [1], [0, 0, 1, 1], [], []>} : vector<128x64xf32>, vector<64x16xf32>, vector<128x16xf32> -> vector<128x16xf32>
    %37 = vector.shape_cast %30 : vector<128x16xf32> to vector<8x16x16xf32>
    %38 = vector.shape_cast %33 : vector<128x16xf32> to vector<8x16x16xf32>
    %39 = vector.shape_cast %36 : vector<128x16xf32> to vector<8x16x16xf32>
    "tpu.trace_start"() <{level = 10 : i32, message = "btd,bsd->bts"}> : () -> ()
    %cst_25 = arith.constant dense<0.000000e+00> : vector<8x16x16xf32>
    %40 = tpu.matmul %37, %38, %cst_25 {dimension_numbers = #tpu.dot_dimension_numbers<[2], [2], [1], [1], [0, 0, 0, 1, 1, 1], [0], [0]>} : vector<8x16x16xf32>, vector<8x16x16xf32>, vector<8x16x16xf32> -> vector<8x16x16xf32>
    "tpu.trace_stop"() : () -> ()
    %41 = vector.shape_cast %26 : vector<16x16xf32> to vector<1x16x16xf32>
    %42 = vector.broadcast %41 : vector<1x16x16xf32> to vector<8x16x16xf32>
    %43 = arith.addf %40, %42 : vector<8x16x16xf32>
    %cst_26 = arith.constant dense<0xFF800000> : vector<8x16xf32>
    %44 = vector.multi_reduction <maximumf>, %43, %cst_26 [2] : vector<8x16x16xf32> to vector<8x16xf32>
    %45 = vector.shape_cast %44 : vector<8x16xf32> to vector<8x16x1xf32>
    %46 = vector.broadcast %45 : vector<8x16x1xf32> to vector<8x16x16xf32>
    %47 = arith.subf %43, %46 : vector<8x16x16xf32>
    %48 = math.exp %47 : vector<8x16x16xf32>
    %cst_27 = arith.constant dense<0.000000e+00> : vector<8x16xf32>
    %49 = vector.multi_reduction <add>, %48, %cst_27 [2] : vector<8x16x16xf32> to vector<8x16xf32>
    %50 = vector.shape_cast %49 : vector<8x16xf32> to vector<8x16x1xf32>
    %51 = vector.broadcast %50 : vector<8x16x1xf32> to vector<8x16x16xf32>
    %52 = arith.divf %48, %51 : vector<8x16x16xf32>
    "tpu.trace_start"() <{level = 10 : i32, message = "bts,bsd->btd"}> : () -> ()
    %cst_28 = arith.constant dense<0.000000e+00> : vector<8x16x16xf32>
    %53 = tpu.matmul %52, %39, %cst_28 {dimension_numbers = #tpu.dot_dimension_numbers<[2], [1], [1], [2], [0, 0, 0, 1, 1, 2], [0], [0]>} : vector<8x16x16xf32>, vector<8x16x16xf32>, vector<8x16x16xf32> -> vector<8x16x16xf32>
    "tpu.trace_stop"() : () -> ()
    %54 = vector.shape_cast %53 : vector<8x16x16xf32> to vector<128x16xf32>
    %c0_29 = arith.constant 0 : index
    %c0_30 = arith.constant 0 : index
    %c0_31 = arith.constant 0 : index
    %55 = vector.load %arg8[%c0_29, %c0_30, %c0_31] : memref<4x16x64xf32, #tpu.memory_space<vmem>>, vector<1x16x64xf32>
    %56 = vector.shape_cast %55 : vector<1x16x64xf32> to vector<16x64xf32>
    %cst_32 = arith.constant dense<0.000000e+00> : vector<128x64xf32>
    %57 = tpu.matmul %54, %56, %cst_32 {dimension_numbers = #tpu.dot_dimension_numbers<[1], [0], [0], [1], [0, 0, 1, 1], [], []>} : vector<128x16xf32>, vector<16x64xf32>, vector<128x64xf32> -> vector<128x64xf32>
    %58 = arith.addf %27, %57 : vector<128x64xf32>
    %c1 = arith.constant 1 : index
    %c0_33 = arith.constant 0 : index
    %c0_34 = arith.constant 0 : index
    %59 = vector.load %arg5[%c1, %c0_33, %c0_34] : memref<4x64x16xf32, #tpu.memory_space<vmem>>, vector<1x64x16xf32>
    %60 = vector.shape_cast %59 : vector<1x64x16xf32> to vector<64x16xf32>
    %cst_35 = arith.constant dense<0.000000e+00> : vector<128x16xf32>
    %61 = tpu.matmul %25, %60, %cst_35 {dimension_numbers = #tpu.dot_dimension_numbers<[1], [0], [0], [1], [0, 0, 1, 1], [], []>} : vector<128x64xf32>, vector<64x16xf32>, vector<128x16xf32> -> vector<128x16xf32>
    %c1_36 = arith.constant 1 : index
    %c0_37 = arith.constant 0 : index
    %c0_38 = arith.constant 0 : index
    %62 = vector.load %arg6[%c1_36, %c0_37, %c0_38] : memref<4x64x16xf32, #tpu.memory_space<vmem>>, vector<1x64x16xf32>
    %63 = vector.shape_cast %62 : vector<1x64x16xf32> to vector<64x16xf32>
    %cst_39 = arith.constant dense<0.000000e+00> : vector<128x16xf32>
    %64 = tpu.matmul %25, %63, %cst_39 {dimension_numbers = #tpu.dot_dimension_numbers<[1], [0], [0], [1], [0, 0, 1, 1], [], []>} : vector<128x64xf32>, vector<64x16xf32>, vector<128x16xf32> -> vector<128x16xf32>
    %c1_40 = arith.constant 1 : index
    %c0_41 = arith.constant 0 : index
    %c0_42 = arith.constant 0 : index
    %65 = vector.load %arg7[%c1_40, %c0_41, %c0_42] : memref<4x64x16xf32, #tpu.memory_space<vmem>>, vector<1x64x16xf32>
    %66 = vector.shape_cast %65 : vector<1x64x16xf32> to vector<64x16xf32>
    %cst_43 = arith.constant dense<0.000000e+00> : vector<128x16xf32>
    %67 = tpu.matmul %25, %66, %cst_43 {dimension_numbers = #tpu.dot_dimension_numbers<[1], [0], [0], [1], [0, 0, 1, 1], [], []>} : vector<128x64xf32>, vector<64x16xf32>, vector<128x16xf32> -> vector<128x16xf32>
    %68 = vector.shape_cast %61 : vector<128x16xf32> to vector<8x16x16xf32>
    %69 = vector.shape_cast %64 : vector<128x16xf32> to vector<8x16x16xf32>
    %70 = vector.shape_cast %67 : vector<128x16xf32> to vector<8x16x16xf32>
    "tpu.trace_start"() <{level = 10 : i32, message = "btd,bsd->bts"}> : () -> ()
    %cst_44 = arith.constant dense<0.000000e+00> : vector<8x16x16xf32>
    %71 = tpu.matmul %68, %69, %cst_44 {dimension_numbers = #tpu.dot_dimension_numbers<[2], [2], [1], [1], [0, 0, 0, 1, 1, 1], [0], [0]>} : vector<8x16x16xf32>, vector<8x16x16xf32>, vector<8x16x16xf32> -> vector<8x16x16xf32>
    "tpu.trace_stop"() : () -> ()
    %72 = vector.shape_cast %26 : vector<16x16xf32> to vector<1x16x16xf32>
    %73 = vector.broadcast %72 : vector<1x16x16xf32> to vector<8x16x16xf32>
    %74 = arith.addf %71, %73 : vector<8x16x16xf32>
    %cst_45 = arith.constant dense<0xFF800000> : vector<8x16xf32>
    %75 = vector.multi_reduction <maximumf>, %74, %cst_45 [2] : vector<8x16x16xf32> to vector<8x16xf32>
    %76 = vector.shape_cast %75 : vector<8x16xf32> to vector<8x16x1xf32>
    %77 = vector.broadcast %76 : vector<8x16x1xf32> to vector<8x16x16xf32>
    %78 = arith.subf %74, %77 : vector<8x16x16xf32>
    %79 = math.exp %78 : vector<8x16x16xf32>
    %cst_46 = arith.constant dense<0.000000e+00> : vector<8x16xf32>
    %80 = vector.multi_reduction <add>, %79, %cst_46 [2] : vector<8x16x16xf32> to vector<8x16xf32>
    %81 = vector.shape_cast %80 : vector<8x16xf32> to vector<8x16x1xf32>
    %82 = vector.broadcast %81 : vector<8x16x1xf32> to vector<8x16x16xf32>
    %83 = arith.divf %79, %82 : vector<8x16x16xf32>
    "tpu.trace_start"() <{level = 10 : i32, message = "bts,bsd->btd"}> : () -> ()
    %cst_47 = arith.constant dense<0.000000e+00> : vector<8x16x16xf32>
    %84 = tpu.matmul %83, %70, %cst_47 {dimension_numbers = #tpu.dot_dimension_numbers<[2], [1], [1], [2], [0, 0, 0, 1, 1, 2], [0], [0]>} : vector<8x16x16xf32>, vector<8x16x16xf32>, vector<8x16x16xf32> -> vector<8x16x16xf32>
    "tpu.trace_stop"() : () -> ()
    %85 = vector.shape_cast %84 : vector<8x16x16xf32> to vector<128x16xf32>
    %c1_48 = arith.constant 1 : index
    %c0_49 = arith.constant 0 : index
    %c0_50 = arith.constant 0 : index
    %86 = vector.load %arg8[%c1_48, %c0_49, %c0_50] : memref<4x16x64xf32, #tpu.memory_space<vmem>>, vector<1x16x64xf32>
    %87 = vector.shape_cast %86 : vector<1x16x64xf32> to vector<16x64xf32>
    %cst_51 = arith.constant dense<0.000000e+00> : vector<128x64xf32>
    %88 = tpu.matmul %85, %87, %cst_51 {dimension_numbers = #tpu.dot_dimension_numbers<[1], [0], [0], [1], [0, 0, 1, 1], [], []>} : vector<128x16xf32>, vector<16x64xf32>, vector<128x64xf32> -> vector<128x64xf32>
    %89 = arith.addf %58, %88 : vector<128x64xf32>
    %c2 = arith.constant 2 : index
    %c0_52 = arith.constant 0 : index
    %c0_53 = arith.constant 0 : index
    %90 = vector.load %arg5[%c2, %c0_52, %c0_53] : memref<4x64x16xf32, #tpu.memory_space<vmem>>, vector<1x64x16xf32>
    %91 = vector.shape_cast %90 : vector<1x64x16xf32> to vector<64x16xf32>
    %cst_54 = arith.constant dense<0.000000e+00> : vector<128x16xf32>
    %92 = tpu.matmul %25, %91, %cst_54 {dimension_numbers = #tpu.dot_dimension_numbers<[1], [0], [0], [1], [0, 0, 1, 1], [], []>} : vector<128x64xf32>, vector<64x16xf32>, vector<128x16xf32> -> vector<128x16xf32>
    %c2_55 = arith.constant 2 : index
    %c0_56 = arith.constant 0 : index
    %c0_57 = arith.constant 0 : index
    %93 = vector.load %arg6[%c2_55, %c0_56, %c0_57] : memref<4x64x16xf32, #tpu.memory_space<vmem>>, vector<1x64x16xf32>
    %94 = vector.shape_cast %93 : vector<1x64x16xf32> to vector<64x16xf32>
    %cst_58 = arith.constant dense<0.000000e+00> : vector<128x16xf32>
    %95 = tpu.matmul %25, %94, %cst_58 {dimension_numbers = #tpu.dot_dimension_numbers<[1], [0], [0], [1], [0, 0, 1, 1], [], []>} : vector<128x64xf32>, vector<64x16xf32>, vector<128x16xf32> -> vector<128x16xf32>
    %c2_59 = arith.constant 2 : index
    %c0_60 = arith.constant 0 : index
    %c0_61 = arith.constant 0 : index
    %96 = vector.load %arg7[%c2_59, %c0_60, %c0_61] : memref<4x64x16xf32, #tpu.memory_space<vmem>>, vector<1x64x16xf32>
    %97 = vector.shape_cast %96 : vector<1x64x16xf32> to vector<64x16xf32>
    %cst_62 = arith.constant dense<0.000000e+00> : vector<128x16xf32>
    %98 = tpu.matmul %25, %97, %cst_62 {dimension_numbers = #tpu.dot_dimension_numbers<[1], [0], [0], [1], [0, 0, 1, 1], [], []>} : vector<128x64xf32>, vector<64x16xf32>, vector<128x16xf32> -> vector<128x16xf32>
    %99 = vector.shape_cast %92 : vector<128x16xf32> to vector<8x16x16xf32>
    %100 = vector.shape_cast %95 : vector<128x16xf32> to vector<8x16x16xf32>
    %101 = vector.shape_cast %98 : vector<128x16xf32> to vector<8x16x16xf32>
    "tpu.trace_start"() <{level = 10 : i32, message = "btd,bsd->bts"}> : () -> ()
    %cst_63 = arith.constant dense<0.000000e+00> : vector<8x16x16xf32>
    %102 = tpu.matmul %99, %100, %cst_63 {dimension_numbers = #tpu.dot_dimension_numbers<[2], [2], [1], [1], [0, 0, 0, 1, 1, 1], [0], [0]>} : vector<8x16x16xf32>, vector<8x16x16xf32>, vector<8x16x16xf32> -> vector<8x16x16xf32>
    "tpu.trace_stop"() : () -> ()
    %103 = vector.shape_cast %26 : vector<16x16xf32> to vector<1x16x16xf32>
    %104 = vector.broadcast %103 : vector<1x16x16xf32> to vector<8x16x16xf32>
    %105 = arith.addf %102, %104 : vector<8x16x16xf32>
    %cst_64 = arith.constant dense<0xFF800000> : vector<8x16xf32>
    %106 = vector.multi_reduction <maximumf>, %105, %cst_64 [2] : vector<8x16x16xf32> to vector<8x16xf32>
    %107 = vector.shape_cast %106 : vector<8x16xf32> to vector<8x16x1xf32>
    %108 = vector.broadcast %107 : vector<8x16x1xf32> to vector<8x16x16xf32>
    %109 = arith.subf %105, %108 : vector<8x16x16xf32>
    %110 = math.exp %109 : vector<8x16x16xf32>
    %cst_65 = arith.constant dense<0.000000e+00> : vector<8x16xf32>
    %111 = vector.multi_reduction <add>, %110, %cst_65 [2] : vector<8x16x16xf32> to vector<8x16xf32>
    %112 = vector.shape_cast %111 : vector<8x16xf32> to vector<8x16x1xf32>
    %113 = vector.broadcast %112 : vector<8x16x1xf32> to vector<8x16x16xf32>
    %114 = arith.divf %110, %113 : vector<8x16x16xf32>
    "tpu.trace_start"() <{level = 10 : i32, message = "bts,bsd->btd"}> : () -> ()
    %cst_66 = arith.constant dense<0.000000e+00> : vector<8x16x16xf32>
    %115 = tpu.matmul %114, %101, %cst_66 {dimension_numbers = #tpu.dot_dimension_numbers<[2], [1], [1], [2], [0, 0, 0, 1, 1, 2], [0], [0]>} : vector<8x16x16xf32>, vector<8x16x16xf32>, vector<8x16x16xf32> -> vector<8x16x16xf32>
    "tpu.trace_stop"() : () -> ()
    %116 = vector.shape_cast %115 : vector<8x16x16xf32> to vector<128x16xf32>
    %c2_67 = arith.constant 2 : index
    %c0_68 = arith.constant 0 : index
    %c0_69 = arith.constant 0 : index
    %117 = vector.load %arg8[%c2_67, %c0_68, %c0_69] : memref<4x16x64xf32, #tpu.memory_space<vmem>>, vector<1x16x64xf32>
    %118 = vector.shape_cast %117 : vector<1x16x64xf32> to vector<16x64xf32>
    %cst_70 = arith.constant dense<0.000000e+00> : vector<128x64xf32>
    %119 = tpu.matmul %116, %118, %cst_70 {dimension_numbers = #tpu.dot_dimension_numbers<[1], [0], [0], [1], [0, 0, 1, 1], [], []>} : vector<128x16xf32>, vector<16x64xf32>, vector<128x64xf32> -> vector<128x64xf32>
    %120 = arith.addf %89, %119 : vector<128x64xf32>
    %c3 = arith.constant 3 : index
    %c0_71 = arith.constant 0 : index
    %c0_72 = arith.constant 0 : index
    %121 = vector.load %arg5[%c3, %c0_71, %c0_72] : memref<4x64x16xf32, #tpu.memory_space<vmem>>, vector<1x64x16xf32>
    %122 = vector.shape_cast %121 : vector<1x64x16xf32> to vector<64x16xf32>
    %cst_73 = arith.constant dense<0.000000e+00> : vector<128x16xf32>
    %123 = tpu.matmul %25, %122, %cst_73 {dimension_numbers = #tpu.dot_dimension_numbers<[1], [0], [0], [1], [0, 0, 1, 1], [], []>} : vector<128x64xf32>, vector<64x16xf32>, vector<128x16xf32> -> vector<128x16xf32>
    %c3_74 = arith.constant 3 : index
    %c0_75 = arith.constant 0 : index
    %c0_76 = arith.constant 0 : index
    %124 = vector.load %arg6[%c3_74, %c0_75, %c0_76] : memref<4x64x16xf32, #tpu.memory_space<vmem>>, vector<1x64x16xf32>
    %125 = vector.shape_cast %124 : vector<1x64x16xf32> to vector<64x16xf32>
    %cst_77 = arith.constant dense<0.000000e+00> : vector<128x16xf32>
    %126 = tpu.matmul %25, %125, %cst_77 {dimension_numbers = #tpu.dot_dimension_numbers<[1], [0], [0], [1], [0, 0, 1, 1], [], []>} : vector<128x64xf32>, vector<64x16xf32>, vector<128x16xf32> -> vector<128x16xf32>
    %c3_78 = arith.constant 3 : index
    %c0_79 = arith.constant 0 : index
    %c0_80 = arith.constant 0 : index
    %127 = vector.load %arg7[%c3_78, %c0_79, %c0_80] : memref<4x64x16xf32, #tpu.memory_space<vmem>>, vector<1x64x16xf32>
    %128 = vector.shape_cast %127 : vector<1x64x16xf32> to vector<64x16xf32>
    %cst_81 = arith.constant dense<0.000000e+00> : vector<128x16xf32>
    %129 = tpu.matmul %25, %128, %cst_81 {dimension_numbers = #tpu.dot_dimension_numbers<[1], [0], [0], [1], [0, 0, 1, 1], [], []>} : vector<128x64xf32>, vector<64x16xf32>, vector<128x16xf32> -> vector<128x16xf32>
    %130 = vector.shape_cast %123 : vector<128x16xf32> to vector<8x16x16xf32>
    %131 = vector.shape_cast %126 : vector<128x16xf32> to vector<8x16x16xf32>
    %132 = vector.shape_cast %129 : vector<128x16xf32> to vector<8x16x16xf32>
    "tpu.trace_start"() <{level = 10 : i32, message = "btd,bsd->bts"}> : () -> ()
    %cst_82 = arith.constant dense<0.000000e+00> : vector<8x16x16xf32>
    %133 = tpu.matmul %130, %131, %cst_82 {dimension_numbers = #tpu.dot_dimension_numbers<[2], [2], [1], [1], [0, 0, 0, 1, 1, 1], [0], [0]>} : vector<8x16x16xf32>, vector<8x16x16xf32>, vector<8x16x16xf32> -> vector<8x16x16xf32>
    "tpu.trace_stop"() : () -> ()
    %134 = vector.shape_cast %26 : vector<16x16xf32> to vector<1x16x16xf32>
    %135 = vector.broadcast %134 : vector<1x16x16xf32> to vector<8x16x16xf32>
    %136 = arith.addf %133, %135 : vector<8x16x16xf32>
    %cst_83 = arith.constant dense<0xFF800000> : vector<8x16xf32>
    %137 = vector.multi_reduction <maximumf>, %136, %cst_83 [2] : vector<8x16x16xf32> to vector<8x16xf32>
    %138 = vector.shape_cast %137 : vector<8x16xf32> to vector<8x16x1xf32>
    %139 = vector.broadcast %138 : vector<8x16x1xf32> to vector<8x16x16xf32>
    %140 = arith.subf %136, %139 : vector<8x16x16xf32>
    %141 = math.exp %140 : vector<8x16x16xf32>
    %cst_84 = arith.constant dense<0.000000e+00> : vector<8x16xf32>
    %142 = vector.multi_reduction <add>, %141, %cst_84 [2] : vector<8x16x16xf32> to vector<8x16xf32>
    %143 = vector.shape_cast %142 : vector<8x16xf32> to vector<8x16x1xf32>
    %144 = vector.broadcast %143 : vector<8x16x1xf32> to vector<8x16x16xf32>
    %145 = arith.divf %141, %144 : vector<8x16x16xf32>
    "tpu.trace_start"() <{level = 10 : i32, message = "bts,bsd->btd"}> : () -> ()
    %cst_85 = arith.constant dense<0.000000e+00> : vector<8x16x16xf32>
    %146 = tpu.matmul %145, %132, %cst_85 {dimension_numbers = #tpu.dot_dimension_numbers<[2], [1], [1], [2], [0, 0, 0, 1, 1, 2], [0], [0]>} : vector<8x16x16xf32>, vector<8x16x16xf32>, vector<8x16x16xf32> -> vector<8x16x16xf32>
    "tpu.trace_stop"() : () -> ()
    %147 = vector.shape_cast %146 : vector<8x16x16xf32> to vector<128x16xf32>
    %c3_86 = arith.constant 3 : index
    %c0_87 = arith.constant 0 : index
    %c0_88 = arith.constant 0 : index
    %148 = vector.load %arg8[%c3_86, %c0_87, %c0_88] : memref<4x16x64xf32, #tpu.memory_space<vmem>>, vector<1x16x64xf32>
    %149 = vector.shape_cast %148 : vector<1x16x64xf32> to vector<16x64xf32>
    %cst_89 = arith.constant dense<0.000000e+00> : vector<128x64xf32>
    %150 = tpu.matmul %147, %149, %cst_89 {dimension_numbers = #tpu.dot_dimension_numbers<[1], [0], [0], [1], [0, 0, 1, 1], [], []>} : vector<128x16xf32>, vector<16x64xf32>, vector<128x64xf32> -> vector<128x64xf32>
    %151 = arith.addf %120, %150 : vector<128x64xf32>
    %152 = arith.addf %1, %151 : vector<128x64xf32>
    %c0_90 = arith.constant 0 : index
    %c0_91 = arith.constant 0 : index
    %153 = vector.load %arg9[%c0_90, %c0_91] : memref<1x64xf32, #tpu.memory_space<vmem>>, vector<1x64xf32>
    %154 = vector.broadcast %153 : vector<1x64xf32> to vector<128x64xf32>
    %155 = arith.addf %152, %154 : vector<128x64xf32>
    %c0_92 = arith.constant 0 : index
    %c0_93 = arith.constant 0 : index
    %156 = vector.load %arg10[%c0_92, %c0_93] : memref<1x64xf32, #tpu.memory_space<vmem>>, vector<1x64xf32>
    %c0_94 = arith.constant 0 : index
    %c0_95 = arith.constant 0 : index
    %157 = vector.load %arg11[%c0_94, %c0_95] : memref<1x64xf32, #tpu.memory_space<vmem>>, vector<1x64xf32>
    %cst_96 = arith.constant dense<0.000000e+00> : vector<128xf32>
    %158 = vector.multi_reduction <add>, %155, %cst_96 [1] : vector<128x64xf32> to vector<128xf32>
    %159 = vector.shape_cast %158 : vector<128xf32> to vector<128x1xf32>
    %cst_97 = arith.constant 6.400000e+01 : f32
    %160 = vector.broadcast %cst_97 : f32 to vector<128x1xf32>
    %161 = arith.divf %159, %160 : vector<128x1xf32>
    %162 = vector.broadcast %161 : vector<128x1xf32> to vector<128x64xf32>
    %163 = arith.subf %155, %162 : vector<128x64xf32>
    %164 = arith.mulf %163, %163 : vector<128x64xf32>
    %cst_98 = arith.constant dense<0.000000e+00> : vector<128xf32>
    %165 = vector.multi_reduction <add>, %164, %cst_98 [1] : vector<128x64xf32> to vector<128xf32>
    %166 = vector.shape_cast %165 : vector<128xf32> to vector<128x1xf32>
    %cst_99 = arith.constant 6.400000e+01 : f32
    %167 = vector.broadcast %cst_99 : f32 to vector<128x1xf32>
    %168 = arith.divf %166, %167 : vector<128x1xf32>
    %169 = vector.broadcast %161 : vector<128x1xf32> to vector<128x64xf32>
    %170 = arith.subf %155, %169 : vector<128x64xf32>
    %cst_100 = arith.constant 9.99999974E-6 : f32
    %171 = vector.broadcast %cst_100 : f32 to vector<128x1xf32>
    %172 = arith.addf %168, %171 : vector<128x1xf32>
    %173 = math.rsqrt %172 : vector<128x1xf32>
    %174 = vector.broadcast %173 : vector<128x1xf32> to vector<128x64xf32>
    %175 = arith.mulf %170, %174 : vector<128x64xf32>
    %176 = vector.broadcast %156 : vector<1x64xf32> to vector<128x64xf32>
    %177 = arith.mulf %175, %176 : vector<128x64xf32>
    %178 = vector.broadcast %157 : vector<1x64xf32> to vector<128x64xf32>
    %179 = arith.addf %177, %178 : vector<128x64xf32>
    %c0_101 = arith.constant 0 : index
    %c0_102 = arith.constant 0 : index
    %180 = vector.load %arg12[%c0_101, %c0_102] : memref<64x256xf32, #tpu.memory_space<vmem>>, vector<64x256xf32>
    %cst_103 = arith.constant dense<0.000000e+00> : vector<128x256xf32>
    %181 = tpu.matmul %179, %180, %cst_103 {dimension_numbers = #tpu.dot_dimension_numbers<[1], [0], [0], [1], [0, 0, 1, 1], [], []>} : vector<128x64xf32>, vector<64x256xf32>, vector<128x256xf32> -> vector<128x256xf32>
    %c0_104 = arith.constant 0 : index
    %c0_105 = arith.constant 0 : index
    %182 = vector.load %arg13[%c0_104, %c0_105] : memref<1x256xf32, #tpu.memory_space<vmem>>, vector<1x256xf32>
    %183 = vector.broadcast %182 : vector<1x256xf32> to vector<128x256xf32>
    %184 = arith.addf %181, %183 : vector<128x256xf32>
    %cst_106 = arith.constant 0.000000e+00 : f32
    %185 = vector.broadcast %cst_106 : f32 to vector<128x256xf32>
    %186 = arith.maximumf %184, %185 : vector<128x256xf32>
    %c0_107 = arith.constant 0 : index
    %c0_108 = arith.constant 0 : index
    %187 = vector.load %arg14[%c0_107, %c0_108] : memref<256x64xf32, #tpu.memory_space<vmem>>, vector<256x64xf32>
    %cst_109 = arith.constant dense<0.000000e+00> : vector<128x64xf32>
    %188 = tpu.matmul %186, %187, %cst_109 {dimension_numbers = #tpu.dot_dimension_numbers<[1], [0], [0], [1], [0, 0, 1, 1], [], []>} : vector<128x256xf32>, vector<256x64xf32>, vector<128x64xf32> -> vector<128x64xf32>
    %c0_110 = arith.constant 0 : index
    %c0_111 = arith.constant 0 : index
    %189 = vector.load %arg15[%c0_110, %c0_111] : memref<1x64xf32, #tpu.memory_space<vmem>>, vector<1x64xf32>
    %190 = vector.broadcast %189 : vector<1x64xf32> to vector<128x64xf32>
    %191 = arith.addf %188, %190 : vector<128x64xf32>
    %192 = arith.addf %155, %191 : vector<128x64xf32>
    %193 = vector.shape_cast %192 : vector<128x64xf32> to vector<8x16x64xf32>
    %c0_112 = arith.constant 0 : index
    %c0_113 = arith.constant 0 : index
    %c0_114 = arith.constant 0 : index
    %194 = vector.load %arg16[%c0_112, %c0_113, %c0_114] : memref<8x16x64xf32, #tpu.memory_space<vmem>>, vector<8x16x64xf32>
    tpu.vector_store %arg16[%c0_112, %c0_113, %c0_114], %193 {strides = array<i32>} : memref<8x16x64xf32, #tpu.memory_space<vmem>>, vector<8x16x64xf32>,
    return
  }
  func.func @transform_0(%arg0: i32) -> (i32, i32, i32) {
    %c0_i32 = arith.constant 0 : i32
    %c0_i32_0 = arith.constant 0 : i32
    %c0_i32_1 = arith.constant 0 : i32
    return %arg0, %c0_i32, %c0_i32_0 : i32, i32, i32
  }
  func.func @transform_1(%arg0: i32) -> (i32, i32) {
    %c0_i32 = arith.constant 0 : i32
    %c0_i32_0 = arith.constant 0 : i32
    %c0_i32_1 = arith.constant 0 : i32
    return %c0_i32, %c0_i32_0 : i32, i32
  }
  func.func @transform_2(%arg0: i32) -> (i32, i32) {
    %c0_i32 = arith.constant 0 : i32
    %c0_i32_0 = arith.constant 0 : i32
    %c0_i32_1 = arith.constant 0 : i32
    return %c0_i32, %c0_i32_0 : i32, i32
  }
  func.func @transform_3(%arg0: i32) -> (i32, i32) {
    %c0_i32 = arith.constant 0 : i32
    %c0_i32_0 = arith.constant 0 : i32
    %c0_i32_1 = arith.constant 0 : i32
    return %c0_i32, %c0_i32_0 : i32, i32
  }
  func.func @transform_4(%arg0: i32) -> (i32, i32, i32) {
    %c0_i32 = arith.constant 0 : i32
    %c0_i32_0 = arith.constant 0 : i32
    %c0_i32_1 = arith.constant 0 : i32
    %c0_i32_2 = arith.constant 0 : i32
    return %c0_i32, %c0_i32_0, %c0_i32_1 : i32, i32, i32
  }
  func.func @transform_5(%arg0: i32) -> (i32, i32, i32) {
    %c0_i32 = arith.constant 0 : i32
    %c0_i32_0 = arith.constant 0 : i32
    %c0_i32_1 = arith.constant 0 : i32
    %c0_i32_2 = arith.constant 0 : i32
    return %c0_i32, %c0_i32_0, %c0_i32_1 : i32, i32, i32
  }
  func.func @transform_6(%arg0: i32) -> (i32, i32, i32) {
    %c0_i32 = arith.constant 0 : i32
    %c0_i32_0 = arith.constant 0 : i32
    %c0_i32_1 = arith.constant 0 : i32
    %c0_i32_2 = arith.constant 0 : i32
    return %c0_i32, %c0_i32_0, %c0_i32_1 : i32, i32, i32
  }
  func.func @transform_7(%arg0: i32) -> (i32, i32, i32) {
    %c0_i32 = arith.constant 0 : i32
    %c0_i32_0 = arith.constant 0 : i32
    %c0_i32_1 = arith.constant 0 : i32
    %c0_i32_2 = arith.constant 0 : i32
    return %c0_i32, %c0_i32_0, %c0_i32_1 : i32, i32, i32
  }
  func.func @transform_8(%arg0: i32) -> (i32, i32) {
    %c0_i32 = arith.constant 0 : i32
    %c0_i32_0 = arith.constant 0 : i32
    %c0_i32_1 = arith.constant 0 : i32
    return %c0_i32, %c0_i32_0 : i32, i32
  }
  func.func @transform_9(%arg0: i32) -> (i32, i32) {
    %c0_i32 = arith.constant 0 : i32
    %c0_i32_0 = arith.constant 0 : i32
    %c0_i32_1 = arith.constant 0 : i32
    return %c0_i32, %c0_i32_0 : i32, i32
  }
  func.func @transform_10(%arg0: i32) -> (i32, i32) {
    %c0_i32 = arith.constant 0 : i32
    %c0_i32_0 = arith.constant 0 : i32
    %c0_i32_1 = arith.constant 0 : i32
    return %c0_i32, %c0_i32_0 : i32, i32
  }
  func.func @transform_11(%arg0: i32) -> (i32, i32) {
    %c0_i32 = arith.constant 0 : i32
    %c0_i32_0 = arith.constant 0 : i32
    %c0_i32_1 = arith.constant 0 : i32
    return %c0_i32, %c0_i32_0 : i32, i32
  }
  func.func @transform_12(%arg0: i32) -> (i32, i32) {
    %c0_i32 = arith.constant 0 : i32
    %c0_i32_0 = arith.constant 0 : i32
    %c0_i32_1 = arith.constant 0 : i32
    return %c0_i32, %c0_i32_0 : i32, i32
  }
  func.func @transform_13(%arg0: i32) -> (i32, i32) {
    %c0_i32 = arith.constant 0 : i32
    %c0_i32_0 = arith.constant 0 : i32
    %c0_i32_1 = arith.constant 0 : i32
    return %c0_i32, %c0_i32_0 : i32, i32
  }
  func.func @transform_14(%arg0: i32) -> (i32, i32) {
    %c0_i32 = arith.constant 0 : i32
    %c0_i32_0 = arith.constant 0 : i32
    %c0_i32_1 = arith.constant 0 : i32
    return %c0_i32, %c0_i32_0 : i32, i32
  }
  func.func @transform_15(%arg0: i32) -> (i32, i32, i32) {
    %c0_i32 = arith.constant 0 : i32
    %c0_i32_0 = arith.constant 0 : i32
    %c0_i32_1 = arith.constant 0 : i32
    return %arg0, %c0_i32, %c0_i32_0 : i32, i32, i32
  }
}

</mosaic_0001>

<llo_original>
// kernel: block_forward.1
$region0: #{block_forward.1}
  #allocation0 [shape = 'u32[]', space=smem, size = 0x4, offset = 0x4, fixed_abs, tag = 'smem constant byte address 0x4 - core index']
  #allocation1 [shape = 'u32[144,128]{1,0:T(1,128)}', space=vmem, size = 0x12000, scoped, tag = 'internal scratch']
  %s0 = inlined_call_operand.vmem [shape: f32[8,16,64], index: 0, kind: input, shape index: {}]
  %s1 = inlined_call_operand.vmem [shape: f32[16,16], index: 1, kind: input, shape index: {}]
  %s2 = inlined_call_operand.vmem [shape: f32[1,64], index: 2, kind: input, shape index: {}]
  %s3 = inlined_call_operand.vmem [shape: f32[1,64], index: 3, kind: input, shape index: {}]
  %s4 = inlined_call_operand.vmem [shape: f32[4,64,16], index: 4, kind: input, shape index: {}]
  %s5 = inlined_call_operand.vmem [shape: f32[4,64,16], index: 5, kind: input, shape index: {}]
  %s6 = inlined_call_operand.vmem [shape: f32[4,64,16], index: 6, kind: input, shape index: {}]
  %s7 = inlined_call_operand.vmem [shape: f32[4,16,64], index: 7, kind: input, shape index: {}]
  %s8 = inlined_call_operand.vmem [shape: f32[1,64], index: 8, kind: input, shape index: {}]
  %s9 = inlined_call_operand.vmem [shape: f32[1,64], index: 9, kind: input, shape index: {}]
  %s10 = inlined_call_operand.vmem [shape: f32[1,64], index: 10, kind: input, shape index: {}]
  %s11 = inlined_call_operand.vmem [shape: f32[64,256], index: 11, kind: input, shape index: {}]
  %s12 = inlined_call_operand.vmem [shape: f32[1,256], index: 12, kind: input, shape index: {}]
  %s13 = inlined_call_operand.vmem [shape: f32[256,64], index: 13, kind: input, shape index: {}]
  %s14 = inlined_call_operand.vmem [shape: f32[1,64], index: 14, kind: input, shape index: {}]
  %s15 = inlined_call_operand.hbm [shape: f32[8,16,64], index: 15, kind: output, shape index: {}]
  %s16 = sld [smem:[#allocation0]]
  $region70: #{block_forward.1} parent=0
    _
  %s18 = ssub.s32 1, %s16
  %s19 = scalar_select 0, %s18, %s16
  $region1: #{block_forward.1} parent=0
    #allocation2 [shape = 'u8[65536]{0}', space=vmem, size = 0x10000, scoped, tag = 'output window, operand 0, single buffered']
    #allocation3 [shape = 's32[1]{0}', space=sflag, size = 0x4, scoped, tag = 'scoped memory for block_forward.1']
    %20 = vsyncpa [#allocation3], 0
    // Predicated region
    $region2: #{block_forward.1} parent=1 // pred_check
      _
    $region3: #{block_forward.1} parent=1 // pred_check_branch
      %22 = sbr.rel (0) target = $region5
    $region4: #{block_forward.1} parent=1 // pred_region
      _
    $region5: #{block_forward.1} parent=1 // pred_fallthru
      _
    // Predicated region
    $region6: #{block_forward.1} parent=1 // pred_check
      _
    $region7: #{block_forward.1} parent=1 // pred_check_branch
      %24 = sbr.rel (0) target = $region9
    $region8: #{block_forward.1} parent=1 // pred_region
      _
    $region9: #{block_forward.1} parent=1 // pred_fallthru
      _
    // Predicated region
    $region10: #{block_forward.1} parent=1 // pred_check
      _
    $region11: #{block_forward.1} parent=1 // pred_check_branch
      %26 = sbr.rel (0) target = $region13
    $region12: #{block_forward.1} parent=1 // pred_region
      _
    $region13: #{block_forward.1} parent=1 // pred_fallthru
      _
    // Predicated region
    $region14: #{block_forward.1} parent=1 // pred_check
      _
    $region15: #{block_forward.1} parent=1 // pred_check_branch
      %28 = sbr.rel (0) target = $region17
    $region16: #{block_forward.1} parent=1 // pred_region
      _
    $region17: #{block_forward.1} parent=1 // pred_fallthru
      _
    // Predicated region
    $region18: #{block_forward.1} parent=1 // pred_check
      _
    $region19: #{block_forward.1} parent=1 // pred_check_branch
      %30 = sbr.rel (0) target = $region21
    $region20: #{block_forward.1} parent=1 // pred_region
      _
    $region21: #{block_forward.1} parent=1 // pred_fallthru
      _
    // Predicated region
    $region22: #{block_forward.1} parent=1 // pred_check
      _
    $region23: #{block_forward.1} parent=1 // pred_check_branch
      %32 = sbr.rel (0) target = $region25
    $region24: #{block_forward.1} parent=1 // pred_region
      _
    $region25: #{block_forward.1} parent=1 // pred_fallthru
      _
    // Predicated region
    $region26: #{block_forward.1} parent=1 // pred_check
      _
    $region27: #{block_forward.1} parent=1 // pred_check_branch
      %34 = sbr.rel (0) target = $region29
    $region28: #{block_forward.1} parent=1 // pred_region
      _
    $region29: #{block_forward.1} parent=1 // pred_fallthru
      _
    // Predicated region
    $region30: #{block_forward.1} parent=1 // pred_check
      _
    $region31: #{block_forward.1} parent=1 // pred_check_branch
      %36 = sbr.rel (0) target = $region33
    $region32: #{block_forward.1} parent=1 // pred_region
      _
    $region33: #{block_forward.1} parent=1 // pred_fallthru
      _
    // Predicated region
    $region34: #{block_forward.1} parent=1 // pred_check
      _
    $region35: #{block_forward.1} parent=1 // pred_check_branch
      %38 = sbr.rel (0) target = $region37
    $region36: #{block_forward.1} parent=1 // pred_region
      _
    $region37: #{block_forward.1} parent=1 // pred_fallthru
      _
    // Predicated region
    $region38: #{block_forward.1} parent=1 // pred_check
      _
    $region39: #{block_forward.1} parent=1 // pred_check_branch
      %40 = sbr.rel (0) target = $region41
    $region40: #{block_forward.1} parent=1 // pred_region
      _
    $region41: #{block_forward.1} parent=1 // pred_fallthru
      _
    // Predicated region
    $region42: #{block_forward.1} parent=1 // pred_check
      _
    $region43: #{block_forward.1} parent=1 // pred_check_branch
      %42 = sbr.rel (0) target = $region45
    $region44: #{block_forward.1} parent=1 // pred_region
      _
    $region45: #{block_forward.1} parent=1 // pred_fallthru
      _
    // Predicated region
    $region46: #{block_forward.1} parent=1 // pred_check
      _
    $region47: #{block_forward.1} parent=1 // pred_check_branch
      %44 = sbr.rel (0) target = $region49
    $region48: #{block_forward.1} parent=1 // pred_region
      _
    $region49: #{block_forward.1} parent=1 // pred_fallthru
      _
    // Predicated region
    $region50: #{block_forward.1} parent=1 // pred_check
      _
    $region51: #{block_forward.1} parent=1 // pred_check_branch
      %46 = sbr.rel (0) target = $region53
    $region52: #{block_forward.1} parent=1 // pred_region
      _
    $region53: #{block_forward.1} parent=1 // pred_fallthru
      _
    // Predicated region
    $region54: #{block_forward.1} parent=1 // pred_check
      _
    $region55: #{block_forward.1} parent=1 // pred_check_branch
      %48 = sbr.rel (0) target = $region57
    $region56: #{block_forward.1} parent=1 // pred_region
      _
    $region57: #{block_forward.1} parent=1 // pred_fallthru
      _
    // Predicated region
    $region58: #{block_forward.1} parent=1 // pred_check
      _
    $region59: #{block_forward.1} parent=1 // pred_check_branch
      %50 = sbr.rel (0) target = $region61
    $region60: #{block_forward.1} parent=1 // pred_region
      _
    $region61: #{block_forward.1} parent=1 // pred_fallthru
      _
    %v51 = vld [vmem:[%s0] sm:$0xff]
    %v52 = vld [vmem:[%s0 + $0x8] sm:$0xff]
    %v53 = vld [vmem:[%s0 + $0x10] sm:$0xff]
    %v54 = vld [vmem:[%s0 + $0x18] sm:$0xff]
    %v55 = vld [vmem:[%s0 + $0x20] sm:$0xff]
    %v56 = vld [vmem:[%s0 + $0x28] sm:$0xff]
    %v57 = vld [vmem:[%s0 + $0x30] sm:$0xff]
    %v58 = vld [vmem:[%s0 + $0x38] sm:$0xff]
    %v59 = vld [vmem:[%s0 + $0x40] sm:$0xff]
    %v60 = vld [vmem:[%s0 + $0x48] sm:$0xff]
    %v61 = vld [vmem:[%s0 + $0x50] sm:$0xff]
    %v62 = vld [vmem:[%s0 + $0x58] sm:$0xff]
    %v63 = vld [vmem:[%s0 + $0x60] sm:$0xff]
    %v64 = vld [vmem:[%s0 + $0x68] sm:$0xff]
    %v65 = vld [vmem:[%s0 + $0x70] sm:$0xff]
    %v66 = vld [vmem:[%s0 + $0x78] sm:$0xff]
    %v67 = vld [vmem:[%s2] sm:$0x1]
    %v68 = vld [vmem:[%s3] sm:$0x1]
    %vm69 = vcmask 523264
    %v70 = vsel %vm69, %v51, 0.0
    %71 = vadd.xlane.f32.xlu0 %v70
    %v72 = vpop.xlane.xlu0 %71
    %v73 = vsel %vm69, %v52, 0.0
    %74 = vadd.xlane.f32.xlu0 %v73
    %v75 = vpop.xlane.xlu0 %74
    %v76 = vsel %vm69, %v53, 0.0
    %77 = vadd.xlane.f32.xlu0 %v76
    %v78 = vpop.xlane.xlu0 %77
    %v79 = vsel %vm69, %v54, 0.0
    %80 = vadd.xlane.f32.xlu0 %v79
    %v81 = vpop.xlane.xlu0 %80
    %v82 = vsel %vm69, %v55, 0.0
    %83 = vadd.xlane.f32.xlu0 %v82
    %v84 = vpop.xlane.xlu0 %83
    %v85 = vsel %vm69, %v56, 0.0
    %86 = vadd.xlane.f32.xlu0 %v85
    %v87 = vpop.xlane.xlu0 %86
    %v88 = vsel %vm69, %v57, 0.0
    %89 = vadd.xlane.f32.xlu0 %v88
    %v90 = vpop.xlane.xlu0 %89
    %v91 = vsel %vm69, %v58, 0.0
    %92 = vadd.xlane.f32.xlu0 %v91
    %v93 = vpop.xlane.xlu0 %92
    %v94 = vsel %vm69, %v59, 0.0
    %95 = vadd.xlane.f32.xlu0 %v94
    %v96 = vpop.xlane.xlu0 %95
    %v97 = vsel %vm69, %v60, 0.0
    %98 = vadd.xlane.f32.xlu0 %v97
    %v99 = vpop.xlane.xlu0 %98
    %v100 = vsel %vm69, %v61, 0.0
    %101 = vadd.xlane.f32.xlu0 %v100
    %v102 = vpop.xlane.xlu0 %101
    %v103 = vsel %vm69, %v62, 0.0
    %104 = vadd.xlane.f32.xlu0 %v103
    %v105 = vpop.xlane.xlu0 %104
    %v106 = vsel %vm69, %v63, 0.0
    %107 = vadd.xlane.f32.xlu0 %v106
    %v108 = vpop.xlane.xlu0 %107
    %v109 = vsel %vm69, %v64, 0.0
    %110 = vadd.xlane.f32.xlu0 %v109
    %v111 = vpop.xlane.xlu0 %110
    %v112 = vsel %vm69, %v65, 0.0
    %113 = vadd.xlane.f32.xlu0 %v112
    %v114 = vpop.xlane.xlu0 %113
    %v115 = vsel %vm69, %v66, 0.0
    %116 = vadd.xlane.f32.xlu0 %v115
    %v117 = vpop.xlane.xlu0 %116
    %v118 = vrcp.pop 64.0
    %v119 = vmul.f32 %v72, %v118
    %v120 = vmul.f32 %v75, %v118
    %v121 = vmul.f32 %v78, %v118
    %v122 = vmul.f32 %v81, %v118
    %v123 = vmul.f32 %v84, %v118
    %v124 = vmul.f32 %v87, %v118
    %v125 = vmul.f32 %v90, %v118
    %v126 = vmul.f32 %v93, %v118
    %v127 = vmul.f32 %v96, %v118
    %v128 = vmul.f32 %v99, %v118
    %v129 = vmul.f32 %v102, %v118
    %v130 = vmul.f32 %v105, %v118
    %v131 = vmul.f32 %v108, %v118
    %v132 = vmul.f32 %v111, %v118
    %v133 = vmul.f32 %v114, %v118
    %v134 = vmul.f32 %v117, %v118
    %v135 = vsub.f32 %v51, %v119
    %v136 = vsub.f32 %v52, %v120
    %v137 = vsub.f32 %v53, %v121
    %v138 = vsub.f32 %v54, %v122
    %v139 = vsub.f32 %v55, %v123
    %v140 = vsub.f32 %v56, %v124
    %v141 = vsub.f32 %v57, %v125
    %v142 = vsub.f32 %v58, %v126
    %v143 = vsub.f32 %v59, %v127
    %v144 = vsub.f32 %v60, %v128
    %v145 = vsub.f32 %v61, %v129
    %v146 = vsub.f32 %v62, %v130
    %v147 = vsub.f32 %v63, %v131
    %v148 = vsub.f32 %v64, %v132
    %v149 = vsub.f32 %v65, %v133
    %v150 = vsub.f32 %v66, %v134
    %v151 = vmul.f32 %v135, %v135
    %v152 = vmul.f32 %v136, %v136
    %v153 = vmul.f32 %v137, %v137
    %v154 = vmul.f32 %v138, %v138
    %v155 = vmul.f32 %v139, %v139
    %v156 = vmul.f32 %v140, %v140
    %v157 = vmul.f32 %v141, %v141
    %v158 = vmul.f32 %v142, %v142
    %v159 = vmul.f32 %v143, %v143
    %v160 = vmul.f32 %v144, %v144
    %v161 = vmul.f32 %v145, %v145
    %v162 = vmul.f32 %v146, %v146
    %v163 = vmul.f32 %v147, %v147
    %v164 = vmul.f32 %v148, %v148
    %v165 = vmul.f32 %v149, %v149
    %v166 = vmul.f32 %v150, %v150
    %v167 = vsel %vm69, %v151, 0.0
    %168 = vadd.xlane.f32.xlu0 %v167
    %v169 = vpop.xlane.xlu0 %168
    %v170 = vsel %vm69, %v152, 0.0
    %171 = vadd.xlane.f32.xlu0 %v170
    %v172 = vpop.xlane.xlu0 %171
    %v173 = vsel %vm69, %v153, 0.0
    %174 = vadd.xlane.f32.xlu0 %v173
    %v175 = vpop.xlane.xlu0 %174
    %v176 = vsel %vm69, %v154, 0.0
    %177 = vadd.xlane.f32.xlu0 %v176
    %v178 = vpop.xlane.xlu0 %177
    %v179 = vsel %vm69, %v155, 0.0
    %180 = vadd.xlane.f32.xlu0 %v179
    %v181 = vpop.xlane.xlu0 %180
    %v182 = vsel %vm69, %v156, 0.0
    %183 = vadd.xlane.f32.xlu0 %v182
    %v184 = vpop.xlane.xlu0 %183
    %v185 = vsel %vm69, %v157, 0.0
    %186 = vadd.xlane.f32.xlu0 %v185
    %v187 = vpop.xlane.xlu0 %186
    %v188 = vsel %vm69, %v158, 0.0
    %189 = vadd.xlane.f32.xlu0 %v188
    %v190 = vpop.xlane.xlu0 %189
    %v191 = vsel %vm69, %v159, 0.0
    %192 = vadd.xlane.f32.xlu0 %v191
    %v193 = vpop.xlane.xlu0 %192
    %v194 = vsel %vm69, %v160, 0.0
    %195 = vadd.xlane.f32.xlu0 %v194
    %v196 = vpop.xlane.xlu0 %195
    %v197 = vsel %vm69, %v161, 0.0
    %198 = vadd.xlane.f32.xlu0 %v197
    %v199 = vpop.xlane.xlu0 %198
    %v200 = vsel %vm69, %v162, 0.0
    %201 = vadd.xlane.f32.xlu0 %v200
    %v202 = vpop.xlane.xlu0 %201
    %v203 = vsel %vm69, %v163, 0.0
    %204 = vadd.xlane.f32.xlu0 %v203
    %v205 = vpop.xlane.xlu0 %204
    %v206 = vsel %vm69, %v164, 0.0
    %207 = vadd.xlane.f32.xlu0 %v206
    %v208 = vpop.xlane.xlu0 %207
    %v209 = vsel %vm69, %v165, 0.0
    %210 = vadd.xlane.f32.xlu0 %v209
    %v211 = vpop.xlane.xlu0 %210
    %v212 = vsel %vm69, %v166, 0.0
    %213 = vadd.xlane.f32.xlu0 %v212
    %v214 = vpop.xlane.xlu0 %213
    %v215 = vmul.f32 %v169, %v118
    %v216 = vmul.f32 %v172, %v118
    %v217 = vmul.f32 %v175, %v118
    %v218 = vmul.f32 %v178, %v118
    %v219 = vmul.f32 %v181, %v118
    %v220 = vmul.f32 %v184, %v118
    %v221 = vmul.f32 %v187, %v118
    %v222 = vmul.f32 %v190, %v118
    %v223 = vmul.f32 %v193, %v118
    %v224 = vmul.f32 %v196, %v118
    %v225 = vmul.f32 %v199, %v118
    %v226 = vmul.f32 %v202, %v118
    %v227 = vmul.f32 %v205, %v118
    %v228 = vmul.f32 %v208, %v118
    %v229 = vmul.f32 %v211, %v118
    %v230 = vmul.f32 %v214, %v118
    %v231 = vadd.f32 %v215, 1e-05
    %v232 = vadd.f32 %v216, 1e-05
    %v233 = vadd.f32 %v217, 1e-05
    %v234 = vadd.f32 %v218, 1e-05
    %v235 = vadd.f32 %v219, 1e-05
    %v236 = vadd.f32 %v220, 1e-05
    %v237 = vadd.f32 %v221, 1e-05
    %v238 = vadd.f32 %v222, 1e-05
    %v239 = vadd.f32 %v223, 1e-05
    %v240 = vadd.f32 %v224, 1e-05
    %v241 = vadd.f32 %v225, 1e-05
    %v242 = vadd.f32 %v226, 1e-05
    %v243 = vadd.f32 %v227, 1e-05
    %v244 = vadd.f32 %v228, 1e-05
    %v245 = vadd.f32 %v229, 1e-05
    %v246 = vadd.f32 %v230, 1e-05
    %v247 = vrsqrt.pop %v231
    %v248 = vrsqrt.pop %v232
    %v249 = vrsqrt.pop %v233
    %v250 = vrsqrt.pop %v234
    %v251 = vrsqrt.pop %v235
    %v252 = vrsqrt.pop %v236
    %v253 = vrsqrt.pop %v237
    %v254 = vrsqrt.pop %v238
    %v255 = vrsqrt.pop %v239
    %v256 = vrsqrt.pop %v240
    %v257 = vrsqrt.pop %v241
    %v258 = vrsqrt.pop %v242
    %v259 = vrsqrt.pop %v243
    %v260 = vrsqrt.pop %v244
    %v261 = vrsqrt.pop %v245
    %v262 = vrsqrt.pop %v246
    %v263 = vmul.f32 %v135, %v247
    %v264 = vmul.f32 %v136, %v248
    %v265 = vmul.f32 %v137, %v249
    %v266 = vmul.f32 %v138, %v250
    %v267 = vmul.f32 %v139, %v251
    %v268 = vmul.f32 %v140, %v252
    %v269 = vmul.f32 %v141, %v253
    %v270 = vmul.f32 %v142, %v254
    %v271 = vmul.f32 %v143, %v255
    %v272 = vmul.f32 %v144, %v256
    %v273 = vmul.f32 %v145, %v257
    %v274 = vmul.f32 %v146, %v258
    %v275 = vmul.f32 %v147, %v259
    %v276 = vmul.f32 %v148, %v260
    %v277 = vmul.f32 %v149, %v261
    %v278 = vmul.f32 %v150, %v262
    %v280 = vlaneseq
    %v281 = vshrl.u32 %v280, 7
    %v282 = vsub.s32 0, %v281
    %v283 = vrot.slane %v67, %v282
    %v285 = vmul.f32 %v263, %v283
    %v286 = vmul.f32 %v264, %v283
    %v287 = vmul.f32 %v265, %v283
    %v288 = vmul.f32 %v266, %v283
    %v289 = vmul.f32 %v267, %v283
    %v290 = vmul.f32 %v268, %v283
    %v291 = vmul.f32 %v269, %v283
    %v292 = vmul.f32 %v270, %v283
    %v293 = vmul.f32 %v271, %v283
    %v294 = vmul.f32 %v272, %v283
    %v295 = vmul.f32 %v273, %v283
    %v296 = vmul.f32 %v274, %v283
    %v297 = vmul.f32 %v275, %v283
    %v298 = vmul.f32 %v276, %v283
    %v299 = vmul.f32 %v277, %v283
    %v300 = vmul.f32 %v278, %v283
    %v302 = vlaneseq
    %v303 = vshrl.u32 %v302, 7
    %v304 = vsub.s32 0, %v303
    %v305 = vrot.slane %v68, %v304
    %v307 = vadd.f32 %v285, %v305
    %v308 = vadd.f32 %v286, %v305
    %v309 = vadd.f32 %v287, %v305
    %v310 = vadd.f32 %v288, %v305
    %v311 = vadd.f32 %v289, %v305
    %v312 = vadd.f32 %v290, %v305
    %v313 = vadd.f32 %v291, %v305
    %v314 = vadd.f32 %v292, %v305
    %v315 = vadd.f32 %v293, %v305
    %v316 = vadd.f32 %v294, %v305
    %v317 = vadd.f32 %v295, %v305
    %v318 = vadd.f32 %v296, %v305
    %v319 = vadd.f32 %v297, %v305
    %v320 = vadd.f32 %v298, %v305
    %v321 = vadd.f32 %v299, %v305
    %v322 = vadd.f32 %v300, %v305
    %v323 = vld [vmem:[%s1] sm:$0xff]
    %v324 = vld [vmem:[%s1 + $0x8] sm:$0xff]
    %v325 = vld [vmem:[%s4] sm:$0xff]
    %v326 = vld [vmem:[%s4 + $0x8] sm:$0xff]
    %v327 = vld [vmem:[%s4 + $0x10] sm:$0xff]
    %v328 = vld [vmem:[%s4 + $0x18] sm:$0xff]
    %v329 = vld [vmem:[%s4 + $0x20] sm:$0xff]
    %v330 = vld [vmem:[%s4 + $0x28] sm:$0xff]
    %v331 = vld [vmem:[%s4 + $0x30] sm:$0xff]
    %v332 = vld [vmem:[%s4 + $0x38] sm:$0xff]
    %v334 = vsel %vm69, %v307, 0
    %v337 = vsel %vm69, %v308, 0
    %v340 = vsel %vm69, %v309, 0
    %v343 = vsel %vm69, %v310, 0
    %v346 = vsel %vm69, %v311, 0
    %v349 = vsel %vm69, %v312, 0
    %v352 = vsel %vm69, %v313, 0
    %v355 = vsel %vm69, %v314, 0
    %v358 = vsel %vm69, %v315, 0
    %v361 = vsel %vm69, %v316, 0
    %v364 = vsel %vm69, %v317, 0
    %v367 = vsel %vm69, %v318, 0
    %v370 = vsel %vm69, %v319, 0
    %v373 = vsel %vm69, %v320, 0
    %v376 = vsel %vm69, %v321, 0
    %v379 = vsel %vm69, %v322, 0
    %381 = vmatprep.subr.mxu0 0.0
    %382 = vmatpush1.msra.mxu0 %v325
    %383 = vmatprep.subr.mxu0 0.0
    %384 = vmatpush1.msra.mxu0 %v326
    %385 = vmatprep.subr.mxu0 0.0
    %386 = vmatpush1.msra.mxu0 %v327
    %387 = vmatprep.subr.mxu0 0.0
    %388 = vmatpush1.msra.mxu0 %v328
    %389 = vmatprep.subr.mxu0 0.0
    %390 = vmatpush1.msra.mxu0 %v329
    %391 = vmatprep.subr.mxu0 0.0
    %392 = vmatpush1.msra.mxu0 %v330
    %393 = vmatprep.subr.mxu0 0.0
    %394 = vmatpush1.msra.mxu0 %v331
    %395 = vmatprep.subr.mxu0 0.0
    %396 = vmatpush1.msra.mxu0 %v332
    %397 = vmatprep.subr.mxu0 0.0
    %398 = vmatpush1.msra.mxu0 0.0
    %399 = vmatprep.subr.mxu0 0.0
    %400 = vmatpush1.msra.mxu0 0.0
    %401 = vmatprep.subr.mxu0 0.0
    %402 = vmatpush1.msra.mxu0 0.0
    %403 = vmatprep.subr.mxu0 0.0
    %404 = vmatpush1.msra.mxu0 0.0
    %405 = vmatprep.subr.mxu0 0.0
    %406 = vmatpush1.msra.mxu0 0.0
    %407 = vmatprep.subr.mxu0 0.0
    %408 = vmatpush1.msra.mxu0 0.0
    %409 = vmatprep.subr.mxu0 0.0
    %410 = vmatpush1.msra.mxu0 0.0
    %411 = vmatprep.subr.mxu0 0.0
    %412 = vmatpush1.msra.mxu0 0.0
    %413 = vmatprep.subr.mxu0 0.0
    %414 = vmatpush1.msra.mxu0 0.0
    %415 = vmatprep.subr.mxu0 0.0
    %416 = vmatpush1.msra.mxu0 0.0
    %417 = vmatprep.subr.mxu0 0.0
    %418 = vmatpush1.msra.mxu0 0.0
    %419 = vmatprep.subr.mxu0 0.0
    %420 = vmatpush1.msra.mxu0 0.0
    %421 = vmatprep.subr.mxu0 0.0
    %422 = vmatpush1.msra.mxu0 0.0
    %423 = vmatprep.subr.mxu0 0.0
    %424 = vmatpush1.msra.mxu0 0.0
    %425 = vmatprep.subr.mxu0 0.0
    %426 = vmatpush1.msra.mxu0 0.0
    %427 = vmatprep.subr.mxu0 0.0
    %428 = vmatpush1.msra.mxu0 0.0
    %429 = vmatprep.subr.mxu0 0.0
    %430 = vmatpush1.msra.mxu0 0.0
    %431 = vmatprep.subr.mxu0 0.0
    %432 = vmatpush1.msra.mxu0 0.0
    %433 = vmatprep.subr.mxu0 0.0
    %434 = vmatpush1.msra.mxu0 0.0
    %435 = vmatprep.subr.mxu0 0.0
    %436 = vmatpush1.msra.mxu0 0.0
    %437 = vmatprep.subr.mxu0 0.0
    %438 = vmatpush1.msra.mxu0 0.0
    %439 = vmatprep.subr.mxu0 0.0
    %440 = vmatpush1.msra.mxu0 0.0
    %441 = vmatprep.subr.mxu0 0.0
    %442 = vmatpush1.msra.mxu0 0.0
    %443 = vmatprep.subr.mxu0 0.0
    %444 = vmatpush1.msra.mxu0 0.0
    %445 = vmatprep.mubr.f32.mxu0 0.0
    %446 = vmatmul.mubr.f32.gmra.mrb[0].mxu0 %v334
    %v447 = vpop.f32.mrb[0].mxu0
    %v448 = vadd.f32 0.0, %v447
    %v449 = vpop.f32.mrb[0].mxu0
    %450 = vmatprep.mubr.f32.mxu0 0.0
    %451 = vmatmul.mubr.f32.gmra.mrb[0].mxu0 %v337
    %v452 = vpop.f32.mrb[0].mxu0
    %v453 = vadd.f32 0.0, %v452
    %v454 = vpop.f32.mrb[0].mxu0
    %455 = vmatprep.mubr.f32.mxu0 0.0
    %456 = vmatmul.mubr.f32.gmra.mrb[0].mxu0 %v340
    %v457 = vpop.f32.mrb[0].mxu0
    %v458 = vadd.f32 0.0, %v457
    %v459 = vpop.f32.mrb[0].mxu0
    %460 = vmatprep.mubr.f32.mxu0 0.0
    %461 = vmatmul.mubr.f32.gmra.mrb[0].mxu0 %v343
    %v462 = vpop.f32.mrb[0].mxu0
    %v463 = vadd.f32 0.0, %v462
    %v464 = vpop.f32.mrb[0].mxu0
    %465 = vmatprep.mubr.f32.mxu0 0.0
    %466 = vmatmul.mubr.f32.gmra.mrb[0].mxu0 %v346
    %v467 = vpop.f32.mrb[0].mxu0
    %v468 = vadd.f32 0.0, %v467
    %v469 = vpop.f32.mrb[0].mxu0
    %470 = vmatprep.mubr.f32.mxu0 0.0
    %471 = vmatmul.mubr.f32.gmra.mrb[0].mxu0 %v349
    %v472 = vpop.f32.mrb[0].mxu0
    %v473 = vadd.f32 0.0, %v472
    %v474 = vpop.f32.mrb[0].mxu0
    %475 = vmatprep.mubr.f32.mxu0 0.0
    %476 = vmatmul.mubr.f32.gmra.mrb[0].mxu0 %v352
    %v477 = vpop.f32.mrb[0].mxu0
    %v478 = vadd.f32 0.0, %v477
    %v479 = vpop.f32.mrb[0].mxu0
    %480 = vmatprep.mubr.f32.mxu0 0.0
    %481 = vmatmul.mubr.f32.gmra.mrb[0].mxu0 %v355
    %v482 = vpop.f32.mrb[0].mxu0
    %v483 = vadd.f32 0.0, %v482
    %v484 = vpop.f32.mrb[0].mxu0
    %485 = vmatprep.mubr.f32.mxu0 0.0
    %486 = vmatmul.mubr.f32.gmra.mrb[0].mxu0 %v358
    %v487 = vpop.f32.mrb[0].mxu0
    %v488 = vadd.f32 0.0, %v487
    %v489 = vpop.f32.mrb[0].mxu0
    %490 = vmatprep.mubr.f32.mxu0 0.0
    %491 = vmatmul.mubr.f32.gmra.mrb[0].mxu0 %v361
    %v492 = vpop.f32.mrb[0].mxu0
    %v493 = vadd.f32 0.0, %v492
    %v494 = vpop.f32.mrb[0].mxu0
    %495 = vmatprep.mubr.f32.mxu0 0.0
    %496 = vmatmul.mubr.f32.gmra.mrb[0].mxu0 %v364
    %v497 = vpop.f32.mrb[0].mxu0
    %v498 = vadd.f32 0.0, %v497
    %v499 = vpop.f32.mrb[0].mxu0
    %500 = vmatprep.mubr.f32.mxu0 0.0
    %501 = vmatmul.mubr.f32.gmra.mrb[0].mxu0 %v367
    %v502 = vpop.f32.mrb[0].mxu0
    %v503 = vadd.f32 0.0, %v502
    %v504 = vpop.f32.mrb[0].mxu0
    %505 = vmatprep.mubr.f32.mxu0 0.0
    %506 = vmatmul.mubr.f32.gmra.mrb[0].mxu0 %v370
    %v507 = vpop.f32.mrb[0].mxu0
    %v508 = vadd.f32 0.0, %v507
    %v509 = vpop.f32.mrb[0].mxu0
    %510 = vmatprep.mubr.f32.mxu0 0.0
    %511 = vmatmul.mubr.f32.gmra.mrb[0].mxu0 %v373
    %v512 = vpop.f32.mrb[0].mxu0
    %v513 = vadd.f32 0.0, %v512
    %v514 = vpop.f32.mrb[0].mxu0
    %515 = vmatprep.mubr.f32.mxu0 0.0
    %516 = vmatmul.mubr.f32.gmra.mrb[0].mxu0 %v376
    %v517 = vpop.f32.mrb[0].mxu0
    %v518 = vadd.f32 0.0, %v517
    %v519 = vpop.f32.mrb[0].mxu0
    %520 = vmatprep.mubr.f32.mxu0 0.0
    %521 = vmatmul.mubr.f32.gmra.mrb[0].mxu0 %v379
    %v522 = vpop.f32.mrb[0].mxu0
    %v523 = vadd.f32 0.0, %v522
    %v524 = vpop.f32.mrb[0].mxu0
    %525 = vdwg.mxu0
    %v526 = vld [vmem:[%s5] sm:$0xff]
    %v527 = vld [vmem:[%s5 + $0x8] sm:$0xff]
    %v528 = vld [vmem:[%s5 + $0x10] sm:$0xff]
    %v529 = vld [vmem:[%s5 + $0x18] sm:$0xff]
    %v530 = vld [vmem:[%s5 + $0x20] sm:$0xff]
    %v531 = vld [vmem:[%s5 + $0x28] sm:$0xff]
    %v532 = vld [vmem:[%s5 + $0x30] sm:$0xff]
    %v533 = vld [vmem:[%s5 + $0x38] sm:$0xff]
    %534 = vmatprep.subr.mxu0 0.0
    %535 = vmatpush1.msra.mxu0 %v526
    %536 = vmatprep.subr.mxu0 0.0
    %537 = vmatpush1.msra.mxu0 %v527
    %538 = vmatprep.subr.mxu0 0.0
    %539 = vmatpush1.msra.mxu0 %v528
    %540 = vmatprep.subr.mxu0 0.0
    %541 = vmatpush1.msra.mxu0 %v529
    %542 = vmatprep.subr.mxu0 0.0
    %543 = vmatpush1.msra.mxu0 %v530
    %544 = vmatprep.subr.mxu0 0.0
    %545 = vmatpush1.msra.mxu0 %v531
    %546 = vmatprep.subr.mxu0 0.0
    %547 = vmatpush1.msra.mxu0 %v532
    %548 = vmatprep.subr.mxu0 0.0
    %549 = vmatpush1.msra.mxu0 %v533
    %550 = vmatprep.subr.mxu0 0.0
    %551 = vmatpush1.msra.mxu0 0.0
    %552 = vmatprep.subr.mxu0 0.0
    %553 = vmatpush1.msra.mxu0 0.0
    %554 = vmatprep.subr.mxu0 0.0
    %555 = vmatpush1.msra.mxu0 0.0
    %556 = vmatprep.subr.mxu0 0.0
    %557 = vmatpush1.msra.mxu0 0.0
    %558 = vmatprep.subr.mxu0 0.0
    %559 = vmatpush1.msra.mxu0 0.0
    %560 = vmatprep.subr.mxu0 0.0
    %561 = vmatpush1.msra.mxu0 0.0
    %562 = vmatprep.subr.mxu0 0.0
    %563 = vmatpush1.msra.mxu0 0.0
    %564 = vmatprep.subr.mxu0 0.0
    %565 = vmatpush1.msra.mxu0 0.0
    %566 = vmatprep.subr.mxu0 0.0
    %567 = vmatpush1.msra.mxu0 0.0
    %568 = vmatprep.subr.mxu0 0.0
    %569 = vmatpush1.msra.mxu0 0.0
    %570 = vmatprep.subr.mxu0 0.0
    %571 = vmatpush1.msra.mxu0 0.0
    %572 = vmatprep.subr.mxu0 0.0
    %573 = vmatpush1.msra.mxu0 0.0
    %574 = vmatprep.subr.mxu0 0.0
    %575 = vmatpush1.msra.mxu0 0.0
    %576 = vmatprep.subr.mxu0 0.0
    %577 = vmatpush1.msra.mxu0 0.0
    %578 = vmatprep.subr.mxu0 0.0
    %579 = vmatpush1.msra.mxu0 0.0
    %580 = vmatprep.subr.mxu0 0.0
    %581 = vmatpush1.msra.mxu0 0.0
    %582 = vmatprep.subr.mxu0 0.0
    %583 = vmatpush1.msra.mxu0 0.0
    %584 = vmatprep.subr.mxu0 0.0
    %585 = vmatpush1.msra.mxu0 0.0
    %586 = vmatprep.subr.mxu0 0.0
    %587 = vmatpush1.msra.mxu0 0.0
    %588 = vmatprep.subr.mxu0 0.0
    %589 = vmatpush1.msra.mxu0 0.0
    %590 = vmatprep.subr.mxu0 0.0
    %591 = vmatpush1.msra.mxu0 0.0
    %592 = vmatprep.subr.mxu0 0.0
    %593 = vmatpush1.msra.mxu0 0.0
    %594 = vmatprep.subr.mxu0 0.0
    %595 = vmatpush1.msra.mxu0 0.0
    %596 = vmatprep.subr.mxu0 0.0
    %597 = vmatpush1.msra.mxu0 0.0
    %598 = vmatprep.mubr.f32.mxu0 0.0
    %599 = vmatmul.mubr.f32.gmra.mrb[0].mxu0 %v334
    %v600 = vpop.f32.mrb[0].mxu0
    %v601 = vadd.f32 0.0, %v600
    %v602 = vpop.f32.mrb[0].mxu0
    %603 = vmatprep.mubr.f32.mxu0 0.0
    %604 = vmatmul.mubr.f32.gmra.mrb[0].mxu0 %v337
    %v605 = vpop.f32.mrb[0].mxu0
    %v606 = vadd.f32 0.0, %v605
    %v607 = vpop.f32.mrb[0].mxu0
    %608 = vmatprep.mubr.f32.mxu0 0.0
    %609 = vmatmul.mubr.f32.gmra.mrb[0].mxu0 %v340
    %v610 = vpop.f32.mrb[0].mxu0
    %v611 = vadd.f32 0.0, %v610
    %v612 = vpop.f32.mrb[0].mxu0
    %613 = vmatprep.mubr.f32.mxu0 0.0
    %614 = vmatmul.mubr.f32.gmra.mrb[0].mxu0 %v343
    %v615 = vpop.f32.mrb[0].mxu0
    %v616 = vadd.f32 0.0, %v615
    %v617 = vpop.f32.mrb[0].mxu0
    %618 = vmatprep.mubr.f32.mxu0 0.0
    %619 = vmatmul.mubr.f32.gmra.mrb[0].mxu0 %v346
    %v620 = vpop.f32.mrb[0].mxu0
    %v621 = vadd.f32 0.0, %v620
    %v622 = vpop.f32.mrb[0].mxu0
    %623 = vmatprep.mubr.f32.mxu0 0.0
    %624 = vmatmul.mubr.f32.gmra.mrb[0].mxu0 %v349
    %v625 = vpop.f32.mrb[0].mxu0
    %v626 = vadd.f32 0.0, %v625
    %v627 = vpop.f32.mrb[0].mxu0
    %628 = vmatprep.mubr.f32.mxu0 0.0
    %629 = vmatmul.mubr.f32.gmra.mrb[0].mxu0 %v352
    %v630 = vpop.f32.mrb[0].mxu0
    %v631 = vadd.f32 0.0, %v630
    %v632 = vpop.f32.mrb[0].mxu0
    %633 = vmatprep.mubr.f32.mxu0 0.0
    %634 = vmatmul.mubr.f32.gmra.mrb[0].mxu0 %v355
    %v635 = vpop.f32.mrb[0].mxu0
    %v636 = vadd.f32 0.0, %v635
    %v637 = vpop.f32.mrb[0].mxu0
    %638 = vmatprep.mubr.f32.mxu0 0.0
    %639 = vmatmul.mubr.f32.gmra.mrb[0].mxu0 %v358
    %v640 = vpop.f32.mrb[0].mxu0
    %v641 = vadd.f32 0.0, %v640
    %v642 = vpop.f32.mrb[0].mxu0
    %643 = vmatprep.mubr.f32.mxu0 0.0
    %644 = vmatmul.mubr.f32.gmra.mrb[0].mxu0 %v361
    %v645 = vpop.f32.mrb[0].mxu0
    %v646 = vadd.f32 0.0, %v645
    %v647 = vpop.f32.mrb[0].mxu0
    %648 = vmatprep.mubr.f32.mxu0 0.0
    %649 = vmatmul.mubr.f32.gmra.mrb[0].mxu0 %v364
    %v650 = vpop.f32.mrb[0].mxu0
    %v651 = vadd.f32 0.0, %v650
    %v652 = vpop.f32.mrb[0].mxu0
    %653 = vmatprep.mubr.f32.mxu0 0.0
    %654 = vmatmul.mubr.f32.gmra.mrb[0].mxu0 %v367
    %v655 = vpop.f32.mrb[0].mxu0
    %v656 = vadd.f32 0.0, %v655
    %v657 = vpop.f32.mrb[0].mxu0
    %658 = vmatprep.mubr.f32.mxu0 0.0
    %659 = vmatmul.mubr.f32.gmra.mrb[0].mxu0 %v370
    %v660 = vpop.f32.mrb[0].mxu0
    %v661 = vadd.f32 0.0, %v660
    %v662 = vpop.f32.mrb[0].mxu0
    %663 = vmatprep.mubr.f32.mxu0 0.0
    %664 = vmatmul.mubr.f32.gmra.mrb[0].mxu0 %v373
    %v665 = vpop.f32.mrb[0].mxu0
    %v666 = vadd.f32 0.0, %v665
    %v667 = vpop.f32.mrb[0].mxu0
    %668 = vmatprep.mubr.f32.mxu0 0.0
    %669 = vmatmul.mubr.f32.gmra.mrb[0].mxu0 %v376
    %v670 = vpop.f32.mrb[0].mxu0
    %v671 = vadd.f32 0.0, %v670
    %v672 = vpop.f32.mrb[0].mxu0
    %673 = vmatprep.mubr.f32.mxu0 0.0
    %674 = vmatmul.mubr.f32.gmra.mrb[0].mxu0 %v379
    %v675 = vpop.f32.mrb[0].mxu0
    %v676 = vadd.f32 0.0, %v675
    %v677 = vpop.f32.mrb[0].mxu0
    %678 = vdwg.mxu0
    %v679 = vld [vmem:[%s6] sm:$0xff]
    %v680 = vld [vmem:[%s6 + $0x8] sm:$0xff]
    %v681 = vld [vmem:[%s6 + $0x10] sm:$0xff]
    %v682 = vld [vmem:[%s6 + $0x18] sm:$0xff]
    %v683 = vld [vmem:[%s6 + $0x20] sm:$0xff]
    %v684 = vld [vmem:[%s6 + $0x28] sm:$0xff]
    %v685 = vld [vmem:[%s6 + $0x30] sm:$0xff]
    %v686 = vld [vmem:[%s6 + $0x38] sm:$0xff]
    %687 = vmatprep.subr.mxu0 0.0
    %688 = vmatpush1.msra.mxu0 %v679
    %689 = vmatprep.subr.mxu0 0.0
    %690 = vmatpush1.msra.mxu0 %v680
    %691 = vmatprep.subr.mxu0 0.0
    %692 = vmatpush1.msra.mxu0 %v681
    %693 = vmatprep.subr.mxu0 0.0
    %694 = vmatpush1.msra.mxu0 %v682
    %695 = vmatprep.subr.mxu0 0.0
    %696 = vmatpush1.msra.mxu0 %v683
    %697 = vmatprep.subr.mxu0 0.0
    %698 = vmatpush1.msra.mxu0 %v684
    %699 = vmatprep.subr.mxu0 0.0
    %700 = vmatpush1.msra.mxu0 %v685
    %701 = vmatprep.subr.mxu0 0.0
    %702 = vmatpush1.msra.mxu0 %v686
    %703 = vmatprep.subr.mxu0 0.0
    %704 = vmatpush1.msra.mxu0 0.0
    %705 = vmatprep.subr.mxu0 0.0
    %706 = vmatpush1.msra.mxu0 0.0
    %707 = vmatprep.subr.mxu0 0.0
    %708 = vmatpush1.msra.mxu0 0.0
    %709 = vmatprep.subr.mxu0 0.0
    %710 = vmatpush1.msra.mxu0 0.0
    %711 = vmatprep.subr.mxu0 0.0
    %712 = vmatpush1.msra.mxu0 0.0
    %713 = vmatprep.subr.mxu0 0.0
    %714 = vmatpush1.msra.mxu0 0.0
    %715 = vmatprep.subr.mxu0 0.0
    %716 = vmatpush1.msra.mxu0 0.0
    %717 = vmatprep.subr.mxu0 0.0
    %718 = vmatpush1.msra.mxu0 0.0
    %719 = vmatprep.subr.mxu0 0.0
    %720 = vmatpush1.msra.mxu0 0.0
    %721 = vmatprep.subr.mxu0 0.0
    %722 = vmatpush1.msra.mxu0 0.0
    %723 = vmatprep.subr.mxu0 0.0
    %724 = vmatpush1.msra.mxu0 0.0
    %725 = vmatprep.subr.mxu0 0.0
    %726 = vmatpush1.msra.mxu0 0.0
    %727 = vmatprep.subr.mxu0 0.0
    %728 = vmatpush1.msra.mxu0 0.0
    %729 = vmatprep.subr.mxu0 0.0
    %730 = vmatpush1.msra.mxu0 0.0
    %731 = vmatprep.subr.mxu0 0.0
    %732 = vmatpush1.msra.mxu0 0.0
    %733 = vmatprep.subr.mxu0 0.0
    %734 = vmatpush1.msra.mxu0 0.0
    %735 = vmatprep.subr.mxu0 0.0
    %736 = vmatpush1.msra.mxu0 0.0
    %737 = vmatprep.subr.mxu0 0.0
    %738 = vmatpush1.msra.mxu0 0.0
    %739 = vmatprep.subr.mxu0 0.0
    %740 = vmatpush1.msra.mxu0 0.0
    %741 = vmatprep.subr.mxu0 0.0
    %742 = vmatpush1.msra.mxu0 0.0
    %743 = vmatprep.subr.mxu0 0.0
    %744 = vmatpush1.msra.mxu0 0.0
    %745 = vmatprep.subr.mxu0 0.0
    %746 = vmatpush1.msra.mxu0 0.0
    %747 = vmatprep.subr.mxu0 0.0
    %748 = vmatpush1.msra.mxu0 0.0
    %749 = vmatprep.subr.mxu0 0.0
    %750 = vmatpush1.msra.mxu0 0.0
    %751 = vmatprep.mubr.f32.mxu0 0.0
    %752 = vmatmul.mubr.f32.gmra.mrb[0].mxu0 %v334
    %v753 = vpop.f32.mrb[0].mxu0
    %v754 = vadd.f32 0.0, %v753
    %v755 = vpop.f32.mrb[0].mxu0
    %756 = vmatprep.mubr.f32.mxu0 0.0
    %757 = vmatmul.mubr.f32.gmra.mrb[0].mxu0 %v337
    %v758 = vpop.f32.mrb[0].mxu0
    %v759 = vadd.f32 0.0, %v758
    %v760 = vpop.f32.mrb[0].mxu0
    %761 = vmatprep.mubr.f32.mxu0 0.0
    %762 = vmatmul.mubr.f32.gmra.mrb[0].mxu0 %v340
    %v763 = vpop.f32.mrb[0].mxu0
    %v764 = vadd.f32 0.0, %v763
    %v765 = vpop.f32.mrb[0].mxu0
    %766 = vmatprep.mubr.f32.mxu0 0.0
    %767 = vmatmul.mubr.f32.gmra.mrb[0].mxu0 %v343
    %v768 = vpop.f32.mrb[0].mxu0
    %v769 = vadd.f32 0.0, %v768
    %v770 = vpop.f32.mrb[0].mxu0
    %771 = vmatprep.mubr.f32.mxu0 0.0
    %772 = vmatmul.mubr.f32.gmra.mrb[0].mxu0 %v346
    %v773 = vpop.f32.mrb[0].mxu0
    %v774 = vadd.f32 0.0, %v773
    %v775 = vpop.f32.mrb[0].mxu0
    %776 = vmatprep.mubr.f32.mxu0 0.0
    %777 = vmatmul.mubr.f32.gmra.mrb[0].mxu0 %v349
    %v778 = vpop.f32.mrb[0].mxu0
    %v779 = vadd.f32 0.0, %v778
    %v780 = vpop.f32.mrb[0].mxu0
    %781 = vmatprep.mubr.f32.mxu0 0.0
    %782 = vmatmul.mubr.f32.gmra.mrb[0].mxu0 %v352
    %v783 = vpop.f32.mrb[0].mxu0
    %v784 = vadd.f32 0.0, %v783
    %v785 = vpop.f32.mrb[0].mxu0
    %786 = vmatprep.mubr.f32.mxu0 0.0
    %787 = vmatmul.mubr.f32.gmra.mrb[0].mxu0 %v355
    %v788 = vpop.f32.mrb[0].mxu0
    %v789 = vadd.f32 0.0, %v788
    %v790 = vpop.f32.mrb[0].mxu0
    %791 = vmatprep.mubr.f32.mxu0 0.0
    %792 = vmatmul.mubr.f32.gmra.mrb[0].mxu0 %v358
    %v793 = vpop.f32.mrb[0].mxu0
    %v794 = vadd.f32 0.0, %v793
    %v795 = vpop.f32.mrb[0].mxu0
    %796 = vmatprep.mubr.f32.mxu0 0.0
    %797 = vmatmul.mubr.f32.gmra.mrb[0].mxu0 %v361
    %v798 = vpop.f32.mrb[0].mxu0
    %v799 = vadd.f32 0.0, %v798
    %v800 = vpop.f32.mrb[0].mxu0
    %801 = vmatprep.mubr.f32.mxu0 0.0
    %802 = vmatmul.mubr.f32.gmra.mrb[0].mxu0 %v364
    %v803 = vpop.f32.mrb[0].mxu0
    %v804 = vadd.f32 0.0, %v803
    %v805 = vpop.f32.mrb[0].mxu0
    %806 = vmatprep.mubr.f32.mxu0 0.0
    %807 = vmatmul.mubr.f32.gmra.mrb[0].mxu0 %v367
    %v808 = vpop.f32.mrb[0].mxu0
    %v809 = vadd.f32 0.0, %v808
    %v810 = vpop.f32.mrb[0].mxu0
    %811 = vmatprep.mubr.f32.mxu0 0.0
    %812 = vmatmul.mubr.f32.gmra.mrb[0].mxu0 %v370
    %v813 = vpop.f32.mrb[0].mxu0
    %v814 = vadd.f32 0.0, %v813
    %v815 = vpop.f32.mrb[0].mxu0
    %816 = vmatprep.mubr.f32.mxu0 0.0
    %817 = vmatmul.mubr.f32.gmra.mrb[0].mxu0 %v373
    %v818 = vpop.f32.mrb[0].mxu0
    %v819 = vadd.f32 0.0, %v818
    %v820 = vpop.f32.mrb[0].mxu0
    %821 = vmatprep.mubr.f32.mxu0 0.0
    %822 = vmatmul.mubr.f32.gmra.mrb[0].mxu0 %v376
    %v823 = vpop.f32.mrb[0].mxu0
    %v824 = vadd.f32 0.0, %v823
    %v825 = vpop.f32.mrb[0].mxu0
    %826 = vmatprep.mubr.f32.mxu0 0.0
    %827 = vmatmul.mubr.f32.gmra.mrb[0].mxu0 %v379
    %v828 = vpop.f32.mrb[0].mxu0
    %v829 = vadd.f32 0.0, %v828
    %v830 = vpop.f32.mrb[0].mxu0
    %831 = vdwg.mxu0
    %vm832 = vcmask 130048
    %v834 = vsel %vm832, %v448, 0
    %v837 = vsel %vm832, %v453, 0
    %v840 = vsel %vm832, %v601, 0
    %v843 = vsel %vm832, %v606, 0
    %845 = vmatprep.subr.mxu0 0.0
    %846 = vmatpush1.xpose.msra.mxu0 %v840
    %847 = vmatprep.subr.mxu0 0.0
    %848 = vmatpush1.xpose.msra.mxu0 %v843
    %849 = vmatprep.subr.mxu0 0.0
    %850 = vmatpush1.xpose.msra.mxu0 0.0
    %851 = vmatprep.subr.mxu0 0.0
    %852 = vmatpush1.xpose.msra.mxu0 0.0
    %853 = vmatprep.subr.mxu0 0.0
    %854 = vmatpush1.xpose.msra.mxu0 0.0
    %855 = vmatprep.subr.mxu0 0.0
    %856 = vmatpush1.xpose.msra.mxu0 0.0
    %857 = vmatprep.subr.mxu0 0.0
    %858 = vmatpush1.xpose.msra.mxu0 0.0
    %859 = vmatprep.subr.mxu0 0.0
    %860 = vmatpush1.xpose.msra.mxu0 0.0
    %861 = vmatprep.subr.mxu0 0.0
    %862 = vmatpush1.xpose.msra.mxu0 0.0
    %863 = vmatprep.subr.mxu0 0.0
    %864 = vmatpush1.xpose.msra.mxu0 0.0
    %865 = vmatprep.subr.mxu0 0.0
    %866 = vmatpush1.xpose.msra.mxu0 0.0
    %867 = vmatprep.subr.mxu0 0.0
    %868 = vmatpush1.xpose.msra.mxu0 0.0
    %869 = vmatprep.subr.mxu0 0.0
    %870 = vmatpush1.xpose.msra.mxu0 0.0
    %871 = vmatprep.subr.mxu0 0.0
    %872 = vmatpush1.xpose.msra.mxu0 0.0
    %873 = vmatprep.subr.mxu0 0.0
    %874 = vmatpush1.xpose.msra.mxu0 0.0
    %875 = vmatprep.subr.mxu0 0.0
    %876 = vmatpush1.xpose.msra.mxu0 0.0
    %877 = vmatprep.subr.mxu0 0.0
    %878 = vmatpush1.xpose.msra.mxu0 0.0
    %879 = vmatprep.subr.mxu0 0.0
    %880 = vmatpush1.xpose.msra.mxu0 0.0
    %881 = vmatprep.subr.mxu0 0.0
    %882 = vmatpush1.xpose.msra.mxu0 0.0
    %883 = vmatprep.subr.mxu0 0.0
    %884 = vmatpush1.xpose.msra.mxu0 0.0
    %885 = vmatprep.subr.mxu0 0.0
    %886 = vmatpush1.xpose.msra.mxu0 0.0
    %887 = vmatprep.subr.mxu0 0.0
    %888 = vmatpush1.xpose.msra.mxu0 0.0
    %889 = vmatprep.subr.mxu0 0.0
    %890 = vmatpush1.xpose.msra.mxu0 0.0
    %891 = vmatprep.subr.mxu0 0.0
    %892 = vmatpush1.xpose.msra.mxu0 0.0
    %893 = vmatprep.subr.mxu0 0.0
    %894 = vmatpush1.xpose.msra.mxu0 0.0
    %895 = vmatprep.subr.mxu0 0.0
    %896 = vmatpush1.xpose.msra.mxu0 0.0
    %897 = vmatprep.subr.mxu0 0.0
    %898 = vmatpush1.xpose.msra.mxu0 0.0
    %899 = vmatprep.subr.mxu0 0.0
    %900 = vmatpush1.xpose.msra.mxu0 0.0
    %901 = vmatprep.subr.mxu0 0.0
    %902 = vmatpush1.xpose.msra.mxu0 0.0
    %903 = vmatprep.subr.mxu0 0.0
    %904 = vmatpush1.xpose.msra.mxu0 0.0
    %905 = vmatprep.subr.mxu0 0.0
    %906 = vmatpush1.xpose.msra.mxu0 0.0
    %907 = vmatprep.subr.mxu0 0.0
    %908 = vmatpush1.xpose.msra.mxu0 0.0
    %909 = vmatprep.mubr.f32.mxu0 0.0
    %910 = vmatmul.mubr.f32.gmra.mrb[0].mxu0 %v834
    %v911 = vpop.f32.mrb[0].mxu0
    %v912 = vadd.f32 %v323, %v911
    %v913 = vpop.f32.mrb[0].mxu0
    %914 = vmatprep.mubr.f32.mxu0 0.0
    %915 = vmatmul.mubr.f32.gmra.mrb[0].mxu0 %v837
    %v916 = vpop.f32.mrb[0].mxu0
    %v917 = vadd.f32 %v324, %v916
    %v918 = vpop.f32.mrb[0].mxu0
    %919 = vdwg.mxu0
    %v921 = vsel %vm832, %v458, 0
    %v924 = vsel %vm832, %v463, 0
    %v927 = vsel %vm832, %v611, 0
    %v930 = vsel %vm832, %v616, 0
    %932 = vmatprep.subr.mxu0 0.0
    %933 = vmatpush1.xpose.msra.mxu0 %v927
    %934 = vmatprep.subr.mxu0 0.0
    %935 = vmatpush1.xpose.msra.mxu0 %v930
    %936 = vmatprep.subr.mxu0 0.0
    %937 = vmatpush1.xpose.msra.mxu0 0.0
    %938 = vmatprep.subr.mxu0 0.0
    %939 = vmatpush1.xpose.msra.mxu0 0.0
    %940 = vmatprep.subr.mxu0 0.0
    %941 = vmatpush1.xpose.msra.mxu0 0.0
    %942 = vmatprep.subr.mxu0 0.0
    %943 = vmatpush1.xpose.msra.mxu0 0.0
    %944 = vmatprep.subr.mxu0 0.0
    %945 = vmatpush1.xpose.msra.mxu0 0.0
    %946 = vmatprep.subr.mxu0 0.0
    %947 = vmatpush1.xpose.msra.mxu0 0.0
    %948 = vmatprep.subr.mxu0 0.0
    %949 = vmatpush1.xpose.msra.mxu0 0.0
    %950 = vmatprep.subr.mxu0 0.0
    %951 = vmatpush1.xpose.msra.mxu0 0.0
    %952 = vmatprep.subr.mxu0 0.0
    %953 = vmatpush1.xpose.msra.mxu0 0.0
    %954 = vmatprep.subr.mxu0 0.0
    %955 = vmatpush1.xpose.msra.mxu0 0.0
    %956 = vmatprep.subr.mxu0 0.0
    %957 = vmatpush1.xpose.msra.mxu0 0.0
    %958 = vmatprep.subr.mxu0 0.0
    %959 = vmatpush1.xpose.msra.mxu0 0.0
    %960 = vmatprep.subr.mxu0 0.0
    %961 = vmatpush1.xpose.msra.mxu0 0.0
    %962 = vmatprep.subr.mxu0 0.0
    %963 = vmatpush1.xpose.msra.mxu0 0.0
    %964 = vmatprep.subr.mxu0 0.0
    %965 = vmatpush1.xpose.msra.mxu0 0.0
    %966 = vmatprep.subr.mxu0 0.0
    %967 = vmatpush1.xpose.msra.mxu0 0.0
    %968 = vmatprep.subr.mxu0 0.0
    %969 = vmatpush1.xpose.msra.mxu0 0.0
    %970 = vmatprep.subr.mxu0 0.0
    %971 = vmatpush1.xpose.msra.mxu0 0.0
    %972 = vmatprep.subr.mxu0 0.0
    %973 = vmatpush1.xpose.msra.mxu0 0.0
    %974 = vmatprep.subr.mxu0 0.0
    %975 = vmatpush1.xpose.msra.mxu0 0.0
    %976 = vmatprep.subr.mxu0 0.0
    %977 = vmatpush1.xpose.msra.mxu0 0.0
    %978 = vmatprep.subr.mxu0 0.0
    %979 = vmatpush1.xpose.msra.mxu0 0.0
    %980 = vmatprep.subr.mxu0 0.0
    %981 = vmatpush1.xpose.msra.mxu0 0.0
    %982 = vmatprep.subr.mxu0 0.0
    %983 = vmatpush1.xpose.msra.mxu0 0.0
    %984 = vmatprep.subr.mxu0 0.0
    %985 = vmatpush1.xpose.msra.mxu0 0.0
    %986 = vmatprep.subr.mxu0 0.0
    %987 = vmatpush1.xpose.msra.mxu0 0.0
    %988 = vmatprep.subr.mxu0 0.0
    %989 = vmatpush1.xpose.msra.mxu0 0.0
    %990 = vmatprep.subr.mxu0 0.0
    %991 = vmatpush1.xpose.msra.mxu0 0.0
    %992 = vmatprep.subr.mxu0 0.0
    %993 = vmatpush1.xpose.msra.mxu0 0.0
    %994 = vmatprep.subr.mxu0 0.0
    %995 = vmatpush1.xpose.msra.mxu0 0.0
    %996 = vmatprep.mubr.f32.mxu0 0.0
    %997 = vmatmul.mubr.f32.gmra.mrb[0].mxu0 %v921
    %v998 = vpop.f32.mrb[0].mxu0
    %v999 = vadd.f32 %v323, %v998
    %v1000 = vpop.f32.mrb[0].mxu0
    %1001 = vmatprep.mubr.f32.mxu0 0.0
    %1002 = vmatmul.mubr.f32.gmra.mrb[0].mxu0 %v924
    %v1003 = vpop.f32.mrb[0].mxu0
    %v1004 = vadd.f32 %v324, %v1003
    %v1005 = vpop.f32.mrb[0].mxu0
    %1006 = vdwg.mxu0
    %v1008 = vsel %vm832, %v468, 0
    %v1011 = vsel %vm832, %v473, 0
    %v1014 = vsel %vm832, %v621, 0
    %v1017 = vsel %vm832, %v626, 0
    %1019 = vmatprep.subr.mxu0 0.0
    %1020 = vmatpush1.xpose.msra.mxu0 %v1014
    %1021 = vmatprep.subr.mxu0 0.0
    %1022 = vmatpush1.xpose.msra.mxu0 %v1017
    %1023 = vmatprep.subr.mxu0 0.0
    %1024 = vmatpush1.xpose.msra.mxu0 0.0
    %1025 = vmatprep.subr.mxu0 0.0
    %1026 = vmatpush1.xpose.msra.mxu0 0.0
    %1027 = vmatprep.subr.mxu0 0.0
    %1028 = vmatpush1.xpose.msra.mxu0 0.0
    %1029 = vmatprep.subr.mxu0 0.0
    %1030 = vmatpush1.xpose.msra.mxu0 0.0
    %1031 = vmatprep.subr.mxu0 0.0
    %1032 = vmatpush1.xpose.msra.mxu0 0.0
    %1033 = vmatprep.subr.mxu0 0.0
    %1034 = vmatpush1.xpose.msra.mxu0 0.0
    %1035 = vmatprep.subr.mxu0 0.0
    %1036 = vmatpush1.xpose.msra.mxu0 0.0
    %1037 = vmatprep.subr.mxu0 0.0
    %1038 = vmatpush1.xpose.msra.mxu0 0.0
    %1039 = vmatprep.subr.mxu0 0.0
    %1040 = vmatpush1.xpose.msra.mxu0 0.0
    %1041 = vmatprep.subr.mxu0 0.0
    %1042 = vmatpush1.xpose.msra.mxu0 0.0
    %1043 = vmatprep.subr.mxu0 0.0
    %1044 = vmatpush1.xpose.msra.mxu0 0.0
    %1045 = vmatprep.subr.mxu0 0.0
    %1046 = vmatpush1.xpose.msra.mxu0 0.0
    %1047 = vmatprep.subr.mxu0 0.0
    %1048 = vmatpush1.xpose.msra.mxu0 0.0
    %1049 = vmatprep.subr.mxu0 0.0
    %1050 = vmatpush1.xpose.msra.mxu0 0.0
    %1051 = vmatprep.subr.mxu0 0.0
    %1052 = vmatpush1.xpose.msra.mxu0 0.0
    %1053 = vmatprep.subr.mxu0 0.0
    %1054 = vmatpush1.xpose.msra.mxu0 0.0
    %1055 = vmatprep.subr.mxu0 0.0
    %1056 = vmatpush1.xpose.msra.mxu0 0.0
    %1057 = vmatprep.subr.mxu0 0.0
    %1058 = vmatpush1.xpose.msra.mxu0 0.0
    %1059 = vmatprep.subr.mxu0 0.0
    %1060 = vmatpush1.xpose.msra.mxu0 0.0
    %1061 = vmatprep.subr.mxu0 0.0
    %1062 = vmatpush1.xpose.msra.mxu0 0.0
    %1063 = vmatprep.subr.mxu0 0.0
    %1064 = vmatpush1.xpose.msra.mxu0 0.0
    %1065 = vmatprep.subr.mxu0 0.0
    %1066 = vmatpush1.xpose.msra.mxu0 0.0
    %1067 = vmatprep.subr.mxu0 0.0
    %1068 = vmatpush1.xpose.msra.mxu0 0.0
    %1069 = vmatprep.subr.mxu0 0.0
    %1070 = vmatpush1.xpose.msra.mxu0 0.0
    %1071 = vmatprep.subr.mxu0 0.0
    %1072 = vmatpush1.xpose.msra.mxu0 0.0
    %1073 = vmatprep.subr.mxu0 0.0
    %1074 = vmatpush1.xpose.msra.mxu0 0.0
    %1075 = vmatprep.subr.mxu0 0.0
    %1076 = vmatpush1.xpose.msra.mxu0 0.0
    %1077 = vmatprep.subr.mxu0 0.0
    %1078 = vmatpush1.xpose.msra.mxu0 0.0
    %1079 = vmatprep.subr.mxu0 0.0
    %1080 = vmatpush1.xpose.msra.mxu0 0.0
    %1081 = vmatprep.subr.mxu0 0.0
    %1082 = vmatpush1.xpose.msra.mxu0 0.0
    %1083 = vmatprep.mubr.f32.mxu0 0.0
    %1084 = vmatmul.mubr.f32.gmra.mrb[0].mxu0 %v1008
    %v1085 = vpop.f32.mrb[0].mxu0
    %v1086 = vadd.f32 %v323, %v1085
    %v1087 = vpop.f32.mrb[0].mxu0
    %1088 = vmatprep.mubr.f32.mxu0 0.0
    %1089 = vmatmul.mubr.f32.gmra.mrb[0].mxu0 %v1011
    %v1090 = vpop.f32.mrb[0].mxu0
    %v1091 = vadd.f32 %v324, %v1090
    %v1092 = vpop.f32.mrb[0].mxu0
    %1093 = vdwg.mxu0
    %v1095 = vsel %vm832, %v478, 0
    %v1098 = vsel %vm832, %v483, 0
    %v1101 = vsel %vm832, %v631, 0
    %v1104 = vsel %vm832, %v636, 0
    %1106 = vmatprep.subr.mxu0 0.0
    %1107 = vmatpush1.xpose.msra.mxu0 %v1101
    %1108 = vmatprep.subr.mxu0 0.0
    %1109 = vmatpush1.xpose.msra.mxu0 %v1104
    %1110 = vmatprep.subr.mxu0 0.0
    %1111 = vmatpush1.xpose.msra.mxu0 0.0
    %1112 = vmatprep.subr.mxu0 0.0
    %1113 = vmatpush1.xpose.msra.mxu0 0.0
    %1114 = vmatprep.subr.mxu0 0.0
    %1115 = vmatpush1.xpose.msra.mxu0 0.0
    %1116 = vmatprep.subr.mxu0 0.0
    %1117 = vmatpush1.xpose.msra.mxu0 0.0
    %1118 = vmatprep.subr.mxu0 0.0
    %1119 = vmatpush1.xpose.msra.mxu0 0.0
    %1120 = vmatprep.subr.mxu0 0.0
    %1121 = vmatpush1.xpose.msra.mxu0 0.0
    %1122 = vmatprep.subr.mxu0 0.0
    %1123 = vmatpush1.xpose.msra.mxu0 0.0
    %1124 = vmatprep.subr.mxu0 0.0
    %1125 = vmatpush1.xpose.msra.mxu0 0.0
    %1126 = vmatprep.subr.mxu0 0.0
    %1127 = vmatpush1.xpose.msra.mxu0 0.0
    %1128 = vmatprep.subr.mxu0 0.0
    %1129 = vmatpush1.xpose.msra.mxu0 0.0
    %1130 = vmatprep.subr.mxu0 0.0
    %1131 = vmatpush1.xpose.msra.mxu0 0.0
    %1132 = vmatprep.subr.mxu0 0.0
    %1133 = vmatpush1.xpose.msra.mxu0 0.0
    %1134 = vmatprep.subr.mxu0 0.0
    %1135 = vmatpush1.xpose.msra.mxu0 0.0
    %1136 = vmatprep.subr.mxu0 0.0
    %1137 = vmatpush1.xpose.msra.mxu0 0.0
    %1138 = vmatprep.subr.mxu0 0.0
    %1139 = vmatpush1.xpose.msra.mxu0 0.0
    %1140 = vmatprep.subr.mxu0 0.0
    %1141 = vmatpush1.xpose.msra.mxu0 0.0
    %1142 = vmatprep.subr.mxu0 0.0
    %1143 = vmatpush1.xpose.msra.mxu0 0.0
    %1144 = vmatprep.subr.mxu0 0.0
    %1145 = vmatpush1.xpose.msra.mxu0 0.0
    %1146 = vmatprep.subr.mxu0 0.0
    %1147 = vmatpush1.xpose.msra.mxu0 0.0
    %1148 = vmatprep.subr.mxu0 0.0
    %1149 = vmatpush1.xpose.msra.mxu0 0.0
    %1150 = vmatprep.subr.mxu0 0.0
    %1151 = vmatpush1.xpose.msra.mxu0 0.0
    %1152 = vmatprep.subr.mxu0 0.0
    %1153 = vmatpush1.xpose.msra.mxu0 0.0
    %1154 = vmatprep.subr.mxu0 0.0
    %1155 = vmatpush1.xpose.msra.mxu0 0.0
    %1156 = vmatprep.subr.mxu0 0.0
    %1157 = vmatpush1.xpose.msra.mxu0 0.0
    %1158 = vmatprep.subr.mxu0 0.0
    %1159 = vmatpush1.xpose.msra.mxu0 0.0
    %1160 = vmatprep.subr.mxu0 0.0
    %1161 = vmatpush1.xpose.msra.mxu0 0.0
    %1162 = vmatprep.subr.mxu0 0.0
    %1163 = vmatpush1.xpose.msra.mxu0 0.0
    %1164 = vmatprep.subr.mxu0 0.0
    %1165 = vmatpush1.xpose.msra.mxu0 0.0
    %1166 = vmatprep.subr.mxu0 0.0
    %1167 = vmatpush1.xpose.msra.mxu0 0.0
    %1168 = vmatprep.subr.mxu0 0.0
    %1169 = vmatpush1.xpose.msra.mxu0 0.0
    %1170 = vmatprep.mubr.f32.mxu0 0.0
    %1171 = vmatmul.mubr.f32.gmra.mrb[0].mxu0 %v1095
    %v1172 = vpop.f32.mrb[0].mxu0
    %v1173 = vadd.f32 %v323, %v1172
    %v1174 = vpop.f32.mrb[0].mxu0
    %1175 = vmatprep.mubr.f32.mxu0 0.0
    %1176 = vmatmul.mubr.f32.gmra.mrb[0].mxu0 %v1098
    %v1177 = vpop.f32.mrb[0].mxu0
    %v1178 = vadd.f32 %v324, %v1177
    %v1179 = vpop.f32.mrb[0].mxu0
    %1180 = vdwg.mxu0
    %v1182 = vsel %vm832, %v488, 0
    %v1185 = vsel %vm832, %v493, 0
    %v1188 = vsel %vm832, %v641, 0
    %v1191 = vsel %vm832, %v646, 0
    %1193 = vmatprep.subr.mxu0 0.0
    %1194 = vmatpush1.xpose.msra.mxu0 %v1188
    %1195 = vmatprep.subr.mxu0 0.0
    %1196 = vmatpush1.xpose.msra.mxu0 %v1191
    %1197 = vmatprep.subr.mxu0 0.0
    %1198 = vmatpush1.xpose.msra.mxu0 0.0
    %1199 = vmatprep.subr.mxu0 0.0
    %1200 = vmatpush1.xpose.msra.mxu0 0.0
    %1201 = vmatprep.subr.mxu0 0.0
    %1202 = vmatpush1.xpose.msra.mxu0 0.0
    %1203 = vmatprep.subr.mxu0 0.0
    %1204 = vmatpush1.xpose.msra.mxu0 0.0
    %1205 = vmatprep.subr.mxu0 0.0
    %1206 = vmatpush1.xpose.msra.mxu0 0.0
    %1207 = vmatprep.subr.mxu0 0.0
    %1208 = vmatpush1.xpose.msra.mxu0 0.0
    %1209 = vmatprep.subr.mxu0 0.0
    %1210 = vmatpush1.xpose.msra.mxu0 0.0
    %1211 = vmatprep.subr.mxu0 0.0
    %1212 = vmatpush1.xpose.msra.mxu0 0.0
    %1213 = vmatprep.subr.mxu0 0.0
    %1214 = vmatpush1.xpose.msra.mxu0 0.0
    %1215 = vmatprep.subr.mxu0 0.0
    %1216 = vmatpush1.xpose.msra.mxu0 0.0
    %1217 = vmatprep.subr.mxu0 0.0
    %1218 = vmatpush1.xpose.msra.mxu0 0.0
    %1219 = vmatprep.subr.mxu0 0.0
    %1220 = vmatpush1.xpose.msra.mxu0 0.0
    %1221 = vmatprep.subr.mxu0 0.0
    %1222 = vmatpush1.xpose.msra.mxu0 0.0
    %1223 = vmatprep.subr.mxu0 0.0
    %1224 = vmatpush1.xpose.msra.mxu0 0.0
    %1225 = vmatprep.subr.mxu0 0.0
    %1226 = vmatpush1.xpose.msra.mxu0 0.0
    %1227 = vmatprep.subr.mxu0 0.0
    %1228 = vmatpush1.xpose.msra.mxu0 0.0
    %1229 = vmatprep.subr.mxu0 0.0
    %1230 = vmatpush1.xpose.msra.mxu0 0.0
    %1231 = vmatprep.subr.mxu0 0.0
    %1232 = vmatpush1.xpose.msra.mxu0 0.0
    %1233 = vmatprep.subr.mxu0 0.0
    %1234 = vmatpush1.xpose.msra.mxu0 0.0
    %1235 = vmatprep.subr.mxu0 0.0
    %1236 = vmatpush1.xpose.msra.mxu0 0.0
    %1237 = vmatprep.subr.mxu0 0.0
    %1238 = vmatpush1.xpose.msra.mxu0 0.0
    %1239 = vmatprep.subr.mxu0 0.0
    %1240 = vmatpush1.xpose.msra.mxu0 0.0
    %1241 = vmatprep.subr.mxu0 0.0
    %1242 = vmatpush1.xpose.msra.mxu0 0.0
    %1243 = vmatprep.subr.mxu0 0.0
    %1244 = vmatpush1.xpose.msra.mxu0 0.0
    %1245 = vmatprep.subr.mxu0 0.0
    %1246 = vmatpush1.xpose.msra.mxu0 0.0
    %1247 = vmatprep.subr.mxu0 0.0
    %1248 = vmatpush1.xpose.msra.mxu0 0.0
    %1249 = vmatprep.subr.mxu0 0.0
    %1250 = vmatpush1.xpose.msra.mxu0 0.0
    %1251 = vmatprep.subr.mxu0 0.0
    %1252 = vmatpush1.xpose.msra.mxu0 0.0
    %1253 = vmatprep.subr.mxu0 0.0
    %1254 = vmatpush1.xpose.msra.mxu0 0.0
    %1255 = vmatprep.subr.mxu0 0.0
    %1256 = vmatpush1.xpose.msra.mxu0 0.0
    %1257 = vmatprep.mubr.f32.mxu0 0.0
    %1258 = vmatmul.mubr.f32.gmra.mrb[0].mxu0 %v1182
    %v1259 = vpop.f32.mrb[0].mxu0
    %v1260 = vadd.f32 %v323, %v1259
    %v1261 = vpop.f32.mrb[0].mxu0
    %1262 = vmatprep.mubr.f32.mxu0 0.0
    %1263 = vmatmul.mubr.f32.gmra.mrb[0].mxu0 %v1185
    %v1264 = vpop.f32.mrb[0].mxu0
    %v1265 = vadd.f32 %v324, %v1264
    %v1266 = vpop.f32.mrb[0].mxu0
    %1267 = vdwg.mxu0
    %v1269 = vsel %vm832, %v498, 0
    %v1272 = vsel %vm832, %v503, 0
    %v1275 = vsel %vm832, %v651, 0
    %v1278 = vsel %vm832, %v656, 0
    %1280 = vmatprep.subr.mxu0 0.0
    %1281 = vmatpush1.xpose.msra.mxu0 %v1275
    %1282 = vmatprep.subr.mxu0 0.0
    %1283 = vmatpush1.xpose.msra.mxu0 %v1278
    %1284 = vmatprep.subr.mxu0 0.0
    %1285 = vmatpush1.xpose.msra.mxu0 0.0
    %1286 = vmatprep.subr.mxu0 0.0
    %1287 = vmatpush1.xpose.msra.mxu0 0.0
    %1288 = vmatprep.subr.mxu0 0.0
    %1289 = vmatpush1.xpose.msra.mxu0 0.0
    %1290 = vmatprep.subr.mxu0 0.0
    %1291 = vmatpush1.xpose.msra.mxu0 0.0
    %1292 = vmatprep.subr.mxu0 0.0
    %1293 = vmatpush1.xpose.msra.mxu0 0.0
    %1294 = vmatprep.subr.mxu0 0.0
    %1295 = vmatpush1.xpose.msra.mxu0 0.0
    %1296 = vmatprep.subr.mxu0 0.0
    %1297 = vmatpush1.xpose.msra.mxu0 0.0
    %1298 = vmatprep.subr.mxu0 0.0
    %1299 = vmatpush1.xpose.msra.mxu0 0.0
    %1300 = vmatprep.subr.mxu0 0.0
    %1301 = vmatpush1.xpose.msra.mxu0 0.0
    %1302 = vmatprep.subr.mxu0 0.0
    %1303 = vmatpush1.xpose.msra.mxu0 0.0
    %1304 = vmatprep.subr.mxu0 0.0
    %1305 = vmatpush1.xpose.msra.mxu0 0.0
    %1306 = vmatprep.subr.mxu0 0.0
    %1307 = vmatpush1.xpose.msra.mxu0 0.0
    %1308 = vmatprep.subr.mxu0 0.0
    %1309 = vmatpush1.xpose.msra.mxu0 0.0
    %1310 = vmatprep.subr.mxu0 0.0
    %1311 = vmatpush1.xpose.msra.mxu0 0.0
    %1312 = vmatprep.subr.mxu0 0.0
    %1313 = vmatpush1.xpose.msra.mxu0 0.0
    %1314 = vmatprep.subr.mxu0 0.0
    %1315 = vmatpush1.xpose.msra.mxu0 0.0
    %1316 = vmatprep.subr.mxu0 0.0
    %1317 = vmatpush1.xpose.msra.mxu0 0.0
    %1318 = vmatprep.subr.mxu0 0.0
    %1319 = vmatpush1.xpose.msra.mxu0 0.0
    %1320 = vmatprep.subr.mxu0 0.0
    %1321 = vmatpush1.xpose.msra.mxu0 0.0
    %1322 = vmatprep.subr.mxu0 0.0
    %1323 = vmatpush1.xpose.msra.mxu0 0.0
    %1324 = vmatprep.subr.mxu0 0.0
    %1325 = vmatpush1.xpose.msra.mxu0 0.0
    %1326 = vmatprep.subr.mxu0 0.0
    %1327 = vmatpush1.xpose.msra.mxu0 0.0
    %1328 = vmatprep.subr.mxu0 0.0
    %1329 = vmatpush1.xpose.msra.mxu0 0.0
    %1330 = vmatprep.subr.mxu0 0.0
    %1331 = vmatpush1.xpose.msra.mxu0 0.0
    %1332 = vmatprep.subr.mxu0 0.0
    %1333 = vmatpush1.xpose.msra.mxu0 0.0
    %1334 = vmatprep.subr.mxu0 0.0
    %1335 = vmatpush1.xpose.msra.mxu0 0.0
    %1336 = vmatprep.subr.mxu0 0.0
    %1337 = vmatpush1.xpose.msra.mxu0 0.0
    %1338 = vmatprep.subr.mxu0 0.0
    %1339 = vmatpush1.xpose.msra.mxu0 0.0
    %1340 = vmatprep.subr.mxu0 0.0
    %1341 = vmatpush1.xpose.msra.mxu0 0.0
    %1342 = vmatprep.subr.mxu0 0.0
    %1343 = vmatpush1.xpose.msra.mxu0 0.0
    %1344 = vmatprep.mubr.f32.mxu0 0.0
    %1345 = vmatmul.mubr.f32.gmra.mrb[0].mxu0 %v1269
    %v1346 = vpop.f32.mrb[0].mxu0
    %v1347 = vadd.f32 %v323, %v1346
    %v1348 = vpop.f32.mrb[0].mxu0
    %1349 = vmatprep.mubr.f32.mxu0 0.0
    %1350 = vmatmul.mubr.f32.gmra.mrb[0].mxu0 %v1272
    %v1351 = vpop.f32.mrb[0].mxu0
    %v1352 = vadd.f32 %v324, %v1351
    %v1353 = vpop.f32.mrb[0].mxu0
    %1354 = vdwg.mxu0
    %v1356 = vsel %vm832, %v508, 0
    %v1359 = vsel %vm832, %v513, 0
    %v1362 = vsel %vm832, %v661, 0
    %v1365 = vsel %vm832, %v666, 0
    %1367 = vmatprep.subr.mxu0 0.0
    %1368 = vmatpush1.xpose.msra.mxu0 %v1362
    %1369 = vmatprep.subr.mxu0 0.0
    %1370 = vmatpush1.xpose.msra.mxu0 %v1365
    %1371 = vmatprep.subr.mxu0 0.0
    %1372 = vmatpush1.xpose.msra.mxu0 0.0
    %1373 = vmatprep.subr.mxu0 0.0
    %1374 = vmatpush1.xpose.msra.mxu0 0.0
    %1375 = vmatprep.subr.mxu0 0.0
    %1376 = vmatpush1.xpose.msra.mxu0 0.0
    %1377 = vmatprep.subr.mxu0 0.0
    %1378 = vmatpush1.xpose.msra.mxu0 0.0
    %1379 = vmatprep.subr.mxu0 0.0
    %1380 = vmatpush1.xpose.msra.mxu0 0.0
    %1381 = vmatprep.subr.mxu0 0.0
    %1382 = vmatpush1.xpose.msra.mxu0 0.0
    %1383 = vmatprep.subr.mxu0 0.0
    %1384 = vmatpush1.xpose.msra.mxu0 0.0
    %1385 = vmatprep.subr.mxu0 0.0
    %1386 = vmatpush1.xpose.msra.mxu0 0.0
    %1387 = vmatprep.subr.mxu0 0.0
    %1388 = vmatpush1.xpose.msra.mxu0 0.0
    %1389 = vmatprep.subr.mxu0 0.0
    %1390 = vmatpush1.xpose.msra.mxu0 0.0
    %1391 = vmatprep.subr.mxu0 0.0
    %1392 = vmatpush1.xpose.msra.mxu0 0.0
    %1393 = vmatprep.subr.mxu0 0.0
    %1394 = vmatpush1.xpose.msra.mxu0 0.0
    %1395 = vmatprep.subr.mxu0 0.0
    %1396 = vmatpush1.xpose.msra.mxu0 0.0
    %1397 = vmatprep.subr.mxu0 0.0
    %1398 = vmatpush1.xpose.msra.mxu0 0.0
    %1399 = vmatprep.subr.mxu0 0.0
    %1400 = vmatpush1.xpose.msra.mxu0 0.0
    %1401 = vmatprep.subr.mxu0 0.0
    %1402 = vmatpush1.xpose.msra.mxu0 0.0
    %1403 = vmatprep.subr.mxu0 0.0
    %1404 = vmatpush1.xpose.msra.mxu0 0.0
    %1405 = vmatprep.subr.mxu0 0.0
    %1406 = vmatpush1.xpose.msra.mxu0 0.0
    %1407 = vmatprep.subr.mxu0 0.0
    %1408 = vmatpush1.xpose.msra.mxu0 0.0
    %1409 = vmatprep.subr.mxu0 0.0
    %1410 = vmatpush1.xpose.msra.mxu0 0.0
    %1411 = vmatprep.subr.mxu0 0.0
    %1412 = vmatpush1.xpose.msra.mxu0 0.0
    %1413 = vmatprep.subr.mxu0 0.0
    %1414 = vmatpush1.xpose.msra.mxu0 0.0
    %1415 = vmatprep.subr.mxu0 0.0
    %1416 = vmatpush1.xpose.msra.mxu0 0.0
    %1417 = vmatprep.subr.mxu0 0.0
    %1418 = vmatpush1.xpose.msra.mxu0 0.0
    %1419 = vmatprep.subr.mxu0 0.0
    %1420 = vmatpush1.xpose.msra.mxu0 0.0
    %1421 = vmatprep.subr.mxu0 0.0
    %1422 = vmatpush1.xpose.msra.mxu0 0.0
    %1423 = vmatprep.subr.mxu0 0.0
    %1424 = vmatpush1.xpose.msra.mxu0 0.0
    %1425 = vmatprep.subr.mxu0 0.0
    %1426 = vmatpush1.xpose.msra.mxu0 0.0
    %1427 = vmatprep.subr.mxu0 0.0
    %1428 = vmatpush1.xpose.msra.mxu0 0.0
    %1429 = vmatprep.subr.mxu0 0.0
    %1430 = vmatpush1.xpose.msra.mxu0 0.0
    %1431 = vmatprep.mubr.f32.mxu0 0.0
    %1432 = vmatmul.mubr.f32.gmra.mrb[0].mxu0 %v1356
    %v1433 = vpop.f32.mrb[0].mxu0
    %v1434 = vadd.f32 %v323, %v1433
    %v1435 = vpop.f32.mrb[0].mxu0
    %1436 = vmatprep.mubr.f32.mxu0 0.0
    %1437 = vmatmul.mubr.f32.gmra.mrb[0].mxu0 %v1359
    %v1438 = vpop.f32.mrb[0].mxu0
    %v1439 = vadd.f32 %v324, %v1438
    %v1440 = vpop.f32.mrb[0].mxu0
    %1441 = vdwg.mxu0
    %v1443 = vsel %vm832, %v518, 0
    %v1446 = vsel %vm832, %v523, 0
    %v1449 = vsel %vm832, %v671, 0
    %v1452 = vsel %vm832, %v676, 0
    %1454 = vmatprep.subr.mxu0 0.0
    %1455 = vmatpush1.xpose.msra.mxu0 %v1449
    %1456 = vmatprep.subr.mxu0 0.0
    %1457 = vmatpush1.xpose.msra.mxu0 %v1452
    %1458 = vmatprep.subr.mxu0 0.0
    %1459 = vmatpush1.xpose.msra.mxu0 0.0
    %1460 = vmatprep.subr.mxu0 0.0
    %1461 = vmatpush1.xpose.msra.mxu0 0.0
    %1462 = vmatprep.subr.mxu0 0.0
    %1463 = vmatpush1.xpose.msra.mxu0 0.0
    %1464 = vmatprep.subr.mxu0 0.0
    %1465 = vmatpush1.xpose.msra.mxu0 0.0
    %1466 = vmatprep.subr.mxu0 0.0
    %1467 = vmatpush1.xpose.msra.mxu0 0.0
    %1468 = vmatprep.subr.mxu0 0.0
    %1469 = vmatpush1.xpose.msra.mxu0 0.0
    %1470 = vmatprep.subr.mxu0 0.0
    %1471 = vmatpush1.xpose.msra.mxu0 0.0
    %1472 = vmatprep.subr.mxu0 0.0
    %1473 = vmatpush1.xpose.msra.mxu0 0.0
    %1474 = vmatprep.subr.mxu0 0.0
    %1475 = vmatpush1.xpose.msra.mxu0 0.0
    %1476 = vmatprep.subr.mxu0 0.0
    %1477 = vmatpush1.xpose.msra.mxu0 0.0
    %1478 = vmatprep.subr.mxu0 0.0
    %1479 = vmatpush1.xpose.msra.mxu0 0.0
    %1480 = vmatprep.subr.mxu0 0.0
    %1481 = vmatpush1.xpose.msra.mxu0 0.0
    %1482 = vmatprep.subr.mxu0 0.0
    %1483 = vmatpush1.xpose.msra.mxu0 0.0
    %1484 = vmatprep.subr.mxu0 0.0
    %1485 = vmatpush1.xpose.msra.mxu0 0.0
    %1486 = vmatprep.subr.mxu0 0.0
    %1487 = vmatpush1.xpose.msra.mxu0 0.0
    %1488 = vmatprep.subr.mxu0 0.0
    %1489 = vmatpush1.xpose.msra.mxu0 0.0
    %1490 = vmatprep.subr.mxu0 0.0
    %1491 = vmatpush1.xpose.msra.mxu0 0.0
    %1492 = vmatprep.subr.mxu0 0.0
    %1493 = vmatpush1.xpose.msra.mxu0 0.0
    %1494 = vmatprep.subr.mxu0 0.0
    %1495 = vmatpush1.xpose.msra.mxu0 0.0
    %1496 = vmatprep.subr.mxu0 0.0
    %1497 = vmatpush1.xpose.msra.mxu0 0.0
    %1498 = vmatprep.subr.mxu0 0.0
    %1499 = vmatpush1.xpose.msra.mxu0 0.0
    %1500 = vmatprep.subr.mxu0 0.0
    %1501 = vmatpush1.xpose.msra.mxu0 0.0
    %1502 = vmatprep.subr.mxu0 0.0
    %1503 = vmatpush1.xpose.msra.mxu0 0.0
    %1504 = vmatprep.subr.mxu0 0.0
    %1505 = vmatpush1.xpose.msra.mxu0 0.0
    %1506 = vmatprep.subr.mxu0 0.0
    %1507 = vmatpush1.xpose.msra.mxu0 0.0
    %1508 = vmatprep.subr.mxu0 0.0
    %1509 = vmatpush1.xpose.msra.mxu0 0.0
    %1510 = vmatprep.subr.mxu0 0.0
    %1511 = vmatpush1.xpose.msra.mxu0 0.0
    %1512 = vmatprep.subr.mxu0 0.0
    %1513 = vmatpush1.xpose.msra.mxu0 0.0
    %1514 = vmatprep.subr.mxu0 0.0
    %1515 = vmatpush1.xpose.msra.mxu0 0.0
    %1516 = vmatprep.subr.mxu0 0.0
    %1517 = vmatpush1.xpose.msra.mxu0 0.0
    %1518 = vmatprep.mubr.f32.mxu0 0.0
    %1519 = vmatmul.mubr.f32.gmra.mrb[0].mxu0 %v1443
    %v1520 = vpop.f32.mrb[0].mxu0
    %v1521 = vadd.f32 %v323, %v1520
    %v1522 = vpop.f32.mrb[0].mxu0
    %1523 = vmatprep.mubr.f32.mxu0 0.0
    %1524 = vmatmul.mubr.f32.gmra.mrb[0].mxu0 %v1446
    %v1525 = vpop.f32.mrb[0].mxu0
    %v1526 = vadd.f32 %v324, %v1525
    %v1527 = vpop.f32.mrb[0].mxu0
    %1528 = vdwg.mxu0
    %v1529 = vsel %vm832, %v912, -inf
    %1530 = vmax.xlane.f32.xlu0 %v1529
    %v1531 = vpop.xlane.xlu0 %1530
    %v1532 = vsel %vm832, %v917, -inf
    %1533 = vmax.xlane.f32.xlu0 %v1532
    %v1534 = vpop.xlane.xlu0 %1533
    %v1535 = vsel %vm832, %v999, -inf
    %1536 = vmax.xlane.f32.xlu0 %v1535
    %v1537 = vpop.xlane.xlu0 %1536
    %v1538 = vsel %vm832, %v1004, -inf
    %1539 = vmax.xlane.f32.xlu0 %v1538
    %v1540 = vpop.xlane.xlu0 %1539
    %v1541 = vsel %vm832, %v1086, -inf
    %1542 = vmax.xlane.f32.xlu0 %v1541
    %v1543 = vpop.xlane.xlu0 %1542
    %v1544 = vsel %vm832, %v1091, -inf
    %1545 = vmax.xlane.f32.xlu0 %v1544
    %v1546 = vpop.xlane.xlu0 %1545
    %v1547 = vsel %vm832, %v1173, -inf
    %1548 = vmax.xlane.f32.xlu0 %v1547
    %v1549 = vpop.xlane.xlu0 %1548
    %v1550 = vsel %vm832, %v1178, -inf
    %1551 = vmax.xlane.f32.xlu0 %v1550
    %v1552 = vpop.xlane.xlu0 %1551
    %v1553 = vsel %vm832, %v1260, -inf
    %1554 = vmax.xlane.f32.xlu0 %v1553
    %v1555 = vpop.xlane.xlu0 %1554
    %v1556 = vsel %vm832, %v1265, -inf
    %1557 = vmax.xlane.f32.xlu0 %v1556
    %v1558 = vpop.xlane.xlu0 %1557
    %v1559 = vsel %vm832, %v1347, -inf
    %1560 = vmax.xlane.f32.xlu0 %v1559
    %v1561 = vpop.xlane.xlu0 %1560
    %v1562 = vsel %vm832, %v1352, -inf
    %1563 = vmax.xlane.f32.xlu0 %v1562
    %v1564 = vpop.xlane.xlu0 %1563
    %v1565 = vsel %vm832, %v1434, -inf
    %1566 = vmax.xlane.f32.xlu0 %v1565
    %v1567 = vpop.xlane.xlu0 %1566
    %v1568 = vsel %vm832, %v1439, -inf
    %1569 = vmax.xlane.f32.xlu0 %v1568
    %v1570 = vpop.xlane.xlu0 %1569
    %v1571 = vsel %vm832, %v1521, -inf
    %1572 = vmax.xlane.f32.xlu0 %v1571
    %v1573 = vpop.xlane.xlu0 %1572
    %v1574 = vsel %vm832, %v1526, -inf
    %1575 = vmax.xlane.f32.xlu0 %v1574
    %v1576 = vpop.xlane.xlu0 %1575
    %v1577 = vsub.f32 %v912, %v1531
    %v1578 = vsub.f32 %v917, %v1534
    %v1579 = vsub.f32 %v999, %v1537
    %v1580 = vsub.f32 %v1004, %v1540
    %v1581 = vsub.f32 %v1086, %v1543
    %v1582 = vsub.f32 %v1091, %v1546
    %v1583 = vsub.f32 %v1173, %v1549
    %v1584 = vsub.f32 %v1178, %v1552
    %v1585 = vsub.f32 %v1260, %v1555
    %v1586 = vsub.f32 %v1265, %v1558
    %v1587 = vsub.f32 %v1347, %v1561
    %v1588 = vsub.f32 %v1352, %v1564
    %v1589 = vsub.f32 %v1434, %v1567
    %v1590 = vsub.f32 %v1439, %v1570
    %v1591 = vsub.f32 %v1521, %v1573
    %v1592 = vsub.f32 %v1526, %v1576
    %v1593 = vmul.f32 %v1577, 1.442695
    %v1594 = vpow.pop %v1593
    %v1595 = vmul.f32 %v1578, 1.442695
    %v1596 = vpow.pop %v1595
    %v1597 = vmul.f32 %v1579, 1.442695
    %v1598 = vpow.pop %v1597
    %v1599 = vmul.f32 %v1580, 1.442695
    %v1600 = vpow.pop %v1599
    %v1601 = vmul.f32 %v1581, 1.442695
    %v1602 = vpow.pop %v1601
    %v1603 = vmul.f32 %v1582, 1.442695
    %v1604 = vpow.pop %v1603
    %v1605 = vmul.f32 %v1583, 1.442695
    %v1606 = vpow.pop %v1605
    %v1607 = vmul.f32 %v1584, 1.442695
    %v1608 = vpow.pop %v1607
    %v1609 = vmul.f32 %v1585, 1.442695
    %v1610 = vpow.pop %v1609
    %v1611 = vmul.f32 %v1586, 1.442695
    %v1612 = vpow.pop %v1611
    %v1613 = vmul.f32 %v1587, 1.442695
    %v1614 = vpow.pop %v1613
    %v1615 = vmul.f32 %v1588, 1.442695
    %v1616 = vpow.pop %v1615
    %v1617 = vmul.f32 %v1589, 1.442695
    %v1618 = vpow.pop %v1617
    %v1619 = vmul.f32 %v1590, 1.442695
    %v1620 = vpow.pop %v1619
    %v1621 = vmul.f32 %v1591, 1.442695
    %v1622 = vpow.pop %v1621
    %v1623 = vmul.f32 %v1592, 1.442695
    %v1624 = vpow.pop %v1623
    %v1625 = vsel %vm832, %v1594, 0.0
    %1626 = vadd.xlane.f32.xlu0 %v1625
    %v1627 = vpop.xlane.xlu0 %1626
    %v1628 = vsel %vm832, %v1596, 0.0
    %1629 = vadd.xlane.f32.xlu0 %v1628
    %v1630 = vpop.xlane.xlu0 %1629
    %v1631 = vsel %vm832, %v1598, 0.0
    %1632 = vadd.xlane.f32.xlu0 %v1631
    %v1633 = vpop.xlane.xlu0 %1632
    %v1634 = vsel %vm832, %v1600, 0.0
    %1635 = vadd.xlane.f32.xlu0 %v1634
    %v1636 = vpop.xlane.xlu0 %1635
    %v1637 = vsel %vm832, %v1602, 0.0
    %1638 = vadd.xlane.f32.xlu0 %v1637
    %v1639 = vpop.xlane.xlu0 %1638
    %v1640 = vsel %vm832, %v1604, 0.0
    %1641 = vadd.xlane.f32.xlu0 %v1640
    %v1642 = vpop.xlane.xlu0 %1641
    %v1643 = vsel %vm832, %v1606, 0.0
    %1644 = vadd.xlane.f32.xlu0 %v1643
    %v1645 = vpop.xlane.xlu0 %1644
    %v1646 = vsel %vm832, %v1608, 0.0
    %1647 = vadd.xlane.f32.xlu0 %v1646
    %v1648 = vpop.xlane.xlu0 %1647
    %v1649 = vsel %vm832, %v1610, 0.0
    %1650 = vadd.xlane.f32.xlu0 %v1649
    %v1651 = vpop.xlane.xlu0 %1650
    %v1652 = vsel %vm832, %v1612, 0.0
    %1653 = vadd.xlane.f32.xlu0 %v1652
    %v1654 = vpop.xlane.xlu0 %1653
    %v1655 = vsel %vm832, %v1614, 0.0
    %1656 = vadd.xlane.f32.xlu0 %v1655
    %v1657 = vpop.xlane.xlu0 %1656
    %v1658 = vsel %vm832, %v1616, 0.0
    %1659 = vadd.xlane.f32.xlu0 %v1658
    %v1660 = vpop.xlane.xlu0 %1659
    %v1661 = vsel %vm832, %v1618, 0.0
    %1662 = vadd.xlane.f32.xlu0 %v1661
    %v1663 = vpop.xlane.xlu0 %1662
    %v1664 = vsel %vm832, %v1620, 0.0
    %1665 = vadd.xlane.f32.xlu0 %v1664
    %v1666 = vpop.xlane.xlu0 %1665
    %v1667 = vsel %vm832, %v1622, 0.0
    %1668 = vadd.xlane.f32.xlu0 %v1667
    %v1669 = vpop.xlane.xlu0 %1668
    %v1670 = vsel %vm832, %v1624, 0.0
    %1671 = vadd.xlane.f32.xlu0 %v1670
    %v1672 = vpop.xlane.xlu0 %1671
    %v1673 = vrcp.pop %v1627
    %v1674 = vmul.f32 %v1594, %v1673
    %v1675 = vrcp.pop %v1630
    %v1676 = vmul.f32 %v1596, %v1675
    %v1677 = vrcp.pop %v1633
    %v1678 = vmul.f32 %v1598, %v1677
    %v1679 = vrcp.pop %v1636
    %v1680 = vmul.f32 %v1600, %v1679
    %v1681 = vrcp.pop %v1639
    %v1682 = vmul.f32 %v1602, %v1681
    %v1683 = vrcp.pop %v1642
    %v1684 = vmul.f32 %v1604, %v1683
    %v1685 = vrcp.pop %v1645
    %v1686 = vmul.f32 %v1606, %v1685
    %v1687 = vrcp.pop %v1648
    %v1688 = vmul.f32 %v1608, %v1687
    %v1689 = vrcp.pop %v1651
    %v1690 = vmul.f32 %v1610, %v1689
    %v1691 = vrcp.pop %v1654
    %v1692 = vmul.f32 %v1612, %v1691
    %v1693 = vrcp.pop %v1657
    %v1694 = vmul.f32 %v1614, %v1693
    %v1695 = vrcp.pop %v1660
    %v1696 = vmul.f32 %v1616, %v1695
    %v1697 = vrcp.pop %v1663
    %v1698 = vmul.f32 %v1618, %v1697
    %v1699 = vrcp.pop %v1666
    %v1700 = vmul.f32 %v1620, %v1699
    %v1701 = vrcp.pop %v1669
    %v1702 = vmul.f32 %v1622, %v1701
    %v1703 = vrcp.pop %v1672
    %v1704 = vmul.f32 %v1624, %v1703
    %v1706 = vsel %vm832, %v1674, 0
    %v1709 = vsel %vm832, %v1676, 0
    %1711 = vmatprep.subr.mxu0 0.0
    %1712 = vmatpush1.msra.mxu0 %v754
    %1713 = vmatprep.subr.mxu0 0.0
    %1714 = vmatpush1.msra.mxu0 %v759
    %1715 = vmatprep.subr.mxu0 0.0
    %1716 = vmatpush1.msra.mxu0 0.0
    %1717 = vmatprep.subr.mxu0 0.0
    %1718 = vmatpush1.msra.mxu0 0.0
    %1719 = vmatprep.subr.mxu0 0.0
    %1720 = vmatpush1.msra.mxu0 0.0
    %1721 = vmatprep.subr.mxu0 0.0
    %1722 = vmatpush1.msra.mxu0 0.0
    %1723 = vmatprep.subr.mxu0 0.0
    %1724 = vmatpush1.msra.mxu0 0.0
    %1725 = vmatprep.subr.mxu0 0.0
    %1726 = vmatpush1.msra.mxu0 0.0
    %1727 = vmatprep.subr.mxu0 0.0
    %1728 = vmatpush1.msra.mxu0 0.0
    %1729 = vmatprep.subr.mxu0 0.0
    %1730 = vmatpush1.msra.mxu0 0.0
    %1731 = vmatprep.subr.mxu0 0.0
    %1732 = vmatpush1.msra.mxu0 0.0
    %1733 = vmatprep.subr.mxu0 0.0
    %1734 = vmatpush1.msra.mxu0 0.0
    %1735 = vmatprep.subr.mxu0 0.0
    %1736 = vmatpush1.msra.mxu0 0.0
    %1737 = vmatprep.subr.mxu0 0.0
    %1738 = vmatpush1.msra.mxu0 0.0
    %1739 = vmatprep.subr.mxu0 0.0
    %1740 = vmatpush1.msra.mxu0 0.0
    %1741 = vmatprep.subr.mxu0 0.0
    %1742 = vmatpush1.msra.mxu0 0.0
    %1743 = vmatprep.subr.mxu0 0.0
    %1744 = vmatpush1.msra.mxu0 0.0
    %1745 = vmatprep.subr.mxu0 0.0
    %1746 = vmatpush1.msra.mxu0 0.0
    %1747 = vmatprep.subr.mxu0 0.0
    %1748 = vmatpush1.msra.mxu0 0.0
    %1749 = vmatprep.subr.mxu0 0.0
    %1750 = vmatpush1.msra.mxu0 0.0
    %1751 = vmatprep.subr.mxu0 0.0
    %1752 = vmatpush1.msra.mxu0 0.0
    %1753 = vmatprep.subr.mxu0 0.0
    %1754 = vmatpush1.msra.mxu0 0.0
    %1755 = vmatprep.subr.mxu0 0.0
    %1756 = vmatpush1.msra.mxu0 0.0
    %1757 = vmatprep.subr.mxu0 0.0
    %1758 = vmatpush1.msra.mxu0 0.0
    %1759 = vmatprep.subr.mxu0 0.0
    %1760 = vmatpush1.msra.mxu0 0.0
    %1761 = vmatprep.subr.mxu0 0.0
    %1762 = vmatpush1.msra.mxu0 0.0
    %1763 = vmatprep.subr.mxu0 0.0
    %1764 = vmatpush1.msra.mxu0 0.0
    %1765 = vmatprep.subr.mxu0 0.0
    %1766 = vmatpush1.msra.mxu0 0.0
    %1767 = vmatprep.subr.mxu0 0.0
    %1768 = vmatpush1.msra.mxu0 0.0
    %1769 = vmatprep.subr.mxu0 0.0
    %1770 = vmatpush1.msra.mxu0 0.0
    %1771 = vmatprep.subr.mxu0 0.0
    %1772 = vmatpush1.msra.mxu0 0.0
    %1773 = vmatprep.subr.mxu0 0.0
    %1774 = vmatpush1.msra.mxu0 0.0
    %1775 = vmatprep.mubr.f32.mxu0 0.0
    %1776 = vmatmul.mubr.f32.gmra.mrb[0].mxu0 %v1706
    %v1777 = vpop.f32.mrb[0].mxu0
    %v1778 = vadd.f32 0.0, %v1777
    %v1779 = vpop.f32.mrb[0].mxu0
    %1780 = vmatprep.mubr.f32.mxu0 0.0
    %1781 = vmatmul.mubr.f32.gmra.mrb[0].mxu0 %v1709
    %v1782 = vpop.f32.mrb[0].mxu0
    %v1783 = vadd.f32 0.0, %v1782
    %v1784 = vpop.f32.mrb[0].mxu0
    %1785 = vdwg.mxu0
    %v1787 = vsel %vm832, %v1678, 0
    %v1790 = vsel %vm832, %v1680, 0
    %1792 = vmatprep.subr.mxu0 0.0
    %1793 = vmatpush1.msra.mxu0 %v764
    %1794 = vmatprep.subr.mxu0 0.0
    %1795 = vmatpush1.msra.mxu0 %v769
    %1796 = vmatprep.subr.mxu0 0.0
    %1797 = vmatpush1.msra.mxu0 0.0
    %1798 = vmatprep.subr.mxu0 0.0
    %1799 = vmatpush1.msra.mxu0 0.0
    %1800 = vmatprep.subr.mxu0 0.0
    %1801 = vmatpush1.msra.mxu0 0.0
    %1802 = vmatprep.subr.mxu0 0.0
    %1803 = vmatpush1.msra.mxu0 0.0
    %1804 = vmatprep.subr.mxu0 0.0
    %1805 = vmatpush1.msra.mxu0 0.0
    %1806 = vmatprep.subr.mxu0 0.0
    %1807 = vmatpush1.msra.mxu0 0.0
    %1808 = vmatprep.subr.mxu0 0.0
    %1809 = vmatpush1.msra.mxu0 0.0
    %1810 = vmatprep.subr.mxu0 0.0
    %1811 = vmatpush1.msra.mxu0 0.0
    %1812 = vmatprep.subr.mxu0 0.0
    %1813 = vmatpush1.msra.mxu0 0.0
    %1814 = vmatprep.subr.mxu0 0.0
    %1815 = vmatpush1.msra.mxu0 0.0
    %1816 = vmatprep.subr.mxu0 0.0
    %1817 = vmatpush1.msra.mxu0 0.0
    %1818 = vmatprep.subr.mxu0 0.0
    %1819 = vmatpush1.msra.mxu0 0.0
    %1820 = vmatprep.subr.mxu0 0.0
    %1821 = vmatpush1.msra.mxu0 0.0
    %1822 = vmatprep.subr.mxu0 0.0
    %1823 = vmatpush1.msra.mxu0 0.0
    %1824 = vmatprep.subr.mxu0 0.0
    %1825 = vmatpush1.msra.mxu0 0.0
    %1826 = vmatprep.subr.mxu0 0.0
    %1827 = vmatpush1.msra.mxu0 0.0
    %1828 = vmatprep.subr.mxu0 0.0
    %1829 = vmatpush1.msra.mxu0 0.0
    %1830 = vmatprep.subr.mxu0 0.0
    %1831 = vmatpush1.msra.mxu0 0.0
    %1832 = vmatprep.subr.mxu0 0.0
    %1833 = vmatpush1.msra.mxu0 0.0
    %1834 = vmatprep.subr.mxu0 0.0
    %1835 = vmatpush1.msra.mxu0 0.0
    %1836 = vmatprep.subr.mxu0 0.0
    %1837 = vmatpush1.msra.mxu0 0.0
    %1838 = vmatprep.subr.mxu0 0.0
    %1839 = vmatpush1.msra.mxu0 0.0
    %1840 = vmatprep.subr.mxu0 0.0
    %1841 = vmatpush1.msra.mxu0 0.0
    %1842 = vmatprep.subr.mxu0 0.0
    %1843 = vmatpush1.msra.mxu0 0.0
    %1844 = vmatprep.subr.mxu0 0.0
    %1845 = vmatpush1.msra.mxu0 0.0
    %1846 = vmatprep.subr.mxu0 0.0
    %1847 = vmatpush1.msra.mxu0 0.0
    %1848 = vmatprep.subr.mxu0 0.0
    %1849 = vmatpush1.msra.mxu0 0.0
    %1850 = vmatprep.subr.mxu0 0.0
    %1851 = vmatpush1.msra.mxu0 0.0
    %1852 = vmatprep.subr.mxu0 0.0
    %1853 = vmatpush1.msra.mxu0 0.0
    %1854 = vmatprep.subr.mxu0 0.0
    %1855 = vmatpush1.msra.mxu0 0.0
    %1856 = vmatprep.mubr.f32.mxu0 0.0
    %1857 = vmatmul.mubr.f32.gmra.mrb[0].mxu0 %v1787
    %v1858 = vpop.f32.mrb[0].mxu0
    %v1859 = vadd.f32 0.0, %v1858
    %v1860 = vpop.f32.mrb[0].mxu0
    %1861 = vmatprep.mubr.f32.mxu0 0.0
    %1862 = vmatmul.mubr.f32.gmra.mrb[0].mxu0 %v1790
    %v1863 = vpop.f32.mrb[0].mxu0
    %v1864 = vadd.f32 0.0, %v1863
    %v1865 = vpop.f32.mrb[0].mxu0
    %1866 = vdwg.mxu0
    %v1868 = vsel %vm832, %v1682, 0
    %v1871 = vsel %vm832, %v1684, 0
    %1873 = vmatprep.subr.mxu0 0.0
    %1874 = vmatpush1.msra.mxu0 %v774
    %1875 = vmatprep.subr.mxu0 0.0
    %1876 = vmatpush1.msra.mxu0 %v779
    %1877 = vmatprep.subr.mxu0 0.0
    %1878 = vmatpush1.msra.mxu0 0.0
    %1879 = vmatprep.subr.mxu0 0.0
    %1880 = vmatpush1.msra.mxu0 0.0
    %1881 = vmatprep.subr.mxu0 0.0
    %1882 = vmatpush1.msra.mxu0 0.0
    %1883 = vmatprep.subr.mxu0 0.0
    %1884 = vmatpush1.msra.mxu0 0.0
    %1885 = vmatprep.subr.mxu0 0.0
    %1886 = vmatpush1.msra.mxu0 0.0
    %1887 = vmatprep.subr.mxu0 0.0
    %1888 = vmatpush1.msra.mxu0 0.0
    %1889 = vmatprep.subr.mxu0 0.0
    %1890 = vmatpush1.msra.mxu0 0.0
    %1891 = vmatprep.subr.mxu0 0.0
    %1892 = vmatpush1.msra.mxu0 0.0
    %1893 = vmatprep.subr.mxu0 0.0
    %1894 = vmatpush1.msra.mxu0 0.0
    %1895 = vmatprep.subr.mxu0 0.0
    %1896 = vmatpush1.msra.mxu0 0.0
    %1897 = vmatprep.subr.mxu0 0.0
    %1898 = vmatpush1.msra.mxu0 0.0
    %1899 = vmatprep.subr.mxu0 0.0
    %1900 = vmatpush1.msra.mxu0 0.0
    %1901 = vmatprep.subr.mxu0 0.0
    %1902 = vmatpush1.msra.mxu0 0.0
    %1903 = vmatprep.subr.mxu0 0.0
    %1904 = vmatpush1.msra.mxu0 0.0
    %1905 = vmatprep.subr.mxu0 0.0
    %1906 = vmatpush1.msra.mxu0 0.0
    %1907 = vmatprep.subr.mxu0 0.0
    %1908 = vmatpush1.msra.mxu0 0.0
    %1909 = vmatprep.subr.mxu0 0.0
    %1910 = vmatpush1.msra.mxu0 0.0
    %1911 = vmatprep.subr.mxu0 0.0
    %1912 = vmatpush1.msra.mxu0 0.0
    %1913 = vmatprep.subr.mxu0 0.0
    %1914 = vmatpush1.msra.mxu0 0.0
    %1915 = vmatprep.subr.mxu0 0.0
    %1916 = vmatpush1.msra.mxu0 0.0
    %1917 = vmatprep.subr.mxu0 0.0
    %1918 = vmatpush1.msra.mxu0 0.0
    %1919 = vmatprep.subr.mxu0 0.0
    %1920 = vmatpush1.msra.mxu0 0.0
    %1921 = vmatprep.subr.mxu0 0.0
    %1922 = vmatpush1.msra.mxu0 0.0
    %1923 = vmatprep.subr.mxu0 0.0
    %1924 = vmatpush1.msra.mxu0 0.0
    %1925 = vmatprep.subr.mxu0 0.0
    %1926 = vmatpush1.msra.mxu0 0.0
    %1927 = vmatprep.subr.mxu0 0.0
    %1928 = vmatpush1.msra.mxu0 0.0
    %1929 = vmatprep.subr.mxu0 0.0
    %1930 = vmatpush1.msra.mxu0 0.0
    %1931 = vmatprep.subr.mxu0 0.0
    %1932 = vmatpush1.msra.mxu0 0.0
    %1933 = vmatprep.subr.mxu0 0.0
    %1934 = vmatpush1.msra.mxu0 0.0
    %1935 = vmatprep.subr.mxu0 0.0
    %1936 = vmatpush1.msra.mxu0 0.0
    %1937 = vmatprep.mubr.f32.mxu0 0.0
    %1938 = vmatmul.mubr.f32.gmra.mrb[0].mxu0 %v1868
    %v1939 = vpop.f32.mrb[0].mxu0
    %v1940 = vadd.f32 0.0, %v1939
    %v1941 = vpop.f32.mrb[0].mxu0
    %1942 = vmatprep.mubr.f32.mxu0 0.0
    %1943 = vmatmul.mubr.f32.gmra.mrb[0].mxu0 %v1871
    %v1944 = vpop.f32.mrb[0].mxu0
    %v1945 = vadd.f32 0.0, %v1944
    %v1946 = vpop.f32.mrb[0].mxu0
    %1947 = vdwg.mxu0
    %v1949 = vsel %vm832, %v1686, 0
    %v1952 = vsel %vm832, %v1688, 0
    %1954 = vmatprep.subr.mxu0 0.0
    %1955 = vmatpush1.msra.mxu0 %v784
    %1956 = vmatprep.subr.mxu0 0.0
    %1957 = vmatpush1.msra.mxu0 %v789
    %1958 = vmatprep.subr.mxu0 0.0
    %1959 = vmatpush1.msra.mxu0 0.0
    %1960 = vmatprep.subr.mxu0 0.0
    %1961 = vmatpush1.msra.mxu0 0.0
    %1962 = vmatprep.subr.mxu0 0.0
    %1963 = vmatpush1.msra.mxu0 0.0
    %1964 = vmatprep.subr.mxu0 0.0
    %1965 = vmatpush1.msra.mxu0 0.0
    %1966 = vmatprep.subr.mxu0 0.0
    %1967 = vmatpush1.msra.mxu0 0.0
    %1968 = vmatprep.subr.mxu0 0.0
    %1969 = vmatpush1.msra.mxu0 0.0
    %1970 = vmatprep.subr.mxu0 0.0
    %1971 = vmatpush1.msra.mxu0 0.0
    %1972 = vmatprep.subr.mxu0 0.0
    %1973 = vmatpush1.msra.mxu0 0.0
    %1974 = vmatprep.subr.mxu0 0.0
    %1975 = vmatpush1.msra.mxu0 0.0
    %1976 = vmatprep.subr.mxu0 0.0
    %1977 = vmatpush1.msra.mxu0 0.0
    %1978 = vmatprep.subr.mxu0 0.0
    %1979 = vmatpush1.msra.mxu0 0.0
    %1980 = vmatprep.subr.mxu0 0.0
    %1981 = vmatpush1.msra.mxu0 0.0
    %1982 = vmatprep.subr.mxu0 0.0
    %1983 = vmatpush1.msra.mxu0 0.0
    %1984 = vmatprep.subr.mxu0 0.0
    %1985 = vmatpush1.msra.mxu0 0.0
    %1986 = vmatprep.subr.mxu0 0.0
    %1987 = vmatpush1.msra.mxu0 0.0
    %1988 = vmatprep.subr.mxu0 0.0
    %1989 = vmatpush1.msra.mxu0 0.0
    %1990 = vmatprep.subr.mxu0 0.0
    %1991 = vmatpush1.msra.mxu0 0.0
    %1992 = vmatprep.subr.mxu0 0.0
    %1993 = vmatpush1.msra.mxu0 0.0
    %1994 = vmatprep.subr.mxu0 0.0
    %1995 = vmatpush1.msra.mxu0 0.0
    %1996 = vmatprep.subr.mxu0 0.0
    %1997 = vmatpush1.msra.mxu0 0.0
    %1998 = vmatprep.subr.mxu0 0.0
    %1999 = vmatpush1.msra.mxu0 0.0
    %2000 = vmatprep.subr.mxu0 0.0
    %2001 = vmatpush1.msra.mxu0 0.0
    %2002 = vmatprep.subr.mxu0 0.0
    %2003 = vmatpush1.msra.mxu0 0.0
    %2004 = vmatprep.subr.mxu0 0.0
    %2005 = vmatpush1.msra.mxu0 0.0
    %2006 = vmatprep.subr.mxu0 0.0
    %2007 = vmatpush1.msra.mxu0 0.0
    %2008 = vmatprep.subr.mxu0 0.0
    %2009 = vmatpush1.msra.mxu0 0.0
    %2010 = vmatprep.subr.mxu0 0.0
    %2011 = vmatpush1.msra.mxu0 0.0
    %2012 = vmatprep.subr.mxu0 0.0
    %2013 = vmatpush1.msra.mxu0 0.0
    %2014 = vmatprep.subr.mxu0 0.0
    %2015 = vmatpush1.msra.mxu0 0.0
    %2016 = vmatprep.subr.mxu0 0.0
    %2017 = vmatpush1.msra.mxu0 0.0
    %2018 = vmatprep.mubr.f32.mxu0 0.0
    %2019 = vmatmul.mubr.f32.gmra.mrb[0].mxu0 %v1949
    %v2020 = vpop.f32.mrb[0].mxu0
    %v2021 = vadd.f32 0.0, %v2020
    %v2022 = vpop.f32.mrb[0].mxu0
    %2023 = vmatprep.mubr.f32.mxu0 0.0
    %2024 = vmatmul.mubr.f32.gmra.mrb[0].mxu0 %v1952
    %v2025 = vpop.f32.mrb[0].mxu0
    %v2026 = vadd.f32 0.0, %v2025
    %v2027 = vpop.f32.mrb[0].mxu0
    %2028 = vdwg.mxu0
    %v2030 = vsel %vm832, %v1690, 0
    %v2033 = vsel %vm832, %v1692, 0
    %2035 = vmatprep.subr.mxu0 0.0
    %2036 = vmatpush1.msra.mxu0 %v794
    %2037 = vmatprep.subr.mxu0 0.0
    %2038 = vmatpush1.msra.mxu0 %v799
    %2039 = vmatprep.subr.mxu0 0.0
    %2040 = vmatpush1.msra.mxu0 0.0
    %2041 = vmatprep.subr.mxu0 0.0
    %2042 = vmatpush1.msra.mxu0 0.0
    %2043 = vmatprep.subr.mxu0 0.0
    %2044 = vmatpush1.msra.mxu0 0.0
    %2045 = vmatprep.subr.mxu0 0.0
    %2046 = vmatpush1.msra.mxu0 0.0
    %2047 = vmatprep.subr.mxu0 0.0
    %2048 = vmatpush1.msra.mxu0 0.0
    %2049 = vmatprep.subr.mxu0 0.0
    %2050 = vmatpush1.msra.mxu0 0.0
    %2051 = vmatprep.subr.mxu0 0.0
    %2052 = vmatpush1.msra.mxu0 0.0
    %2053 = vmatprep.subr.mxu0 0.0
    %2054 = vmatpush1.msra.mxu0 0.0
    %2055 = vmatprep.subr.mxu0 0.0
    %2056 = vmatpush1.msra.mxu0 0.0
    %2057 = vmatprep.subr.mxu0 0.0
    %2058 = vmatpush1.msra.mxu0 0.0
    %2059 = vmatprep.subr.mxu0 0.0
    %2060 = vmatpush1.msra.mxu0 0.0
    %2061 = vmatprep.subr.mxu0 0.0
    %2062 = vmatpush1.msra.mxu0 0.0
    %2063 = vmatprep.subr.mxu0 0.0
    %2064 = vmatpush1.msra.mxu0 0.0
    %2065 = vmatprep.subr.mxu0 0.0
    %2066 = vmatpush1.msra.mxu0 0.0
    %2067 = vmatprep.subr.mxu0 0.0
    %2068 = vmatpush1.msra.mxu0 0.0
    %2069 = vmatprep.subr.mxu0 0.0
    %2070 = vmatpush1.msra.mxu0 0.0
    %2071 = vmatprep.subr.mxu0 0.0
    %2072 = vmatpush1.msra.mxu0 0.0
    %2073 = vmatprep.subr.mxu0 0.0
    %2074 = vmatpush1.msra.mxu0 0.0
    %2075 = vmatprep.subr.mxu0 0.0
    %2076 = vmatpush1.msra.mxu0 0.0
    %2077 = vmatprep.subr.mxu0 0.0
    %2078 = vmatpush1.msra.mxu0 0.0
    %2079 = vmatprep.subr.mxu0 0.0
    %2080 = vmatpush1.msra.mxu0 0.0
    %2081 = vmatprep.subr.mxu0 0.0
    %2082 = vmatpush1.msra.mxu0 0.0
    %2083 = vmatprep.subr.mxu0 0.0
    %2084 = vmatpush1.msra.mxu0 0.0
    %2085 = vmatprep.subr.mxu0 0.0
    %2086 = vmatpush1.msra.mxu0 0.0
    %2087 = vmatprep.subr.mxu0 0.0
    %2088 = vmatpush1.msra.mxu0 0.0
    %2089 = vmatprep.subr.mxu0 0.0
    %2090 = vmatpush1.msra.mxu0 0.0
    %2091 = vmatprep.subr.mxu0 0.0
    %2092 = vmatpush1.msra.mxu0 0.0
    %2093 = vmatprep.subr.mxu0 0.0
    %2094 = vmatpush1.msra.mxu0 0.0
    %2095 = vmatprep.subr.mxu0 0.0
    %2096 = vmatpush1.msra.mxu0 0.0
    %2097 = vmatprep.subr.mxu0 0.0
    %2098 = vmatpush1.msra.mxu0 0.0
    %2099 = vmatprep.mubr.f32.mxu0 0.0
    %2100 = vmatmul.mubr.f32.gmra.mrb[0].mxu0 %v2030
    %v2101 = vpop.f32.mrb[0].mxu0
    %v2102 = vadd.f32 0.0, %v2101
    %v2103 = vpop.f32.mrb[0].mxu0
    %2104 = vmatprep.mubr.f32.mxu0 0.0
    %2105 = vmatmul.mubr.f32.gmra.mrb[0].mxu0 %v2033
    %v2106 = vpop.f32.mrb[0].mxu0
    %v2107 = vadd.f32 0.0, %v2106
    %v2108 = vpop.f32.mrb[0].mxu0
    %2109 = vdwg.mxu0
    %v2111 = vsel %vm832, %v1694, 0
    %v2114 = vsel %vm832, %v1696, 0
    %2116 = vmatprep.subr.mxu0 0.0
    %2117 = vmatpush1.msra.mxu0 %v804
    %2118 = vmatprep.subr.mxu0 0.0
    %2119 = vmatpush1.msra.mxu0 %v809
    %2120 = vmatprep.subr.mxu0 0.0
    %2121 = vmatpush1.msra.mxu0 0.0
    %2122 = vmatprep.subr.mxu0 0.0
    %2123 = vmatpush1.msra.mxu0 0.0
    %2124 = vmatprep.subr.mxu0 0.0
    %2125 = vmatpush1.msra.mxu0 0.0
    %2126 = vmatprep.subr.mxu0 0.0
    %2127 = vmatpush1.msra.mxu0 0.0
    %2128 = vmatprep.subr.mxu0 0.0
    %2129 = vmatpush1.msra.mxu0 0.0
    %2130 = vmatprep.subr.mxu0 0.0
    %2131 = vmatpush1.msra.mxu0 0.0
    %2132 = vmatprep.subr.mxu0 0.0
    %2133 = vmatpush1.msra.mxu0 0.0
    %2134 = vmatprep.subr.mxu0 0.0
    %2135 = vmatpush1.msra.mxu0 0.0
    %2136 = vmatprep.subr.mxu0 0.0
    %2137 = vmatpush1.msra.mxu0 0.0
    %2138 = vmatprep.subr.mxu0 0.0
    %2139 = vmatpush1.msra.mxu0 0.0
    %2140 = vmatprep.subr.mxu0 0.0
    %2141 = vmatpush1.msra.mxu0 0.0
    %2142 = vmatprep.subr.mxu0 0.0
    %2143 = vmatpush1.msra.mxu0 0.0
    %2144 = vmatprep.subr.mxu0 0.0
    %2145 = vmatpush1.msra.mxu0 0.0
    %2146 = vmatprep.subr.mxu0 0.0
    %2147 = vmatpush1.msra.mxu0 0.0
    %2148 = vmatprep.subr.mxu0 0.0
    %2149 = vmatpush1.msra.mxu0 0.0
    %2150 = vmatprep.subr.mxu0 0.0
    %2151 = vmatpush1.msra.mxu0 0.0
    %2152 = vmatprep.subr.mxu0 0.0
    %2153 = vmatpush1.msra.mxu0 0.0
    %2154 = vmatprep.subr.mxu0 0.0
    %2155 = vmatpush1.msra.mxu0 0.0
    %2156 = vmatprep.subr.mxu0 0.0
    %2157 = vmatpush1.msra.mxu0 0.0
    %2158 = vmatprep.subr.mxu0 0.0
    %2159 = vmatpush1.msra.mxu0 0.0
    %2160 = vmatprep.subr.mxu0 0.0
    %2161 = vmatpush1.msra.mxu0 0.0
    %2162 = vmatprep.subr.mxu0 0.0
    %2163 = vmatpush1.msra.mxu0 0.0
    %2164 = vmatprep.subr.mxu0 0.0
    %2165 = vmatpush1.msra.mxu0 0.0
    %2166 = vmatprep.subr.mxu0 0.0
    %2167 = vmatpush1.msra.mxu0 0.0
    %2168 = vmatprep.subr.mxu0 0.0
    %2169 = vmatpush1.msra.mxu0 0.0
    %2170 = vmatprep.subr.mxu0 0.0
    %2171 = vmatpush1.msra.mxu0 0.0
    %2172 = vmatprep.subr.mxu0 0.0
    %2173 = vmatpush1.msra.mxu0 0.0
    %2174 = vmatprep.subr.mxu0 0.0
    %2175 = vmatpush1.msra.mxu0 0.0
    %2176 = vmatprep.subr.mxu0 0.0
    %2177 = vmatpush1.msra.mxu0 0.0
    %2178 = vmatprep.subr.mxu0 0.0
    %2179 = vmatpush1.msra.mxu0 0.0
    %2180 = vmatprep.mubr.f32.mxu0 0.0
    %2181 = vmatmul.mubr.f32.gmra.mrb[0].mxu0 %v2111
    %v2182 = vpop.f32.mrb[0].mxu0
    %v2183 = vadd.f32 0.0, %v2182
    %v2184 = vpop.f32.mrb[0].mxu0
    %2185 = vmatprep.mubr.f32.mxu0 0.0
    %2186 = vmatmul.mubr.f32.gmra.mrb[0].mxu0 %v2114
    %v2187 = vpop.f32.mrb[0].mxu0
    %v2188 = vadd.f32 0.0, %v2187
    %v2189 = vpop.f32.mrb[0].mxu0
    %2190 = vdwg.mxu0
    %v2192 = vsel %vm832, %v1698, 0
    %v2195 = vsel %vm832, %v1700, 0
    %2197 = vmatprep.subr.mxu0 0.0
    %2198 = vmatpush1.msra.mxu0 %v814
    %2199 = vmatprep.subr.mxu0 0.0
    %2200 = vmatpush1.msra.mxu0 %v819
    %2201 = vmatprep.subr.mxu0 0.0
    %2202 = vmatpush1.msra.mxu0 0.0
    %2203 = vmatprep.subr.mxu0 0.0
    %2204 = vmatpush1.msra.mxu0 0.0
    %2205 = vmatprep.subr.mxu0 0.0
    %2206 = vmatpush1.msra.mxu0 0.0
    %2207 = vmatprep.subr.mxu0 0.0
    %2208 = vmatpush1.msra.mxu0 0.0
    %2209 = vmatprep.subr.mxu0 0.0
    %2210 = vmatpush1.msra.mxu0 0.0
    %2211 = vmatprep.subr.mxu0 0.0
    %2212 = vmatpush1.msra.mxu0 0.0
    %2213 = vmatprep.subr.mxu0 0.0
    %2214 = vmatpush1.msra.mxu0 0.0
    %2215 = vmatprep.subr.mxu0 0.0
    %2216 = vmatpush1.msra.mxu0 0.0
    %2217 = vmatprep.subr.mxu0 0.0
    %2218 = vmatpush1.msra.mxu0 0.0
    %2219 = vmatprep.subr.mxu0 0.0
    %2220 = vmatpush1.msra.mxu0 0.0
    %2221 = vmatprep.subr.mxu0 0.0
    %2222 = vmatpush1.msra.mxu0 0.0
    %2223 = vmatprep.subr.mxu0 0.0
    %2224 = vmatpush1.msra.mxu0 0.0
    %2225 = vmatprep.subr.mxu0 0.0
    %2226 = vmatpush1.msra.mxu0 0.0
    %2227 = vmatprep.subr.mxu0 0.0
    %2228 = vmatpush1.msra.mxu0 0.0
    %2229 = vmatprep.subr.mxu0 0.0
    %2230 = vmatpush1.msra.mxu0 0.0
    %2231 = vmatprep.subr.mxu0 0.0
    %2232 = vmatpush1.msra.mxu0 0.0
    %2233 = vmatprep.subr.mxu0 0.0
    %2234 = vmatpush1.msra.mxu0 0.0
    %2235 = vmatprep.subr.mxu0 0.0
    %2236 = vmatpush1.msra.mxu0 0.0
    %2237 = vmatprep.subr.mxu0 0.0
    %2238 = vmatpush1.msra.mxu0 0.0
    %2239 = vmatprep.subr.mxu0 0.0
    %2240 = vmatpush1.msra.mxu0 0.0
    %2241 = vmatprep.subr.mxu0 0.0
    %2242 = vmatpush1.msra.mxu0 0.0
    %2243 = vmatprep.subr.mxu0 0.0
    %2244 = vmatpush1.msra.mxu0 0.0
    %2245 = vmatprep.subr.mxu0 0.0
    %2246 = vmatpush1.msra.mxu0 0.0
    %2247 = vmatprep.subr.mxu0 0.0
    %2248 = vmatpush1.msra.mxu0 0.0
    %2249 = vmatprep.subr.mxu0 0.0
    %2250 = vmatpush1.msra.mxu0 0.0
    %2251 = vmatprep.subr.mxu0 0.0
    %2252 = vmatpush1.msra.mxu0 0.0
    %2253 = vmatprep.subr.mxu0 0.0
    %2254 = vmatpush1.msra.mxu0 0.0
    %2255 = vmatprep.subr.mxu0 0.0
    %2256 = vmatpush1.msra.mxu0 0.0
    %2257 = vmatprep.subr.mxu0 0.0
    %2258 = vmatpush1.msra.mxu0 0.0
    %2259 = vmatprep.subr.mxu0 0.0
    %2260 = vmatpush1.msra.mxu0 0.0
    %2261 = vmatprep.mubr.f32.mxu0 0.0
    %2262 = vmatmul.mubr.f32.gmra.mrb[0].mxu0 %v2192
    %v2263 = vpop.f32.mrb[0].mxu0
    %v2264 = vadd.f32 0.0, %v2263
    %v2265 = vpop.f32.mrb[0].mxu0
    %2266 = vmatprep.mubr.f32.mxu0 0.0
    %2267 = vmatmul.mubr.f32.gmra.mrb[0].mxu0 %v2195
    %v2268 = vpop.f32.mrb[0].mxu0
    %v2269 = vadd.f32 0.0, %v2268
    %v2270 = vpop.f32.mrb[0].mxu0
    %2271 = vdwg.mxu0
    %v2273 = vsel %vm832, %v1702, 0
    %v2276 = vsel %vm832, %v1704, 0
    %2278 = vmatprep.subr.mxu0 0.0
    %2279 = vmatpush1.msra.mxu0 %v824
    %2280 = vmatprep.subr.mxu0 0.0
    %2281 = vmatpush1.msra.mxu0 %v829
    %2282 = vmatprep.subr.mxu0 0.0
    %2283 = vmatpush1.msra.mxu0 0.0
    %2284 = vmatprep.subr.mxu0 0.0
    %2285 = vmatpush1.msra.mxu0 0.0
    %2286 = vmatprep.subr.mxu0 0.0
    %2287 = vmatpush1.msra.mxu0 0.0
    %2288 = vmatprep.subr.mxu0 0.0
    %2289 = vmatpush1.msra.mxu0 0.0
    %2290 = vmatprep.subr.mxu0 0.0
    %2291 = vmatpush1.msra.mxu0 0.0
    %2292 = vmatprep.subr.mxu0 0.0
    %2293 = vmatpush1.msra.mxu0 0.0
    %2294 = vmatprep.subr.mxu0 0.0
    %2295 = vmatpush1.msra.mxu0 0.0
    %2296 = vmatprep.subr.mxu0 0.0
    %2297 = vmatpush1.msra.mxu0 0.0
    %2298 = vmatprep.subr.mxu0 0.0
    %2299 = vmatpush1.msra.mxu0 0.0
    %2300 = vmatprep.subr.mxu0 0.0
    %2301 = vmatpush1.msra.mxu0 0.0
    %2302 = vmatprep.subr.mxu0 0.0
    %2303 = vmatpush1.msra.mxu0 0.0
    %2304 = vmatprep.subr.mxu0 0.0
    %2305 = vmatpush1.msra.mxu0 0.0
    %2306 = vmatprep.subr.mxu0 0.0
    %2307 = vmatpush1.msra.mxu0 0.0
    %2308 = vmatprep.subr.mxu0 0.0
    %2309 = vmatpush1.msra.mxu0 0.0
    %2310 = vmatprep.subr.mxu0 0.0
    %2311 = vmatpush1.msra.mxu0 0.0
    %2312 = vmatprep.subr.mxu0 0.0
    %2313 = vmatpush1.msra.mxu0 0.0
    %2314 = vmatprep.subr.mxu0 0.0
    %2315 = vmatpush1.msra.mxu0 0.0
    %2316 = vmatprep.subr.mxu0 0.0
    %2317 = vmatpush1.msra.mxu0 0.0
    %2318 = vmatprep.subr.mxu0 0.0
    %2319 = vmatpush1.msra.mxu0 0.0
    %2320 = vmatprep.subr.mxu0 0.0
    %2321 = vmatpush1.msra.mxu0 0.0
    %2322 = vmatprep.subr.mxu0 0.0
    %2323 = vmatpush1.msra.mxu0 0.0
    %2324 = vmatprep.subr.mxu0 0.0
    %2325 = vmatpush1.msra.mxu0 0.0
    %2326 = vmatprep.subr.mxu0 0.0
    %2327 = vmatpush1.msra.mxu0 0.0
    %2328 = vmatprep.subr.mxu0 0.0
    %2329 = vmatpush1.msra.mxu0 0.0
    %2330 = vmatprep.subr.mxu0 0.0
    %2331 = vmatpush1.msra.mxu0 0.0
    %2332 = vmatprep.subr.mxu0 0.0
    %2333 = vmatpush1.msra.mxu0 0.0
    %2334 = vmatprep.subr.mxu0 0.0
    %2335 = vmatpush1.msra.mxu0 0.0
    %2336 = vmatprep.subr.mxu0 0.0
    %2337 = vmatpush1.msra.mxu0 0.0
    %2338 = vmatprep.subr.mxu0 0.0
    %2339 = vmatpush1.msra.mxu0 0.0
    %2340 = vmatprep.subr.mxu0 0.0
    %2341 = vmatpush1.msra.mxu0 0.0
    %2342 = vmatprep.mubr.f32.mxu0 0.0
    %2343 = vmatmul.mubr.f32.gmra.mrb[0].mxu0 %v2273
    %v2344 = vpop.f32.mrb[0].mxu0
    %v2345 = vadd.f32 0.0, %v2344
    %v2346 = vpop.f32.mrb[0].mxu0
    %2347 = vmatprep.mubr.f32.mxu0 0.0
    %2348 = vmatmul.mubr.f32.gmra.mrb[0].mxu0 %v2276
    %v2349 = vpop.f32.mrb[0].mxu0
    %v2350 = vadd.f32 0.0, %v2349
    %v2351 = vpop.f32.mrb[0].mxu0
    %2352 = vdwg.mxu0
    %v2353 = vld [vmem:[%s7] sm:$0xff]
    %v2354 = vld [vmem:[%s7 + $0x8] sm:$0xff]
    %s2355 = scalar_lea.vmem %s4, 64
    %v2356 = vld [vmem:[%s2355] sm:$0xff]
    %v2357 = vld [vmem:[%s2355 + $0x8] sm:$0xff]
    %v2358 = vld [vmem:[%s2355 + $0x10] sm:$0xff]
    %v2359 = vld [vmem:[%s2355 + $0x18] sm:$0xff]
    %v2360 = vld [vmem:[%s2355 + $0x20] sm:$0xff]
    %v2361 = vld [vmem:[%s2355 + $0x28] sm:$0xff]
    %v2362 = vld [vmem:[%s2355 + $0x30] sm:$0xff]
    %v2363 = vld [vmem:[%s2355 + $0x38] sm:$0xff]
    %2364 = vmatprep.subr.mxu0 0.0
    %2365 = vmatpush1.msra.mxu0 %v2356
    %2366 = vmatprep.subr.mxu0 0.0
    %2367 = vmatpush1.msra.mxu0 %v2357
    %2368 = vmatprep.subr.mxu0 0.0
    %2369 = vmatpush1.msra.mxu0 %v2358
    %2370 = vmatprep.subr.mxu0 0.0
    %2371 = vmatpush1.msra.mxu0 %v2359
    %2372 = vmatprep.subr.mxu0 0.0
    %2373 = vmatpush1.msra.mxu0 %v2360
    %2374 = vmatprep.subr.mxu0 0.0
    %2375 = vmatpush1.msra.mxu0 %v2361
    %2376 = vmatprep.subr.mxu0 0.0
    %2377 = vmatpush1.msra.mxu0 %v2362
    %2378 = vmatprep.subr.mxu0 0.0
    %2379 = vmatpush1.msra.mxu0 %v2363
    %2380 = vmatprep.subr.mxu0 0.0
    %2381 = vmatpush1.msra.mxu0 0.0
    %2382 = vmatprep.subr.mxu0 0.0
    %2383 = vmatpush1.msra.mxu0 0.0
    %2384 = vmatprep.subr.mxu0 0.0
    %2385 = vmatpush1.msra.mxu0 0.0
    %2386 = vmatprep.subr.mxu0 0.0
    %2387 = vmatpush1.msra.mxu0 0.0
    %2388 = vmatprep.subr.mxu0 0.0
    %2389 = vmatpush1.msra.mxu0 0.0
    %2390 = vmatprep.subr.mxu0 0.0
    %2391 = vmatpush1.msra.mxu0 0.0
    %2392 = vmatprep.subr.mxu0 0.0
    %2393 = vmatpush1.msra.mxu0 0.0
    %2394 = vmatprep.subr.mxu0 0.0
    %2395 = vmatpush1.msra.mxu0 0.0
    %2396 = vmatprep.subr.mxu0 0.0
    %2397 = vmatpush1.msra.mxu0 0.0
    %2398 = vmatprep.subr.mxu0 0.0
    %2399 = vmatpush1.msra.mxu0 0.0
    %2400 = vmatprep.subr.mxu0 0.0
    %2401 = vmatpush1.msra.mxu0 0.0
    %2402 = vmatprep.subr.mxu0 0.0
    %2403 = vmatpush1.msra.mxu0 0.0
    %2404 = vmatprep.subr.mxu0 0.0
    %2405 = vmatpush1.msra.mxu0 0.0
    %2406 = vmatprep.subr.mxu0 0.0
    %2407 = vmatpush1.msra.mxu0 0.0
    %2408 = vmatprep.subr.mxu0 0.0
    %2409 = vmatpush1.msra.mxu0 0.0
    %2410 = vmatprep.subr.mxu0 0.0
    %2411 = vmatpush1.msra.mxu0 0.0
    %2412 = vmatprep.subr.mxu0 0.0
    %2413 = vmatpush1.msra.mxu0 0.0
    %2414 = vmatprep.subr.mxu0 0.0
    %2415 = vmatpush1.msra.mxu0 0.0
    %2416 = vmatprep.subr.mxu0 0.0
    %2417 = vmatpush1.msra.mxu0 0.0
    %2418 = vmatprep.subr.mxu0 0.0
    %2419 = vmatpush1.msra.mxu0 0.0
    %2420 = vmatprep.subr.mxu0 0.0
    %2421 = vmatpush1.msra.mxu0 0.0
    %2422 = vmatprep.subr.mxu0 0.0
    %2423 = vmatpush1.msra.mxu0 0.0
    %2424 = vmatprep.subr.mxu0 0.0
    %2425 = vmatpush1.msra.mxu0 0.0
    %2426 = vmatprep.subr.mxu0 0.0
    %2427 = vmatpush1.msra.mxu0 0.0
    %2428 = vmatprep.mubr.f32.mxu0 0.0
    %2429 = vmatmul.mubr.f32.gmra.mrb[0].mxu0 %v334
    %v2430 = vpop.f32.mrb[0].mxu0
    %v2431 = vadd.f32 0.0, %v2430
    %v2432 = vpop.f32.mrb[0].mxu0
    %2433 = vmatprep.mubr.f32.mxu0 0.0
    %2434 = vmatmul.mubr.f32.gmra.mrb[0].mxu0 %v337
    %v2435 = vpop.f32.mrb[0].mxu0
    %v2436 = vadd.f32 0.0, %v2435
    %v2437 = vpop.f32.mrb[0].mxu0
    %2438 = vmatprep.mubr.f32.mxu0 0.0
    %2439 = vmatmul.mubr.f32.gmra.mrb[0].mxu0 %v340
    %v2440 = vpop.f32.mrb[0].mxu0
    %v2441 = vadd.f32 0.0, %v2440
    %v2442 = vpop.f32.mrb[0].mxu0
    %2443 = vmatprep.mubr.f32.mxu0 0.0
    %2444 = vmatmul.mubr.f32.gmra.mrb[0].mxu0 %v343
    %v2445 = vpop.f32.mrb[0].mxu0
    %v2446 = vadd.f32 0.0, %v2445
    %v2447 = vpop.f32.mrb[0].mxu0
    %2448 = vmatprep.mubr.f32.mxu0 0.0
    %2449 = vmatmul.mubr.f32.gmra.mrb[0].mxu0 %v346
    %v2450 = vpop.f32.mrb[0].mxu0
    %v2451 = vadd.f32 0.0, %v2450
    %v2452 = vpop.f32.mrb[0].mxu0
    %2453 = vmatprep.mubr.f32.mxu0 0.0
    %2454 = vmatmul.mubr.f32.gmra.mrb[0].mxu0 %v349
    %v2455 = vpop.f32.mrb[0].mxu0
    %v2456 = vadd.f32 0.0, %v2455
    %v2457 = vpop.f32.mrb[0].mxu0
    %2458 = vmatprep.mubr.f32.mxu0 0.0
    %2459 = vmatmul.mubr.f32.gmra.mrb[0].mxu0 %v352
    %v2460 = vpop.f32.mrb[0].mxu0
    %v2461 = vadd.f32 0.0, %v2460
    %v2462 = vpop.f32.mrb[0].mxu0
    %2463 = vmatprep.mubr.f32.mxu0 0.0
    %2464 = vmatmul.mubr.f32.gmra.mrb[0].mxu0 %v355
    %v2465 = vpop.f32.mrb[0].mxu0
    %v2466 = vadd.f32 0.0, %v2465
    %v2467 = vpop.f32.mrb[0].mxu0
    %2468 = vmatprep.mubr.f32.mxu0 0.0
    %2469 = vmatmul.mubr.f32.gmra.mrb[0].mxu0 %v358
    %v2470 = vpop.f32.mrb[0].mxu0
    %v2471 = vadd.f32 0.0, %v2470
    %v2472 = vpop.f32.mrb[0].mxu0
    %2473 = vmatprep.mubr.f32.mxu0 0.0
    %2474 = vmatmul.mubr.f32.gmra.mrb[0].mxu0 %v361
    %v2475 = vpop.f32.mrb[0].mxu0
    %v2476 = vadd.f32 0.0, %v2475
    %v2477 = vpop.f32.mrb[0].mxu0
    %2478 = vmatprep.mubr.f32.mxu0 0.0
    %2479 = vmatmul.mubr.f32.gmra.mrb[0].mxu0 %v364
    %v2480 = vpop.f32.mrb[0].mxu0
    %v2481 = vadd.f32 0.0, %v2480
    %v2482 = vpop.f32.mrb[0].mxu0
    %2483 = vmatprep.mubr.f32.mxu0 0.0
    %2484 = vmatmul.mubr.f32.gmra.mrb[0].mxu0 %v367
    %v2485 = vpop.f32.mrb[0].mxu0
    %v2486 = vadd.f32 0.0, %v2485
    %v2487 = vpop.f32.mrb[0].mxu0
    %2488 = vmatprep.mubr.f32.mxu0 0.0
    %2489 = vmatmul.mubr.f32.gmra.mrb[0].mxu0 %v370
    %v2490 = vpop.f32.mrb[0].mxu0
    %v2491 = vadd.f32 0.0, %v2490
    %v2492 = vpop.f32.mrb[0].mxu0
    %2493 = vmatprep.mubr.f32.mxu0 0.0
    %2494 = vmatmul.mubr.f32.gmra.mrb[0].mxu0 %v373
    %v2495 = vpop.f32.mrb[0].mxu0
    %v2496 = vadd.f32 0.0, %v2495
    %v2497 = vpop.f32.mrb[0].mxu0
    %2498 = vmatprep.mubr.f32.mxu0 0.0
    %2499 = vmatmul.mubr.f32.gmra.mrb[0].mxu0 %v376
    %v2500 = vpop.f32.mrb[0].mxu0
    %v2501 = vadd.f32 0.0, %v2500
    %v2502 = vpop.f32.mrb[0].mxu0
    %2503 = vmatprep.mubr.f32.mxu0 0.0
    %2504 = vmatmul.mubr.f32.gmra.mrb[0].mxu0 %v379
    %v2505 = vpop.f32.mrb[0].mxu0
    %v2506 = vadd.f32 0.0, %v2505
    %v2507 = vpop.f32.mrb[0].mxu0
    %2508 = vdwg.mxu0
    %s2509 = scalar_lea.vmem %s5, 64
    %v2510 = vld [vmem:[%s2509] sm:$0xff]
    %v2511 = vld [vmem:[%s2509 + $0x8] sm:$0xff]
    %v2512 = vld [vmem:[%s2509 + $0x10] sm:$0xff]
    %v2513 = vld [vmem:[%s2509 + $0x18] sm:$0xff]
    %v2514 = vld [vmem:[%s2509 + $0x20] sm:$0xff]
    %v2515 = vld [vmem:[%s2509 + $0x28] sm:$0xff]
    %v2516 = vld [vmem:[%s2509 + $0x30] sm:$0xff]
    %v2517 = vld [vmem:[%s2509 + $0x38] sm:$0xff]
    %2518 = vmatprep.subr.mxu0 0.0
    %2519 = vmatpush1.msra.mxu0 %v2510
    %2520 = vmatprep.subr.mxu0 0.0
    %2521 = vmatpush1.msra.mxu0 %v2511
    %2522 = vmatprep.subr.mxu0 0.0
    %2523 = vmatpush1.msra.mxu0 %v2512
    %2524 = vmatprep.subr.mxu0 0.0
    %2525 = vmatpush1.msra.mxu0 %v2513
    %2526 = vmatprep.subr.mxu0 0.0
    %2527 = vmatpush1.msra.mxu0 %v2514
    %2528 = vmatprep.subr.mxu0 0.0
    %2529 = vmatpush1.msra.mxu0 %v2515
    %2530 = vmatprep.subr.mxu0 0.0
    %2531 = vmatpush1.msra.mxu0 %v2516
    %2532 = vmatprep.subr.mxu0 0.0
    %2533 = vmatpush1.msra.mxu0 %v2517
    %2534 = vmatprep.subr.mxu0 0.0
    %2535 = vmatpush1.msra.mxu0 0.0
    %2536 = vmatprep.subr.mxu0 0.0
    %2537 = vmatpush1.msra.mxu0 0.0
    %2538 = vmatprep.subr.mxu0 0.0
    %2539 = vmatpush1.msra.mxu0 0.0
    %2540 = vmatprep.subr.mxu0 0.0
    %2541 = vmatpush1.msra.mxu0 0.0
    %2542 = vmatprep.subr.mxu0 0.0
    %2543 = vmatpush1.msra.mxu0 0.0
    %2544 = vmatprep.subr.mxu0 0.0
    %2545 = vmatpush1.msra.mxu0 0.0
    %2546 = vmatprep.subr.mxu0 0.0
    %2547 = vmatpush1.msra.mxu0 0.0
    %2548 = vmatprep.subr.mxu0 0.0
    %2549 = vmatpush1.msra.mxu0 0.0
    %2550 = vmatprep.subr.mxu0 0.0
    %2551 = vmatpush1.msra.mxu0 0.0
    %2552 = vmatprep.subr.mxu0 0.0
    %2553 = vmatpush1.msra.mxu0 0.0
    %2554 = vmatprep.subr.mxu0 0.0
    %2555 = vmatpush1.msra.mxu0 0.0
    %2556 = vmatprep.subr.mxu0 0.0
    %2557 = vmatpush1.msra.mxu0 0.0
    %2558 = vmatprep.subr.mxu0 0.0
    %2559 = vmatpush1.msra.mxu0 0.0
    %2560 = vmatprep.subr.mxu0 0.0
    %2561 = vmatpush1.msra.mxu0 0.0
    %2562 = vmatprep.subr.mxu0 0.0
    %2563 = vmatpush1.msra.mxu0 0.0
    %2564 = vmatprep.subr.mxu0 0.0
    %2565 = vmatpush1.msra.mxu0 0.0
    %2566 = vmatprep.subr.mxu0 0.0
    %2567 = vmatpush1.msra.mxu0 0.0
    %2568 = vmatprep.subr.mxu0 0.0
    %2569 = vmatpush1.msra.mxu0 0.0
    %2570 = vmatprep.subr.mxu0 0.0
    %2571 = vmatpush1.msra.mxu0 0.0
    %2572 = vmatprep.subr.mxu0 0.0
    %2573 = vmatpush1.msra.mxu0 0.0
    %2574 = vmatprep.subr.mxu0 0.0
    %2575 = vmatpush1.msra.mxu0 0.0
    %2576 = vmatprep.subr.mxu0 0.0
    %2577 = vmatpush1.msra.mxu0 0.0
    %2578 = vmatprep.subr.mxu0 0.0
    %2579 = vmatpush1.msra.mxu0 0.0
    %2580 = vmatprep.subr.mxu0 0.0
    %2581 = vmatpush1.msra.mxu0 0.0
    %2582 = vmatprep.mubr.f32.mxu0 0.0
    %2583 = vmatmul.mubr.f32.gmra.mrb[0].mxu0 %v334
    %v2584 = vpop.f32.mrb[0].mxu0
    %v2585 = vadd.f32 0.0, %v2584
    %v2586 = vpop.f32.mrb[0].mxu0
    %2587 = vmatprep.mubr.f32.mxu0 0.0
    %2588 = vmatmul.mubr.f32.gmra.mrb[0].mxu0 %v337
    %v2589 = vpop.f32.mrb[0].mxu0
    %v2590 = vadd.f32 0.0, %v2589
    %v2591 = vpop.f32.mrb[0].mxu0
    %2592 = vmatprep.mubr.f32.mxu0 0.0
    %2593 = vmatmul.mubr.f32.gmra.mrb[0].mxu0 %v340
    %v2594 = vpop.f32.mrb[0].mxu0
    %v2595 = vadd.f32 0.0, %v2594
    %v2596 = vpop.f32.mrb[0].mxu0
    %2597 = vmatprep.mubr.f32.mxu0 0.0
    %2598 = vmatmul.mubr.f32.gmra.mrb[0].mxu0 %v343
    %v2599 = vpop.f32.mrb[0].mxu0
    %v2600 = vadd.f32 0.0, %v2599
    %v2601 = vpop.f32.mrb[0].mxu0
    %2602 = vmatprep.mubr.f32.mxu0 0.0
    %2603 = vmatmul.mubr.f32.gmra.mrb[0].mxu0 %v346
    %v2604 = vpop.f32.mrb[0].mxu0
    %v2605 = vadd.f32 0.0, %v2604
    %v2606 = vpop.f32.mrb[0].mxu0
    %2607 = vmatprep.mubr.f32.mxu0 0.0
    %2608 = vmatmul.mubr.f32.gmra.mrb[0].mxu0 %v349
    %v2609 = vpop.f32.mrb[0].mxu0
    %v2610 = vadd.f32 0.0, %v2609
    %v2611 = vpop.f32.mrb[0].mxu0
    %2612 = vmatprep.mubr.f32.mxu0 0.0
    %2613 = vmatmul.mubr.f32.gmra.mrb[0].mxu0 %v352
    %v2614 = vpop.f32.mrb[0].mxu0
    %v2615 = vadd.f32 0.0, %v2614
    %v2616 = vpop.f32.mrb[0].mxu0
    %2617 = vmatprep.mubr.f32.mxu0 0.0
    %2618 = vmatmul.mubr.f32.gmra.mrb[0].mxu0 %v355
    %v2619 = vpop.f32.mrb[0].mxu0
    %v2620 = vadd.f32 0.0, %v2619
    %v2621 = vpop.f32.mrb[0].mxu0
    %2622 = vmatprep.mubr.f32.mxu0 0.0
    %2623 = vmatmul.mubr.f32.gmra.mrb[0].mxu0 %v358
    %v2624 = vpop.f32.mrb[0].mxu0
    %v2625 = vadd.f32 0.0, %v2624
    %v2626 = vpop.f32.mrb[0].mxu0
    %2627 = vmatprep.mubr.f32.mxu0 0.0
    %2628 = vmatmul.mubr.f32.gmra.mrb[0].mxu0 %v361
    %v2629 = vpop.f32.mrb[0].mxu0
    %v2630 = vadd.f32 0.0, %v2629
    %v2631 = vpop.f32.mrb[0].mxu0
    %2632 = vmatprep.mubr.f32.mxu0 0.0
    %2633 = vmatmul.mubr.f32.gmra.mrb[0].mxu0 %v364
    %v2634 = vpop.f32.mrb[0].mxu0
    %v2635 = vadd.f32 0.0, %v2634
    %v2636 = vpop.f32.mrb[0].mxu0
    %2637 = vmatprep.mubr.f32.mxu0 0.0
    %2638 = vmatmul.mubr.f32.gmra.mrb[0].mxu0 %v367
    %v2639 = vpop.f32.mrb[0].mxu0
    %v2640 = vadd.f32 0.0, %v2639
    %v2641 = vpop.f32.mrb[0].mxu0
    %2642 = vmatprep.mubr.f32.mxu0 0.0
    %2643 = vmatmul.mubr.f32.gmra.mrb[0].mxu0 %v370
    %v2644 = vpop.f32.mrb[0].mxu0
    %v2645 = vadd.f32 0.0, %v2644
    %v2646 = vpop.f32.mrb[0].mxu0
    %2647 = vmatprep.mubr.f32.mxu0 0.0
    %2648 = vmatmul.mubr.f32.gmra.mrb[0].mxu0 %v373
    %v2649 = vpop.f32.mrb[0].mxu0
    %v2650 = vadd.f32 0.0, %v2649
    %v2651 = vpop.f32.mrb[0].mxu0
    %2652 = vmatprep.mubr.f32.mxu0 0.0
    %2653 = vmatmul.mubr.f32.gmra.mrb[0].mxu0 %v376
    %v2654 = vpop.f32.mrb[0].mxu0
    %v2655 = vadd.f32 0.0, %v2654
    %v2656 = vpop.f32.mrb[0].mxu0
    %2657 = vmatprep.mubr.f32.mxu0 0.0
    %2658 = vmatmul.mubr.f32.gmra.mrb[0].mxu0 %v379
    %v2659 = vpop.f32.mrb[0].mxu0
    %v2660 = vadd.f32 0.0, %v2659
    %v2661 = vpop.f32.mrb[0].mxu0
    %2662 = vdwg.mxu0
    %s2663 = scalar_lea.vmem %s6, 64
    %v2664 = vld [vmem:[%s2663] sm:$0xff]
    %v2665 = vld [vmem:[%s2663 + $0x8] sm:$0xff]
    %v2666 = vld [vmem:[%s2663 + $0x10] sm:$0xff]
    %v2667 = vld [vmem:[%s2663 + $0x18] sm:$0xff]
    %v2668 = vld [vmem:[%s2663 + $0x20] sm:$0xff]
    %v2669 = vld [vmem:[%s2663 + $0x28] sm:$0xff]
    %v2670 = vld [vmem:[%s2663 + $0x30] sm:$0xff]
    %v2671 = vld [vmem:[%s2663 + $0x38] sm:$0xff]
    %2672 = vmatprep.subr.mxu0 0.0
    %2673 = vmatpush1.msra.mxu0 %v2664
    %2674 = vmatprep.subr.mxu0 0.0
    %2675 = vmatpush1.msra.mxu0 %v2665
    %2676 = vmatprep.subr.mxu0 0.0
    %2677 = vmatpush1.msra.mxu0 %v2666
    %2678 = vmatprep.subr.mxu0 0.0
    %2679 = vmatpush1.msra.mxu0 %v2667
    %2680 = vmatprep.subr.mxu0 0.0
    %2681 = vmatpush1.msra.mxu0 %v2668
    %2682 = vmatprep.subr.mxu0 0.0
    %2683 = vmatpush1.msra.mxu0 %v2669
    %2684 = vmatprep.subr.mxu0 0.0
    %2685 = vmatpush1.msra.mxu0 %v2670
    %2686 = vmatprep.subr.mxu0 0.0
    %2687 = vmatpush1.msra.mxu0 %v2671
    %2688 = vmatprep.subr.mxu0 0.0
    %2689 = vmatpush1.msra.mxu0 0.0
    %2690 = vmatprep.subr.mxu0 0.0
    %2691 = vmatpush1.msra.mxu0 0.0
    %2692 = vmatprep.subr.mxu0 0.0
    %2693 = vmatpush1.msra.mxu0 0.0
    %2694 = vmatprep.subr.mxu0 0.0
    %2695 = vmatpush1.msra.mxu0 0.0
    %2696 = vmatprep.subr.mxu0 0.0
    %2697 = vmatpush1.msra.mxu0 0.0
    %2698 = vmatprep.subr.mxu0 0.0
    %2699 = vmatpush1.msra.mxu0 0.0
    %2700 = vmatprep.subr.mxu0 0.0
    %2701 = vmatpush1.msra.mxu0 0.0
    %2702 = vmatprep.subr.mxu0 0.0
    %2703 = vmatpush1.msra.mxu0 0.0
    %2704 = vmatprep.subr.mxu0 0.0
    %2705 = vmatpush1.msra.mxu0 0.0
    %2706 = vmatprep.subr.mxu0 0.0
    %2707 = vmatpush1.msra.mxu0 0.0
    %2708 = vmatprep.subr.mxu0 0.0
    %2709 = vmatpush1.msra.mxu0 0.0
    %2710 = vmatprep.subr.mxu0 0.0
    %2711 = vmatpush1.msra.mxu0 0.0
    %2712 = vmatprep.subr.mxu0 0.0
    %2713 = vmatpush1.msra.mxu0 0.0
    %2714 = vmatprep.subr.mxu0 0.0
    %2715 = vmatpush1.msra.mxu0 0.0
    %2716 = vmatprep.subr.mxu0 0.0
    %2717 = vmatpush1.msra.mxu0 0.0
    %2718 = vmatprep.subr.mxu0 0.0
    %2719 = vmatpush1.msra.mxu0 0.0
    %2720 = vmatprep.subr.mxu0 0.0
    %2721 = vmatpush1.msra.mxu0 0.0
    %2722 = vmatprep.subr.mxu0 0.0
    %2723 = vmatpush1.msra.mxu0 0.0
    %2724 = vmatprep.subr.mxu0 0.0
    %2725 = vmatpush1.msra.mxu0 0.0
    %2726 = vmatprep.subr.mxu0 0.0
    %2727 = vmatpush1.msra.mxu0 0.0
    %2728 = vmatprep.subr.mxu0 0.0
    %2729 = vmatpush1.msra.mxu0 0.0
    %2730 = vmatprep.subr.mxu0 0.0
    %2731 = vmatpush1.msra.mxu0 0.0
    %2732 = vmatprep.subr.mxu0 0.0
    %2733 = vmatpush1.msra.mxu0 0.0
    %2734 = vmatprep.subr.mxu0 0.0
    %2735 = vmatpush1.msra.mxu0 0.0
    %2736 = vmatprep.mubr.f32.mxu0 0.0
    %2737 = vmatmul.mubr.f32.gmra.mrb[0].mxu0 %v334
    %v2738 = vpop.f32.mrb[0].mxu0
    %v2739 = vadd.f32 0.0, %v2738
    %v2740 = vpop.f32.mrb[0].mxu0
    %2741 = vmatprep.mubr.f32.mxu0 0.0
    %2742 = vmatmul.mubr.f32.gmra.mrb[0].mxu0 %v337
    %v2743 = vpop.f32.mrb[0].mxu0
    %v2744 = vadd.f32 0.0, %v2743
    %v2745 = vpop.f32.mrb[0].mxu0
    %2746 = vmatprep.mubr.f32.mxu0 0.0
    %2747 = vmatmul.mubr.f32.gmra.mrb[0].mxu0 %v340
    %v2748 = vpop.f32.mrb[0].mxu0
    %v2749 = vadd.f32 0.0, %v2748
    %v2750 = vpop.f32.mrb[0].mxu0
    %2751 = vmatprep.mubr.f32.mxu0 0.0
    %2752 = vmatmul.mubr.f32.gmra.mrb[0].mxu0 %v343
    %v2753 = vpop.f32.mrb[0].mxu0
    %v2754 = vadd.f32 0.0, %v2753
    %v2755 = vpop.f32.mrb[0].mxu0
    %2756 = vmatprep.mubr.f32.mxu0 0.0
    %2757 = vmatmul.mubr.f32.gmra.mrb[0].mxu0 %v346
    %v2758 = vpop.f32.mrb[0].mxu0
    %v2759 = vadd.f32 0.0, %v2758
    %v2760 = vpop.f32.mrb[0].mxu0
    %2761 = vmatprep.mubr.f32.mxu0 0.0
    %2762 = vmatmul.mubr.f32.gmra.mrb[0].mxu0 %v349
    %v2763 = vpop.f32.mrb[0].mxu0
    %v2764 = vadd.f32 0.0, %v2763
    %v2765 = vpop.f32.mrb[0].mxu0
    %2766 = vmatprep.mubr.f32.mxu0 0.0
    %2767 = vmatmul.mubr.f32.gmra.mrb[0].mxu0 %v352
    %v2768 = vpop.f32.mrb[0].mxu0
    %v2769 = vadd.f32 0.0, %v2768
    %v2770 = vpop.f32.mrb[0].mxu0
    %2771 = vmatprep.mubr.f32.mxu0 0.0
    %2772 = vmatmul.mubr.f32.gmra.mrb[0].mxu0 %v355
    %v2773 = vpop.f32.mrb[0].mxu0
    %v2774 = vadd.f32 0.0, %v2773
    %v2775 = vpop.f32.mrb[0].mxu0
    %2776 = vmatprep.mubr.f32.mxu0 0.0
    %2777 = vmatmul.mubr.f32.gmra.mrb[0].mxu0 %v358
    %v2778 = vpop.f32.mrb[0].mxu0
    %v2779 = vadd.f32 0.0, %v2778
    %v2780 = vpop.f32.mrb[0].mxu0
    %2781 = vmatprep.mubr.f32.mxu0 0.0
    %2782 = vmatmul.mubr.f32.gmra.mrb[0].mxu0 %v361
    %v2783 = vpop.f32.mrb[0].mxu0
    %v2784 = vadd.f32 0.0, %v2783
    %v2785 = vpop.f32.mrb[0].mxu0
    %2786 = vmatprep.mubr.f32.mxu0 0.0
    %2787 = vmatmul.mubr.f32.gmra.mrb[0].mxu0 %v364
    %v2788 = vpop.f32.mrb[0].mxu0
    %v2789 = vadd.f32 0.0, %v2788
    %v2790 = vpop.f32.mrb[0].mxu0
    %2791 = vmatprep.mubr.f32.mxu0 0.0
    %2792 = vmatmul.mubr.f32.gmra.mrb[0].mxu0 %v367
    %v2793 = vpop.f32.mrb[0].mxu0
    %v2794 = vadd.f32 0.0, %v2793
    %v2795 = vpop.f32.mrb[0].mxu0
    %2796 = vmatprep.mubr.f32.mxu0 0.0
    %2797 = vmatmul.mubr.f32.gmra.mrb[0].mxu0 %v370
    %v2798 = vpop.f32.mrb[0].mxu0
    %v2799 = vadd.f32 0.0, %v2798
    %v2800 = vpop.f32.mrb[0].mxu0
    %2801 = vmatprep.mubr.f32.mxu0 0.0
    %2802 = vmatmul.mubr.f32.gmra.mrb[0].mxu0 %v373
    %v2803 = vpop.f32.mrb[0].mxu0
    %v2804 = vadd.f32 0.0, %v2803
    %v2805 = vpop.f32.mrb[0].mxu0
    %2806 = vmatprep.mubr.f32.mxu0 0.0
    %2807 = vmatmul.mubr.f32.gmra.mrb[0].mxu0 %v376
    %v2808 = vpop.f32.mrb[0].mxu0
    %v2809 = vadd.f32 0.0, %v2808
    %v2810 = vpop.f32.mrb[0].mxu0
    %2811 = vmatprep.mubr.f32.mxu0 0.0
    %2812 = vmatmul.mubr.f32.gmra.mrb[0].mxu0 %v379
    %v2813 = vpop.f32.mrb[0].mxu0
    %v2814 = vadd.f32 0.0, %v2813
    %v2815 = vpop.f32.mrb[0].mxu0
    %2816 = vdwg.mxu0
    %v2818 = vsel %vm832, %v2431, 0
    %v2821 = vsel %vm832, %v2436, 0
    %v2824 = vsel %vm832, %v2585, 0
    %v2827 = vsel %vm832, %v2590, 0
    %2829 = vmatprep.subr.mxu0 0.0
    %2830 = vmatpush1.xpose.msra.mxu0 %v2824
    %2831 = vmatprep.subr.mxu0 0.0
    %2832 = vmatpush1.xpose.msra.mxu0 %v2827
    %2833 = vmatprep.subr.mxu0 0.0
    %2834 = vmatpush1.xpose.msra.mxu0 0.0
    %2835 = vmatprep.subr.mxu0 0.0
    %2836 = vmatpush1.xpose.msra.mxu0 0.0
    %2837 = vmatprep.subr.mxu0 0.0
    %2838 = vmatpush1.xpose.msra.mxu0 0.0
    %2839 = vmatprep.subr.mxu0 0.0
    %2840 = vmatpush1.xpose.msra.mxu0 0.0
    %2841 = vmatprep.subr.mxu0 0.0
    %2842 = vmatpush1.xpose.msra.mxu0 0.0
    %2843 = vmatprep.subr.mxu0 0.0
    %2844 = vmatpush1.xpose.msra.mxu0 0.0
    %2845 = vmatprep.subr.mxu0 0.0
    %2846 = vmatpush1.xpose.msra.mxu0 0.0
    %2847 = vmatprep.subr.mxu0 0.0
    %2848 = vmatpush1.xpose.msra.mxu0 0.0
    %2849 = vmatprep.subr.mxu0 0.0
    %2850 = vmatpush1.xpose.msra.mxu0 0.0
    %2851 = vmatprep.subr.mxu0 0.0
    %2852 = vmatpush1.xpose.msra.mxu0 0.0
    %2853 = vmatprep.subr.mxu0 0.0
    %2854 = vmatpush1.xpose.msra.mxu0 0.0
    %2855 = vmatprep.subr.mxu0 0.0
    %2856 = vmatpush1.xpose.msra.mxu0 0.0
    %2857 = vmatprep.subr.mxu0 0.0
    %2858 = vmatpush1.xpose.msra.mxu0 0.0
    %2859 = vmatprep.subr.mxu0 0.0
    %2860 = vmatpush1.xpose.msra.mxu0 0.0
    %2861 = vmatprep.subr.mxu0 0.0
    %2862 = vmatpush1.xpose.msra.mxu0 0.0
    %2863 = vmatprep.subr.mxu0 0.0
    %2864 = vmatpush1.xpose.msra.mxu0 0.0
    %2865 = vmatprep.subr.mxu0 0.0
    %2866 = vmatpush1.xpose.msra.mxu0 0.0
    %2867 = vmatprep.subr.mxu0 0.0
    %2868 = vmatpush1.xpose.msra.mxu0 0.0
    %2869 = vmatprep.subr.mxu0 0.0
    %2870 = vmatpush1.xpose.msra.mxu0 0.0
    %2871 = vmatprep.subr.mxu0 0.0
    %2872 = vmatpush1.xpose.msra.mxu0 0.0
    %2873 = vmatprep.subr.mxu0 0.0
    %2874 = vmatpush1.xpose.msra.mxu0 0.0
    %2875 = vmatprep.subr.mxu0 0.0
    %2876 = vmatpush1.xpose.msra.mxu0 0.0
    %2877 = vmatprep.subr.mxu0 0.0
    %2878 = vmatpush1.xpose.msra.mxu0 0.0
    %2879 = vmatprep.subr.mxu0 0.0
    %2880 = vmatpush1.xpose.msra.mxu0 0.0
    %2881 = vmatprep.subr.mxu0 0.0
    %2882 = vmatpush1.xpose.msra.mxu0 0.0
    %2883 = vmatprep.subr.mxu0 0.0
    %2884 = vmatpush1.xpose.msra.mxu0 0.0
    %2885 = vmatprep.subr.mxu0 0.0
    %2886 = vmatpush1.xpose.msra.mxu0 0.0
    %2887 = vmatprep.subr.mxu0 0.0
    %2888 = vmatpush1.xpose.msra.mxu0 0.0
    %2889 = vmatprep.subr.mxu0 0.0
    %2890 = vmatpush1.xpose.msra.mxu0 0.0
    %2891 = vmatprep.subr.mxu0 0.0
    %2892 = vmatpush1.xpose.msra.mxu0 0.0
    %2893 = vmatprep.mubr.f32.mxu0 0.0
    %2894 = vmatmul.mubr.f32.gmra.mrb[0].mxu0 %v2818
    %v2895 = vpop.f32.mrb[0].mxu0
    %v2896 = vadd.f32 %v323, %v2895
    %v2897 = vpop.f32.mrb[0].mxu0
    %2898 = vmatprep.mubr.f32.mxu0 0.0
    %2899 = vmatmul.mubr.f32.gmra.mrb[0].mxu0 %v2821
    %v2900 = vpop.f32.mrb[0].mxu0
    %v2901 = vadd.f32 %v324, %v2900
    %v2902 = vpop.f32.mrb[0].mxu0
    %2903 = vdwg.mxu0
    %v2905 = vsel %vm832, %v2441, 0
    %v2908 = vsel %vm832, %v2446, 0
    %v2911 = vsel %vm832, %v2595, 0
    %v2914 = vsel %vm832, %v2600, 0
    %2916 = vmatprep.subr.mxu0 0.0
    %2917 = vmatpush1.xpose.msra.mxu0 %v2911
    %2918 = vmatprep.subr.mxu0 0.0
    %2919 = vmatpush1.xpose.msra.mxu0 %v2914
    %2920 = vmatprep.subr.mxu0 0.0
    %2921 = vmatpush1.xpose.msra.mxu0 0.0
    %2922 = vmatprep.subr.mxu0 0.0
    %2923 = vmatpush1.xpose.msra.mxu0 0.0
    %2924 = vmatprep.subr.mxu0 0.0
    %2925 = vmatpush1.xpose.msra.mxu0 0.0
    %2926 = vmatprep.subr.mxu0 0.0
    %2927 = vmatpush1.xpose.msra.mxu0 0.0
    %2928 = vmatprep.subr.mxu0 0.0
    %2929 = vmatpush1.xpose.msra.mxu0 0.0
    %2930 = vmatprep.subr.mxu0 0.0
    %2931 = vmatpush1.xpose.msra.mxu0 0.0
    %2932 = vmatprep.subr.mxu0 0.0
    %2933 = vmatpush1.xpose.msra.mxu0 0.0
    %2934 = vmatprep.subr.mxu0 0.0
    %2935 = vmatpush1.xpose.msra.mxu0 0.0
    %2936 = vmatprep.subr.mxu0 0.0
    %2937 = vmatpush1.xpose.msra.mxu0 0.0
    %2938 = vmatprep.subr.mxu0 0.0
    %2939 = vmatpush1.xpose.msra.mxu0 0.0
    %2940 = vmatprep.subr.mxu0 0.0
    %2941 = vmatpush1.xpose.msra.mxu0 0.0
    %2942 = vmatprep.subr.mxu0 0.0
    %2943 = vmatpush1.xpose.msra.mxu0 0.0
    %2944 = vmatprep.subr.mxu0 0.0
    %2945 = vmatpush1.xpose.msra.mxu0 0.0
    %2946 = vmatprep.subr.mxu0 0.0
    %2947 = vmatpush1.xpose.msra.mxu0 0.0
    %2948 = vmatprep.subr.mxu0 0.0
    %2949 = vmatpush1.xpose.msra.mxu0 0.0
    %2950 = vmatprep.subr.mxu0 0.0
    %2951 = vmatpush1.xpose.msra.mxu0 0.0
    %2952 = vmatprep.subr.mxu0 0.0
    %2953 = vmatpush1.xpose.msra.mxu0 0.0
    %2954 = vmatprep.subr.mxu0 0.0
    %2955 = vmatpush1.xpose.msra.mxu0 0.0
    %2956 = vmatprep.subr.mxu0 0.0
    %2957 = vmatpush1.xpose.msra.mxu0 0.0
    %2958 = vmatprep.subr.mxu0 0.0
    %2959 = vmatpush1.xpose.msra.mxu0 0.0
    %2960 = vmatprep.subr.mxu0 0.0
    %2961 = vmatpush1.xpose.msra.mxu0 0.0
    %2962 = vmatprep.subr.mxu0 0.0
    %2963 = vmatpush1.xpose.msra.mxu0 0.0
    %2964 = vmatprep.subr.mxu0 0.0
    %2965 = vmatpush1.xpose.msra.mxu0 0.0
    %2966 = vmatprep.subr.mxu0 0.0
    %2967 = vmatpush1.xpose.msra.mxu0 0.0
    %2968 = vmatprep.subr.mxu0 0.0
    %2969 = vmatpush1.xpose.msra.mxu0 0.0
    %2970 = vmatprep.subr.mxu0 0.0
    %2971 = vmatpush1.xpose.msra.mxu0 0.0
    %2972 = vmatprep.subr.mxu0 0.0
    %2973 = vmatpush1.xpose.msra.mxu0 0.0
    %2974 = vmatprep.subr.mxu0 0.0
    %2975 = vmatpush1.xpose.msra.mxu0 0.0
    %2976 = vmatprep.subr.mxu0 0.0
    %2977 = vmatpush1.xpose.msra.mxu0 0.0
    %2978 = vmatprep.subr.mxu0 0.0
    %2979 = vmatpush1.xpose.msra.mxu0 0.0
    %2980 = vmatprep.mubr.f32.mxu0 0.0
    %2981 = vmatmul.mubr.f32.gmra.mrb[0].mxu0 %v2905
    %v2982 = vpop.f32.mrb[0].mxu0
    %v2983 = vadd.f32 %v323, %v2982
    %v2984 = vpop.f32.mrb[0].mxu0
    %2985 = vmatprep.mubr.f32.mxu0 0.0
    %2986 = vmatmul.mubr.f32.gmra.mrb[0].mxu0 %v2908
    %v2987 = vpop.f32.mrb[0].mxu0
    %v2988 = vadd.f32 %v324, %v2987
    %v2989 = vpop.f32.mrb[0].mxu0
    %2990 = vdwg.mxu0
    %v2992 = vsel %vm832, %v2451, 0
    %v2995 = vsel %vm832, %v2456, 0
    %v2998 = vsel %vm832, %v2605, 0
    %v3001 = vsel %vm832, %v2610, 0
    %3003 = vmatprep.subr.mxu0 0.0
    %3004 = vmatpush1.xpose.msra.mxu0 %v2998
    %3005 = vmatprep.subr.mxu0 0.0
    %3006 = vmatpush1.xpose.msra.mxu0 %v3001
    %3007 = vmatprep.subr.mxu0 0.0
    %3008 = vmatpush1.xpose.msra.mxu0 0.0
    %3009 = vmatprep.subr.mxu0 0.0
    %3010 = vmatpush1.xpose.msra.mxu0 0.0
    %3011 = vmatprep.subr.mxu0 0.0
    %3012 = vmatpush1.xpose.msra.mxu0 0.0
    %3013 = vmatprep.subr.mxu0 0.0
    %3014 = vmatpush1.xpose.msra.mxu0 0.0
    %3015 = vmatprep.subr.mxu0 0.0
    %3016 = vmatpush1.xpose.msra.mxu0 0.0
    %3017 = vmatprep.subr.mxu0 0.0
    %3018 = vmatpush1.xpose.msra.mxu0 0.0
    %3019 = vmatprep.subr.mxu0 0.0
    %3020 = vmatpush1.xpose.msra.mxu0 0.0
    %3021 = vmatprep.subr.mxu0 0.0
    %3022 = vmatpush1.xpose.msra.mxu0 0.0
    %3023 = vmatprep.subr.mxu0 0.0
    %3024 = vmatpush1.xpose.msra.mxu0 0.0
    %3025 = vmatprep.subr.mxu0 0.0
    %3026 = vmatpush1.xpose.msra.mxu0 0.0
    %3027 = vmatprep.subr.mxu0 0.0
    %3028 = vmatpush1.xpose.msra.mxu0 0.0
    %3029 = vmatprep.subr.mxu0 0.0
    %3030 = vmatpush1.xpose.msra.mxu0 0.0
    %3031 = vmatprep.subr.mxu0 0.0
    %3032 = vmatpush1.xpose.msra.mxu0 0.0
    %3033 = vmatprep.subr.mxu0 0.0
    %3034 = vmatpush1.xpose.msra.mxu0 0.0
    %3035 = vmatprep.subr.mxu0 0.0
    %3036 = vmatpush1.xpose.msra.mxu0 0.0
    %3037 = vmatprep.subr.mxu0 0.0
    %3038 = vmatpush1.xpose.msra.mxu0 0.0
    %3039 = vmatprep.subr.mxu0 0.0
    %3040 = vmatpush1.xpose.msra.mxu0 0.0
    %3041 = vmatprep.subr.mxu0 0.0
    %3042 = vmatpush1.xpose.msra.mxu0 0.0
    %3043 = vmatprep.subr.mxu0 0.0
    %3044 = vmatpush1.xpose.msra.mxu0 0.0
    %3045 = vmatprep.subr.mxu0 0.0
    %3046 = vmatpush1.xpose.msra.mxu0 0.0
    %3047 = vmatprep.subr.mxu0 0.0
    %3048 = vmatpush1.xpose.msra.mxu0 0.0
    %3049 = vmatprep.subr.mxu0 0.0
    %3050 = vmatpush1.xpose.msra.mxu0 0.0
    %3051 = vmatprep.subr.mxu0 0.0
    %3052 = vmatpush1.xpose.msra.mxu0 0.0
    %3053 = vmatprep.subr.mxu0 0.0
    %3054 = vmatpush1.xpose.msra.mxu0 0.0
    %3055 = vmatprep.subr.mxu0 0.0
    %3056 = vmatpush1.xpose.msra.mxu0 0.0
    %3057 = vmatprep.subr.mxu0 0.0
    %3058 = vmatpush1.xpose.msra.mxu0 0.0
    %3059 = vmatprep.subr.mxu0 0.0
    %3060 = vmatpush1.xpose.msra.mxu0 0.0
    %3061 = vmatprep.subr.mxu0 0.0
    %3062 = vmatpush1.xpose.msra.mxu0 0.0
    %3063 = vmatprep.subr.mxu0 0.0
    %3064 = vmatpush1.xpose.msra.mxu0 0.0
    %3065 = vmatprep.subr.mxu0 0.0
    %3066 = vmatpush1.xpose.msra.mxu0 0.0
    %3067 = vmatprep.mubr.f32.mxu0 0.0
    %3068 = vmatmul.mubr.f32.gmra.mrb[0].mxu0 %v2992
    %v3069 = vpop.f32.mrb[0].mxu0
    %v3070 = vadd.f32 %v323, %v3069
    %v3071 = vpop.f32.mrb[0].mxu0
    %3072 = vmatprep.mubr.f32.mxu0 0.0
    %3073 = vmatmul.mubr.f32.gmra.mrb[0].mxu0 %v2995
    %v3074 = vpop.f32.mrb[0].mxu0
    %v3075 = vadd.f32 %v324, %v3074
    %v3076 = vpop.f32.mrb[0].mxu0
    %3077 = vdwg.mxu0
    %v3079 = vsel %vm832, %v2461, 0
    %v3082 = vsel %vm832, %v2466, 0
    %v3085 = vsel %vm832, %v2615, 0
    %v3088 = vsel %vm832, %v2620, 0
    %3090 = vmatprep.subr.mxu0 0.0
    %3091 = vmatpush1.xpose.msra.mxu0 %v3085
    %3092 = vmatprep.subr.mxu0 0.0
    %3093 = vmatpush1.xpose.msra.mxu0 %v3088
    %3094 = vmatprep.subr.mxu0 0.0
    %3095 = vmatpush1.xpose.msra.mxu0 0.0
    %3096 = vmatprep.subr.mxu0 0.0
    %3097 = vmatpush1.xpose.msra.mxu0 0.0
    %3098 = vmatprep.subr.mxu0 0.0
    %3099 = vmatpush1.xpose.msra.mxu0 0.0
    %3100 = vmatprep.subr.mxu0 0.0
    %3101 = vmatpush1.xpose.msra.mxu0 0.0
    %3102 = vmatprep.subr.mxu0 0.0
    %3103 = vmatpush1.xpose.msra.mxu0 0.0
    %3104 = vmatprep.subr.mxu0 0.0
    %3105 = vmatpush1.xpose.msra.mxu0 0.0
    %3106 = vmatprep.subr.mxu0 0.0
    %3107 = vmatpush1.xpose.msra.mxu0 0.0
    %3108 = vmatprep.subr.mxu0 0.0
    %3109 = vmatpush1.xpose.msra.mxu0 0.0
    %3110 = vmatprep.subr.mxu0 0.0
    %3111 = vmatpush1.xpose.msra.mxu0 0.0
    %3112 = vmatprep.subr.mxu0 0.0
    %3113 = vmatpush1.xpose.msra.mxu0 0.0
    %3114 = vmatprep.subr.mxu0 0.0
    %3115 = vmatpush1.xpose.msra.mxu0 0.0
    %3116 = vmatprep.subr.mxu0 0.0
    %3117 = vmatpush1.xpose.msra.mxu0 0.0
    %3118 = vmatprep.subr.mxu0 0.0
    %3119 = vmatpush1.xpose.msra.mxu0 0.0
    %3120 = vmatprep.subr.mxu0 0.0
    %3121 = vmatpush1.xpose.msra.mxu0 0.0
    %3122 = vmatprep.subr.mxu0 0.0
    %3123 = vmatpush1.xpose.msra.mxu0 0.0
    %3124 = vmatprep.subr.mxu0 0.0
    %3125 = vmatpush1.xpose.msra.mxu0 0.0
    %3126 = vmatprep.subr.mxu0 0.0
    %3127 = vmatpush1.xpose.msra.mxu0 0.0
    %3128 = vmatprep.subr.mxu0 0.0
    %3129 = vmatpush1.xpose.msra.mxu0 0.0
    %3130 = vmatprep.subr.mxu0 0.0
    %3131 = vmatpush1.xpose.msra.mxu0 0.0
    %3132 = vmatprep.subr.mxu0 0.0
    %3133 = vmatpush1.xpose.msra.mxu0 0.0
    %3134 = vmatprep.subr.mxu0 0.0
    %3135 = vmatpush1.xpose.msra.mxu0 0.0
    %3136 = vmatprep.subr.mxu0 0.0
    %3137 = vmatpush1.xpose.msra.mxu0 0.0
    %3138 = vmatprep.subr.mxu0 0.0
    %3139 = vmatpush1.xpose.msra.mxu0 0.0
    %3140 = vmatprep.subr.mxu0 0.0
    %3141 = vmatpush1.xpose.msra.mxu0 0.0
    %3142 = vmatprep.subr.mxu0 0.0
    %3143 = vmatpush1.xpose.msra.mxu0 0.0
    %3144 = vmatprep.subr.mxu0 0.0
    %3145 = vmatpush1.xpose.msra.mxu0 0.0
    %3146 = vmatprep.subr.mxu0 0.0
    %3147 = vmatpush1.xpose.msra.mxu0 0.0
    %3148 = vmatprep.subr.mxu0 0.0
    %3149 = vmatpush1.xpose.msra.mxu0 0.0
    %3150 = vmatprep.subr.mxu0 0.0
    %3151 = vmatpush1.xpose.msra.mxu0 0.0
    %3152 = vmatprep.subr.mxu0 0.0
    %3153 = vmatpush1.xpose.msra.mxu0 0.0
    %3154 = vmatprep.mubr.f32.mxu0 0.0
    %3155 = vmatmul.mubr.f32.gmra.mrb[0].mxu0 %v3079
    %v3156 = vpop.f32.mrb[0].mxu0
    %v3157 = vadd.f32 %v323, %v3156
    %v3158 = vpop.f32.mrb[0].mxu0
    %3159 = vmatprep.mubr.f32.mxu0 0.0
    %3160 = vmatmul.mubr.f32.gmra.mrb[0].mxu0 %v3082
    %v3161 = vpop.f32.mrb[0].mxu0
    %v3162 = vadd.f32 %v324, %v3161
    %v3163 = vpop.f32.mrb[0].mxu0
    %3164 = vdwg.mxu0
    %v3166 = vsel %vm832, %v2471, 0
    %v3169 = vsel %vm832, %v2476, 0
    %v3172 = vsel %vm832, %v2625, 0
    %v3175 = vsel %vm832, %v2630, 0
    %3177 = vmatprep.subr.mxu0 0.0
    %3178 = vmatpush1.xpose.msra.mxu0 %v3172
    %3179 = vmatprep.subr.mxu0 0.0
    %3180 = vmatpush1.xpose.msra.mxu0 %v3175
    %3181 = vmatprep.subr.mxu0 0.0
    %3182 = vmatpush1.xpose.msra.mxu0 0.0
    %3183 = vmatprep.subr.mxu0 0.0
    %3184 = vmatpush1.xpose.msra.mxu0 0.0
    %3185 = vmatprep.subr.mxu0 0.0
    %3186 = vmatpush1.xpose.msra.mxu0 0.0
    %3187 = vmatprep.subr.mxu0 0.0
    %3188 = vmatpush1.xpose.msra.mxu0 0.0
    %3189 = vmatprep.subr.mxu0 0.0
    %3190 = vmatpush1.xpose.msra.mxu0 0.0
    %3191 = vmatprep.subr.mxu0 0.0
    %3192 = vmatpush1.xpose.msra.mxu0 0.0
    %3193 = vmatprep.subr.mxu0 0.0
    %3194 = vmatpush1.xpose.msra.mxu0 0.0
    %3195 = vmatprep.subr.mxu0 0.0
    %3196 = vmatpush1.xpose.msra.mxu0 0.0
    %3197 = vmatprep.subr.mxu0 0.0
    %3198 = vmatpush1.xpose.msra.mxu0 0.0
    %3199 = vmatprep.subr.mxu0 0.0
    %3200 = vmatpush1.xpose.msra.mxu0 0.0
    %3201 = vmatprep.subr.mxu0 0.0
    %3202 = vmatpush1.xpose.msra.mxu0 0.0
    %3203 = vmatprep.subr.mxu0 0.0
    %3204 = vmatpush1.xpose.msra.mxu0 0.0
    %3205 = vmatprep.subr.mxu0 0.0
    %3206 = vmatpush1.xpose.msra.mxu0 0.0
    %3207 = vmatprep.subr.mxu0 0.0
    %3208 = vmatpush1.xpose.msra.mxu0 0.0
    %3209 = vmatprep.subr.mxu0 0.0
    %3210 = vmatpush1.xpose.msra.mxu0 0.0
    %3211 = vmatprep.subr.mxu0 0.0
    %3212 = vmatpush1.xpose.msra.mxu0 0.0
    %3213 = vmatprep.subr.mxu0 0.0
    %3214 = vmatpush1.xpose.msra.mxu0 0.0
    %3215 = vmatprep.subr.mxu0 0.0
    %3216 = vmatpush1.xpose.msra.mxu0 0.0
    %3217 = vmatprep.subr.mxu0 0.0
    %3218 = vmatpush1.xpose.msra.mxu0 0.0
    %3219 = vmatprep.subr.mxu0 0.0
    %3220 = vmatpush1.xpose.msra.mxu0 0.0
    %3221 = vmatprep.subr.mxu0 0.0
    %3222 = vmatpush1.xpose.msra.mxu0 0.0
    %3223 = vmatprep.subr.mxu0 0.0
    %3224 = vmatpush1.xpose.msra.mxu0 0.0
    %3225 = vmatprep.subr.mxu0 0.0
    %3226 = vmatpush1.xpose.msra.mxu0 0.0
    %3227 = vmatprep.subr.mxu0 0.0
    %3228 = vmatpush1.xpose.msra.mxu0 0.0
    %3229 = vmatprep.subr.mxu0 0.0
    %3230 = vmatpush1.xpose.msra.mxu0 0.0
    %3231 = vmatprep.subr.mxu0 0.0
    %3232 = vmatpush1.xpose.msra.mxu0 0.0
    %3233 = vmatprep.subr.mxu0 0.0
    %3234 = vmatpush1.xpose.msra.mxu0 0.0
    %3235 = vmatprep.subr.mxu0 0.0
    %3236 = vmatpush1.xpose.msra.mxu0 0.0
    %3237 = vmatprep.subr.mxu0 0.0
    %3238 = vmatpush1.xpose.msra.mxu0 0.0
    %3239 = vmatprep.subr.mxu0 0.0
    %3240 = vmatpush1.xpose.msra.mxu0 0.0
    %3241 = vmatprep.mubr.f32.mxu0 0.0
    %3242 = vmatmul.mubr.f32.gmra.mrb[0].mxu0 %v3166
    %v3243 = vpop.f32.mrb[0].mxu0
    %v3244 = vadd.f32 %v323, %v3243
    %v3245 = vpop.f32.mrb[0].mxu0
    %3246 = vmatprep.mubr.f32.mxu0 0.0
    %3247 = vmatmul.mubr.f32.gmra.mrb[0].mxu0 %v3169
    %v3248 = vpop.f32.mrb[0].mxu0
    %v3249 = vadd.f32 %v324, %v3248
    %v3250 = vpop.f32.mrb[0].mxu0
    %3251 = vdwg.mxu0
    %v3253 = vsel %vm832, %v2481, 0
    %v3256 = vsel %vm832, %v2486, 0
    %v3259 = vsel %vm832, %v2635, 0
    %v3262 = vsel %vm832, %v2640, 0
    %3264 = vmatprep.subr.mxu0 0.0
    %3265 = vmatpush1.xpose.msra.mxu0 %v3259
    %3266 = vmatprep.subr.mxu0 0.0
    %3267 = vmatpush1.xpose.msra.mxu0 %v3262
    %3268 = vmatprep.subr.mxu0 0.0
    %3269 = vmatpush1.xpose.msra.mxu0 0.0
    %3270 = vmatprep.subr.mxu0 0.0
    %3271 = vmatpush1.xpose.msra.mxu0 0.0
    %3272 = vmatprep.subr.mxu0 0.0
    %3273 = vmatpush1.xpose.msra.mxu0 0.0
    %3274 = vmatprep.subr.mxu0 0.0
    %3275 = vmatpush1.xpose.msra.mxu0 0.0
    %3276 = vmatprep.subr.mxu0 0.0
    %3277 = vmatpush1.xpose.msra.mxu0 0.0
    %3278 = vmatprep.subr.mxu0 0.0
    %3279 = vmatpush1.xpose.msra.mxu0 0.0
    %3280 = vmatprep.subr.mxu0 0.0
    %3281 = vmatpush1.xpose.msra.mxu0 0.0
    %3282 = vmatprep.subr.mxu0 0.0
    %3283 = vmatpush1.xpose.msra.mxu0 0.0
    %3284 = vmatprep.subr.mxu0 0.0
    %3285 = vmatpush1.xpose.msra.mxu0 0.0
    %3286 = vmatprep.subr.mxu0 0.0
    %3287 = vmatpush1.xpose.msra.mxu0 0.0
    %3288 = vmatprep.subr.mxu0 0.0
    %3289 = vmatpush1.xpose.msra.mxu0 0.0
    %3290 = vmatprep.subr.mxu0 0.0
    %3291 = vmatpush1.xpose.msra.mxu0 0.0
    %3292 = vmatprep.subr.mxu0 0.0
    %3293 = vmatpush1.xpose.msra.mxu0 0.0
    %3294 = vmatprep.subr.mxu0 0.0
    %3295 = vmatpush1.xpose.msra.mxu0 0.0
    %3296 = vmatprep.subr.mxu0 0.0
    %3297 = vmatpush1.xpose.msra.mxu0 0.0
    %3298 = vmatprep.subr.mxu0 0.0
    %3299 = vmatpush1.xpose.msra.mxu0 0.0
    %3300 = vmatprep.subr.mxu0 0.0
    %3301 = vmatpush1.xpose.msra.mxu0 0.0
    %3302 = vmatprep.subr.mxu0 0.0
    %3303 = vmatpush1.xpose.msra.mxu0 0.0
    %3304 = vmatprep.subr.mxu0 0.0
    %3305 = vmatpush1.xpose.msra.mxu0 0.0
    %3306 = vmatprep.subr.mxu0 0.0
    %3307 = vmatpush1.xpose.msra.mxu0 0.0
    %3308 = vmatprep.subr.mxu0 0.0
    %3309 = vmatpush1.xpose.msra.mxu0 0.0
    %3310 = vmatprep.subr.mxu0 0.0
    %3311 = vmatpush1.xpose.msra.mxu0 0.0
    %3312 = vmatprep.subr.mxu0 0.0
    %3313 = vmatpush1.xpose.msra.mxu0 0.0
    %3314 = vmatprep.subr.mxu0 0.0
    %3315 = vmatpush1.xpose.msra.mxu0 0.0
    %3316 = vmatprep.subr.mxu0 0.0
    %3317 = vmatpush1.xpose.msra.mxu0 0.0
    %3318 = vmatprep.subr.mxu0 0.0
    %3319 = vmatpush1.xpose.msra.mxu0 0.0
    %3320 = vmatprep.subr.mxu0 0.0
    %3321 = vmatpush1.xpose.msra.mxu0 0.0
    %3322 = vmatprep.subr.mxu0 0.0
    %3323 = vmatpush1.xpose.msra.mxu0 0.0
    %3324 = vmatprep.subr.mxu0 0.0
    %3325 = vmatpush1.xpose.msra.mxu0 0.0
    %3326 = vmatprep.subr.mxu0 0.0
    %3327 = vmatpush1.xpose.msra.mxu0 0.0
    %3328 = vmatprep.mubr.f32.mxu0 0.0
    %3329 = vmatmul.mubr.f32.gmra.mrb[0].mxu0 %v3253
    %v3330 = vpop.f32.mrb[0].mxu0
    %v3331 = vadd.f32 %v323, %v3330
    %v3332 = vpop.f32.mrb[0].mxu0
    %3333 = vmatprep.mubr.f32.mxu0 0.0
    %3334 = vmatmul.mubr.f32.gmra.mrb[0].mxu0 %v3256
    %v3335 = vpop.f32.mrb[0].mxu0
    %v3336 = vadd.f32 %v324, %v3335
    %v3337 = vpop.f32.mrb[0].mxu0
    %3338 = vdwg.mxu0
    %v3340 = vsel %vm832, %v2491, 0
    %v3343 = vsel %vm832, %v2496, 0
    %v3346 = vsel %vm832, %v2645, 0
    %v3349 = vsel %vm832, %v2650, 0
    %3351 = vmatprep.subr.mxu0 0.0
    %3352 = vmatpush1.xpose.msra.mxu0 %v3346
    %3353 = vmatprep.subr.mxu0 0.0
    %3354 = vmatpush1.xpose.msra.mxu0 %v3349
    %3355 = vmatprep.subr.mxu0 0.0
    %3356 = vmatpush1.xpose.msra.mxu0 0.0
    %3357 = vmatprep.subr.mxu0 0.0
    %3358 = vmatpush1.xpose.msra.mxu0 0.0
    %3359 = vmatprep.subr.mxu0 0.0
    %3360 = vmatpush1.xpose.msra.mxu0 0.0
    %3361 = vmatprep.subr.mxu0 0.0
    %3362 = vmatpush1.xpose.msra.mxu0 0.0
    %3363 = vmatprep.subr.mxu0 0.0
    %3364 = vmatpush1.xpose.msra.mxu0 0.0
    %3365 = vmatprep.subr.mxu0 0.0
    %3366 = vmatpush1.xpose.msra.mxu0 0.0
    %3367 = vmatprep.subr.mxu0 0.0
    %3368 = vmatpush1.xpose.msra.mxu0 0.0
    %3369 = vmatprep.subr.mxu0 0.0
    %3370 = vmatpush1.xpose.msra.mxu0 0.0
    %3371 = vmatprep.subr.mxu0 0.0
    %3372 = vmatpush1.xpose.msra.mxu0 0.0
    %3373 = vmatprep.subr.mxu0 0.0
    %3374 = vmatpush1.xpose.msra.mxu0 0.0
    %3375 = vmatprep.subr.mxu0 0.0
    %3376 = vmatpush1.xpose.msra.mxu0 0.0
    %3377 = vmatprep.subr.mxu0 0.0
    %3378 = vmatpush1.xpose.msra.mxu0 0.0
    %3379 = vmatprep.subr.mxu0 0.0
    %3380 = vmatpush1.xpose.msra.mxu0 0.0
    %3381 = vmatprep.subr.mxu0 0.0
    %3382 = vmatpush1.xpose.msra.mxu0 0.0
    %3383 = vmatprep.subr.mxu0 0.0
    %3384 = vmatpush1.xpose.msra.mxu0 0.0
    %3385 = vmatprep.subr.mxu0 0.0
    %3386 = vmatpush1.xpose.msra.mxu0 0.0
    %3387 = vmatprep.subr.mxu0 0.0
    %3388 = vmatpush1.xpose.msra.mxu0 0.0
    %3389 = vmatprep.subr.mxu0 0.0
    %3390 = vmatpush1.xpose.msra.mxu0 0.0
    %3391 = vmatprep.subr.mxu0 0.0
    %3392 = vmatpush1.xpose.msra.mxu0 0.0
    %3393 = vmatprep.subr.mxu0 0.0
    %3394 = vmatpush1.xpose.msra.mxu0 0.0
    %3395 = vmatprep.subr.mxu0 0.0
    %3396 = vmatpush1.xpose.msra.mxu0 0.0
    %3397 = vmatprep.subr.mxu0 0.0
    %3398 = vmatpush1.xpose.msra.mxu0 0.0
    %3399 = vmatprep.subr.mxu0 0.0
    %3400 = vmatpush1.xpose.msra.mxu0 0.0
    %3401 = vmatprep.subr.mxu0 0.0
    %3402 = vmatpush1.xpose.msra.mxu0 0.0
    %3403 = vmatprep.subr.mxu0 0.0
    %3404 = vmatpush1.xpose.msra.mxu0 0.0
    %3405 = vmatprep.subr.mxu0 0.0
    %3406 = vmatpush1.xpose.msra.mxu0 0.0
    %3407 = vmatprep.subr.mxu0 0.0
    %3408 = vmatpush1.xpose.msra.mxu0 0.0
    %3409 = vmatprep.subr.mxu0 0.0
    %3410 = vmatpush1.xpose.msra.mxu0 0.0
    %3411 = vmatprep.subr.mxu0 0.0
    %3412 = vmatpush1.xpose.msra.mxu0 0.0
    %3413 = vmatprep.subr.mxu0 0.0
    %3414 = vmatpush1.xpose.msra.mxu0 0.0
    %3415 = vmatprep.mubr.f32.mxu0 0.0
    %3416 = vmatmul.mubr.f32.gmra.mrb[0].mxu0 %v3340
    %v3417 = vpop.f32.mrb[0].mxu0
    %v3418 = vadd.f32 %v323, %v3417
    %v3419 = vpop.f32.mrb[0].mxu0
    %3420 = vmatprep.mubr.f32.mxu0 0.0
    %3421 = vmatmul.mubr.f32.gmra.mrb[0].mxu0 %v3343
    %v3422 = vpop.f32.mrb[0].mxu0
    %v3423 = vadd.f32 %v324, %v3422
    %v3424 = vpop.f32.mrb[0].mxu0
    %3425 = vdwg.mxu0
    %v3427 = vsel %vm832, %v2501, 0
    %v3430 = vsel %vm832, %v2506, 0
    %v3433 = vsel %vm832, %v2655, 0
    %v3436 = vsel %vm832, %v2660, 0
    %3438 = vmatprep.subr.mxu0 0.0
    %3439 = vmatpush1.xpose.msra.mxu0 %v3433
    %3440 = vmatprep.subr.mxu0 0.0
    %3441 = vmatpush1.xpose.msra.mxu0 %v3436
    %3442 = vmatprep.subr.mxu0 0.0
    %3443 = vmatpush1.xpose.msra.mxu0 0.0
    %3444 = vmatprep.subr.mxu0 0.0
    %3445 = vmatpush1.xpose.msra.mxu0 0.0
    %3446 = vmatprep.subr.mxu0 0.0
    %3447 = vmatpush1.xpose.msra.mxu0 0.0
    %3448 = vmatprep.subr.mxu0 0.0
    %3449 = vmatpush1.xpose.msra.mxu0 0.0
    %3450 = vmatprep.subr.mxu0 0.0
    %3451 = vmatpush1.xpose.msra.mxu0 0.0
    %3452 = vmatprep.subr.mxu0 0.0
    %3453 = vmatpush1.xpose.msra.mxu0 0.0
    %3454 = vmatprep.subr.mxu0 0.0
    %3455 = vmatpush1.xpose.msra.mxu0 0.0
    %3456 = vmatprep.subr.mxu0 0.0
    %3457 = vmatpush1.xpose.msra.mxu0 0.0
    %3458 = vmatprep.subr.mxu0 0.0
    %3459 = vmatpush1.xpose.msra.mxu0 0.0
    %3460 = vmatprep.subr.mxu0 0.0
    %3461 = vmatpush1.xpose.msra.mxu0 0.0
    %3462 = vmatprep.subr.mxu0 0.0
    %3463 = vmatpush1.xpose.msra.mxu0 0.0
    %3464 = vmatprep.subr.mxu0 0.0
    %3465 = vmatpush1.xpose.msra.mxu0 0.0
    %3466 = vmatprep.subr.mxu0 0.0
    %3467 = vmatpush1.xpose.msra.mxu0 0.0
    %3468 = vmatprep.subr.mxu0 0.0
    %3469 = vmatpush1.xpose.msra.mxu0 0.0
    %3470 = vmatprep.subr.mxu0 0.0
    %3471 = vmatpush1.xpose.msra.mxu0 0.0
    %3472 = vmatprep.subr.mxu0 0.0
    %3473 = vmatpush1.xpose.msra.mxu0 0.0
    %3474 = vmatprep.subr.mxu0 0.0
    %3475 = vmatpush1.xpose.msra.mxu0 0.0
    %3476 = vmatprep.subr.mxu0 0.0
    %3477 = vmatpush1.xpose.msra.mxu0 0.0
    %3478 = vmatprep.subr.mxu0 0.0
    %3479 = vmatpush1.xpose.msra.mxu0 0.0
    %3480 = vmatprep.subr.mxu0 0.0
    %3481 = vmatpush1.xpose.msra.mxu0 0.0
    %3482 = vmatprep.subr.mxu0 0.0
    %3483 = vmatpush1.xpose.msra.mxu0 0.0
    %3484 = vmatprep.subr.mxu0 0.0
    %3485 = vmatpush1.xpose.msra.mxu0 0.0
    %3486 = vmatprep.subr.mxu0 0.0
    %3487 = vmatpush1.xpose.msra.mxu0 0.0
    %3488 = vmatprep.subr.mxu0 0.0
    %3489 = vmatpush1.xpose.msra.mxu0 0.0
    %3490 = vmatprep.subr.mxu0 0.0
    %3491 = vmatpush1.xpose.msra.mxu0 0.0
    %3492 = vmatprep.subr.mxu0 0.0
    %3493 = vmatpush1.xpose.msra.mxu0 0.0
    %3494 = vmatprep.subr.mxu0 0.0
    %3495 = vmatpush1.xpose.msra.mxu0 0.0
    %3496 = vmatprep.subr.mxu0 0.0
    %3497 = vmatpush1.xpose.msra.mxu0 0.0
    %3498 = vmatprep.subr.mxu0 0.0
    %3499 = vmatpush1.xpose.msra.mxu0 0.0
    %3500 = vmatprep.subr.mxu0 0.0
    %3501 = vmatpush1.xpose.msra.mxu0 0.0
    %3502 = vmatprep.mubr.f32.mxu0 0.0
    %3503 = vmatmul.mubr.f32.gmra.mrb[0].mxu0 %v3427
    %v3504 = vpop.f32.mrb[0].mxu0
    %v3505 = vadd.f32 %v323, %v3504
    %v3506 = vpop.f32.mrb[0].mxu0
    %3507 = vmatprep.mubr.f32.mxu0 0.0
    %3508 = vmatmul.mubr.f32.gmra.mrb[0].mxu0 %v3430
    %v3509 = vpop.f32.mrb[0].mxu0
    %v3510 = vadd.f32 %v324, %v3509
    %v3511 = vpop.f32.mrb[0].mxu0
    %3512 = vdwg.mxu0
    %v3513 = vsel %vm832, %v2896, -inf
    %3514 = vmax.xlane.f32.xlu0 %v3513
    %v3515 = vpop.xlane.xlu0 %3514
    %v3516 = vsel %vm832, %v2901, -inf
    %3517 = vmax.xlane.f32.xlu0 %v3516
    %v3518 = vpop.xlane.xlu0 %3517
    %v3519 = vsel %vm832, %v2983, -inf
    %3520 = vmax.xlane.f32.xlu0 %v3519
    %v3521 = vpop.xlane.xlu0 %3520
    %v3522 = vsel %vm832, %v2988, -inf
    %3523 = vmax.xlane.f32.xlu0 %v3522
    %v3524 = vpop.xlane.xlu0 %3523
    %v3525 = vsel %vm832, %v3070, -inf
    %3526 = vmax.xlane.f32.xlu0 %v3525
    %v3527 = vpop.xlane.xlu0 %3526
    %v3528 = vsel %vm832, %v3075, -inf
    %3529 = vmax.xlane.f32.xlu0 %v3528
    %v3530 = vpop.xlane.xlu0 %3529
    %v3531 = vsel %vm832, %v3157, -inf
    %3532 = vmax.xlane.f32.xlu0 %v3531
    %v3533 = vpop.xlane.xlu0 %3532
    %v3534 = vsel %vm832, %v3162, -inf
    %3535 = vmax.xlane.f32.xlu0 %v3534
    %v3536 = vpop.xlane.xlu0 %3535
    %v3537 = vsel %vm832, %v3244, -inf
    %3538 = vmax.xlane.f32.xlu0 %v3537
    %v3539 = vpop.xlane.xlu0 %3538
    %v3540 = vsel %vm832, %v3249, -inf
    %3541 = vmax.xlane.f32.xlu0 %v3540
    %v3542 = vpop.xlane.xlu0 %3541
    %v3543 = vsel %vm832, %v3331, -inf
    %3544 = vmax.xlane.f32.xlu0 %v3543
    %v3545 = vpop.xlane.xlu0 %3544
    %v3546 = vsel %vm832, %v3336, -inf
    %3547 = vmax.xlane.f32.xlu0 %v3546
    %v3548 = vpop.xlane.xlu0 %3547
    %v3549 = vsel %vm832, %v3418, -inf
    %3550 = vmax.xlane.f32.xlu0 %v3549
    %v3551 = vpop.xlane.xlu0 %3550
    %v3552 = vsel %vm832, %v3423, -inf
    %3553 = vmax.xlane.f32.xlu0 %v3552
    %v3554 = vpop.xlane.xlu0 %3553
    %v3555 = vsel %vm832, %v3505, -inf
    %3556 = vmax.xlane.f32.xlu0 %v3555
    %v3557 = vpop.xlane.xlu0 %3556
    %v3558 = vsel %vm832, %v3510, -inf
    %3559 = vmax.xlane.f32.xlu0 %v3558
    %v3560 = vpop.xlane.xlu0 %3559
    %v3561 = vsub.f32 %v2896, %v3515
    %v3562 = vsub.f32 %v2901, %v3518
    %v3563 = vsub.f32 %v2983, %v3521
    %v3564 = vsub.f32 %v2988, %v3524
    %v3565 = vsub.f32 %v3070, %v3527
    %v3566 = vsub.f32 %v3075, %v3530
    %v3567 = vsub.f32 %v3157, %v3533
    %v3568 = vsub.f32 %v3162, %v3536
    %v3569 = vsub.f32 %v3244, %v3539
    %v3570 = vsub.f32 %v3249, %v3542
    %v3571 = vsub.f32 %v3331, %v3545
    %v3572 = vsub.f32 %v3336, %v3548
    %v3573 = vsub.f32 %v3418, %v3551
    %v3574 = vsub.f32 %v3423, %v3554
    %v3575 = vsub.f32 %v3505, %v3557
    %v3576 = vsub.f32 %v3510, %v3560
    %v3577 = vmul.f32 %v3561, 1.442695
    %v3578 = vpow.pop %v3577
    %v3579 = vmul.f32 %v3562, 1.442695
    %v3580 = vpow.pop %v3579
    %v3581 = vmul.f32 %v3563, 1.442695
    %v3582 = vpow.pop %v3581
    %v3583 = vmul.f32 %v3564, 1.442695
    %v3584 = vpow.pop %v3583
    %v3585 = vmul.f32 %v3565, 1.442695
    %v3586 = vpow.pop %v3585
    %v3587 = vmul.f32 %v3566, 1.442695
    %v3588 = vpow.pop %v3587
    %v3589 = vmul.f32 %v3567, 1.442695
    %v3590 = vpow.pop %v3589
    %v3591 = vmul.f32 %v3568, 1.442695
    %v3592 = vpow.pop %v3591
    %v3593 = vmul.f32 %v3569, 1.442695
    %v3594 = vpow.pop %v3593
    %v3595 = vmul.f32 %v3570, 1.442695
    %v3596 = vpow.pop %v3595
    %v3597 = vmul.f32 %v3571, 1.442695
    %v3598 = vpow.pop %v3597
    %v3599 = vmul.f32 %v3572, 1.442695
    %v3600 = vpow.pop %v3599
    %v3601 = vmul.f32 %v3573, 1.442695
    %v3602 = vpow.pop %v3601
    %v3603 = vmul.f32 %v3574, 1.442695
    %v3604 = vpow.pop %v3603
    %v3605 = vmul.f32 %v3575, 1.442695
    %v3606 = vpow.pop %v3605
    %v3607 = vmul.f32 %v3576, 1.442695
    %v3608 = vpow.pop %v3607
    %v3609 = vsel %vm832, %v3578, 0.0
    %3610 = vadd.xlane.f32.xlu0 %v3609
    %v3611 = vpop.xlane.xlu0 %3610
    %v3612 = vsel %vm832, %v3580, 0.0
    %3613 = vadd.xlane.f32.xlu0 %v3612
    %v3614 = vpop.xlane.xlu0 %3613
    %v3615 = vsel %vm832, %v3582, 0.0
    %3616 = vadd.xlane.f32.xlu0 %v3615
    %v3617 = vpop.xlane.xlu0 %3616
    %v3618 = vsel %vm832, %v3584, 0.0
    %3619 = vadd.xlane.f32.xlu0 %v3618
    %v3620 = vpop.xlane.xlu0 %3619
    %v3621 = vsel %vm832, %v3586, 0.0
    %3622 = vadd.xlane.f32.xlu0 %v3621
    %v3623 = vpop.xlane.xlu0 %3622
    %v3624 = vsel %vm832, %v3588, 0.0
    %3625 = vadd.xlane.f32.xlu0 %v3624
    %v3626 = vpop.xlane.xlu0 %3625
    %v3627 = vsel %vm832, %v3590, 0.0
    %3628 = vadd.xlane.f32.xlu0 %v3627
    %v3629 = vpop.xlane.xlu0 %3628
    %v3630 = vsel %vm832, %v3592, 0.0
    %3631 = vadd.xlane.f32.xlu0 %v3630
    %v3632 = vpop.xlane.xlu0 %3631
    %v3633 = vsel %vm832, %v3594, 0.0
    %3634 = vadd.xlane.f32.xlu0 %v3633
    %v3635 = vpop.xlane.xlu0 %3634
    %v3636 = vsel %vm832, %v3596, 0.0
    %3637 = vadd.xlane.f32.xlu0 %v3636
    %v3638 = vpop.xlane.xlu0 %3637
    %v3639 = vsel %vm832, %v3598, 0.0
    %3640 = vadd.xlane.f32.xlu0 %v3639
    %v3641 = vpop.xlane.xlu0 %3640
    %v3642 = vsel %vm832, %v3600, 0.0
    %3643 = vadd.xlane.f32.xlu0 %v3642
    %v3644 = vpop.xlane.xlu0 %3643
    %v3645 = vsel %vm832, %v3602, 0.0
    %3646 = vadd.xlane.f32.xlu0 %v3645
    %v3647 = vpop.xlane.xlu0 %3646
    %v3648 = vsel %vm832, %v3604, 0.0
    %3649 = vadd.xlane.f32.xlu0 %v3648
    %v3650 = vpop.xlane.xlu0 %3649
    %v3651 = vsel %vm832, %v3606, 0.0
    %3652 = vadd.xlane.f32.xlu0 %v3651
    %v3653 = vpop.xlane.xlu0 %3652
    %v3654 = vsel %vm832, %v3608, 0.0
    %3655 = vadd.xlane.f32.xlu0 %v3654
    %v3656 = vpop.xlane.xlu0 %3655
    %v3657 = vrcp.pop %v3611
    %v3658 = vmul.f32 %v3578, %v3657
    %v3659 = vrcp.pop %v3614
    %v3660 = vmul.f32 %v3580, %v3659
    %v3661 = vrcp.pop %v3617
    %v3662 = vmul.f32 %v3582, %v3661
    %v3663 = vrcp.pop %v3620
    %v3664 = vmul.f32 %v3584, %v3663
    %v3665 = vrcp.pop %v3623
    %v3666 = vmul.f32 %v3586, %v3665
    %v3667 = vrcp.pop %v3626
    %v3668 = vmul.f32 %v3588, %v3667
    %v3669 = vrcp.pop %v3629
    %v3670 = vmul.f32 %v3590, %v3669
    %v3671 = vrcp.pop %v3632
    %v3672 = vmul.f32 %v3592, %v3671
    %v3673 = vrcp.pop %v3635
    %v3674 = vmul.f32 %v3594, %v3673
    %v3675 = vrcp.pop %v3638
    %v3676 = vmul.f32 %v3596, %v3675
    %v3677 = vrcp.pop %v3641
    %v3678 = vmul.f32 %v3598, %v3677
    %v3679 = vrcp.pop %v3644
    %v3680 = vmul.f32 %v3600, %v3679
    %v3681 = vrcp.pop %v3647
    %v3682 = vmul.f32 %v3602, %v3681
    %v3683 = vrcp.pop %v3650
    %v3684 = vmul.f32 %v3604, %v3683
    %v3685 = vrcp.pop %v3653
    %v3686 = vmul.f32 %v3606, %v3685
    %v3687 = vrcp.pop %v3656
    %v3688 = vmul.f32 %v3608, %v3687
    %v3690 = vsel %vm832, %v3658, 0
    %v3693 = vsel %vm832, %v3660, 0
    %3695 = vmatprep.subr.mxu0 0.0
    %3696 = vmatpush1.msra.mxu0 %v2739
    %3697 = vmatprep.subr.mxu0 0.0
    %3698 = vmatpush1.msra.mxu0 %v2744
    %3699 = vmatprep.subr.mxu0 0.0
    %3700 = vmatpush1.msra.mxu0 0.0
    %3701 = vmatprep.subr.mxu0 0.0
    %3702 = vmatpush1.msra.mxu0 0.0
    %3703 = vmatprep.subr.mxu0 0.0
    %3704 = vmatpush1.msra.mxu0 0.0
    %3705 = vmatprep.subr.mxu0 0.0
    %3706 = vmatpush1.msra.mxu0 0.0
    %3707 = vmatprep.subr.mxu0 0.0
    %3708 = vmatpush1.msra.mxu0 0.0
    %3709 = vmatprep.subr.mxu0 0.0
    %3710 = vmatpush1.msra.mxu0 0.0
    %3711 = vmatprep.subr.mxu0 0.0
    %3712 = vmatpush1.msra.mxu0 0.0
    %3713 = vmatprep.subr.mxu0 0.0
    %3714 = vmatpush1.msra.mxu0 0.0
    %3715 = vmatprep.subr.mxu0 0.0
    %3716 = vmatpush1.msra.mxu0 0.0
    %3717 = vmatprep.subr.mxu0 0.0
    %3718 = vmatpush1.msra.mxu0 0.0
    %3719 = vmatprep.subr.mxu0 0.0
    %3720 = vmatpush1.msra.mxu0 0.0
    %3721 = vmatprep.subr.mxu0 0.0
    %3722 = vmatpush1.msra.mxu0 0.0
    %3723 = vmatprep.subr.mxu0 0.0
    %3724 = vmatpush1.msra.mxu0 0.0
    %3725 = vmatprep.subr.mxu0 0.0
    %3726 = vmatpush1.msra.mxu0 0.0
    %3727 = vmatprep.subr.mxu0 0.0
    %3728 = vmatpush1.msra.mxu0 0.0
    %3729 = vmatprep.subr.mxu0 0.0
    %3730 = vmatpush1.msra.mxu0 0.0
    %3731 = vmatprep.subr.mxu0 0.0
    %3732 = vmatpush1.msra.mxu0 0.0
    %3733 = vmatprep.subr.mxu0 0.0
    %3734 = vmatpush1.msra.mxu0 0.0
    %3735 = vmatprep.subr.mxu0 0.0
    %3736 = vmatpush1.msra.mxu0 0.0
    %3737 = vmatprep.subr.mxu0 0.0
    %3738 = vmatpush1.msra.mxu0 0.0
    %3739 = vmatprep.subr.mxu0 0.0
    %3740 = vmatpush1.msra.mxu0 0.0
    %3741 = vmatprep.subr.mxu0 0.0
    %3742 = vmatpush1.msra.mxu0 0.0
    %3743 = vmatprep.subr.mxu0 0.0
    %3744 = vmatpush1.msra.mxu0 0.0
    %3745 = vmatprep.subr.mxu0 0.0
    %3746 = vmatpush1.msra.mxu0 0.0
    %3747 = vmatprep.subr.mxu0 0.0
    %3748 = vmatpush1.msra.mxu0 0.0
    %3749 = vmatprep.subr.mxu0 0.0
    %3750 = vmatpush1.msra.mxu0 0.0
    %3751 = vmatprep.subr.mxu0 0.0
    %3752 = vmatpush1.msra.mxu0 0.0
    %3753 = vmatprep.subr.mxu0 0.0
    %3754 = vmatpush1.msra.mxu0 0.0
    %3755 = vmatprep.subr.mxu0 0.0
    %3756 = vmatpush1.msra.mxu0 0.0
    %3757 = vmatprep.subr.mxu0 0.0
    %3758 = vmatpush1.msra.mxu0 0.0
    %3759 = vmatprep.mubr.f32.mxu0 0.0
    %3760 = vmatmul.mubr.f32.gmra.mrb[0].mxu0 %v3690
    %v3761 = vpop.f32.mrb[0].mxu0
    %v3762 = vadd.f32 0.0, %v3761
    %v3763 = vpop.f32.mrb[0].mxu0
    %3764 = vmatprep.mubr.f32.mxu0 0.0
    %3765 = vmatmul.mubr.f32.gmra.mrb[0].mxu0 %v3693
    %v3766 = vpop.f32.mrb[0].mxu0
    %v3767 = vadd.f32 0.0, %v3766
    %v3768 = vpop.f32.mrb[0].mxu0
    %3769 = vdwg.mxu0
    %v3771 = vsel %vm832, %v3662, 0
    %v3774 = vsel %vm832, %v3664, 0
    %3776 = vmatprep.subr.mxu0 0.0
    %3777 = vmatpush1.msra.mxu0 %v2749
    %3778 = vmatprep.subr.mxu0 0.0
    %3779 = vmatpush1.msra.mxu0 %v2754
    %3780 = vmatprep.subr.mxu0 0.0
    %3781 = vmatpush1.msra.mxu0 0.0
    %3782 = vmatprep.subr.mxu0 0.0
    %3783 = vmatpush1.msra.mxu0 0.0
    %3784 = vmatprep.subr.mxu0 0.0
    %3785 = vmatpush1.msra.mxu0 0.0
    %3786 = vmatprep.subr.mxu0 0.0
    %3787 = vmatpush1.msra.mxu0 0.0
    %3788 = vmatprep.subr.mxu0 0.0
    %3789 = vmatpush1.msra.mxu0 0.0
    %3790 = vmatprep.subr.mxu0 0.0
    %3791 = vmatpush1.msra.mxu0 0.0
    %3792 = vmatprep.subr.mxu0 0.0
    %3793 = vmatpush1.msra.mxu0 0.0
    %3794 = vmatprep.subr.mxu0 0.0
    %3795 = vmatpush1.msra.mxu0 0.0
    %3796 = vmatprep.subr.mxu0 0.0
    %3797 = vmatpush1.msra.mxu0 0.0
    %3798 = vmatprep.subr.mxu0 0.0
    %3799 = vmatpush1.msra.mxu0 0.0
    %3800 = vmatprep.subr.mxu0 0.0
    %3801 = vmatpush1.msra.mxu0 0.0
    %3802 = vmatprep.subr.mxu0 0.0
    %3803 = vmatpush1.msra.mxu0 0.0
    %3804 = vmatprep.subr.mxu0 0.0
    %3805 = vmatpush1.msra.mxu0 0.0
    %3806 = vmatprep.subr.mxu0 0.0
    %3807 = vmatpush1.msra.mxu0 0.0
    %3808 = vmatprep.subr.mxu0 0.0
    %3809 = vmatpush1.msra.mxu0 0.0
    %3810 = vmatprep.subr.mxu0 0.0
    %3811 = vmatpush1.msra.mxu0 0.0
    %3812 = vmatprep.subr.mxu0 0.0
    %3813 = vmatpush1.msra.mxu0 0.0
    %3814 = vmatprep.subr.mxu0 0.0
    %3815 = vmatpush1.msra.mxu0 0.0
    %3816 = vmatprep.subr.mxu0 0.0
    %3817 = vmatpush1.msra.mxu0 0.0
    %3818 = vmatprep.subr.mxu0 0.0
    %3819 = vmatpush1.msra.mxu0 0.0
    %3820 = vmatprep.subr.mxu0 0.0
    %3821 = vmatpush1.msra.mxu0 0.0
    %3822 = vmatprep.subr.mxu0 0.0
    %3823 = vmatpush1.msra.mxu0 0.0
    %3824 = vmatprep.subr.mxu0 0.0
    %3825 = vmatpush1.msra.mxu0 0.0
    %3826 = vmatprep.subr.mxu0 0.0
    %3827 = vmatpush1.msra.mxu0 0.0
    %3828 = vmatprep.subr.mxu0 0.0
    %3829 = vmatpush1.msra.mxu0 0.0
    %3830 = vmatprep.subr.mxu0 0.0
    %3831 = vmatpush1.msra.mxu0 0.0
    %3832 = vmatprep.subr.mxu0 0.0
    %3833 = vmatpush1.msra.mxu0 0.0
    %3834 = vmatprep.subr.mxu0 0.0
    %3835 = vmatpush1.msra.mxu0 0.0
    %3836 = vmatprep.subr.mxu0 0.0
    %3837 = vmatpush1.msra.mxu0 0.0
    %3838 = vmatprep.subr.mxu0 0.0
    %3839 = vmatpush1.msra.mxu0 0.0
    %3840 = vmatprep.mubr.f32.mxu0 0.0
    %3841 = vmatmul.mubr.f32.gmra.mrb[0].mxu0 %v3771
    %v3842 = vpop.f32.mrb[0].mxu0
    %v3843 = vadd.f32 0.0, %v3842
    %v3844 = vpop.f32.mrb[0].mxu0
    %3845 = vmatprep.mubr.f32.mxu0 0.0
    %3846 = vmatmul.mubr.f32.gmra.mrb[0].mxu0 %v3774
    %v3847 = vpop.f32.mrb[0].mxu0
    %v3848 = vadd.f32 0.0, %v3847
    %v3849 = vpop.f32.mrb[0].mxu0
    %3850 = vdwg.mxu0
    %v3852 = vsel %vm832, %v3666, 0
    %v3855 = vsel %vm832, %v3668, 0
    %3857 = vmatprep.subr.mxu0 0.0
    %3858 = vmatpush1.msra.mxu0 %v2759
    %3859 = vmatprep.subr.mxu0 0.0
    %3860 = vmatpush1.msra.mxu0 %v2764
    %3861 = vmatprep.subr.mxu0 0.0
    %3862 = vmatpush1.msra.mxu0 0.0
    %3863 = vmatprep.subr.mxu0 0.0
    %3864 = vmatpush1.msra.mxu0 0.0
    %3865 = vmatprep.subr.mxu0 0.0
    %3866 = vmatpush1.msra.mxu0 0.0
    %3867 = vmatprep.subr.mxu0 0.0
    %3868 = vmatpush1.msra.mxu0 0.0
    %3869 = vmatprep.subr.mxu0 0.0
    %3870 = vmatpush1.msra.mxu0 0.0
    %3871 = vmatprep.subr.mxu0 0.0
    %3872 = vmatpush1.msra.mxu0 0.0
    %3873 = vmatprep.subr.mxu0 0.0
    %3874 = vmatpush1.msra.mxu0 0.0
    %3875 = vmatprep.subr.mxu0 0.0
    %3876 = vmatpush1.msra.mxu0 0.0
    %3877 = vmatprep.subr.mxu0 0.0
    %3878 = vmatpush1.msra.mxu0 0.0
    %3879 = vmatprep.subr.mxu0 0.0
    %3880 = vmatpush1.msra.mxu0 0.0
    %3881 = vmatprep.subr.mxu0 0.0
    %3882 = vmatpush1.msra.mxu0 0.0
    %3883 = vmatprep.subr.mxu0 0.0
    %3884 = vmatpush1.msra.mxu0 0.0
    %3885 = vmatprep.subr.mxu0 0.0
    %3886 = vmatpush1.msra.mxu0 0.0
    %3887 = vmatprep.subr.mxu0 0.0
    %3888 = vmatpush1.msra.mxu0 0.0
    %3889 = vmatprep.subr.mxu0 0.0
    %3890 = vmatpush1.msra.mxu0 0.0
    %3891 = vmatprep.subr.mxu0 0.0
    %3892 = vmatpush1.msra.mxu0 0.0
    %3893 = vmatprep.subr.mxu0 0.0
    %3894 = vmatpush1.msra.mxu0 0.0
    %3895 = vmatprep.subr.mxu0 0.0
    %3896 = vmatpush1.msra.mxu0 0.0
    %3897 = vmatprep.subr.mxu0 0.0
    %3898 = vmatpush1.msra.mxu0 0.0
    %3899 = vmatprep.subr.mxu0 0.0
    %3900 = vmatpush1.msra.mxu0 0.0
    %3901 = vmatprep.subr.mxu0 0.0
    %3902 = vmatpush1.msra.mxu0 0.0
    %3903 = vmatprep.subr.mxu0 0.0
    %3904 = vmatpush1.msra.mxu0 0.0
    %3905 = vmatprep.subr.mxu0 0.0
    %3906 = vmatpush1.msra.mxu0 0.0
    %3907 = vmatprep.subr.mxu0 0.0
    %3908 = vmatpush1.msra.mxu0 0.0
    %3909 = vmatprep.subr.mxu0 0.0
    %3910 = vmatpush1.msra.mxu0 0.0
    %3911 = vmatprep.subr.mxu0 0.0
    %3912 = vmatpush1.msra.mxu0 0.0
    %3913 = vmatprep.subr.mxu0 0.0
    %3914 = vmatpush1.msra.mxu0 0.0
    %3915 = vmatprep.subr.mxu0 0.0
    %3916 = vmatpush1.msra.mxu0 0.0
    %3917 = vmatprep.subr.mxu0 0.0
    %3918 = vmatpush1.msra.mxu0 0.0
    %3919 = vmatprep.subr.mxu0 0.0
    %3920 = vmatpush1.msra.mxu0 0.0
    %3921 = vmatprep.mubr.f32.mxu0 0.0
    %3922 = vmatmul.mubr.f32.gmra.mrb[0].mxu0 %v3852
    %v3923 = vpop.f32.mrb[0].mxu0
    %v3924 = vadd.f32 0.0, %v3923
    %v3925 = vpop.f32.mrb[0].mxu0
    %3926 = vmatprep.mubr.f32.mxu0 0.0
    %3927 = vmatmul.mubr.f32.gmra.mrb[0].mxu0 %v3855
    %v3928 = vpop.f32.mrb[0].mxu0
    %v3929 = vadd.f32 0.0, %v3928
    %v3930 = vpop.f32.mrb[0].mxu0
    %3931 = vdwg.mxu0
    %v3933 = vsel %vm832, %v3670, 0
    %v3936 = vsel %vm832, %v3672, 0
    %3938 = vmatprep.subr.mxu0 0.0
    %3939 = vmatpush1.msra.mxu0 %v2769
    %3940 = vmatprep.subr.mxu0 0.0
    %3941 = vmatpush1.msra.mxu0 %v2774
    %3942 = vmatprep.subr.mxu0 0.0
    %3943 = vmatpush1.msra.mxu0 0.0
    %3944 = vmatprep.subr.mxu0 0.0
    %3945 = vmatpush1.msra.mxu0 0.0
    %3946 = vmatprep.subr.mxu0 0.0
    %3947 = vmatpush1.msra.mxu0 0.0
    %3948 = vmatprep.subr.mxu0 0.0
    %3949 = vmatpush1.msra.mxu0 0.0
    %3950 = vmatprep.subr.mxu0 0.0
    %3951 = vmatpush1.msra.mxu0 0.0
    %3952 = vmatprep.subr.mxu0 0.0
    %3953 = vmatpush1.msra.mxu0 0.0
    %3954 = vmatprep.subr.mxu0 0.0
    %3955 = vmatpush1.msra.mxu0 0.0
    %3956 = vmatprep.subr.mxu0 0.0
    %3957 = vmatpush1.msra.mxu0 0.0
    %3958 = vmatprep.subr.mxu0 0.0
    %3959 = vmatpush1.msra.mxu0 0.0
    %3960 = vmatprep.subr.mxu0 0.0
    %3961 = vmatpush1.msra.mxu0 0.0
    %3962 = vmatprep.subr.mxu0 0.0
    %3963 = vmatpush1.msra.mxu0 0.0
    %3964 = vmatprep.subr.mxu0 0.0
    %3965 = vmatpush1.msra.mxu0 0.0
    %3966 = vmatprep.subr.mxu0 0.0
    %3967 = vmatpush1.msra.mxu0 0.0
    %3968 = vmatprep.subr.mxu0 0.0
    %3969 = vmatpush1.msra.mxu0 0.0
    %3970 = vmatprep.subr.mxu0 0.0
    %3971 = vmatpush1.msra.mxu0 0.0
    %3972 = vmatprep.subr.mxu0 0.0
    %3973 = vmatpush1.msra.mxu0 0.0
    %3974 = vmatprep.subr.mxu0 0.0
    %3975 = vmatpush1.msra.mxu0 0.0
    %3976 = vmatprep.subr.mxu0 0.0
    %3977 = vmatpush1.msra.mxu0 0.0
    %3978 = vmatprep.subr.mxu0 0.0
    %3979 = vmatpush1.msra.mxu0 0.0
    %3980 = vmatprep.subr.mxu0 0.0
    %3981 = vmatpush1.msra.mxu0 0.0
    %3982 = vmatprep.subr.mxu0 0.0
    %3983 = vmatpush1.msra.mxu0 0.0
    %3984 = vmatprep.subr.mxu0 0.0
    %3985 = vmatpush1.msra.mxu0 0.0
    %3986 = vmatprep.subr.mxu0 0.0
    %3987 = vmatpush1.msra.mxu0 0.0
    %3988 = vmatprep.subr.mxu0 0.0
    %3989 = vmatpush1.msra.mxu0 0.0
    %3990 = vmatprep.subr.mxu0 0.0
    %3991 = vmatpush1.msra.mxu0 0.0
    %3992 = vmatprep.subr.mxu0 0.0
    %3993 = vmatpush1.msra.mxu0 0.0
    %3994 = vmatprep.subr.mxu0 0.0
    %3995 = vmatpush1.msra.mxu0 0.0
    %3996 = vmatprep.subr.mxu0 0.0
    %3997 = vmatpush1.msra.mxu0 0.0
    %3998 = vmatprep.subr.mxu0 0.0
    %3999 = vmatpush1.msra.mxu0 0.0
    %4000 = vmatprep.subr.mxu0 0.0
    %4001 = vmatpush1.msra.mxu0 0.0
    %4002 = vmatprep.mubr.f32.mxu0 0.0
    %4003 = vmatmul.mubr.f32.gmra.mrb[0].mxu0 %v3933
    %v4004 = vpop.f32.mrb[0].mxu0
    %v4005 = vadd.f32 0.0, %v4004
    %v4006 = vpop.f32.mrb[0].mxu0
    %4007 = vmatprep.mubr.f32.mxu0 0.0
    %4008 = vmatmul.mubr.f32.gmra.mrb[0].mxu0 %v3936
    %v4009 = vpop.f32.mrb[0].mxu0
    %v4010 = vadd.f32 0.0, %v4009
    %v4011 = vpop.f32.mrb[0].mxu0
    %4012 = vdwg.mxu0
    %v4014 = vsel %vm832, %v3674, 0
    %v4017 = vsel %vm832, %v3676, 0
    %4019 = vmatprep.subr.mxu0 0.0
    %4020 = vmatpush1.msra.mxu0 %v2779
    %4021 = vmatprep.subr.mxu0 0.0
    %4022 = vmatpush1.msra.mxu0 %v2784
    %4023 = vmatprep.subr.mxu0 0.0
    %4024 = vmatpush1.msra.mxu0 0.0
    %4025 = vmatprep.subr.mxu0 0.0
    %4026 = vmatpush1.msra.mxu0 0.0
    %4027 = vmatprep.subr.mxu0 0.0
    %4028 = vmatpush1.msra.mxu0 0.0
    %4029 = vmatprep.subr.mxu0 0.0
    %4030 = vmatpush1.msra.mxu0 0.0
    %4031 = vmatprep.subr.mxu0 0.0
    %4032 = vmatpush1.msra.mxu0 0.0
    %4033 = vmatprep.subr.mxu0 0.0
    %4034 = vmatpush1.msra.mxu0 0.0
    %4035 = vmatprep.subr.mxu0 0.0
    %4036 = vmatpush1.msra.mxu0 0.0
    %4037 = vmatprep.subr.mxu0 0.0
    %4038 = vmatpush1.msra.mxu0 0.0
    %4039 = vmatprep.subr.mxu0 0.0
    %4040 = vmatpush1.msra.mxu0 0.0
    %4041 = vmatprep.subr.mxu0 0.0
    %4042 = vmatpush1.msra.mxu0 0.0
    %4043 = vmatprep.subr.mxu0 0.0
    %4044 = vmatpush1.msra.mxu0 0.0
    %4045 = vmatprep.subr.mxu0 0.0
    %4046 = vmatpush1.msra.mxu0 0.0
    %4047 = vmatprep.subr.mxu0 0.0
    %4048 = vmatpush1.msra.mxu0 0.0
    %4049 = vmatprep.subr.mxu0 0.0
    %4050 = vmatpush1.msra.mxu0 0.0
    %4051 = vmatprep.subr.mxu0 0.0
    %4052 = vmatpush1.msra.mxu0 0.0
    %4053 = vmatprep.subr.mxu0 0.0
    %4054 = vmatpush1.msra.mxu0 0.0
    %4055 = vmatprep.subr.mxu0 0.0
    %4056 = vmatpush1.msra.mxu0 0.0
    %4057 = vmatprep.subr.mxu0 0.0
    %4058 = vmatpush1.msra.mxu0 0.0
    %4059 = vmatprep.subr.mxu0 0.0
    %4060 = vmatpush1.msra.mxu0 0.0
    %4061 = vmatprep.subr.mxu0 0.0
    %4062 = vmatpush1.msra.mxu0 0.0
    %4063 = vmatprep.subr.mxu0 0.0
    %4064 = vmatpush1.msra.mxu0 0.0
    %4065 = vmatprep.subr.mxu0 0.0
    %4066 = vmatpush1.msra.mxu0 0.0
    %4067 = vmatprep.subr.mxu0 0.0
    %4068 = vmatpush1.msra.mxu0 0.0
    %4069 = vmatprep.subr.mxu0 0.0
    %4070 = vmatpush1.msra.mxu0 0.0
    %4071 = vmatprep.subr.mxu0 0.0
    %4072 = vmatpush1.msra.mxu0 0.0
    %4073 = vmatprep.subr.mxu0 0.0
    %4074 = vmatpush1.msra.mxu0 0.0
    %4075 = vmatprep.subr.mxu0 0.0
    %4076 = vmatpush1.msra.mxu0 0.0
    %4077 = vmatprep.subr.mxu0 0.0
    %4078 = vmatpush1.msra.mxu0 0.0
    %4079 = vmatprep.subr.mxu0 0.0
    %4080 = vmatpush1.msra.mxu0 0.0
    %4081 = vmatprep.subr.mxu0 0.0
    %4082 = vmatpush1.msra.mxu0 0.0
    %4083 = vmatprep.mubr.f32.mxu0 0.0
    %4084 = vmatmul.mubr.f32.gmra.mrb[0].mxu0 %v4014
    %v4085 = vpop.f32.mrb[0].mxu0
    %v4086 = vadd.f32 0.0, %v4085
    %v4087 = vpop.f32.mrb[0].mxu0
    %4088 = vmatprep.mubr.f32.mxu0 0.0
    %4089 = vmatmul.mubr.f32.gmra.mrb[0].mxu0 %v4017
    %v4090 = vpop.f32.mrb[0].mxu0
    %v4091 = vadd.f32 0.0, %v4090
    %v4092 = vpop.f32.mrb[0].mxu0
    %4093 = vdwg.mxu0
    %v4095 = vsel %vm832, %v3678, 0
    %v4098 = vsel %vm832, %v3680, 0
    %4100 = vmatprep.subr.mxu0 0.0
    %4101 = vmatpush1.msra.mxu0 %v2789
    %4102 = vmatprep.subr.mxu0 0.0
    %4103 = vmatpush1.msra.mxu0 %v2794
    %4104 = vmatprep.subr.mxu0 0.0
    %4105 = vmatpush1.msra.mxu0 0.0
    %4106 = vmatprep.subr.mxu0 0.0
    %4107 = vmatpush1.msra.mxu0 0.0
    %4108 = vmatprep.subr.mxu0 0.0
    %4109 = vmatpush1.msra.mxu0 0.0
    %4110 = vmatprep.subr.mxu0 0.0
    %4111 = vmatpush1.msra.mxu0 0.0
    %4112 = vmatprep.subr.mxu0 0.0
    %4113 = vmatpush1.msra.mxu0 0.0
    %4114 = vmatprep.subr.mxu0 0.0
    %4115 = vmatpush1.msra.mxu0 0.0
    %4116 = vmatprep.subr.mxu0 0.0
    %4117 = vmatpush1.msra.mxu0 0.0
    %4118 = vmatprep.subr.mxu0 0.0
    %4119 = vmatpush1.msra.mxu0 0.0
    %4120 = vmatprep.subr.mxu0 0.0
    %4121 = vmatpush1.msra.mxu0 0.0
    %4122 = vmatprep.subr.mxu0 0.0
    %4123 = vmatpush1.msra.mxu0 0.0
    %4124 = vmatprep.subr.mxu0 0.0
    %4125 = vmatpush1.msra.mxu0 0.0
    %4126 = vmatprep.subr.mxu0 0.0
    %4127 = vmatpush1.msra.mxu0 0.0
    %4128 = vmatprep.subr.mxu0 0.0
    %4129 = vmatpush1.msra.mxu0 0.0
    %4130 = vmatprep.subr.mxu0 0.0
    %4131 = vmatpush1.msra.mxu0 0.0
    %4132 = vmatprep.subr.mxu0 0.0
    %4133 = vmatpush1.msra.mxu0 0.0
    %4134 = vmatprep.subr.mxu0 0.0
    %4135 = vmatpush1.msra.mxu0 0.0
    %4136 = vmatprep.subr.mxu0 0.0
    %4137 = vmatpush1.msra.mxu0 0.0
    %4138 = vmatprep.subr.mxu0 0.0
    %4139 = vmatpush1.msra.mxu0 0.0
    %4140 = vmatprep.subr.mxu0 0.0
    %4141 = vmatpush1.msra.mxu0 0.0
    %4142 = vmatprep.subr.mxu0 0.0
    %4143 = vmatpush1.msra.mxu0 0.0
    %4144 = vmatprep.subr.mxu0 0.0
    %4145 = vmatpush1.msra.mxu0 0.0
    %4146 = vmatprep.subr.mxu0 0.0
    %4147 = vmatpush1.msra.mxu0 0.0
    %4148 = vmatprep.subr.mxu0 0.0
    %4149 = vmatpush1.msra.mxu0 0.0
    %4150 = vmatprep.subr.mxu0 0.0
    %4151 = vmatpush1.msra.mxu0 0.0
    %4152 = vmatprep.subr.mxu0 0.0
    %4153 = vmatpush1.msra.mxu0 0.0
    %4154 = vmatprep.subr.mxu0 0.0
    %4155 = vmatpush1.msra.mxu0 0.0
    %4156 = vmatprep.subr.mxu0 0.0
    %4157 = vmatpush1.msra.mxu0 0.0
    %4158 = vmatprep.subr.mxu0 0.0
    %4159 = vmatpush1.msra.mxu0 0.0
    %4160 = vmatprep.subr.mxu0 0.0
    %4161 = vmatpush1.msra.mxu0 0.0
    %4162 = vmatprep.subr.mxu0 0.0
    %4163 = vmatpush1.msra.mxu0 0.0
    %4164 = vmatprep.mubr.f32.mxu0 0.0
    %4165 = vmatmul.mubr.f32.gmra.mrb[0].mxu0 %v4095
    %v4166 = vpop.f32.mrb[0].mxu0
    %v4167 = vadd.f32 0.0, %v4166
    %v4168 = vpop.f32.mrb[0].mxu0
    %4169 = vmatprep.mubr.f32.mxu0 0.0
    %4170 = vmatmul.mubr.f32.gmra.mrb[0].mxu0 %v4098
    %v4171 = vpop.f32.mrb[0].mxu0
    %v4172 = vadd.f32 0.0, %v4171
    %v4173 = vpop.f32.mrb[0].mxu0
    %4174 = vdwg.mxu0
    %v4176 = vsel %vm832, %v3682, 0
    %v4179 = vsel %vm832, %v3684, 0
    %4181 = vmatprep.subr.mxu0 0.0
    %4182 = vmatpush1.msra.mxu0 %v2799
    %4183 = vmatprep.subr.mxu0 0.0
    %4184 = vmatpush1.msra.mxu0 %v2804
    %4185 = vmatprep.subr.mxu0 0.0
    %4186 = vmatpush1.msra.mxu0 0.0
    %4187 = vmatprep.subr.mxu0 0.0
    %4188 = vmatpush1.msra.mxu0 0.0
    %4189 = vmatprep.subr.mxu0 0.0
    %4190 = vmatpush1.msra.mxu0 0.0
    %4191 = vmatprep.subr.mxu0 0.0
    %4192 = vmatpush1.msra.mxu0 0.0
    %4193 = vmatprep.subr.mxu0 0.0
    %4194 = vmatpush1.msra.mxu0 0.0
    %4195 = vmatprep.subr.mxu0 0.0
    %4196 = vmatpush1.msra.mxu0 0.0
    %4197 = vmatprep.subr.mxu0 0.0
    %4198 = vmatpush1.msra.mxu0 0.0
    %4199 = vmatprep.subr.mxu0 0.0
    %4200 = vmatpush1.msra.mxu0 0.0
    %4201 = vmatprep.subr.mxu0 0.0
    %4202 = vmatpush1.msra.mxu0 0.0
    %4203 = vmatprep.subr.mxu0 0.0
    %4204 = vmatpush1.msra.mxu0 0.0
    %4205 = vmatprep.subr.mxu0 0.0
    %4206 = vmatpush1.msra.mxu0 0.0
    %4207 = vmatprep.subr.mxu0 0.0
    %4208 = vmatpush1.msra.mxu0 0.0
    %4209 = vmatprep.subr.mxu0 0.0
    %4210 = vmatpush1.msra.mxu0 0.0
    %4211 = vmatprep.subr.mxu0 0.0
    %4212 = vmatpush1.msra.mxu0 0.0
    %4213 = vmatprep.subr.mxu0 0.0
    %4214 = vmatpush1.msra.mxu0 0.0
    %4215 = vmatprep.subr.mxu0 0.0
    %4216 = vmatpush1.msra.mxu0 0.0
    %4217 = vmatprep.subr.mxu0 0.0
    %4218 = vmatpush1.msra.mxu0 0.0
    %4219 = vmatprep.subr.mxu0 0.0
    %4220 = vmatpush1.msra.mxu0 0.0
    %4221 = vmatprep.subr.mxu0 0.0
    %4222 = vmatpush1.msra.mxu0 0.0
    %4223 = vmatprep.subr.mxu0 0.0
    %4224 = vmatpush1.msra.mxu0 0.0
    %4225 = vmatprep.subr.mxu0 0.0
    %4226 = vmatpush1.msra.mxu0 0.0
    %4227 = vmatprep.subr.mxu0 0.0
    %4228 = vmatpush1.msra.mxu0 0.0
    %4229 = vmatprep.subr.mxu0 0.0
    %4230 = vmatpush1.msra.mxu0 0.0
    %4231 = vmatprep.subr.mxu0 0.0
    %4232 = vmatpush1.msra.mxu0 0.0
    %4233 = vmatprep.subr.mxu0 0.0
    %4234 = vmatpush1.msra.mxu0 0.0
    %4235 = vmatprep.subr.mxu0 0.0
    %4236 = vmatpush1.msra.mxu0 0.0
    %4237 = vmatprep.subr.mxu0 0.0
    %4238 = vmatpush1.msra.mxu0 0.0
    %4239 = vmatprep.subr.mxu0 0.0
    %4240 = vmatpush1.msra.mxu0 0.0
    %4241 = vmatprep.subr.mxu0 0.0
    %4242 = vmatpush1.msra.mxu0 0.0
    %4243 = vmatprep.subr.mxu0 0.0
    %4244 = vmatpush1.msra.mxu0 0.0
    %4245 = vmatprep.mubr.f32.mxu0 0.0
    %4246 = vmatmul.mubr.f32.gmra.mrb[0].mxu0 %v4176
    %v4247 = vpop.f32.mrb[0].mxu0
    %v4248 = vadd.f32 0.0, %v4247
    %v4249 = vpop.f32.mrb[0].mxu0
    %4250 = vmatprep.mubr.f32.mxu0 0.0
    %4251 = vmatmul.mubr.f32.gmra.mrb[0].mxu0 %v4179
    %v4252 = vpop.f32.mrb[0].mxu0
    %v4253 = vadd.f32 0.0, %v4252
    %v4254 = vpop.f32.mrb[0].mxu0
    %4255 = vdwg.mxu0
    %v4257 = vsel %vm832, %v3686, 0
    %v4260 = vsel %vm832, %v3688, 0
    %4262 = vmatprep.subr.mxu0 0.0
    %4263 = vmatpush1.msra.mxu0 %v2809
    %4264 = vmatprep.subr.mxu0 0.0
    %4265 = vmatpush1.msra.mxu0 %v2814
    %4266 = vmatprep.subr.mxu0 0.0
    %4267 = vmatpush1.msra.mxu0 0.0
    %4268 = vmatprep.subr.mxu0 0.0
    %4269 = vmatpush1.msra.mxu0 0.0
    %4270 = vmatprep.subr.mxu0 0.0
    %4271 = vmatpush1.msra.mxu0 0.0
    %4272 = vmatprep.subr.mxu0 0.0
    %4273 = vmatpush1.msra.mxu0 0.0
    %4274 = vmatprep.subr.mxu0 0.0
    %4275 = vmatpush1.msra.mxu0 0.0
    %4276 = vmatprep.subr.mxu0 0.0
    %4277 = vmatpush1.msra.mxu0 0.0
    %4278 = vmatprep.subr.mxu0 0.0
    %4279 = vmatpush1.msra.mxu0 0.0
    %4280 = vmatprep.subr.mxu0 0.0
    %4281 = vmatpush1.msra.mxu0 0.0
    %4282 = vmatprep.subr.mxu0 0.0
    %4283 = vmatpush1.msra.mxu0 0.0
    %4284 = vmatprep.subr.mxu0 0.0
    %4285 = vmatpush1.msra.mxu0 0.0
    %4286 = vmatprep.subr.mxu0 0.0
    %4287 = vmatpush1.msra.mxu0 0.0
    %4288 = vmatprep.subr.mxu0 0.0
    %4289 = vmatpush1.msra.mxu0 0.0
    %4290 = vmatprep.subr.mxu0 0.0
    %4291 = vmatpush1.msra.mxu0 0.0
    %4292 = vmatprep.subr.mxu0 0.0
    %4293 = vmatpush1.msra.mxu0 0.0
    %4294 = vmatprep.subr.mxu0 0.0
    %4295 = vmatpush1.msra.mxu0 0.0
    %4296 = vmatprep.subr.mxu0 0.0
    %4297 = vmatpush1.msra.mxu0 0.0
    %4298 = vmatprep.subr.mxu0 0.0
    %4299 = vmatpush1.msra.mxu0 0.0
    %4300 = vmatprep.subr.mxu0 0.0
    %4301 = vmatpush1.msra.mxu0 0.0
    %4302 = vmatprep.subr.mxu0 0.0
    %4303 = vmatpush1.msra.mxu0 0.0
    %4304 = vmatprep.subr.mxu0 0.0
    %4305 = vmatpush1.msra.mxu0 0.0
    %4306 = vmatprep.subr.mxu0 0.0
    %4307 = vmatpush1.msra.mxu0 0.0
    %4308 = vmatprep.subr.mxu0 0.0
    %4309 = vmatpush1.msra.mxu0 0.0
    %4310 = vmatprep.subr.mxu0 0.0
    %4311 = vmatpush1.msra.mxu0 0.0
    %4312 = vmatprep.subr.mxu0 0.0
    %4313 = vmatpush1.msra.mxu0 0.0
    %4314 = vmatprep.subr.mxu0 0.0
    %4315 = vmatpush1.msra.mxu0 0.0
    %4316 = vmatprep.subr.mxu0 0.0
    %4317 = vmatpush1.msra.mxu0 0.0
    %4318 = vmatprep.subr.mxu0 0.0
    %4319 = vmatpush1.msra.mxu0 0.0
    %4320 = vmatprep.subr.mxu0 0.0
    %4321 = vmatpush1.msra.mxu0 0.0
    %4322 = vmatprep.subr.mxu0 0.0
    %4323 = vmatpush1.msra.mxu0 0.0
    %4324 = vmatprep.subr.mxu0 0.0
    %4325 = vmatpush1.msra.mxu0 0.0
    %4326 = vmatprep.mubr.f32.mxu0 0.0
    %4327 = vmatmul.mubr.f32.gmra.mrb[0].mxu0 %v4257
    %v4328 = vpop.f32.mrb[0].mxu0
    %v4329 = vadd.f32 0.0, %v4328
    %v4330 = vpop.f32.mrb[0].mxu0
    %4331 = vmatprep.mubr.f32.mxu0 0.0
    %4332 = vmatmul.mubr.f32.gmra.mrb[0].mxu0 %v4260
    %v4333 = vpop.f32.mrb[0].mxu0
    %v4334 = vadd.f32 0.0, %v4333
    %v4335 = vpop.f32.mrb[0].mxu0
    %4336 = vdwg.mxu0
    %s4337 = scalar_lea.vmem %s7, 16
    %v4338 = vld [vmem:[%s4337] sm:$0xff]
    %v4339 = vld [vmem:[%s4337 + $0x8] sm:$0xff]
    %v4341 = vsel %vm832, %v3762, 0
    %v4344 = vsel %vm832, %v3767, 0
    %v4347 = vsel %vm832, %v3843, 0
    %v4350 = vsel %vm832, %v3848, 0
    %v4353 = vsel %vm832, %v3924, 0
    %v4356 = vsel %vm832, %v3929, 0
    %v4359 = vsel %vm832, %v4005, 0
    %v4362 = vsel %vm832, %v4010, 0
    %v4365 = vsel %vm832, %v4086, 0
    %v4368 = vsel %vm832, %v4091, 0
    %v4371 = vsel %vm832, %v4167, 0
    %v4374 = vsel %vm832, %v4172, 0
    %v4377 = vsel %vm832, %v4248, 0
    %v4380 = vsel %vm832, %v4253, 0
    %v4383 = vsel %vm832, %v4329, 0
    %v4386 = vsel %vm832, %v4334, 0
    %4388 = vmatprep.subr.mxu0 0.0
    %4389 = vmatpush1.msra.mxu0 %v4338
    %4390 = vmatprep.subr.mxu0 0.0
    %4391 = vmatpush1.msra.mxu0 %v4339
    %4392 = vmatprep.subr.mxu0 0.0
    %4393 = vmatpush1.msra.mxu0 0.0
    %4394 = vmatprep.subr.mxu0 0.0
    %4395 = vmatpush1.msra.mxu0 0.0
    %4396 = vmatprep.subr.mxu0 0.0
    %4397 = vmatpush1.msra.mxu0 0.0
    %4398 = vmatprep.subr.mxu0 0.0
    %4399 = vmatpush1.msra.mxu0 0.0
    %4400 = vmatprep.subr.mxu0 0.0
    %4401 = vmatpush1.msra.mxu0 0.0
    %4402 = vmatprep.subr.mxu0 0.0
    %4403 = vmatpush1.msra.mxu0 0.0
    %4404 = vmatprep.subr.mxu0 0.0
    %4405 = vmatpush1.msra.mxu0 0.0
    %4406 = vmatprep.subr.mxu0 0.0
    %4407 = vmatpush1.msra.mxu0 0.0
    %4408 = vmatprep.subr.mxu0 0.0
    %4409 = vmatpush1.msra.mxu0 0.0
    %4410 = vmatprep.subr.mxu0 0.0
    %4411 = vmatpush1.msra.mxu0 0.0
    %4412 = vmatprep.subr.mxu0 0.0
    %4413 = vmatpush1.msra.mxu0 0.0
    %4414 = vmatprep.subr.mxu0 0.0
    %4415 = vmatpush1.msra.mxu0 0.0
    %4416 = vmatprep.subr.mxu0 0.0
    %4417 = vmatpush1.msra.mxu0 0.0
    %4418 = vmatprep.subr.mxu0 0.0
    %4419 = vmatpush1.msra.mxu0 0.0
    %4420 = vmatprep.subr.mxu0 0.0
    %4421 = vmatpush1.msra.mxu0 0.0
    %4422 = vmatprep.subr.mxu0 0.0
    %4423 = vmatpush1.msra.mxu0 0.0
    %4424 = vmatprep.subr.mxu0 0.0
    %4425 = vmatpush1.msra.mxu0 0.0
    %4426 = vmatprep.subr.mxu0 0.0
    %4427 = vmatpush1.msra.mxu0 0.0
    %4428 = vmatprep.subr.mxu0 0.0
    %4429 = vmatpush1.msra.mxu0 0.0
    %4430 = vmatprep.subr.mxu0 0.0
    %4431 = vmatpush1.msra.mxu0 0.0
    %4432 = vmatprep.subr.mxu0 0.0
    %4433 = vmatpush1.msra.mxu0 0.0
    %4434 = vmatprep.subr.mxu0 0.0
    %4435 = vmatpush1.msra.mxu0 0.0
    %4436 = vmatprep.subr.mxu0 0.0
    %4437 = vmatpush1.msra.mxu0 0.0
    %4438 = vmatprep.subr.mxu0 0.0
    %4439 = vmatpush1.msra.mxu0 0.0
    %4440 = vmatprep.subr.mxu0 0.0
    %4441 = vmatpush1.msra.mxu0 0.0
    %4442 = vmatprep.subr.mxu0 0.0
    %4443 = vmatpush1.msra.mxu0 0.0
    %4444 = vmatprep.subr.mxu0 0.0
    %4445 = vmatpush1.msra.mxu0 0.0
    %4446 = vmatprep.subr.mxu0 0.0
    %4447 = vmatpush1.msra.mxu0 0.0
    %4448 = vmatprep.subr.mxu0 0.0
    %4449 = vmatpush1.msra.mxu0 0.0
    %4450 = vmatprep.subr.mxu0 0.0
    %4451 = vmatpush1.msra.mxu0 0.0
    %4452 = vmatprep.mubr.f32.mxu0 0.0
    %4453 = vmatmul.mubr.f32.gmra.mrb[0].mxu0 %v4341
    %v4454 = vpop.f32.mrb[0].mxu0
    %v4455 = vadd.f32 0.0, %v4454
    %v4456 = vpop.f32.mrb[0].mxu0
    %4457 = vmatprep.mubr.f32.mxu0 0.0
    %4458 = vmatmul.mubr.f32.gmra.mrb[0].mxu0 %v4344
    %v4459 = vpop.f32.mrb[0].mxu0
    %v4460 = vadd.f32 0.0, %v4459
    %v4461 = vpop.f32.mrb[0].mxu0
    %4462 = vmatprep.mubr.f32.mxu0 0.0
    %4463 = vmatmul.mubr.f32.gmra.mrb[0].mxu0 %v4347
    %v4464 = vpop.f32.mrb[0].mxu0
    %v4465 = vadd.f32 0.0, %v4464
    %v4466 = vpop.f32.mrb[0].mxu0
    %4467 = vmatprep.mubr.f32.mxu0 0.0
    %4468 = vmatmul.mubr.f32.gmra.mrb[0].mxu0 %v4350
    %v4469 = vpop.f32.mrb[0].mxu0
    %v4470 = vadd.f32 0.0, %v4469
    %v4471 = vpop.f32.mrb[0].mxu0
    %4472 = vmatprep.mubr.f32.mxu0 0.0
    %4473 = vmatmul.mubr.f32.gmra.mrb[0].mxu0 %v4353
    %v4474 = vpop.f32.mrb[0].mxu0
    %v4475 = vadd.f32 0.0, %v4474
    %v4476 = vpop.f32.mrb[0].mxu0
    %4477 = vmatprep.mubr.f32.mxu0 0.0
    %4478 = vmatmul.mubr.f32.gmra.mrb[0].mxu0 %v4356
    %v4479 = vpop.f32.mrb[0].mxu0
    %v4480 = vadd.f32 0.0, %v4479
    %v4481 = vpop.f32.mrb[0].mxu0
    %4482 = vmatprep.mubr.f32.mxu0 0.0
    %4483 = vmatmul.mubr.f32.gmra.mrb[0].mxu0 %v4359
    %v4484 = vpop.f32.mrb[0].mxu0
    %v4485 = vadd.f32 0.0, %v4484
    %v4486 = vpop.f32.mrb[0].mxu0
    %4487 = vmatprep.mubr.f32.mxu0 0.0
    %4488 = vmatmul.mubr.f32.gmra.mrb[0].mxu0 %v4362
    %v4489 = vpop.f32.mrb[0].mxu0
    %v4490 = vadd.f32 0.0, %v4489
    %v4491 = vpop.f32.mrb[0].mxu0
    %4492 = vmatprep.mubr.f32.mxu0 0.0
    %4493 = vmatmul.mubr.f32.gmra.mrb[0].mxu0 %v4365
    %v4494 = vpop.f32.mrb[0].mxu0
    %v4495 = vadd.f32 0.0, %v4494
    %v4496 = vpop.f32.mrb[0].mxu0
    %4497 = vmatprep.mubr.f32.mxu0 0.0
    %4498 = vmatmul.mubr.f32.gmra.mrb[0].mxu0 %v4368
    %v4499 = vpop.f32.mrb[0].mxu0
    %v4500 = vadd.f32 0.0, %v4499
    %v4501 = vpop.f32.mrb[0].mxu0
    %4502 = vmatprep.mubr.f32.mxu0 0.0
    %4503 = vmatmul.mubr.f32.gmra.mrb[0].mxu0 %v4371
    %v4504 = vpop.f32.mrb[0].mxu0
    %v4505 = vadd.f32 0.0, %v4504
    %v4506 = vpop.f32.mrb[0].mxu0
    %4507 = vmatprep.mubr.f32.mxu0 0.0
    %4508 = vmatmul.mubr.f32.gmra.mrb[0].mxu0 %v4374
    %v4509 = vpop.f32.mrb[0].mxu0
    %v4510 = vadd.f32 0.0, %v4509
    %v4511 = vpop.f32.mrb[0].mxu0
    %4512 = vmatprep.mubr.f32.mxu0 0.0
    %4513 = vmatmul.mubr.f32.gmra.mrb[0].mxu0 %v4377
    %v4514 = vpop.f32.mrb[0].mxu0
    %v4515 = vadd.f32 0.0, %v4514
    %v4516 = vpop.f32.mrb[0].mxu0
    %4517 = vmatprep.mubr.f32.mxu0 0.0
    %4518 = vmatmul.mubr.f32.gmra.mrb[0].mxu0 %v4380
    %v4519 = vpop.f32.mrb[0].mxu0
    %v4520 = vadd.f32 0.0, %v4519
    %v4521 = vpop.f32.mrb[0].mxu0
    %4522 = vmatprep.mubr.f32.mxu0 0.0
    %4523 = vmatmul.mubr.f32.gmra.mrb[0].mxu0 %v4383
    %v4524 = vpop.f32.mrb[0].mxu0
    %v4525 = vadd.f32 0.0, %v4524
    %v4526 = vpop.f32.mrb[0].mxu0
    %4527 = vmatprep.mubr.f32.mxu0 0.0
    %4528 = vmatmul.mubr.f32.gmra.mrb[0].mxu0 %v4386
    %v4529 = vpop.f32.mrb[0].mxu0
    %v4530 = vadd.f32 0.0, %v4529
    %v4531 = vpop.f32.mrb[0].mxu0
    %4532 = vdwg.mxu0
    %v4534 = vsel %vm832, %v1778, 0
    %v4537 = vsel %vm832, %v1783, 0
    %v4540 = vsel %vm832, %v1859, 0
    %v4543 = vsel %vm832, %v1864, 0
    %v4546 = vsel %vm832, %v1940, 0
    %v4549 = vsel %vm832, %v1945, 0
    %v4552 = vsel %vm832, %v2021, 0
    %v4555 = vsel %vm832, %v2026, 0
    %v4558 = vsel %vm832, %v2102, 0
    %v4561 = vsel %vm832, %v2107, 0
    %v4564 = vsel %vm832, %v2183, 0
    %v4567 = vsel %vm832, %v2188, 0
    %v4570 = vsel %vm832, %v2264, 0
    %v4573 = vsel %vm832, %v2269, 0
    %v4576 = vsel %vm832, %v2345, 0
    %v4579 = vsel %vm832, %v2350, 0
    %4581 = vmatprep.subr.mxu0 0.0
    %4582 = vmatpush1.msra.mxu0 %v2353
    %4583 = vmatprep.subr.mxu0 0.0
    %4584 = vmatpush1.msra.mxu0 %v2354
    %4585 = vmatprep.subr.mxu0 0.0
    %4586 = vmatpush1.msra.mxu0 0.0
    %4587 = vmatprep.subr.mxu0 0.0
    %4588 = vmatpush1.msra.mxu0 0.0
    %4589 = vmatprep.subr.mxu0 0.0
    %4590 = vmatpush1.msra.mxu0 0.0
    %4591 = vmatprep.subr.mxu0 0.0
    %4592 = vmatpush1.msra.mxu0 0.0
    %4593 = vmatprep.subr.mxu0 0.0
    %4594 = vmatpush1.msra.mxu0 0.0
    %4595 = vmatprep.subr.mxu0 0.0
    %4596 = vmatpush1.msra.mxu0 0.0
    %4597 = vmatprep.subr.mxu0 0.0
    %4598 = vmatpush1.msra.mxu0 0.0
    %4599 = vmatprep.subr.mxu0 0.0
    %4600 = vmatpush1.msra.mxu0 0.0
    %4601 = vmatprep.subr.mxu0 0.0
    %4602 = vmatpush1.msra.mxu0 0.0
    %4603 = vmatprep.subr.mxu0 0.0
    %4604 = vmatpush1.msra.mxu0 0.0
    %4605 = vmatprep.subr.mxu0 0.0
    %4606 = vmatpush1.msra.mxu0 0.0
    %4607 = vmatprep.subr.mxu0 0.0
    %4608 = vmatpush1.msra.mxu0 0.0
    %4609 = vmatprep.subr.mxu0 0.0
    %4610 = vmatpush1.msra.mxu0 0.0
    %4611 = vmatprep.subr.mxu0 0.0
    %4612 = vmatpush1.msra.mxu0 0.0
    %4613 = vmatprep.subr.mxu0 0.0
    %4614 = vmatpush1.msra.mxu0 0.0
    %4615 = vmatprep.subr.mxu0 0.0
    %4616 = vmatpush1.msra.mxu0 0.0
    %4617 = vmatprep.subr.mxu0 0.0
    %4618 = vmatpush1.msra.mxu0 0.0
    %4619 = vmatprep.subr.mxu0 0.0
    %4620 = vmatpush1.msra.mxu0 0.0
    %4621 = vmatprep.subr.mxu0 0.0
    %4622 = vmatpush1.msra.mxu0 0.0
    %4623 = vmatprep.subr.mxu0 0.0
    %4624 = vmatpush1.msra.mxu0 0.0
    %4625 = vmatprep.subr.mxu0 0.0
    %4626 = vmatpush1.msra.mxu0 0.0
    %4627 = vmatprep.subr.mxu0 0.0
    %4628 = vmatpush1.msra.mxu0 0.0
    %4629 = vmatprep.subr.mxu0 0.0
    %4630 = vmatpush1.msra.mxu0 0.0
    %4631 = vmatprep.subr.mxu0 0.0
    %4632 = vmatpush1.msra.mxu0 0.0
    %4633 = vmatprep.subr.mxu0 0.0
    %4634 = vmatpush1.msra.mxu0 0.0
    %4635 = vmatprep.subr.mxu0 0.0
    %4636 = vmatpush1.msra.mxu0 0.0
    %4637 = vmatprep.subr.mxu0 0.0
    %4638 = vmatpush1.msra.mxu0 0.0
    %4639 = vmatprep.subr.mxu0 0.0
    %4640 = vmatpush1.msra.mxu0 0.0
    %4641 = vmatprep.subr.mxu0 0.0
    %4642 = vmatpush1.msra.mxu0 0.0
    %4643 = vmatprep.subr.mxu0 0.0
    %4644 = vmatpush1.msra.mxu0 0.0
    %4645 = vmatprep.mubr.f32.mxu0 0.0
    %4646 = vmatmul.mubr.f32.gmra.mrb[0].mxu0 %v4534
    %v4647 = vpop.f32.mrb[0].mxu0
    %v4648 = vadd.f32 %v4455, %v4647
    %v4649 = vpop.f32.mrb[0].mxu0
    %4650 = vmatprep.mubr.f32.mxu0 0.0
    %4651 = vmatmul.mubr.f32.gmra.mrb[0].mxu0 %v4537
    %v4652 = vpop.f32.mrb[0].mxu0
    %v4653 = vadd.f32 %v4460, %v4652
    %v4654 = vpop.f32.mrb[0].mxu0
    %4655 = vmatprep.mubr.f32.mxu0 0.0
    %4656 = vmatmul.mubr.f32.gmra.mrb[0].mxu0 %v4540
    %v4657 = vpop.f32.mrb[0].mxu0
    %v4658 = vadd.f32 %v4465, %v4657
    %v4659 = vpop.f32.mrb[0].mxu0
    %4660 = vmatprep.mubr.f32.mxu0 0.0
    %4661 = vmatmul.mubr.f32.gmra.mrb[0].mxu0 %v4543
    %v4662 = vpop.f32.mrb[0].mxu0
    %v4663 = vadd.f32 %v4470, %v4662
    %v4664 = vpop.f32.mrb[0].mxu0
    %4665 = vmatprep.mubr.f32.mxu0 0.0
    %4666 = vmatmul.mubr.f32.gmra.mrb[0].mxu0 %v4546
    %v4667 = vpop.f32.mrb[0].mxu0
    %v4668 = vadd.f32 %v4475, %v4667
    %v4669 = vpop.f32.mrb[0].mxu0
    %4670 = vmatprep.mubr.f32.mxu0 0.0
    %4671 = vmatmul.mubr.f32.gmra.mrb[0].mxu0 %v4549
    %v4672 = vpop.f32.mrb[0].mxu0
    %v4673 = vadd.f32 %v4480, %v4672
    %v4674 = vpop.f32.mrb[0].mxu0
    %4675 = vmatprep.mubr.f32.mxu0 0.0
    %4676 = vmatmul.mubr.f32.gmra.mrb[0].mxu0 %v4552
    %v4677 = vpop.f32.mrb[0].mxu0
    %v4678 = vadd.f32 %v4485, %v4677
    %v4679 = vpop.f32.mrb[0].mxu0
    %4680 = vmatprep.mubr.f32.mxu0 0.0
    %4681 = vmatmul.mubr.f32.gmra.mrb[0].mxu0 %v4555
    %v4682 = vpop.f32.mrb[0].mxu0
    %v4683 = vadd.f32 %v4490, %v4682
    %v4684 = vpop.f32.mrb[0].mxu0
    %4685 = vmatprep.mubr.f32.mxu0 0.0
    %4686 = vmatmul.mubr.f32.gmra.mrb[0].mxu0 %v4558
    %v4687 = vpop.f32.mrb[0].mxu0
    %v4688 = vadd.f32 %v4495, %v4687
    %v4689 = vpop.f32.mrb[0].mxu0
    %4690 = vmatprep.mubr.f32.mxu0 0.0
    %4691 = vmatmul.mubr.f32.gmra.mrb[0].mxu0 %v4561
    %v4692 = vpop.f32.mrb[0].mxu0
    %v4693 = vadd.f32 %v4500, %v4692
    %v4694 = vpop.f32.mrb[0].mxu0
    %4695 = vmatprep.mubr.f32.mxu0 0.0
    %4696 = vmatmul.mubr.f32.gmra.mrb[0].mxu0 %v4564
    %v4697 = vpop.f32.mrb[0].mxu0
    %v4698 = vadd.f32 %v4505, %v4697
    %v4699 = vpop.f32.mrb[0].mxu0
    %4700 = vmatprep.mubr.f32.mxu0 0.0
    %4701 = vmatmul.mubr.f32.gmra.mrb[0].mxu0 %v4567
    %v4702 = vpop.f32.mrb[0].mxu0
    %v4703 = vadd.f32 %v4510, %v4702
    %v4704 = vpop.f32.mrb[0].mxu0
    %4705 = vmatprep.mubr.f32.mxu0 0.0
    %4706 = vmatmul.mubr.f32.gmra.mrb[0].mxu0 %v4570
    %v4707 = vpop.f32.mrb[0].mxu0
    %v4708 = vadd.f32 %v4515, %v4707
    %v4709 = vpop.f32.mrb[0].mxu0
    %4710 = vmatprep.mubr.f32.mxu0 0.0
    %4711 = vmatmul.mubr.f32.gmra.mrb[0].mxu0 %v4573
    %v4712 = vpop.f32.mrb[0].mxu0
    %v4713 = vadd.f32 %v4520, %v4712
    %v4714 = vpop.f32.mrb[0].mxu0
    %4715 = vmatprep.mubr.f32.mxu0 0.0
    %4716 = vmatmul.mubr.f32.gmra.mrb[0].mxu0 %v4576
    %v4717 = vpop.f32.mrb[0].mxu0
    %v4718 = vadd.f32 %v4525, %v4717
    %v4719 = vpop.f32.mrb[0].mxu0
    %4720 = vmatprep.mubr.f32.mxu0 0.0
    %4721 = vmatmul.mubr.f32.gmra.mrb[0].mxu0 %v4579
    %v4722 = vpop.f32.mrb[0].mxu0
    %v4723 = vadd.f32 %v4530, %v4722
    %v4724 = vpop.f32.mrb[0].mxu0
    %4725 = vdwg.mxu0
    %s4726 = scalar_lea.vmem %s4, 128
    %v4727 = vld [vmem:[%s4726] sm:$0xff]
    %v4728 = vld [vmem:[%s4726 + $0x8] sm:$0xff]
    %v4729 = vld [vmem:[%s4726 + $0x10] sm:$0xff]
    %v4730 = vld [vmem:[%s4726 + $0x18] sm:$0xff]
    %v4731 = vld [vmem:[%s4726 + $0x20] sm:$0xff]
    %v4732 = vld [vmem:[%s4726 + $0x28] sm:$0xff]
    %v4733 = vld [vmem:[%s4726 + $0x30] sm:$0xff]
    %v4734 = vld [vmem:[%s4726 + $0x38] sm:$0xff]
    %4735 = vmatprep.subr.mxu0 0.0
    %4736 = vmatpush1.msra.mxu0 %v4727
    %4737 = vmatprep.subr.mxu0 0.0
    %4738 = vmatpush1.msra.mxu0 %v4728
    %4739 = vmatprep.subr.mxu0 0.0
    %4740 = vmatpush1.msra.mxu0 %v4729
    %4741 = vmatprep.subr.mxu0 0.0
    %4742 = vmatpush1.msra.mxu0 %v4730
    %4743 = vmatprep.subr.mxu0 0.0
    %4744 = vmatpush1.msra.mxu0 %v4731
    %4745 = vmatprep.subr.mxu0 0.0
    %4746 = vmatpush1.msra.mxu0 %v4732
    %4747 = vmatprep.subr.mxu0 0.0
    %4748 = vmatpush1.msra.mxu0 %v4733
    %4749 = vmatprep.subr.mxu0 0.0
    %4750 = vmatpush1.msra.mxu0 %v4734
    %4751 = vmatprep.subr.mxu0 0.0
    %4752 = vmatpush1.msra.mxu0 0.0
    %4753 = vmatprep.subr.mxu0 0.0
    %4754 = vmatpush1.msra.mxu0 0.0
    %4755 = vmatprep.subr.mxu0 0.0
    %4756 = vmatpush1.msra.mxu0 0.0
    %4757 = vmatprep.subr.mxu0 0.0
    %4758 = vmatpush1.msra.mxu0 0.0
    %4759 = vmatprep.subr.mxu0 0.0
    %4760 = vmatpush1.msra.mxu0 0.0
    %4761 = vmatprep.subr.mxu0 0.0
    %4762 = vmatpush1.msra.mxu0 0.0
    %4763 = vmatprep.subr.mxu0 0.0
    %4764 = vmatpush1.msra.mxu0 0.0
    %4765 = vmatprep.subr.mxu0 0.0
    %4766 = vmatpush1.msra.mxu0 0.0
    %4767 = vmatprep.subr.mxu0 0.0
    %4768 = vmatpush1.msra.mxu0 0.0
    %4769 = vmatprep.subr.mxu0 0.0
    %4770 = vmatpush1.msra.mxu0 0.0
    %4771 = vmatprep.subr.mxu0 0.0
    %4772 = vmatpush1.msra.mxu0 0.0
    %4773 = vmatprep.subr.mxu0 0.0
    %4774 = vmatpush1.msra.mxu0 0.0
    %4775 = vmatprep.subr.mxu0 0.0
    %4776 = vmatpush1.msra.mxu0 0.0
    %4777 = vmatprep.subr.mxu0 0.0
    %4778 = vmatpush1.msra.mxu0 0.0
    %4779 = vmatprep.subr.mxu0 0.0
    %4780 = vmatpush1.msra.mxu0 0.0
    %4781 = vmatprep.subr.mxu0 0.0
    %4782 = vmatpush1.msra.mxu0 0.0
    %4783 = vmatprep.subr.mxu0 0.0
    %4784 = vmatpush1.msra.mxu0 0.0
    %4785 = vmatprep.subr.mxu0 0.0
    %4786 = vmatpush1.msra.mxu0 0.0
    %4787 = vmatprep.subr.mxu0 0.0
    %4788 = vmatpush1.msra.mxu0 0.0
    %4789 = vmatprep.subr.mxu0 0.0
    %4790 = vmatpush1.msra.mxu0 0.0
    %4791 = vmatprep.subr.mxu0 0.0
    %4792 = vmatpush1.msra.mxu0 0.0
    %4793 = vmatprep.subr.mxu0 0.0
    %4794 = vmatpush1.msra.mxu0 0.0
    %4795 = vmatprep.subr.mxu0 0.0
    %4796 = vmatpush1.msra.mxu0 0.0
    %4797 = vmatprep.subr.mxu0 0.0
    %4798 = vmatpush1.msra.mxu0 0.0
    %4799 = vmatprep.mubr.f32.mxu0 0.0
    %4800 = vmatmul.mubr.f32.gmra.mrb[0].mxu0 %v334
    %v4801 = vpop.f32.mrb[0].mxu0
    %v4802 = vadd.f32 0.0, %v4801
    %v4803 = vpop.f32.mrb[0].mxu0
    %4804 = vmatprep.mubr.f32.mxu0 0.0
    %4805 = vmatmul.mubr.f32.gmra.mrb[0].mxu0 %v337
    %v4806 = vpop.f32.mrb[0].mxu0
    %v4807 = vadd.f32 0.0, %v4806
    %v4808 = vpop.f32.mrb[0].mxu0
    %4809 = vmatprep.mubr.f32.mxu0 0.0
    %4810 = vmatmul.mubr.f32.gmra.mrb[0].mxu0 %v340
    %v4811 = vpop.f32.mrb[0].mxu0
    %v4812 = vadd.f32 0.0, %v4811
    %v4813 = vpop.f32.mrb[0].mxu0
    %4814 = vmatprep.mubr.f32.mxu0 0.0
    %4815 = vmatmul.mubr.f32.gmra.mrb[0].mxu0 %v343
    %v4816 = vpop.f32.mrb[0].mxu0
    %v4817 = vadd.f32 0.0, %v4816
    %v4818 = vpop.f32.mrb[0].mxu0
    %4819 = vmatprep.mubr.f32.mxu0 0.0
    %4820 = vmatmul.mubr.f32.gmra.mrb[0].mxu0 %v346
    %v4821 = vpop.f32.mrb[0].mxu0
    %v4822 = vadd.f32 0.0, %v4821
    %v4823 = vpop.f32.mrb[0].mxu0
    %4824 = vmatprep.mubr.f32.mxu0 0.0
    %4825 = vmatmul.mubr.f32.gmra.mrb[0].mxu0 %v349
    %v4826 = vpop.f32.mrb[0].mxu0
    %v4827 = vadd.f32 0.0, %v4826
    %v4828 = vpop.f32.mrb[0].mxu0
    %4829 = vmatprep.mubr.f32.mxu0 0.0
    %4830 = vmatmul.mubr.f32.gmra.mrb[0].mxu0 %v352
    %v4831 = vpop.f32.mrb[0].mxu0
    %v4832 = vadd.f32 0.0, %v4831
    %v4833 = vpop.f32.mrb[0].mxu0
    %4834 = vmatprep.mubr.f32.mxu0 0.0
    %4835 = vmatmul.mubr.f32.gmra.mrb[0].mxu0 %v355
    %v4836 = vpop.f32.mrb[0].mxu0
    %v4837 = vadd.f32 0.0, %v4836
    %v4838 = vpop.f32.mrb[0].mxu0
    %4839 = vmatprep.mubr.f32.mxu0 0.0
    %4840 = vmatmul.mubr.f32.gmra.mrb[0].mxu0 %v358
    %v4841 = vpop.f32.mrb[0].mxu0
    %v4842 = vadd.f32 0.0, %v4841
    %v4843 = vpop.f32.mrb[0].mxu0
    %4844 = vmatprep.mubr.f32.mxu0 0.0
    %4845 = vmatmul.mubr.f32.gmra.mrb[0].mxu0 %v361
    %v4846 = vpop.f32.mrb[0].mxu0
    %v4847 = vadd.f32 0.0, %v4846
    %v4848 = vpop.f32.mrb[0].mxu0
    %4849 = vmatprep.mubr.f32.mxu0 0.0
    %4850 = vmatmul.mubr.f32.gmra.mrb[0].mxu0 %v364
    %v4851 = vpop.f32.mrb[0].mxu0
    %v4852 = vadd.f32 0.0, %v4851
    %v4853 = vpop.f32.mrb[0].mxu0
    %4854 = vmatprep.mubr.f32.mxu0 0.0
    %4855 = vmatmul.mubr.f32.gmra.mrb[0].mxu0 %v367
    %v4856 = vpop.f32.mrb[0].mxu0
    %v4857 = vadd.f32 0.0, %v4856
    %v4858 = vpop.f32.mrb[0].mxu0
    %4859 = vmatprep.mubr.f32.mxu0 0.0
    %4860 = vmatmul.mubr.f32.gmra.mrb[0].mxu0 %v370
    %v4861 = vpop.f32.mrb[0].mxu0
    %v4862 = vadd.f32 0.0, %v4861
    %v4863 = vpop.f32.mrb[0].mxu0
    %4864 = vmatprep.mubr.f32.mxu0 0.0
    %4865 = vmatmul.mubr.f32.gmra.mrb[0].mxu0 %v373
    %v4866 = vpop.f32.mrb[0].mxu0
    %v4867 = vadd.f32 0.0, %v4866
    %v4868 = vpop.f32.mrb[0].mxu0
    %4869 = vmatprep.mubr.f32.mxu0 0.0
    %4870 = vmatmul.mubr.f32.gmra.mrb[0].mxu0 %v376
    %v4871 = vpop.f32.mrb[0].mxu0
    %v4872 = vadd.f32 0.0, %v4871
    %v4873 = vpop.f32.mrb[0].mxu0
    %4874 = vmatprep.mubr.f32.mxu0 0.0
    %4875 = vmatmul.mubr.f32.gmra.mrb[0].mxu0 %v379
    %v4876 = vpop.f32.mrb[0].mxu0
    %v4877 = vadd.f32 0.0, %v4876
    %v4878 = vpop.f32.mrb[0].mxu0
    %4879 = vdwg.mxu0
    %s4880 = scalar_lea.vmem %s5, 128
    %v4881 = vld [vmem:[%s4880] sm:$0xff]
    %v4882 = vld [vmem:[%s4880 + $0x8] sm:$0xff]
    %v4883 = vld [vmem:[%s4880 + $0x10] sm:$0xff]
    %v4884 = vld [vmem:[%s4880 + $0x18] sm:$0xff]
    %v4885 = vld [vmem:[%s4880 + $0x20] sm:$0xff]
    %v4886 = vld [vmem:[%s4880 + $0x28] sm:$0xff]
    %v4887 = vld [vmem:[%s4880 + $0x30] sm:$0xff]
    %v4888 = vld [vmem:[%s4880 + $0x38] sm:$0xff]
    %4889 = vmatprep.subr.mxu0 0.0
    %4890 = vmatpush1.msra.mxu0 %v4881
    %4891 = vmatprep.subr.mxu0 0.0
    %4892 = vmatpush1.msra.mxu0 %v4882
    %4893 = vmatprep.subr.mxu0 0.0
    %4894 = vmatpush1.msra.mxu0 %v4883
    %4895 = vmatprep.subr.mxu0 0.0
    %4896 = vmatpush1.msra.mxu0 %v4884
    %4897 = vmatprep.subr.mxu0 0.0
    %4898 = vmatpush1.msra.mxu0 %v4885
    %4899 = vmatprep.subr.mxu0 0.0
    %4900 = vmatpush1.msra.mxu0 %v4886
    %4901 = vmatprep.subr.mxu0 0.0
    %4902 = vmatpush1.msra.mxu0 %v4887
    %4903 = vmatprep.subr.mxu0 0.0
    %4904 = vmatpush1.msra.mxu0 %v4888
    %4905 = vmatprep.subr.mxu0 0.0
    %4906 = vmatpush1.msra.mxu0 0.0
    %4907 = vmatprep.subr.mxu0 0.0
    %4908 = vmatpush1.msra.mxu0 0.0
    %4909 = vmatprep.subr.mxu0 0.0
    %4910 = vmatpush1.msra.mxu0 0.0
    %4911 = vmatprep.subr.mxu0 0.0
    %4912 = vmatpush1.msra.mxu0 0.0
    %4913 = vmatprep.subr.mxu0 0.0
    %4914 = vmatpush1.msra.mxu0 0.0
    %4915 = vmatprep.subr.mxu0 0.0
    %4916 = vmatpush1.msra.mxu0 0.0
    %4917 = vmatprep.subr.mxu0 0.0
    %4918 = vmatpush1.msra.mxu0 0.0
    %4919 = vmatprep.subr.mxu0 0.0
    %4920 = vmatpush1.msra.mxu0 0.0
    %4921 = vmatprep.subr.mxu0 0.0
    %4922 = vmatpush1.msra.mxu0 0.0
    %4923 = vmatprep.subr.mxu0 0.0
    %4924 = vmatpush1.msra.mxu0 0.0
    %4925 = vmatprep.subr.mxu0 0.0
    %4926 = vmatpush1.msra.mxu0 0.0
    %4927 = vmatprep.subr.mxu0 0.0
    %4928 = vmatpush1.msra.mxu0 0.0
    %4929 = vmatprep.subr.mxu0 0.0
    %4930 = vmatpush1.msra.mxu0 0.0
    %4931 = vmatprep.subr.mxu0 0.0
    %4932 = vmatpush1.msra.mxu0 0.0
    %4933 = vmatprep.subr.mxu0 0.0
    %4934 = vmatpush1.msra.mxu0 0.0
    %4935 = vmatprep.subr.mxu0 0.0
    %4936 = vmatpush1.msra.mxu0 0.0
    %4937 = vmatprep.subr.mxu0 0.0
    %4938 = vmatpush1.msra.mxu0 0.0
    %4939 = vmatprep.subr.mxu0 0.0
    %4940 = vmatpush1.msra.mxu0 0.0
    %4941 = vmatprep.subr.mxu0 0.0
    %4942 = vmatpush1.msra.mxu0 0.0
    %4943 = vmatprep.subr.mxu0 0.0
    %4944 = vmatpush1.msra.mxu0 0.0
    %4945 = vmatprep.subr.mxu0 0.0
    %4946 = vmatpush1.msra.mxu0 0.0
    %4947 = vmatprep.subr.mxu0 0.0
    %4948 = vmatpush1.msra.mxu0 0.0
    %4949 = vmatprep.subr.mxu0 0.0
    %4950 = vmatpush1.msra.mxu0 0.0
    %4951 = vmatprep.subr.mxu0 0.0
    %4952 = vmatpush1.msra.mxu0 0.0
    %4953 = vmatprep.mubr.f32.mxu0 0.0
    %4954 = vmatmul.mubr.f32.gmra.mrb[0].mxu0 %v334
    %v4955 = vpop.f32.mrb[0].mxu0
    %v4956 = vadd.f32 0.0, %v4955
    %v4957 = vpop.f32.mrb[0].mxu0
    %4958 = vmatprep.mubr.f32.mxu0 0.0
    %4959 = vmatmul.mubr.f32.gmra.mrb[0].mxu0 %v337
    %v4960 = vpop.f32.mrb[0].mxu0
    %v4961 = vadd.f32 0.0, %v4960
    %v4962 = vpop.f32.mrb[0].mxu0
    %4963 = vmatprep.mubr.f32.mxu0 0.0
    %4964 = vmatmul.mubr.f32.gmra.mrb[0].mxu0 %v340
    %v4965 = vpop.f32.mrb[0].mxu0
    %v4966 = vadd.f32 0.0, %v4965
    %v4967 = vpop.f32.mrb[0].mxu0
    %4968 = vmatprep.mubr.f32.mxu0 0.0
    %4969 = vmatmul.mubr.f32.gmra.mrb[0].mxu0 %v343
    %v4970 = vpop.f32.mrb[0].mxu0
    %v4971 = vadd.f32 0.0, %v4970
    %v4972 = vpop.f32.mrb[0].mxu0
    %4973 = vmatprep.mubr.f32.mxu0 0.0
    %4974 = vmatmul.mubr.f32.gmra.mrb[0].mxu0 %v346
    %v4975 = vpop.f32.mrb[0].mxu0
    %v4976 = vadd.f32 0.0, %v4975
    %v4977 = vpop.f32.mrb[0].mxu0
    %4978 = vmatprep.mubr.f32.mxu0 0.0
    %4979 = vmatmul.mubr.f32.gmra.mrb[0].mxu0 %v349
    %v4980 = vpop.f32.mrb[0].mxu0
    %v4981 = vadd.f32 0.0, %v4980
    %v4982 = vpop.f32.mrb[0].mxu0
    %4983 = vmatprep.mubr.f32.mxu0 0.0
    %4984 = vmatmul.mubr.f32.gmra.mrb[0].mxu0 %v352
    %v4985 = vpop.f32.mrb[0].mxu0
    %v4986 = vadd.f32 0.0, %v4985
    %v4987 = vpop.f32.mrb[0].mxu0
    %4988 = vmatprep.mubr.f32.mxu0 0.0
    %4989 = vmatmul.mubr.f32.gmra.mrb[0].mxu0 %v355
    %v4990 = vpop.f32.mrb[0].mxu0
    %v4991 = vadd.f32 0.0, %v4990
    %v4992 = vpop.f32.mrb[0].mxu0
    %4993 = vmatprep.mubr.f32.mxu0 0.0
    %4994 = vmatmul.mubr.f32.gmra.mrb[0].mxu0 %v358
    %v4995 = vpop.f32.mrb[0].mxu0
    %v4996 = vadd.f32 0.0, %v4995
    %v4997 = vpop.f32.mrb[0].mxu0
    %4998 = vmatprep.mubr.f32.mxu0 0.0
    %4999 = vmatmul.mubr.f32.gmra.mrb[0].mxu0 %v361
    %v5000 = vpop.f32.mrb[0].mxu0
    %v5001 = vadd.f32 0.0, %v5000
    %v5002 = vpop.f32.mrb[0].mxu0
    %5003 = vmatprep.mubr.f32.mxu0 0.0
    %5004 = vmatmul.mubr.f32.gmra.mrb[0].mxu0 %v364
    %v5005 = vpop.f32.mrb[0].mxu0
    %v5006 = vadd.f32 0.0, %v5005
    %v5007 = vpop.f32.mrb[0].mxu0
    %5008 = vmatprep.mubr.f32.mxu0 0.0
    %5009 = vmatmul.mubr.f32.gmra.mrb[0].mxu0 %v367
    %v5010 = vpop.f32.mrb[0].mxu0
    %v5011 = vadd.f32 0.0, %v5010
    %v5012 = vpop.f32.mrb[0].mxu0
    %5013 = vmatprep.mubr.f32.mxu0 0.0
    %5014 = vmatmul.mubr.f32.gmra.mrb[0].mxu0 %v370
    %v5015 = vpop.f32.mrb[0].mxu0
    %v5016 = vadd.f32 0.0, %v5015
    %v5017 = vpop.f32.mrb[0].mxu0
    %5018 = vmatprep.mubr.f32.mxu0 0.0
    %5019 = vmatmul.mubr.f32.gmra.mrb[0].mxu0 %v373
    %v5020 = vpop.f32.mrb[0].mxu0
    %v5021 = vadd.f32 0.0, %v5020
    %v5022 = vpop.f32.mrb[0].mxu0
    %5023 = vmatprep.mubr.f32.mxu0 0.0
    %5024 = vmatmul.mubr.f32.gmra.mrb[0].mxu0 %v376
    %v5025 = vpop.f32.mrb[0].mxu0
    %v5026 = vadd.f32 0.0, %v5025
    %v5027 = vpop.f32.mrb[0].mxu0
    %5028 = vmatprep.mubr.f32.mxu0 0.0
    %5029 = vmatmul.mubr.f32.gmra.mrb[0].mxu0 %v379
    %v5030 = vpop.f32.mrb[0].mxu0
    %v5031 = vadd.f32 0.0, %v5030
    %v5032 = vpop.f32.mrb[0].mxu0
    %5033 = vdwg.mxu0
    %s5034 = scalar_lea.vmem %s6, 128
    %v5035 = vld [vmem:[%s5034] sm:$0xff]
    %v5036 = vld [vmem:[%s5034 + $0x8] sm:$0xff]
    %v5037 = vld [vmem:[%s5034 + $0x10] sm:$0xff]
    %v5038 = vld [vmem:[%s5034 + $0x18] sm:$0xff]
    %v5039 = vld [vmem:[%s5034 + $0x20] sm:$0xff]
    %v5040 = vld [vmem:[%s5034 + $0x28] sm:$0xff]
    %v5041 = vld [vmem:[%s5034 + $0x30] sm:$0xff]
    %v5042 = vld [vmem:[%s5034 + $0x38] sm:$0xff]
    %5043 = vmatprep.subr.mxu0 0.0
    %5044 = vmatpush1.msra.mxu0 %v5035
    %5045 = vmatprep.subr.mxu0 0.0
    %5046 = vmatpush1.msra.mxu0 %v5036
    %5047 = vmatprep.subr.mxu0 0.0
    %5048 = vmatpush1.msra.mxu0 %v5037
    %5049 = vmatprep.subr.mxu0 0.0
    %5050 = vmatpush1.msra.mxu0 %v5038
    %5051 = vmatprep.subr.mxu0 0.0
    %5052 = vmatpush1.msra.mxu0 %v5039
    %5053 = vmatprep.subr.mxu0 0.0
    %5054 = vmatpush1.msra.mxu0 %v5040
    %5055 = vmatprep.subr.mxu0 0.0
    %5056 = vmatpush1.msra.mxu0 %v5041
    %5057 = vmatprep.subr.mxu0 0.0
    %5058 = vmatpush1.msra.mxu0 %v5042
    %5059 = vmatprep.subr.mxu0 0.0
    %5060 = vmatpush1.msra.mxu0 0.0
    %5061 = vmatprep.subr.mxu0 0.0
    %5062 = vmatpush1.msra.mxu0 0.0
    %5063 = vmatprep.subr.mxu0 0.0
    %5064 = vmatpush1.msra.mxu0 0.0
    %5065 = vmatprep.subr.mxu0 0.0
    %5066 = vmatpush1.msra.mxu0 0.0
    %5067 = vmatprep.subr.mxu0 0.0
    %5068 = vmatpush1.msra.mxu0 0.0
    %5069 = vmatprep.subr.mxu0 0.0
    %5070 = vmatpush1.msra.mxu0 0.0
    %5071 = vmatprep.subr.mxu0 0.0
    %5072 = vmatpush1.msra.mxu0 0.0
    %5073 = vmatprep.subr.mxu0 0.0
    %5074 = vmatpush1.msra.mxu0 0.0
    %5075 = vmatprep.subr.mxu0 0.0
    %5076 = vmatpush1.msra.mxu0 0.0
    %5077 = vmatprep.subr.mxu0 0.0
    %5078 = vmatpush1.msra.mxu0 0.0
    %5079 = vmatprep.subr.mxu0 0.0
    %5080 = vmatpush1.msra.mxu0 0.0
    %5081 = vmatprep.subr.mxu0 0.0
    %5082 = vmatpush1.msra.mxu0 0.0
    %5083 = vmatprep.subr.mxu0 0.0
    %5084 = vmatpush1.msra.mxu0 0.0
    %5085 = vmatprep.subr.mxu0 0.0
    %5086 = vmatpush1.msra.mxu0 0.0
    %5087 = vmatprep.subr.mxu0 0.0
    %5088 = vmatpush1.msra.mxu0 0.0
    %5089 = vmatprep.subr.mxu0 0.0
    %5090 = vmatpush1.msra.mxu0 0.0
    %5091 = vmatprep.subr.mxu0 0.0
    %5092 = vmatpush1.msra.mxu0 0.0
    %5093 = vmatprep.subr.mxu0 0.0
    %5094 = vmatpush1.msra.mxu0 0.0
    %5095 = vmatprep.subr.mxu0 0.0
    %5096 = vmatpush1.msra.mxu0 0.0
    %5097 = vmatprep.subr.mxu0 0.0
    %5098 = vmatpush1.msra.mxu0 0.0
    %5099 = vmatprep.subr.mxu0 0.0
    %5100 = vmatpush1.msra.mxu0 0.0
    %5101 = vmatprep.subr.mxu0 0.0
    %5102 = vmatpush1.msra.mxu0 0.0
    %5103 = vmatprep.subr.mxu0 0.0
    %5104 = vmatpush1.msra.mxu0 0.0
    %5105 = vmatprep.subr.mxu0 0.0
    %5106 = vmatpush1.msra.mxu0 0.0
    %5107 = vmatprep.mubr.f32.mxu0 0.0
    %5108 = vmatmul.mubr.f32.gmra.mrb[0].mxu0 %v334
    %v5109 = vpop.f32.mrb[0].mxu0
    %v5110 = vadd.f32 0.0, %v5109
    %v5111 = vpop.f32.mrb[0].mxu0
    %5112 = vmatprep.mubr.f32.mxu0 0.0
    %5113 = vmatmul.mubr.f32.gmra.mrb[0].mxu0 %v337
    %v5114 = vpop.f32.mrb[0].mxu0
    %v5115 = vadd.f32 0.0, %v5114
    %v5116 = vpop.f32.mrb[0].mxu0
    %5117 = vmatprep.mubr.f32.mxu0 0.0
    %5118 = vmatmul.mubr.f32.gmra.mrb[0].mxu0 %v340
    %v5119 = vpop.f32.mrb[0].mxu0
    %v5120 = vadd.f32 0.0, %v5119
    %v5121 = vpop.f32.mrb[0].mxu0
    %5122 = vmatprep.mubr.f32.mxu0 0.0
    %5123 = vmatmul.mubr.f32.gmra.mrb[0].mxu0 %v343
    %v5124 = vpop.f32.mrb[0].mxu0
    %v5125 = vadd.f32 0.0, %v5124
    %v5126 = vpop.f32.mrb[0].mxu0
    %5127 = vmatprep.mubr.f32.mxu0 0.0
    %5128 = vmatmul.mubr.f32.gmra.mrb[0].mxu0 %v346
    %v5129 = vpop.f32.mrb[0].mxu0
    %v5130 = vadd.f32 0.0, %v5129
    %v5131 = vpop.f32.mrb[0].mxu0
    %5132 = vmatprep.mubr.f32.mxu0 0.0
    %5133 = vmatmul.mubr.f32.gmra.mrb[0].mxu0 %v349
    %v5134 = vpop.f32.mrb[0].mxu0
    %v5135 = vadd.f32 0.0, %v5134
    %v5136 = vpop.f32.mrb[0].mxu0
    %5137 = vmatprep.mubr.f32.mxu0 0.0
    %5138 = vmatmul.mubr.f32.gmra.mrb[0].mxu0 %v352
    %v5139 = vpop.f32.mrb[0].mxu0
    %v5140 = vadd.f32 0.0, %v5139
    %v5141 = vpop.f32.mrb[0].mxu0
    %5142 = vmatprep.mubr.f32.mxu0 0.0
    %5143 = vmatmul.mubr.f32.gmra.mrb[0].mxu0 %v355
    %v5144 = vpop.f32.mrb[0].mxu0
    %v5145 = vadd.f32 0.0, %v5144
    %v5146 = vpop.f32.mrb[0].mxu0
    %5147 = vmatprep.mubr.f32.mxu0 0.0
    %5148 = vmatmul.mubr.f32.gmra.mrb[0].mxu0 %v358
    %v5149 = vpop.f32.mrb[0].mxu0
    %v5150 = vadd.f32 0.0, %v5149
    %v5151 = vpop.f32.mrb[0].mxu0
    %5152 = vmatprep.mubr.f32.mxu0 0.0
    %5153 = vmatmul.mubr.f32.gmra.mrb[0].mxu0 %v361
    %v5154 = vpop.f32.mrb[0].mxu0
    %v5155 = vadd.f32 0.0, %v5154
    %v5156 = vpop.f32.mrb[0].mxu0
    %5157 = vmatprep.mubr.f32.mxu0 0.0
    %5158 = vmatmul.mubr.f32.gmra.mrb[0].mxu0 %v364
    %v5159 = vpop.f32.mrb[0].mxu0
    %v5160 = vadd.f32 0.0, %v5159
    %v5161 = vpop.f32.mrb[0].mxu0
    %5162 = vmatprep.mubr.f32.mxu0 0.0
    %5163 = vmatmul.mubr.f32.gmra.mrb[0].mxu0 %v367
    %v5164 = vpop.f32.mrb[0].mxu0
    %v5165 = vadd.f32 0.0, %v5164
    %v5166 = vpop.f32.mrb[0].mxu0
    %5167 = vmatprep.mubr.f32.mxu0 0.0
    %5168 = vmatmul.mubr.f32.gmra.mrb[0].mxu0 %v370
    %v5169 = vpop.f32.mrb[0].mxu0
    %v5170 = vadd.f32 0.0, %v5169
    %v5171 = vpop.f32.mrb[0].mxu0
    %5172 = vmatprep.mubr.f32.mxu0 0.0
    %5173 = vmatmul.mubr.f32.gmra.mrb[0].mxu0 %v373
    %v5174 = vpop.f32.mrb[0].mxu0
    %v5175 = vadd.f32 0.0, %v5174
    %v5176 = vpop.f32.mrb[0].mxu0
    %5177 = vmatprep.mubr.f32.mxu0 0.0
    %5178 = vmatmul.mubr.f32.gmra.mrb[0].mxu0 %v376
    %v5179 = vpop.f32.mrb[0].mxu0
    %v5180 = vadd.f32 0.0, %v5179
    %v5181 = vpop.f32.mrb[0].mxu0
    %5182 = vmatprep.mubr.f32.mxu0 0.0
    %5183 = vmatmul.mubr.f32.gmra.mrb[0].mxu0 %v379
    %v5184 = vpop.f32.mrb[0].mxu0
    %v5185 = vadd.f32 0.0, %v5184
    %v5186 = vpop.f32.mrb[0].mxu0
    %5187 = vdwg.mxu0
    %v5189 = vsel %vm832, %v4802, 0
    %v5192 = vsel %vm832, %v4807, 0
    %v5195 = vsel %vm832, %v4956, 0
    %v5198 = vsel %vm832, %v4961, 0
    %5200 = vmatprep.subr.mxu0 0.0
    %5201 = vmatpush1.xpose.msra.mxu0 %v5195
    %5202 = vmatprep.subr.mxu0 0.0
    %5203 = vmatpush1.xpose.msra.mxu0 %v5198
    %5204 = vmatprep.subr.mxu0 0.0
    %5205 = vmatpush1.xpose.msra.mxu0 0.0
    %5206 = vmatprep.subr.mxu0 0.0
    %5207 = vmatpush1.xpose.msra.mxu0 0.0
    %5208 = vmatprep.subr.mxu0 0.0
    %5209 = vmatpush1.xpose.msra.mxu0 0.0
    %5210 = vmatprep.subr.mxu0 0.0
    %5211 = vmatpush1.xpose.msra.mxu0 0.0
    %5212 = vmatprep.subr.mxu0 0.0
    %5213 = vmatpush1.xpose.msra.mxu0 0.0
    %5214 = vmatprep.subr.mxu0 0.0
    %5215 = vmatpush1.xpose.msra.mxu0 0.0
    %5216 = vmatprep.subr.mxu0 0.0
    %5217 = vmatpush1.xpose.msra.mxu0 0.0
    %5218 = vmatprep.subr.mxu0 0.0
    %5219 = vmatpush1.xpose.msra.mxu0 0.0
    %5220 = vmatprep.subr.mxu0 0.0
    %5221 = vmatpush1.xpose.msra.mxu0 0.0
    %5222 = vmatprep.subr.mxu0 0.0
    %5223 = vmatpush1.xpose.msra.mxu0 0.0
    %5224 = vmatprep.subr.mxu0 0.0
    %5225 = vmatpush1.xpose.msra.mxu0 0.0
    %5226 = vmatprep.subr.mxu0 0.0
    %5227 = vmatpush1.xpose.msra.mxu0 0.0
    %5228 = vmatprep.subr.mxu0 0.0
    %5229 = vmatpush1.xpose.msra.mxu0 0.0
    %5230 = vmatprep.subr.mxu0 0.0
    %5231 = vmatpush1.xpose.msra.mxu0 0.0
    %5232 = vmatprep.subr.mxu0 0.0
    %5233 = vmatpush1.xpose.msra.mxu0 0.0
    %5234 = vmatprep.subr.mxu0 0.0
    %5235 = vmatpush1.xpose.msra.mxu0 0.0
    %5236 = vmatprep.subr.mxu0 0.0
    %5237 = vmatpush1.xpose.msra.mxu0 0.0
    %5238 = vmatprep.subr.mxu0 0.0
    %5239 = vmatpush1.xpose.msra.mxu0 0.0
    %5240 = vmatprep.subr.mxu0 0.0
    %5241 = vmatpush1.xpose.msra.mxu0 0.0
    %5242 = vmatprep.subr.mxu0 0.0
    %5243 = vmatpush1.xpose.msra.mxu0 0.0
    %5244 = vmatprep.subr.mxu0 0.0
    %5245 = vmatpush1.xpose.msra.mxu0 0.0
    %5246 = vmatprep.subr.mxu0 0.0
    %5247 = vmatpush1.xpose.msra.mxu0 0.0
    %5248 = vmatprep.subr.mxu0 0.0
    %5249 = vmatpush1.xpose.msra.mxu0 0.0
    %5250 = vmatprep.subr.mxu0 0.0
    %5251 = vmatpush1.xpose.msra.mxu0 0.0
    %5252 = vmatprep.subr.mxu0 0.0
    %5253 = vmatpush1.xpose.msra.mxu0 0.0
    %5254 = vmatprep.subr.mxu0 0.0
    %5255 = vmatpush1.xpose.msra.mxu0 0.0
    %5256 = vmatprep.subr.mxu0 0.0
    %5257 = vmatpush1.xpose.msra.mxu0 0.0
    %5258 = vmatprep.subr.mxu0 0.0
    %5259 = vmatpush1.xpose.msra.mxu0 0.0
    %5260 = vmatprep.subr.mxu0 0.0
    %5261 = vmatpush1.xpose.msra.mxu0 0.0
    %5262 = vmatprep.subr.mxu0 0.0
    %5263 = vmatpush1.xpose.msra.mxu0 0.0
    %5264 = vmatprep.mubr.f32.mxu0 0.0
    %5265 = vmatmul.mubr.f32.gmra.mrb[0].mxu0 %v5189
    %v5266 = vpop.f32.mrb[0].mxu0
    %v5267 = vadd.f32 %v323, %v5266
    %v5268 = vpop.f32.mrb[0].mxu0
    %5269 = vmatprep.mubr.f32.mxu0 0.0
    %5270 = vmatmul.mubr.f32.gmra.mrb[0].mxu0 %v5192
    %v5271 = vpop.f32.mrb[0].mxu0
    %v5272 = vadd.f32 %v324, %v5271
    %v5273 = vpop.f32.mrb[0].mxu0
    %5274 = vdwg.mxu0
    %v5276 = vsel %vm832, %v4812, 0
    %v5279 = vsel %vm832, %v4817, 0
    %v5282 = vsel %vm832, %v4966, 0
    %v5285 = vsel %vm832, %v4971, 0
    %5287 = vmatprep.subr.mxu0 0.0
    %5288 = vmatpush1.xpose.msra.mxu0 %v5282
    %5289 = vmatprep.subr.mxu0 0.0
    %5290 = vmatpush1.xpose.msra.mxu0 %v5285
    %5291 = vmatprep.subr.mxu0 0.0
    %5292 = vmatpush1.xpose.msra.mxu0 0.0
    %5293 = vmatprep.subr.mxu0 0.0
    %5294 = vmatpush1.xpose.msra.mxu0 0.0
    %5295 = vmatprep.subr.mxu0 0.0
    %5296 = vmatpush1.xpose.msra.mxu0 0.0
    %5297 = vmatprep.subr.mxu0 0.0
    %5298 = vmatpush1.xpose.msra.mxu0 0.0
    %5299 = vmatprep.subr.mxu0 0.0
    %5300 = vmatpush1.xpose.msra.mxu0 0.0
    %5301 = vmatprep.subr.mxu0 0.0
    %5302 = vmatpush1.xpose.msra.mxu0 0.0
    %5303 = vmatprep.subr.mxu0 0.0
    %5304 = vmatpush1.xpose.msra.mxu0 0.0
    %5305 = vmatprep.subr.mxu0 0.0
    %5306 = vmatpush1.xpose.msra.mxu0 0.0
    %5307 = vmatprep.subr.mxu0 0.0
    %5308 = vmatpush1.xpose.msra.mxu0 0.0
    %5309 = vmatprep.subr.mxu0 0.0
    %5310 = vmatpush1.xpose.msra.mxu0 0.0
    %5311 = vmatprep.subr.mxu0 0.0
    %5312 = vmatpush1.xpose.msra.mxu0 0.0
    %5313 = vmatprep.subr.mxu0 0.0
    %5314 = vmatpush1.xpose.msra.mxu0 0.0
    %5315 = vmatprep.subr.mxu0 0.0
    %5316 = vmatpush1.xpose.msra.mxu0 0.0
    %5317 = vmatprep.subr.mxu0 0.0
    %5318 = vmatpush1.xpose.msra.mxu0 0.0
    %5319 = vmatprep.subr.mxu0 0.0
    %5320 = vmatpush1.xpose.msra.mxu0 0.0
    %5321 = vmatprep.subr.mxu0 0.0
    %5322 = vmatpush1.xpose.msra.mxu0 0.0
    %5323 = vmatprep.subr.mxu0 0.0
    %5324 = vmatpush1.xpose.msra.mxu0 0.0
    %5325 = vmatprep.subr.mxu0 0.0
    %5326 = vmatpush1.xpose.msra.mxu0 0.0
    %5327 = vmatprep.subr.mxu0 0.0
    %5328 = vmatpush1.xpose.msra.mxu0 0.0
    %5329 = vmatprep.subr.mxu0 0.0
    %5330 = vmatpush1.xpose.msra.mxu0 0.0
    %5331 = vmatprep.subr.mxu0 0.0
    %5332 = vmatpush1.xpose.msra.mxu0 0.0
    %5333 = vmatprep.subr.mxu0 0.0
    %5334 = vmatpush1.xpose.msra.mxu0 0.0
    %5335 = vmatprep.subr.mxu0 0.0
    %5336 = vmatpush1.xpose.msra.mxu0 0.0
    %5337 = vmatprep.subr.mxu0 0.0
    %5338 = vmatpush1.xpose.msra.mxu0 0.0
    %5339 = vmatprep.subr.mxu0 0.0
    %5340 = vmatpush1.xpose.msra.mxu0 0.0
    %5341 = vmatprep.subr.mxu0 0.0
    %5342 = vmatpush1.xpose.msra.mxu0 0.0
    %5343 = vmatprep.subr.mxu0 0.0
    %5344 = vmatpush1.xpose.msra.mxu0 0.0
    %5345 = vmatprep.subr.mxu0 0.0
    %5346 = vmatpush1.xpose.msra.mxu0 0.0
    %5347 = vmatprep.subr.mxu0 0.0
    %5348 = vmatpush1.xpose.msra.mxu0 0.0
    %5349 = vmatprep.subr.mxu0 0.0
    %5350 = vmatpush1.xpose.msra.mxu0 0.0
    %5351 = vmatprep.mubr.f32.mxu0 0.0
    %5352 = vmatmul.mubr.f32.gmra.mrb[0].mxu0 %v5276
    %v5353 = vpop.f32.mrb[0].mxu0
    %v5354 = vadd.f32 %v323, %v5353
    %v5355 = vpop.f32.mrb[0].mxu0
    %5356 = vmatprep.mubr.f32.mxu0 0.0
    %5357 = vmatmul.mubr.f32.gmra.mrb[0].mxu0 %v5279
    %v5358 = vpop.f32.mrb[0].mxu0
    %v5359 = vadd.f32 %v324, %v5358
    %v5360 = vpop.f32.mrb[0].mxu0
    %5361 = vdwg.mxu0
    %v5363 = vsel %vm832, %v4822, 0
    %v5366 = vsel %vm832, %v4827, 0
    %v5369 = vsel %vm832, %v4976, 0
    %v5372 = vsel %vm832, %v4981, 0
    %5374 = vmatprep.subr.mxu0 0.0
    %5375 = vmatpush1.xpose.msra.mxu0 %v5369
    %5376 = vmatprep.subr.mxu0 0.0
    %5377 = vmatpush1.xpose.msra.mxu0 %v5372
    %5378 = vmatprep.subr.mxu0 0.0
    %5379 = vmatpush1.xpose.msra.mxu0 0.0
    %5380 = vmatprep.subr.mxu0 0.0
    %5381 = vmatpush1.xpose.msra.mxu0 0.0
    %5382 = vmatprep.subr.mxu0 0.0
    %5383 = vmatpush1.xpose.msra.mxu0 0.0
    %5384 = vmatprep.subr.mxu0 0.0
    %5385 = vmatpush1.xpose.msra.mxu0 0.0
    %5386 = vmatprep.subr.mxu0 0.0
    %5387 = vmatpush1.xpose.msra.mxu0 0.0
    %5388 = vmatprep.subr.mxu0 0.0
    %5389 = vmatpush1.xpose.msra.mxu0 0.0
    %5390 = vmatprep.subr.mxu0 0.0
    %5391 = vmatpush1.xpose.msra.mxu0 0.0
    %5392 = vmatprep.subr.mxu0 0.0
    %5393 = vmatpush1.xpose.msra.mxu0 0.0
    %5394 = vmatprep.subr.mxu0 0.0
    %5395 = vmatpush1.xpose.msra.mxu0 0.0
    %5396 = vmatprep.subr.mxu0 0.0
    %5397 = vmatpush1.xpose.msra.mxu0 0.0
    %5398 = vmatprep.subr.mxu0 0.0
    %5399 = vmatpush1.xpose.msra.mxu0 0.0
    %5400 = vmatprep.subr.mxu0 0.0
    %5401 = vmatpush1.xpose.msra.mxu0 0.0
    %5402 = vmatprep.subr.mxu0 0.0
    %5403 = vmatpush1.xpose.msra.mxu0 0.0
    %5404 = vmatprep.subr.mxu0 0.0
    %5405 = vmatpush1.xpose.msra.mxu0 0.0
    %5406 = vmatprep.subr.mxu0 0.0
    %5407 = vmatpush1.xpose.msra.mxu0 0.0
    %5408 = vmatprep.subr.mxu0 0.0
    %5409 = vmatpush1.xpose.msra.mxu0 0.0
    %5410 = vmatprep.subr.mxu0 0.0
    %5411 = vmatpush1.xpose.msra.mxu0 0.0
    %5412 = vmatprep.subr.mxu0 0.0
    %5413 = vmatpush1.xpose.msra.mxu0 0.0
    %5414 = vmatprep.subr.mxu0 0.0
    %5415 = vmatpush1.xpose.msra.mxu0 0.0
    %5416 = vmatprep.subr.mxu0 0.0
    %5417 = vmatpush1.xpose.msra.mxu0 0.0
    %5418 = vmatprep.subr.mxu0 0.0
    %5419 = vmatpush1.xpose.msra.mxu0 0.0
    %5420 = vmatprep.subr.mxu0 0.0
    %5421 = vmatpush1.xpose.msra.mxu0 0.0
    %5422 = vmatprep.subr.mxu0 0.0
    %5423 = vmatpush1.xpose.msra.mxu0 0.0
    %5424 = vmatprep.subr.mxu0 0.0
    %5425 = vmatpush1.xpose.msra.mxu0 0.0
    %5426 = vmatprep.subr.mxu0 0.0
    %5427 = vmatpush1.xpose.msra.mxu0 0.0
    %5428 = vmatprep.subr.mxu0 0.0
    %5429 = vmatpush1.xpose.msra.mxu0 0.0
    %5430 = vmatprep.subr.mxu0 0.0
    %5431 = vmatpush1.xpose.msra.mxu0 0.0
    %5432 = vmatprep.subr.mxu0 0.0
    %5433 = vmatpush1.xpose.msra.mxu0 0.0
    %5434 = vmatprep.subr.mxu0 0.0
    %5435 = vmatpush1.xpose.msra.mxu0 0.0
    %5436 = vmatprep.subr.mxu0 0.0
    %5437 = vmatpush1.xpose.msra.mxu0 0.0
    %5438 = vmatprep.mubr.f32.mxu0 0.0
    %5439 = vmatmul.mubr.f32.gmra.mrb[0].mxu0 %v5363
    %v5440 = vpop.f32.mrb[0].mxu0
    %v5441 = vadd.f32 %v323, %v5440
    %v5442 = vpop.f32.mrb[0].mxu0
    %5443 = vmatprep.mubr.f32.mxu0 0.0
    %5444 = vmatmul.mubr.f32.gmra.mrb[0].mxu0 %v5366
    %v5445 = vpop.f32.mrb[0].mxu0
    %v5446 = vadd.f32 %v324, %v5445
    %v5447 = vpop.f32.mrb[0].mxu0
    %5448 = vdwg.mxu0
    %v5450 = vsel %vm832, %v4832, 0
    %v5453 = vsel %vm832, %v4837, 0
    %v5456 = vsel %vm832, %v4986, 0
    %v5459 = vsel %vm832, %v4991, 0
    %5461 = vmatprep.subr.mxu0 0.0
    %5462 = vmatpush1.xpose.msra.mxu0 %v5456
    %5463 = vmatprep.subr.mxu0 0.0
    %5464 = vmatpush1.xpose.msra.mxu0 %v5459
    %5465 = vmatprep.subr.mxu0 0.0
    %5466 = vmatpush1.xpose.msra.mxu0 0.0
    %5467 = vmatprep.subr.mxu0 0.0
    %5468 = vmatpush1.xpose.msra.mxu0 0.0
    %5469 = vmatprep.subr.mxu0 0.0
    %5470 = vmatpush1.xpose.msra.mxu0 0.0
    %5471 = vmatprep.subr.mxu0 0.0
    %5472 = vmatpush1.xpose.msra.mxu0 0.0
    %5473 = vmatprep.subr.mxu0 0.0
    %5474 = vmatpush1.xpose.msra.mxu0 0.0
    %5475 = vmatprep.subr.mxu0 0.0
    %5476 = vmatpush1.xpose.msra.mxu0 0.0
    %5477 = vmatprep.subr.mxu0 0.0
    %5478 = vmatpush1.xpose.msra.mxu0 0.0
    %5479 = vmatprep.subr.mxu0 0.0
    %5480 = vmatpush1.xpose.msra.mxu0 0.0
    %5481 = vmatprep.subr.mxu0 0.0
    %5482 = vmatpush1.xpose.msra.mxu0 0.0
    %5483 = vmatprep.subr.mxu0 0.0
    %5484 = vmatpush1.xpose.msra.mxu0 0.0
    %5485 = vmatprep.subr.mxu0 0.0
    %5486 = vmatpush1.xpose.msra.mxu0 0.0
    %5487 = vmatprep.subr.mxu0 0.0
    %5488 = vmatpush1.xpose.msra.mxu0 0.0
    %5489 = vmatprep.subr.mxu0 0.0
    %5490 = vmatpush1.xpose.msra.mxu0 0.0
    %5491 = vmatprep.subr.mxu0 0.0
    %5492 = vmatpush1.xpose.msra.mxu0 0.0
    %5493 = vmatprep.subr.mxu0 0.0
    %5494 = vmatpush1.xpose.msra.mxu0 0.0
    %5495 = vmatprep.subr.mxu0 0.0
    %5496 = vmatpush1.xpose.msra.mxu0 0.0
    %5497 = vmatprep.subr.mxu0 0.0
    %5498 = vmatpush1.xpose.msra.mxu0 0.0
    %5499 = vmatprep.subr.mxu0 0.0
    %5500 = vmatpush1.xpose.msra.mxu0 0.0
    %5501 = vmatprep.subr.mxu0 0.0
    %5502 = vmatpush1.xpose.msra.mxu0 0.0
    %5503 = vmatprep.subr.mxu0 0.0
    %5504 = vmatpush1.xpose.msra.mxu0 0.0
    %5505 = vmatprep.subr.mxu0 0.0
    %5506 = vmatpush1.xpose.msra.mxu0 0.0
    %5507 = vmatprep.subr.mxu0 0.0
    %5508 = vmatpush1.xpose.msra.mxu0 0.0
    %5509 = vmatprep.subr.mxu0 0.0
    %5510 = vmatpush1.xpose.msra.mxu0 0.0
    %5511 = vmatprep.subr.mxu0 0.0
    %5512 = vmatpush1.xpose.msra.mxu0 0.0
    %5513 = vmatprep.subr.mxu0 0.0
    %5514 = vmatpush1.xpose.msra.mxu0 0.0
    %5515 = vmatprep.subr.mxu0 0.0
    %5516 = vmatpush1.xpose.msra.mxu0 0.0
    %5517 = vmatprep.subr.mxu0 0.0
    %5518 = vmatpush1.xpose.msra.mxu0 0.0
    %5519 = vmatprep.subr.mxu0 0.0
    %5520 = vmatpush1.xpose.msra.mxu0 0.0
    %5521 = vmatprep.subr.mxu0 0.0
    %5522 = vmatpush1.xpose.msra.mxu0 0.0
    %5523 = vmatprep.subr.mxu0 0.0
    %5524 = vmatpush1.xpose.msra.mxu0 0.0
    %5525 = vmatprep.mubr.f32.mxu0 0.0
    %5526 = vmatmul.mubr.f32.gmra.mrb[0].mxu0 %v5450
    %v5527 = vpop.f32.mrb[0].mxu0
    %v5528 = vadd.f32 %v323, %v5527
    %v5529 = vpop.f32.mrb[0].mxu0
    %5530 = vmatprep.mubr.f32.mxu0 0.0
    %5531 = vmatmul.mubr.f32.gmra.mrb[0].mxu0 %v5453
    %v5532 = vpop.f32.mrb[0].mxu0
    %v5533 = vadd.f32 %v324, %v5532
    %v5534 = vpop.f32.mrb[0].mxu0
    %5535 = vdwg.mxu0
    %v5537 = vsel %vm832, %v4842, 0
    %v5540 = vsel %vm832, %v4847, 0
    %v5543 = vsel %vm832, %v4996, 0
    %v5546 = vsel %vm832, %v5001, 0
    %5548 = vmatprep.subr.mxu0 0.0
    %5549 = vmatpush1.xpose.msra.mxu0 %v5543
    %5550 = vmatprep.subr.mxu0 0.0
    %5551 = vmatpush1.xpose.msra.mxu0 %v5546
    %5552 = vmatprep.subr.mxu0 0.0
    %5553 = vmatpush1.xpose.msra.mxu0 0.0
    %5554 = vmatprep.subr.mxu0 0.0
    %5555 = vmatpush1.xpose.msra.mxu0 0.0
    %5556 = vmatprep.subr.mxu0 0.0
    %5557 = vmatpush1.xpose.msra.mxu0 0.0
    %5558 = vmatprep.subr.mxu0 0.0
    %5559 = vmatpush1.xpose.msra.mxu0 0.0
    %5560 = vmatprep.subr.mxu0 0.0
    %5561 = vmatpush1.xpose.msra.mxu0 0.0
    %5562 = vmatprep.subr.mxu0 0.0
    %5563 = vmatpush1.xpose.msra.mxu0 0.0
    %5564 = vmatprep.subr.mxu0 0.0
    %5565 = vmatpush1.xpose.msra.mxu0 0.0
    %5566 = vmatprep.subr.mxu0 0.0
    %5567 = vmatpush1.xpose.msra.mxu0 0.0
    %5568 = vmatprep.subr.mxu0 0.0
    %5569 = vmatpush1.xpose.msra.mxu0 0.0
    %5570 = vmatprep.subr.mxu0 0.0
    %5571 = vmatpush1.xpose.msra.mxu0 0.0
    %5572 = vmatprep.subr.mxu0 0.0
    %5573 = vmatpush1.xpose.msra.mxu0 0.0
    %5574 = vmatprep.subr.mxu0 0.0
    %5575 = vmatpush1.xpose.msra.mxu0 0.0
    %5576 = vmatprep.subr.mxu0 0.0
    %5577 = vmatpush1.xpose.msra.mxu0 0.0
    %5578 = vmatprep.subr.mxu0 0.0
    %5579 = vmatpush1.xpose.msra.mxu0 0.0
    %5580 = vmatprep.subr.mxu0 0.0
    %5581 = vmatpush1.xpose.msra.mxu0 0.0
    %5582 = vmatprep.subr.mxu0 0.0
    %5583 = vmatpush1.xpose.msra.mxu0 0.0
    %5584 = vmatprep.subr.mxu0 0.0
    %5585 = vmatpush1.xpose.msra.mxu0 0.0
    %5586 = vmatprep.subr.mxu0 0.0
    %5587 = vmatpush1.xpose.msra.mxu0 0.0
    %5588 = vmatprep.subr.mxu0 0.0
    %5589 = vmatpush1.xpose.msra.mxu0 0.0
    %5590 = vmatprep.subr.mxu0 0.0
    %5591 = vmatpush1.xpose.msra.mxu0 0.0
    %5592 = vmatprep.subr.mxu0 0.0
    %5593 = vmatpush1.xpose.msra.mxu0 0.0
    %5594 = vmatprep.subr.mxu0 0.0
    %5595 = vmatpush1.xpose.msra.mxu0 0.0
    %5596 = vmatprep.subr.mxu0 0.0
    %5597 = vmatpush1.xpose.msra.mxu0 0.0
    %5598 = vmatprep.subr.mxu0 0.0
    %5599 = vmatpush1.xpose.msra.mxu0 0.0
    %5600 = vmatprep.subr.mxu0 0.0
    %5601 = vmatpush1.xpose.msra.mxu0 0.0
    %5602 = vmatprep.subr.mxu0 0.0
    %5603 = vmatpush1.xpose.msra.mxu0 0.0
    %5604 = vmatprep.subr.mxu0 0.0
    %5605 = vmatpush1.xpose.msra.mxu0 0.0
    %5606 = vmatprep.subr.mxu0 0.0
    %5607 = vmatpush1.xpose.msra.mxu0 0.0
    %5608 = vmatprep.subr.mxu0 0.0
    %5609 = vmatpush1.xpose.msra.mxu0 0.0
    %5610 = vmatprep.subr.mxu0 0.0
    %5611 = vmatpush1.xpose.msra.mxu0 0.0
    %5612 = vmatprep.mubr.f32.mxu0 0.0
    %5613 = vmatmul.mubr.f32.gmra.mrb[0].mxu0 %v5537
    %v5614 = vpop.f32.mrb[0].mxu0
    %v5615 = vadd.f32 %v323, %v5614
    %v5616 = vpop.f32.mrb[0].mxu0
    %5617 = vmatprep.mubr.f32.mxu0 0.0
    %5618 = vmatmul.mubr.f32.gmra.mrb[0].mxu0 %v5540
    %v5619 = vpop.f32.mrb[0].mxu0
    %v5620 = vadd.f32 %v324, %v5619
    %v5621 = vpop.f32.mrb[0].mxu0
    %5622 = vdwg.mxu0
    %v5624 = vsel %vm832, %v4852, 0
    %v5627 = vsel %vm832, %v4857, 0
    %v5630 = vsel %vm832, %v5006, 0
    %v5633 = vsel %vm832, %v5011, 0
    %5635 = vmatprep.subr.mxu0 0.0
    %5636 = vmatpush1.xpose.msra.mxu0 %v5630
    %5637 = vmatprep.subr.mxu0 0.0
    %5638 = vmatpush1.xpose.msra.mxu0 %v5633
    %5639 = vmatprep.subr.mxu0 0.0
    %5640 = vmatpush1.xpose.msra.mxu0 0.0
    %5641 = vmatprep.subr.mxu0 0.0
    %5642 = vmatpush1.xpose.msra.mxu0 0.0
    %5643 = vmatprep.subr.mxu0 0.0
    %5644 = vmatpush1.xpose.msra.mxu0 0.0
    %5645 = vmatprep.subr.mxu0 0.0
    %5646 = vmatpush1.xpose.msra.mxu0 0.0
    %5647 = vmatprep.subr.mxu0 0.0
    %5648 = vmatpush1.xpose.msra.mxu0 0.0
    %5649 = vmatprep.subr.mxu0 0.0
    %5650 = vmatpush1.xpose.msra.mxu0 0.0
    %5651 = vmatprep.subr.mxu0 0.0
    %5652 = vmatpush1.xpose.msra.mxu0 0.0
    %5653 = vmatprep.subr.mxu0 0.0
    %5654 = vmatpush1.xpose.msra.mxu0 0.0
    %5655 = vmatprep.subr.mxu0 0.0
    %5656 = vmatpush1.xpose.msra.mxu0 0.0
    %5657 = vmatprep.subr.mxu0 0.0
    %5658 = vmatpush1.xpose.msra.mxu0 0.0
    %5659 = vmatprep.subr.mxu0 0.0
    %5660 = vmatpush1.xpose.msra.mxu0 0.0
    %5661 = vmatprep.subr.mxu0 0.0
    %5662 = vmatpush1.xpose.msra.mxu0 0.0
    %5663 = vmatprep.subr.mxu0 0.0
    %5664 = vmatpush1.xpose.msra.mxu0 0.0
    %5665 = vmatprep.subr.mxu0 0.0
    %5666 = vmatpush1.xpose.msra.mxu0 0.0
    %5667 = vmatprep.subr.mxu0 0.0
    %5668 = vmatpush1.xpose.msra.mxu0 0.0
    %5669 = vmatprep.subr.mxu0 0.0
    %5670 = vmatpush1.xpose.msra.mxu0 0.0
    %5671 = vmatprep.subr.mxu0 0.0
    %5672 = vmatpush1.xpose.msra.mxu0 0.0
    %5673 = vmatprep.subr.mxu0 0.0
    %5674 = vmatpush1.xpose.msra.mxu0 0.0
    %5675 = vmatprep.subr.mxu0 0.0
    %5676 = vmatpush1.xpose.msra.mxu0 0.0
    %5677 = vmatprep.subr.mxu0 0.0
    %5678 = vmatpush1.xpose.msra.mxu0 0.0
    %5679 = vmatprep.subr.mxu0 0.0
    %5680 = vmatpush1.xpose.msra.mxu0 0.0
    %5681 = vmatprep.subr.mxu0 0.0
    %5682 = vmatpush1.xpose.msra.mxu0 0.0
    %5683 = vmatprep.subr.mxu0 0.0
    %5684 = vmatpush1.xpose.msra.mxu0 0.0
    %5685 = vmatprep.subr.mxu0 0.0
    %5686 = vmatpush1.xpose.msra.mxu0 0.0
    %5687 = vmatprep.subr.mxu0 0.0
    %5688 = vmatpush1.xpose.msra.mxu0 0.0
    %5689 = vmatprep.subr.mxu0 0.0
    %5690 = vmatpush1.xpose.msra.mxu0 0.0
    %5691 = vmatprep.subr.mxu0 0.0
    %5692 = vmatpush1.xpose.msra.mxu0 0.0
    %5693 = vmatprep.subr.mxu0 0.0
    %5694 = vmatpush1.xpose.msra.mxu0 0.0
    %5695 = vmatprep.subr.mxu0 0.0
    %5696 = vmatpush1.xpose.msra.mxu0 0.0
    %5697 = vmatprep.subr.mxu0 0.0
    %5698 = vmatpush1.xpose.msra.mxu0 0.0
    %5699 = vmatprep.mubr.f32.mxu0 0.0
    %5700 = vmatmul.mubr.f32.gmra.mrb[0].mxu0 %v5624
    %v5701 = vpop.f32.mrb[0].mxu0
    %v5702 = vadd.f32 %v323, %v5701
    %v5703 = vpop.f32.mrb[0].mxu0
    %5704 = vmatprep.mubr.f32.mxu0 0.0
    %5705 = vmatmul.mubr.f32.gmra.mrb[0].mxu0 %v5627
    %v5706 = vpop.f32.mrb[0].mxu0
    %v5707 = vadd.f32 %v324, %v5706
    %v5708 = vpop.f32.mrb[0].mxu0
    %5709 = vdwg.mxu0
    %v5711 = vsel %vm832, %v4862, 0
    %v5714 = vsel %vm832, %v4867, 0
    %v5717 = vsel %vm832, %v5016, 0
    %v5720 = vsel %vm832, %v5021, 0
    %5722 = vmatprep.subr.mxu0 0.0
    %5723 = vmatpush1.xpose.msra.mxu0 %v5717
    %5724 = vmatprep.subr.mxu0 0.0
    %5725 = vmatpush1.xpose.msra.mxu0 %v5720
    %5726 = vmatprep.subr.mxu0 0.0
    %5727 = vmatpush1.xpose.msra.mxu0 0.0
    %5728 = vmatprep.subr.mxu0 0.0
    %5729 = vmatpush1.xpose.msra.mxu0 0.0
    %5730 = vmatprep.subr.mxu0 0.0
    %5731 = vmatpush1.xpose.msra.mxu0 0.0
    %5732 = vmatprep.subr.mxu0 0.0
    %5733 = vmatpush1.xpose.msra.mxu0 0.0
    %5734 = vmatprep.subr.mxu0 0.0
    %5735 = vmatpush1.xpose.msra.mxu0 0.0
    %5736 = vmatprep.subr.mxu0 0.0
    %5737 = vmatpush1.xpose.msra.mxu0 0.0
    %5738 = vmatprep.subr.mxu0 0.0
    %5739 = vmatpush1.xpose.msra.mxu0 0.0
    %5740 = vmatprep.subr.mxu0 0.0
    %5741 = vmatpush1.xpose.msra.mxu0 0.0
    %5742 = vmatprep.subr.mxu0 0.0
    %5743 = vmatpush1.xpose.msra.mxu0 0.0
    %5744 = vmatprep.subr.mxu0 0.0
    %5745 = vmatpush1.xpose.msra.mxu0 0.0
    %5746 = vmatprep.subr.mxu0 0.0
    %5747 = vmatpush1.xpose.msra.mxu0 0.0
    %5748 = vmatprep.subr.mxu0 0.0
    %5749 = vmatpush1.xpose.msra.mxu0 0.0
    %5750 = vmatprep.subr.mxu0 0.0
    %5751 = vmatpush1.xpose.msra.mxu0 0.0
    %5752 = vmatprep.subr.mxu0 0.0
    %5753 = vmatpush1.xpose.msra.mxu0 0.0
    %5754 = vmatprep.subr.mxu0 0.0
    %5755 = vmatpush1.xpose.msra.mxu0 0.0
    %5756 = vmatprep.subr.mxu0 0.0
    %5757 = vmatpush1.xpose.msra.mxu0 0.0
    %5758 = vmatprep.subr.mxu0 0.0
    %5759 = vmatpush1.xpose.msra.mxu0 0.0
    %5760 = vmatprep.subr.mxu0 0.0
    %5761 = vmatpush1.xpose.msra.mxu0 0.0
    %5762 = vmatprep.subr.mxu0 0.0
    %5763 = vmatpush1.xpose.msra.mxu0 0.0
    %5764 = vmatprep.subr.mxu0 0.0
    %5765 = vmatpush1.xpose.msra.mxu0 0.0
    %5766 = vmatprep.subr.mxu0 0.0
    %5767 = vmatpush1.xpose.msra.mxu0 0.0
    %5768 = vmatprep.subr.mxu0 0.0
    %5769 = vmatpush1.xpose.msra.mxu0 0.0
    %5770 = vmatprep.subr.mxu0 0.0
    %5771 = vmatpush1.xpose.msra.mxu0 0.0
    %5772 = vmatprep.subr.mxu0 0.0
    %5773 = vmatpush1.xpose.msra.mxu0 0.0
    %5774 = vmatprep.subr.mxu0 0.0
    %5775 = vmatpush1.xpose.msra.mxu0 0.0
    %5776 = vmatprep.subr.mxu0 0.0
    %5777 = vmatpush1.xpose.msra.mxu0 0.0
    %5778 = vmatprep.subr.mxu0 0.0
    %5779 = vmatpush1.xpose.msra.mxu0 0.0
    %5780 = vmatprep.subr.mxu0 0.0
    %5781 = vmatpush1.xpose.msra.mxu0 0.0
    %5782 = vmatprep.subr.mxu0 0.0
    %5783 = vmatpush1.xpose.msra.mxu0 0.0
    %5784 = vmatprep.subr.mxu0 0.0
    %5785 = vmatpush1.xpose.msra.mxu0 0.0
    %5786 = vmatprep.mubr.f32.mxu0 0.0
    %5787 = vmatmul.mubr.f32.gmra.mrb[0].mxu0 %v5711
    %v5788 = vpop.f32.mrb[0].mxu0
    %v5789 = vadd.f32 %v323, %v5788
    %v5790 = vpop.f32.mrb[0].mxu0
    %5791 = vmatprep.mubr.f32.mxu0 0.0
    %5792 = vmatmul.mubr.f32.gmra.mrb[0].mxu0 %v5714
    %v5793 = vpop.f32.mrb[0].mxu0
    %v5794 = vadd.f32 %v324, %v5793
    %v5795 = vpop.f32.mrb[0].mxu0
    %5796 = vdwg.mxu0
    %v5798 = vsel %vm832, %v4872, 0
    %v5801 = vsel %vm832, %v4877, 0
    %v5804 = vsel %vm832, %v5026, 0
    %v5807 = vsel %vm832, %v5031, 0
    %5809 = vmatprep.subr.mxu0 0.0
    %5810 = vmatpush1.xpose.msra.mxu0 %v5804
    %5811 = vmatprep.subr.mxu0 0.0
    %5812 = vmatpush1.xpose.msra.mxu0 %v5807
    %5813 = vmatprep.subr.mxu0 0.0
    %5814 = vmatpush1.xpose.msra.mxu0 0.0
    %5815 = vmatprep.subr.mxu0 0.0
    %5816 = vmatpush1.xpose.msra.mxu0 0.0
    %5817 = vmatprep.subr.mxu0 0.0
    %5818 = vmatpush1.xpose.msra.mxu0 0.0
    %5819 = vmatprep.subr.mxu0 0.0
    %5820 = vmatpush1.xpose.msra.mxu0 0.0
    %5821 = vmatprep.subr.mxu0 0.0
    %5822 = vmatpush1.xpose.msra.mxu0 0.0
    %5823 = vmatprep.subr.mxu0 0.0
    %5824 = vmatpush1.xpose.msra.mxu0 0.0
    %5825 = vmatprep.subr.mxu0 0.0
    %5826 = vmatpush1.xpose.msra.mxu0 0.0
    %5827 = vmatprep.subr.mxu0 0.0
    %5828 = vmatpush1.xpose.msra.mxu0 0.0
    %5829 = vmatprep.subr.mxu0 0.0
    %5830 = vmatpush1.xpose.msra.mxu0 0.0
    %5831 = vmatprep.subr.mxu0 0.0
    %5832 = vmatpush1.xpose.msra.mxu0 0.0
    %5833 = vmatprep.subr.mxu0 0.0
    %5834 = vmatpush1.xpose.msra.mxu0 0.0
    %5835 = vmatprep.subr.mxu0 0.0
    %5836 = vmatpush1.xpose.msra.mxu0 0.0
    %5837 = vmatprep.subr.mxu0 0.0
    %5838 = vmatpush1.xpose.msra.mxu0 0.0
    %5839 = vmatprep.subr.mxu0 0.0
    %5840 = vmatpush1.xpose.msra.mxu0 0.0
    %5841 = vmatprep.subr.mxu0 0.0
    %5842 = vmatpush1.xpose.msra.mxu0 0.0
    %5843 = vmatprep.subr.mxu0 0.0
    %5844 = vmatpush1.xpose.msra.mxu0 0.0
    %5845 = vmatprep.subr.mxu0 0.0
    %5846 = vmatpush1.xpose.msra.mxu0 0.0
    %5847 = vmatprep.subr.mxu0 0.0
    %5848 = vmatpush1.xpose.msra.mxu0 0.0
    %5849 = vmatprep.subr.mxu0 0.0
    %5850 = vmatpush1.xpose.msra.mxu0 0.0
    %5851 = vmatprep.subr.mxu0 0.0
    %5852 = vmatpush1.xpose.msra.mxu0 0.0
    %5853 = vmatprep.subr.mxu0 0.0
    %5854 = vmatpush1.xpose.msra.mxu0 0.0
    %5855 = vmatprep.subr.mxu0 0.0
    %5856 = vmatpush1.xpose.msra.mxu0 0.0
    %5857 = vmatprep.subr.mxu0 0.0
    %5858 = vmatpush1.xpose.msra.mxu0 0.0
    %5859 = vmatprep.subr.mxu0 0.0
    %5860 = vmatpush1.xpose.msra.mxu0 0.0
    %5861 = vmatprep.subr.mxu0 0.0
    %5862 = vmatpush1.xpose.msra.mxu0 0.0
    %5863 = vmatprep.subr.mxu0 0.0
    %5864 = vmatpush1.xpose.msra.mxu0 0.0
    %5865 = vmatprep.subr.mxu0 0.0
    %5866 = vmatpush1.xpose.msra.mxu0 0.0
    %5867 = vmatprep.subr.mxu0 0.0
    %5868 = vmatpush1.xpose.msra.mxu0 0.0
    %5869 = vmatprep.subr.mxu0 0.0
    %5870 = vmatpush1.xpose.msra.mxu0 0.0
    %5871 = vmatprep.subr.mxu0 0.0
    %5872 = vmatpush1.xpose.msra.mxu0 0.0
    %5873 = vmatprep.mubr.f32.mxu0 0.0
    %5874 = vmatmul.mubr.f32.gmra.mrb[0].mxu0 %v5798
    %v5875 = vpop.f32.mrb[0].mxu0
    %v5876 = vadd.f32 %v323, %v5875
    %v5877 = vpop.f32.mrb[0].mxu0
    %5878 = vmatprep.mubr.f32.mxu0 0.0
    %5879 = vmatmul.mubr.f32.gmra.mrb[0].mxu0 %v5801
    %v5880 = vpop.f32.mrb[0].mxu0
    %v5881 = vadd.f32 %v324, %v5880
    %v5882 = vpop.f32.mrb[0].mxu0
    %5883 = vdwg.mxu0
    %v5884 = vsel %vm832, %v5267, -inf
    %5885 = vmax.xlane.f32.xlu0 %v5884
    %v5886 = vpop.xlane.xlu0 %5885
    %v5887 = vsel %vm832, %v5272, -inf
    %5888 = vmax.xlane.f32.xlu0 %v5887
    %v5889 = vpop.xlane.xlu0 %5888
    %v5890 = vsel %vm832, %v5354, -inf
    %5891 = vmax.xlane.f32.xlu0 %v5890
    %v5892 = vpop.xlane.xlu0 %5891
    %v5893 = vsel %vm832, %v5359, -inf
    %5894 = vmax.xlane.f32.xlu0 %v5893
    %v5895 = vpop.xlane.xlu0 %5894
    %v5896 = vsel %vm832, %v5441, -inf
    %5897 = vmax.xlane.f32.xlu0 %v5896
    %v5898 = vpop.xlane.xlu0 %5897
    %v5899 = vsel %vm832, %v5446, -inf
    %5900 = vmax.xlane.f32.xlu0 %v5899
    %v5901 = vpop.xlane.xlu0 %5900
    %v5902 = vsel %vm832, %v5528, -inf
    %5903 = vmax.xlane.f32.xlu0 %v5902
    %v5904 = vpop.xlane.xlu0 %5903
    %v5905 = vsel %vm832, %v5533, -inf
    %5906 = vmax.xlane.f32.xlu0 %v5905
    %v5907 = vpop.xlane.xlu0 %5906
    %v5908 = vsel %vm832, %v5615, -inf
    %5909 = vmax.xlane.f32.xlu0 %v5908
    %v5910 = vpop.xlane.xlu0 %5909
    %v5911 = vsel %vm832, %v5620, -inf
    %5912 = vmax.xlane.f32.xlu0 %v5911
    %v5913 = vpop.xlane.xlu0 %5912
    %v5914 = vsel %vm832, %v5702, -inf
    %5915 = vmax.xlane.f32.xlu0 %v5914
    %v5916 = vpop.xlane.xlu0 %5915
    %v5917 = vsel %vm832, %v5707, -inf
    %5918 = vmax.xlane.f32.xlu0 %v5917
    %v5919 = vpop.xlane.xlu0 %5918
    %v5920 = vsel %vm832, %v5789, -inf
    %5921 = vmax.xlane.f32.xlu0 %v5920
    %v5922 = vpop.xlane.xlu0 %5921
    %v5923 = vsel %vm832, %v5794, -inf
    %5924 = vmax.xlane.f32.xlu0 %v5923
    %v5925 = vpop.xlane.xlu0 %5924
    %v5926 = vsel %vm832, %v5876, -inf
    %5927 = vmax.xlane.f32.xlu0 %v5926
    %v5928 = vpop.xlane.xlu0 %5927
    %v5929 = vsel %vm832, %v5881, -inf
    %5930 = vmax.xlane.f32.xlu0 %v5929
    %v5931 = vpop.xlane.xlu0 %5930
    %v5932 = vsub.f32 %v5267, %v5886
    %v5933 = vsub.f32 %v5272, %v5889
    %v5934 = vsub.f32 %v5354, %v5892
    %v5935 = vsub.f32 %v5359, %v5895
    %v5936 = vsub.f32 %v5441, %v5898
    %v5937 = vsub.f32 %v5446, %v5901
    %v5938 = vsub.f32 %v5528, %v5904
    %v5939 = vsub.f32 %v5533, %v5907
    %v5940 = vsub.f32 %v5615, %v5910
    %v5941 = vsub.f32 %v5620, %v5913
    %v5942 = vsub.f32 %v5702, %v5916
    %v5943 = vsub.f32 %v5707, %v5919
    %v5944 = vsub.f32 %v5789, %v5922
    %v5945 = vsub.f32 %v5794, %v5925
    %v5946 = vsub.f32 %v5876, %v5928
    %v5947 = vsub.f32 %v5881, %v5931
    %v5948 = vmul.f32 %v5932, 1.442695
    %v5949 = vpow.pop %v5948
    %v5950 = vmul.f32 %v5933, 1.442695
    %v5951 = vpow.pop %v5950
    %v5952 = vmul.f32 %v5934, 1.442695
    %v5953 = vpow.pop %v5952
    %v5954 = vmul.f32 %v5935, 1.442695
    %v5955 = vpow.pop %v5954
    %v5956 = vmul.f32 %v5936, 1.442695
    %v5957 = vpow.pop %v5956
    %v5958 = vmul.f32 %v5937, 1.442695
    %v5959 = vpow.pop %v5958
    %v5960 = vmul.f32 %v5938, 1.442695
    %v5961 = vpow.pop %v5960
    %v5962 = vmul.f32 %v5939, 1.442695
    %v5963 = vpow.pop %v5962
    %v5964 = vmul.f32 %v5940, 1.442695
    %v5965 = vpow.pop %v5964
    %v5966 = vmul.f32 %v5941, 1.442695
    %v5967 = vpow.pop %v5966
    %v5968 = vmul.f32 %v5942, 1.442695
    %v5969 = vpow.pop %v5968
    %v5970 = vmul.f32 %v5943, 1.442695
    %v5971 = vpow.pop %v5970
    %v5972 = vmul.f32 %v5944, 1.442695
    %v5973 = vpow.pop %v5972
    %v5974 = vmul.f32 %v5945, 1.442695
    %v5975 = vpow.pop %v5974
    %v5976 = vmul.f32 %v5946, 1.442695
    %v5977 = vpow.pop %v5976
    %v5978 = vmul.f32 %v5947, 1.442695
    %v5979 = vpow.pop %v5978
    %v5980 = vsel %vm832, %v5949, 0.0
    %5981 = vadd.xlane.f32.xlu0 %v5980
    %v5982 = vpop.xlane.xlu0 %5981
    %v5983 = vsel %vm832, %v5951, 0.0
    %5984 = vadd.xlane.f32.xlu0 %v5983
    %v5985 = vpop.xlane.xlu0 %5984
    %v5986 = vsel %vm832, %v5953, 0.0
    %5987 = vadd.xlane.f32.xlu0 %v5986
    %v5988 = vpop.xlane.xlu0 %5987
    %v5989 = vsel %vm832, %v5955, 0.0
    %5990 = vadd.xlane.f32.xlu0 %v5989
    %v5991 = vpop.xlane.xlu0 %5990
    %v5992 = vsel %vm832, %v5957, 0.0
    %5993 = vadd.xlane.f32.xlu0 %v5992
    %v5994 = vpop.xlane.xlu0 %5993
    %v5995 = vsel %vm832, %v5959, 0.0
    %5996 = vadd.xlane.f32.xlu0 %v5995
    %v5997 = vpop.xlane.xlu0 %5996
    %v5998 = vsel %vm832, %v5961, 0.0
    %5999 = vadd.xlane.f32.xlu0 %v5998
    %v6000 = vpop.xlane.xlu0 %5999
    %v6001 = vsel %vm832, %v5963, 0.0
    %6002 = vadd.xlane.f32.xlu0 %v6001
    %v6003 = vpop.xlane.xlu0 %6002
    %v6004 = vsel %vm832, %v5965, 0.0
    %6005 = vadd.xlane.f32.xlu0 %v6004
    %v6006 = vpop.xlane.xlu0 %6005
    %v6007 = vsel %vm832, %v5967, 0.0
    %6008 = vadd.xlane.f32.xlu0 %v6007
    %v6009 = vpop.xlane.xlu0 %6008
    %v6010 = vsel %vm832, %v5969, 0.0
    %6011 = vadd.xlane.f32.xlu0 %v6010
    %v6012 = vpop.xlane.xlu0 %6011
    %v6013 = vsel %vm832, %v5971, 0.0
    %6014 = vadd.xlane.f32.xlu0 %v6013
    %v6015 = vpop.xlane.xlu0 %6014
    %v6016 = vsel %vm832, %v5973, 0.0
    %6017 = vadd.xlane.f32.xlu0 %v6016
    %v6018 = vpop.xlane.xlu0 %6017
    %v6019 = vsel %vm832, %v5975, 0.0
    %6020 = vadd.xlane.f32.xlu0 %v6019
    %v6021 = vpop.xlane.xlu0 %6020
    %v6022 = vsel %vm832, %v5977, 0.0
    %6023 = vadd.xlane.f32.xlu0 %v6022
    %v6024 = vpop.xlane.xlu0 %6023
    %v6025 = vsel %vm832, %v5979, 0.0
    %6026 = vadd.xlane.f32.xlu0 %v6025
    %v6027 = vpop.xlane.xlu0 %6026
    %v6028 = vrcp.pop %v5982
    %v6029 = vmul.f32 %v5949, %v6028
    %v6030 = vrcp.pop %v5985
    %v6031 = vmul.f32 %v5951, %v6030
    %v6032 = vrcp.pop %v5988
    %v6033 = vmul.f32 %v5953, %v6032
    %v6034 = vrcp.pop %v5991
    %v6035 = vmul.f32 %v5955, %v6034
    %v6036 = vrcp.pop %v5994
    %v6037 = vmul.f32 %v5957, %v6036
    %v6038 = vrcp.pop %v5997
    %v6039 = vmul.f32 %v5959, %v6038
    %v6040 = vrcp.pop %v6000
    %v6041 = vmul.f32 %v5961, %v6040
    %v6042 = vrcp.pop %v6003
    %v6043 = vmul.f32 %v5963, %v6042
    %v6044 = vrcp.pop %v6006
    %v6045 = vmul.f32 %v5965, %v6044
    %v6046 = vrcp.pop %v6009
    %v6047 = vmul.f32 %v5967, %v6046
    %v6048 = vrcp.pop %v6012
    %v6049 = vmul.f32 %v5969, %v6048
    %v6050 = vrcp.pop %v6015
    %v6051 = vmul.f32 %v5971, %v6050
    %v6052 = vrcp.pop %v6018
    %v6053 = vmul.f32 %v5973, %v6052
    %v6054 = vrcp.pop %v6021
    %v6055 = vmul.f32 %v5975, %v6054
    %v6056 = vrcp.pop %v6024
    %v6057 = vmul.f32 %v5977, %v6056
    %v6058 = vrcp.pop %v6027
    %v6059 = vmul.f32 %v5979, %v6058
    %v6061 = vsel %vm832, %v6029, 0
    %v6064 = vsel %vm832, %v6031, 0
    %6066 = vmatprep.subr.mxu0 0.0
    %6067 = vmatpush1.msra.mxu0 %v5110
    %6068 = vmatprep.subr.mxu0 0.0
    %6069 = vmatpush1.msra.mxu0 %v5115
    %6070 = vmatprep.subr.mxu0 0.0
    %6071 = vmatpush1.msra.mxu0 0.0
    %6072 = vmatprep.subr.mxu0 0.0
    %6073 = vmatpush1.msra.mxu0 0.0
    %6074 = vmatprep.subr.mxu0 0.0
    %6075 = vmatpush1.msra.mxu0 0.0
    %6076 = vmatprep.subr.mxu0 0.0
    %6077 = vmatpush1.msra.mxu0 0.0
    %6078 = vmatprep.subr.mxu0 0.0
    %6079 = vmatpush1.msra.mxu0 0.0
    %6080 = vmatprep.subr.mxu0 0.0
    %6081 = vmatpush1.msra.mxu0 0.0
    %6082 = vmatprep.subr.mxu0 0.0
    %6083 = vmatpush1.msra.mxu0 0.0
    %6084 = vmatprep.subr.mxu0 0.0
    %6085 = vmatpush1.msra.mxu0 0.0
    %6086 = vmatprep.subr.mxu0 0.0
    %6087 = vmatpush1.msra.mxu0 0.0
    %6088 = vmatprep.subr.mxu0 0.0
    %6089 = vmatpush1.msra.mxu0 0.0
    %6090 = vmatprep.subr.mxu0 0.0
    %6091 = vmatpush1.msra.mxu0 0.0
    %6092 = vmatprep.subr.mxu0 0.0
    %6093 = vmatpush1.msra.mxu0 0.0
    %6094 = vmatprep.subr.mxu0 0.0
    %6095 = vmatpush1.msra.mxu0 0.0
    %6096 = vmatprep.subr.mxu0 0.0
    %6097 = vmatpush1.msra.mxu0 0.0
    %6098 = vmatprep.subr.mxu0 0.0
    %6099 = vmatpush1.msra.mxu0 0.0
    %6100 = vmatprep.subr.mxu0 0.0
    %6101 = vmatpush1.msra.mxu0 0.0
    %6102 = vmatprep.subr.mxu0 0.0
    %6103 = vmatpush1.msra.mxu0 0.0
    %6104 = vmatprep.subr.mxu0 0.0
    %6105 = vmatpush1.msra.mxu0 0.0
    %6106 = vmatprep.subr.mxu0 0.0
    %6107 = vmatpush1.msra.mxu0 0.0
    %6108 = vmatprep.subr.mxu0 0.0
    %6109 = vmatpush1.msra.mxu0 0.0
    %6110 = vmatprep.subr.mxu0 0.0
    %6111 = vmatpush1.msra.mxu0 0.0
    %6112 = vmatprep.subr.mxu0 0.0
    %6113 = vmatpush1.msra.mxu0 0.0
    %6114 = vmatprep.subr.mxu0 0.0
    %6115 = vmatpush1.msra.mxu0 0.0
    %6116 = vmatprep.subr.mxu0 0.0
    %6117 = vmatpush1.msra.mxu0 0.0
    %6118 = vmatprep.subr.mxu0 0.0
    %6119 = vmatpush1.msra.mxu0 0.0
    %6120 = vmatprep.subr.mxu0 0.0
    %6121 = vmatpush1.msra.mxu0 0.0
    %6122 = vmatprep.subr.mxu0 0.0
    %6123 = vmatpush1.msra.mxu0 0.0
    %6124 = vmatprep.subr.mxu0 0.0
    %6125 = vmatpush1.msra.mxu0 0.0
    %6126 = vmatprep.subr.mxu0 0.0
    %6127 = vmatpush1.msra.mxu0 0.0
    %6128 = vmatprep.subr.mxu0 0.0
    %6129 = vmatpush1.msra.mxu0 0.0
    %6130 = vmatprep.mubr.f32.mxu0 0.0
    %6131 = vmatmul.mubr.f32.gmra.mrb[0].mxu0 %v6061
    %v6132 = vpop.f32.mrb[0].mxu0
    %v6133 = vadd.f32 0.0, %v6132
    %v6134 = vpop.f32.mrb[0].mxu0
    %6135 = vmatprep.mubr.f32.mxu0 0.0
    %6136 = vmatmul.mubr.f32.gmra.mrb[0].mxu0 %v6064
    %v6137 = vpop.f32.mrb[0].mxu0
    %v6138 = vadd.f32 0.0, %v6137
    %v6139 = vpop.f32.mrb[0].mxu0
    %6140 = vdwg.mxu0
    %v6142 = vsel %vm832, %v6033, 0
    %v6145 = vsel %vm832, %v6035, 0
    %6147 = vmatprep.subr.mxu0 0.0
    %6148 = vmatpush1.msra.mxu0 %v5120
    %6149 = vmatprep.subr.mxu0 0.0
    %6150 = vmatpush1.msra.mxu0 %v5125
    %6151 = vmatprep.subr.mxu0 0.0
    %6152 = vmatpush1.msra.mxu0 0.0
    %6153 = vmatprep.subr.mxu0 0.0
    %6154 = vmatpush1.msra.mxu0 0.0
    %6155 = vmatprep.subr.mxu0 0.0
    %6156 = vmatpush1.msra.mxu0 0.0
    %6157 = vmatprep.subr.mxu0 0.0
    %6158 = vmatpush1.msra.mxu0 0.0
    %6159 = vmatprep.subr.mxu0 0.0
    %6160 = vmatpush1.msra.mxu0 0.0
    %6161 = vmatprep.subr.mxu0 0.0
    %6162 = vmatpush1.msra.mxu0 0.0
    %6163 = vmatprep.subr.mxu0 0.0
    %6164 = vmatpush1.msra.mxu0 0.0
    %6165 = vmatprep.subr.mxu0 0.0
    %6166 = vmatpush1.msra.mxu0 0.0
    %6167 = vmatprep.subr.mxu0 0.0
    %6168 = vmatpush1.msra.mxu0 0.0
    %6169 = vmatprep.subr.mxu0 0.0
    %6170 = vmatpush1.msra.mxu0 0.0
    %6171 = vmatprep.subr.mxu0 0.0
    %6172 = vmatpush1.msra.mxu0 0.0
    %6173 = vmatprep.subr.mxu0 0.0
    %6174 = vmatpush1.msra.mxu0 0.0
    %6175 = vmatprep.subr.mxu0 0.0
    %6176 = vmatpush1.msra.mxu0 0.0
    %6177 = vmatprep.subr.mxu0 0.0
    %6178 = vmatpush1.msra.mxu0 0.0
    %6179 = vmatprep.subr.mxu0 0.0
    %6180 = vmatpush1.msra.mxu0 0.0
    %6181 = vmatprep.subr.mxu0 0.0
    %6182 = vmatpush1.msra.mxu0 0.0
    %6183 = vmatprep.subr.mxu0 0.0
    %6184 = vmatpush1.msra.mxu0 0.0
    %6185 = vmatprep.subr.mxu0 0.0
    %6186 = vmatpush1.msra.mxu0 0.0
    %6187 = vmatprep.subr.mxu0 0.0
    %6188 = vmatpush1.msra.mxu0 0.0
    %6189 = vmatprep.subr.mxu0 0.0
    %6190 = vmatpush1.msra.mxu0 0.0
    %6191 = vmatprep.subr.mxu0 0.0
    %6192 = vmatpush1.msra.mxu0 0.0
    %6193 = vmatprep.subr.mxu0 0.0
    %6194 = vmatpush1.msra.mxu0 0.0
    %6195 = vmatprep.subr.mxu0 0.0
    %6196 = vmatpush1.msra.mxu0 0.0
    %6197 = vmatprep.subr.mxu0 0.0
    %6198 = vmatpush1.msra.mxu0 0.0
    %6199 = vmatprep.subr.mxu0 0.0
    %6200 = vmatpush1.msra.mxu0 0.0
    %6201 = vmatprep.subr.mxu0 0.0
    %6202 = vmatpush1.msra.mxu0 0.0
    %6203 = vmatprep.subr.mxu0 0.0
    %6204 = vmatpush1.msra.mxu0 0.0
    %6205 = vmatprep.subr.mxu0 0.0
    %6206 = vmatpush1.msra.mxu0 0.0
    %6207 = vmatprep.subr.mxu0 0.0
    %6208 = vmatpush1.msra.mxu0 0.0
    %6209 = vmatprep.subr.mxu0 0.0
    %6210 = vmatpush1.msra.mxu0 0.0
    %6211 = vmatprep.mubr.f32.mxu0 0.0
    %6212 = vmatmul.mubr.f32.gmra.mrb[0].mxu0 %v6142
    %v6213 = vpop.f32.mrb[0].mxu0
    %v6214 = vadd.f32 0.0, %v6213
    %v6215 = vpop.f32.mrb[0].mxu0
    %6216 = vmatprep.mubr.f32.mxu0 0.0
    %6217 = vmatmul.mubr.f32.gmra.mrb[0].mxu0 %v6145
    %v6218 = vpop.f32.mrb[0].mxu0
    %v6219 = vadd.f32 0.0, %v6218
    %v6220 = vpop.f32.mrb[0].mxu0
    %6221 = vdwg.mxu0
    %v6223 = vsel %vm832, %v6037, 0
    %v6226 = vsel %vm832, %v6039, 0
    %6228 = vmatprep.subr.mxu0 0.0
    %6229 = vmatpush1.msra.mxu0 %v5130
    %6230 = vmatprep.subr.mxu0 0.0
    %6231 = vmatpush1.msra.mxu0 %v5135
    %6232 = vmatprep.subr.mxu0 0.0
    %6233 = vmatpush1.msra.mxu0 0.0
    %6234 = vmatprep.subr.mxu0 0.0
    %6235 = vmatpush1.msra.mxu0 0.0
    %6236 = vmatprep.subr.mxu0 0.0
    %6237 = vmatpush1.msra.mxu0 0.0
    %6238 = vmatprep.subr.mxu0 0.0
    %6239 = vmatpush1.msra.mxu0 0.0
    %6240 = vmatprep.subr.mxu0 0.0
    %6241 = vmatpush1.msra.mxu0 0.0
    %6242 = vmatprep.subr.mxu0 0.0
    %6243 = vmatpush1.msra.mxu0 0.0
    %6244 = vmatprep.subr.mxu0 0.0
    %6245 = vmatpush1.msra.mxu0 0.0
    %6246 = vmatprep.subr.mxu0 0.0
    %6247 = vmatpush1.msra.mxu0 0.0
    %6248 = vmatprep.subr.mxu0 0.0
    %6249 = vmatpush1.msra.mxu0 0.0
    %6250 = vmatprep.subr.mxu0 0.0
    %6251 = vmatpush1.msra.mxu0 0.0
    %6252 = vmatprep.subr.mxu0 0.0
    %6253 = vmatpush1.msra.mxu0 0.0
    %6254 = vmatprep.subr.mxu0 0.0
    %6255 = vmatpush1.msra.mxu0 0.0
    %6256 = vmatprep.subr.mxu0 0.0
    %6257 = vmatpush1.msra.mxu0 0.0
    %6258 = vmatprep.subr.mxu0 0.0
    %6259 = vmatpush1.msra.mxu0 0.0
    %6260 = vmatprep.subr.mxu0 0.0
    %6261 = vmatpush1.msra.mxu0 0.0
    %6262 = vmatprep.subr.mxu0 0.0
    %6263 = vmatpush1.msra.mxu0 0.0
    %6264 = vmatprep.subr.mxu0 0.0
    %6265 = vmatpush1.msra.mxu0 0.0
    %6266 = vmatprep.subr.mxu0 0.0
    %6267 = vmatpush1.msra.mxu0 0.0
    %6268 = vmatprep.subr.mxu0 0.0
    %6269 = vmatpush1.msra.mxu0 0.0
    %6270 = vmatprep.subr.mxu0 0.0
    %6271 = vmatpush1.msra.mxu0 0.0
    %6272 = vmatprep.subr.mxu0 0.0
    %6273 = vmatpush1.msra.mxu0 0.0
    %6274 = vmatprep.subr.mxu0 0.0
    %6275 = vmatpush1.msra.mxu0 0.0
    %6276 = vmatprep.subr.mxu0 0.0
    %6277 = vmatpush1.msra.mxu0 0.0
    %6278 = vmatprep.subr.mxu0 0.0
    %6279 = vmatpush1.msra.mxu0 0.0
    %6280 = vmatprep.subr.mxu0 0.0
    %6281 = vmatpush1.msra.mxu0 0.0
    %6282 = vmatprep.subr.mxu0 0.0
    %6283 = vmatpush1.msra.mxu0 0.0
    %6284 = vmatprep.subr.mxu0 0.0
    %6285 = vmatpush1.msra.mxu0 0.0
    %6286 = vmatprep.subr.mxu0 0.0
    %6287 = vmatpush1.msra.mxu0 0.0
    %6288 = vmatprep.subr.mxu0 0.0
    %6289 = vmatpush1.msra.mxu0 0.0
    %6290 = vmatprep.subr.mxu0 0.0
    %6291 = vmatpush1.msra.mxu0 0.0
    %6292 = vmatprep.mubr.f32.mxu0 0.0
    %6293 = vmatmul.mubr.f32.gmra.mrb[0].mxu0 %v6223
    %v6294 = vpop.f32.mrb[0].mxu0
    %v6295 = vadd.f32 0.0, %v6294
    %v6296 = vpop.f32.mrb[0].mxu0
    %6297 = vmatprep.mubr.f32.mxu0 0.0
    %6298 = vmatmul.mubr.f32.gmra.mrb[0].mxu0 %v6226
    %v6299 = vpop.f32.mrb[0].mxu0
    %v6300 = vadd.f32 0.0, %v6299
    %v6301 = vpop.f32.mrb[0].mxu0
    %6302 = vdwg.mxu0
    %v6304 = vsel %vm832, %v6041, 0
    %v6307 = vsel %vm832, %v6043, 0
    %6309 = vmatprep.subr.mxu0 0.0
    %6310 = vmatpush1.msra.mxu0 %v5140
    %6311 = vmatprep.subr.mxu0 0.0
    %6312 = vmatpush1.msra.mxu0 %v5145
    %6313 = vmatprep.subr.mxu0 0.0
    %6314 = vmatpush1.msra.mxu0 0.0
    %6315 = vmatprep.subr.mxu0 0.0
    %6316 = vmatpush1.msra.mxu0 0.0
    %6317 = vmatprep.subr.mxu0 0.0
    %6318 = vmatpush1.msra.mxu0 0.0
    %6319 = vmatprep.subr.mxu0 0.0
    %6320 = vmatpush1.msra.mxu0 0.0
    %6321 = vmatprep.subr.mxu0 0.0
    %6322 = vmatpush1.msra.mxu0 0.0
    %6323 = vmatprep.subr.mxu0 0.0
    %6324 = vmatpush1.msra.mxu0 0.0
    %6325 = vmatprep.subr.mxu0 0.0
    %6326 = vmatpush1.msra.mxu0 0.0
    %6327 = vmatprep.subr.mxu0 0.0
    %6328 = vmatpush1.msra.mxu0 0.0
    %6329 = vmatprep.subr.mxu0 0.0
    %6330 = vmatpush1.msra.mxu0 0.0
    %6331 = vmatprep.subr.mxu0 0.0
    %6332 = vmatpush1.msra.mxu0 0.0
    %6333 = vmatprep.subr.mxu0 0.0
    %6334 = vmatpush1.msra.mxu0 0.0
    %6335 = vmatprep.subr.mxu0 0.0
    %6336 = vmatpush1.msra.mxu0 0.0
    %6337 = vmatprep.subr.mxu0 0.0
    %6338 = vmatpush1.msra.mxu0 0.0
    %6339 = vmatprep.subr.mxu0 0.0
    %6340 = vmatpush1.msra.mxu0 0.0
    %6341 = vmatprep.subr.mxu0 0.0
    %6342 = vmatpush1.msra.mxu0 0.0
    %6343 = vmatprep.subr.mxu0 0.0
    %6344 = vmatpush1.msra.mxu0 0.0
    %6345 = vmatprep.subr.mxu0 0.0
    %6346 = vmatpush1.msra.mxu0 0.0
    %6347 = vmatprep.subr.mxu0 0.0
    %6348 = vmatpush1.msra.mxu0 0.0
    %6349 = vmatprep.subr.mxu0 0.0
    %6350 = vmatpush1.msra.mxu0 0.0
    %6351 = vmatprep.subr.mxu0 0.0
    %6352 = vmatpush1.msra.mxu0 0.0
    %6353 = vmatprep.subr.mxu0 0.0
    %6354 = vmatpush1.msra.mxu0 0.0
    %6355 = vmatprep.subr.mxu0 0.0
    %6356 = vmatpush1.msra.mxu0 0.0
    %6357 = vmatprep.subr.mxu0 0.0
    %6358 = vmatpush1.msra.mxu0 0.0
    %6359 = vmatprep.subr.mxu0 0.0
    %6360 = vmatpush1.msra.mxu0 0.0
    %6361 = vmatprep.subr.mxu0 0.0
    %6362 = vmatpush1.msra.mxu0 0.0
    %6363 = vmatprep.subr.mxu0 0.0
    %6364 = vmatpush1.msra.mxu0 0.0
    %6365 = vmatprep.subr.mxu0 0.0
    %6366 = vmatpush1.msra.mxu0 0.0
    %6367 = vmatprep.subr.mxu0 0.0
    %6368 = vmatpush1.msra.mxu0 0.0
    %6369 = vmatprep.subr.mxu0 0.0
    %6370 = vmatpush1.msra.mxu0 0.0
    %6371 = vmatprep.subr.mxu0 0.0
    %6372 = vmatpush1.msra.mxu0 0.0
    %6373 = vmatprep.mubr.f32.mxu0 0.0
    %6374 = vmatmul.mubr.f32.gmra.mrb[0].mxu0 %v6304
    %v6375 = vpop.f32.mrb[0].mxu0
    %v6376 = vadd.f32 0.0, %v6375
    %v6377 = vpop.f32.mrb[0].mxu0
    %6378 = vmatprep.mubr.f32.mxu0 0.0
    %6379 = vmatmul.mubr.f32.gmra.mrb[0].mxu0 %v6307
    %v6380 = vpop.f32.mrb[0].mxu0
    %v6381 = vadd.f32 0.0, %v6380
    %v6382 = vpop.f32.mrb[0].mxu0
    %6383 = vdwg.mxu0
    %v6385 = vsel %vm832, %v6045, 0
    %v6388 = vsel %vm832, %v6047, 0
    %6390 = vmatprep.subr.mxu0 0.0
    %6391 = vmatpush1.msra.mxu0 %v5150
    %6392 = vmatprep.subr.mxu0 0.0
    %6393 = vmatpush1.msra.mxu0 %v5155
    %6394 = vmatprep.subr.mxu0 0.0
    %6395 = vmatpush1.msra.mxu0 0.0
    %6396 = vmatprep.subr.mxu0 0.0
    %6397 = vmatpush1.msra.mxu0 0.0
    %6398 = vmatprep.subr.mxu0 0.0
    %6399 = vmatpush1.msra.mxu0 0.0
    %6400 = vmatprep.subr.mxu0 0.0
    %6401 = vmatpush1.msra.mxu0 0.0
    %6402 = vmatprep.subr.mxu0 0.0
    %6403 = vmatpush1.msra.mxu0 0.0
    %6404 = vmatprep.subr.mxu0 0.0
    %6405 = vmatpush1.msra.mxu0 0.0
    %6406 = vmatprep.subr.mxu0 0.0
    %6407 = vmatpush1.msra.mxu0 0.0
    %6408 = vmatprep.subr.mxu0 0.0
    %6409 = vmatpush1.msra.mxu0 0.0
    %6410 = vmatprep.subr.mxu0 0.0
    %6411 = vmatpush1.msra.mxu0 0.0
    %6412 = vmatprep.subr.mxu0 0.0
    %6413 = vmatpush1.msra.mxu0 0.0
    %6414 = vmatprep.subr.mxu0 0.0
    %6415 = vmatpush1.msra.mxu0 0.0
    %6416 = vmatprep.subr.mxu0 0.0
    %6417 = vmatpush1.msra.mxu0 0.0
    %6418 = vmatprep.subr.mxu0 0.0
    %6419 = vmatpush1.msra.mxu0 0.0
    %6420 = vmatprep.subr.mxu0 0.0
    %6421 = vmatpush1.msra.mxu0 0.0
    %6422 = vmatprep.subr.mxu0 0.0
    %6423 = vmatpush1.msra.mxu0 0.0
    %6424 = vmatprep.subr.mxu0 0.0
    %6425 = vmatpush1.msra.mxu0 0.0
    %6426 = vmatprep.subr.mxu0 0.0
    %6427 = vmatpush1.msra.mxu0 0.0
    %6428 = vmatprep.subr.mxu0 0.0
    %6429 = vmatpush1.msra.mxu0 0.0
    %6430 = vmatprep.subr.mxu0 0.0
    %6431 = vmatpush1.msra.mxu0 0.0
    %6432 = vmatprep.subr.mxu0 0.0
    %6433 = vmatpush1.msra.mxu0 0.0
    %6434 = vmatprep.subr.mxu0 0.0
    %6435 = vmatpush1.msra.mxu0 0.0
    %6436 = vmatprep.subr.mxu0 0.0
    %6437 = vmatpush1.msra.mxu0 0.0
    %6438 = vmatprep.subr.mxu0 0.0
    %6439 = vmatpush1.msra.mxu0 0.0
    %6440 = vmatprep.subr.mxu0 0.0
    %6441 = vmatpush1.msra.mxu0 0.0
    %6442 = vmatprep.subr.mxu0 0.0
    %6443 = vmatpush1.msra.mxu0 0.0
    %6444 = vmatprep.subr.mxu0 0.0
    %6445 = vmatpush1.msra.mxu0 0.0
    %6446 = vmatprep.subr.mxu0 0.0
    %6447 = vmatpush1.msra.mxu0 0.0
    %6448 = vmatprep.subr.mxu0 0.0
    %6449 = vmatpush1.msra.mxu0 0.0
    %6450 = vmatprep.subr.mxu0 0.0
    %6451 = vmatpush1.msra.mxu0 0.0
    %6452 = vmatprep.subr.mxu0 0.0
    %6453 = vmatpush1.msra.mxu0 0.0
    %6454 = vmatprep.mubr.f32.mxu0 0.0
    %6455 = vmatmul.mubr.f32.gmra.mrb[0].mxu0 %v6385
    %v6456 = vpop.f32.mrb[0].mxu0
    %v6457 = vadd.f32 0.0, %v6456
    %v6458 = vpop.f32.mrb[0].mxu0
    %6459 = vmatprep.mubr.f32.mxu0 0.0
    %6460 = vmatmul.mubr.f32.gmra.mrb[0].mxu0 %v6388
    %v6461 = vpop.f32.mrb[0].mxu0
    %v6462 = vadd.f32 0.0, %v6461
    %v6463 = vpop.f32.mrb[0].mxu0
    %6464 = vdwg.mxu0
    %v6466 = vsel %vm832, %v6049, 0
    %v6469 = vsel %vm832, %v6051, 0
    %6471 = vmatprep.subr.mxu0 0.0
    %6472 = vmatpush1.msra.mxu0 %v5160
    %6473 = vmatprep.subr.mxu0 0.0
    %6474 = vmatpush1.msra.mxu0 %v5165
    %6475 = vmatprep.subr.mxu0 0.0
    %6476 = vmatpush1.msra.mxu0 0.0
    %6477 = vmatprep.subr.mxu0 0.0
    %6478 = vmatpush1.msra.mxu0 0.0
    %6479 = vmatprep.subr.mxu0 0.0
    %6480 = vmatpush1.msra.mxu0 0.0
    %6481 = vmatprep.subr.mxu0 0.0
    %6482 = vmatpush1.msra.mxu0 0.0
    %6483 = vmatprep.subr.mxu0 0.0
    %6484 = vmatpush1.msra.mxu0 0.0
    %6485 = vmatprep.subr.mxu0 0.0
    %6486 = vmatpush1.msra.mxu0 0.0
    %6487 = vmatprep.subr.mxu0 0.0
    %6488 = vmatpush1.msra.mxu0 0.0
    %6489 = vmatprep.subr.mxu0 0.0
    %6490 = vmatpush1.msra.mxu0 0.0
    %6491 = vmatprep.subr.mxu0 0.0
    %6492 = vmatpush1.msra.mxu0 0.0
    %6493 = vmatprep.subr.mxu0 0.0
    %6494 = vmatpush1.msra.mxu0 0.0
    %6495 = vmatprep.subr.mxu0 0.0
    %6496 = vmatpush1.msra.mxu0 0.0
    %6497 = vmatprep.subr.mxu0 0.0
    %6498 = vmatpush1.msra.mxu0 0.0
    %6499 = vmatprep.subr.mxu0 0.0
    %6500 = vmatpush1.msra.mxu0 0.0
    %6501 = vmatprep.subr.mxu0 0.0
    %6502 = vmatpush1.msra.mxu0 0.0
    %6503 = vmatprep.subr.mxu0 0.0
    %6504 = vmatpush1.msra.mxu0 0.0
    %6505 = vmatprep.subr.mxu0 0.0
    %6506 = vmatpush1.msra.mxu0 0.0
    %6507 = vmatprep.subr.mxu0 0.0
    %6508 = vmatpush1.msra.mxu0 0.0
    %6509 = vmatprep.subr.mxu0 0.0
    %6510 = vmatpush1.msra.mxu0 0.0
    %6511 = vmatprep.subr.mxu0 0.0
    %6512 = vmatpush1.msra.mxu0 0.0
    %6513 = vmatprep.subr.mxu0 0.0
    %6514 = vmatpush1.msra.mxu0 0.0
    %6515 = vmatprep.subr.mxu0 0.0
    %6516 = vmatpush1.msra.mxu0 0.0
    %6517 = vmatprep.subr.mxu0 0.0
    %6518 = vmatpush1.msra.mxu0 0.0
    %6519 = vmatprep.subr.mxu0 0.0
    %6520 = vmatpush1.msra.mxu0 0.0
    %6521 = vmatprep.subr.mxu0 0.0
    %6522 = vmatpush1.msra.mxu0 0.0
    %6523 = vmatprep.subr.mxu0 0.0
    %6524 = vmatpush1.msra.mxu0 0.0
    %6525 = vmatprep.subr.mxu0 0.0
    %6526 = vmatpush1.msra.mxu0 0.0
    %6527 = vmatprep.subr.mxu0 0.0
    %6528 = vmatpush1.msra.mxu0 0.0
    %6529 = vmatprep.subr.mxu0 0.0
    %6530 = vmatpush1.msra.mxu0 0.0
    %6531 = vmatprep.subr.mxu0 0.0
    %6532 = vmatpush1.msra.mxu0 0.0
    %6533 = vmatprep.subr.mxu0 0.0
    %6534 = vmatpush1.msra.mxu0 0.0
    %6535 = vmatprep.mubr.f32.mxu0 0.0
    %6536 = vmatmul.mubr.f32.gmra.mrb[0].mxu0 %v6466
    %v6537 = vpop.f32.mrb[0].mxu0
    %v6538 = vadd.f32 0.0, %v6537
    %v6539 = vpop.f32.mrb[0].mxu0
    %6540 = vmatprep.mubr.f32.mxu0 0.0
    %6541 = vmatmul.mubr.f32.gmra.mrb[0].mxu0 %v6469
    %v6542 = vpop.f32.mrb[0].mxu0
    %v6543 = vadd.f32 0.0, %v6542
    %v6544 = vpop.f32.mrb[0].mxu0
    %6545 = vdwg.mxu0
    %v6547 = vsel %vm832, %v6053, 0
    %v6550 = vsel %vm832, %v6055, 0
    %6552 = vmatprep.subr.mxu0 0.0
    %6553 = vmatpush1.msra.mxu0 %v5170
    %6554 = vmatprep.subr.mxu0 0.0
    %6555 = vmatpush1.msra.mxu0 %v5175
    %6556 = vmatprep.subr.mxu0 0.0
    %6557 = vmatpush1.msra.mxu0 0.0
    %6558 = vmatprep.subr.mxu0 0.0
    %6559 = vmatpush1.msra.mxu0 0.0
    %6560 = vmatprep.subr.mxu0 0.0
    %6561 = vmatpush1.msra.mxu0 0.0
    %6562 = vmatprep.subr.mxu0 0.0
    %6563 = vmatpush1.msra.mxu0 0.0
    %6564 = vmatprep.subr.mxu0 0.0
    %6565 = vmatpush1.msra.mxu0 0.0
    %6566 = vmatprep.subr.mxu0 0.0
    %6567 = vmatpush1.msra.mxu0 0.0
    %6568 = vmatprep.subr.mxu0 0.0
    %6569 = vmatpush1.msra.mxu0 0.0
    %6570 = vmatprep.subr.mxu0 0.0
    %6571 = vmatpush1.msra.mxu0 0.0
    %6572 = vmatprep.subr.mxu0 0.0
    %6573 = vmatpush1.msra.mxu0 0.0
    %6574 = vmatprep.subr.mxu0 0.0
    %6575 = vmatpush1.msra.mxu0 0.0
    %6576 = vmatprep.subr.mxu0 0.0
    %6577 = vmatpush1.msra.mxu0 0.0
    %6578 = vmatprep.subr.mxu0 0.0
    %6579 = vmatpush1.msra.mxu0 0.0
    %6580 = vmatprep.subr.mxu0 0.0
    %6581 = vmatpush1.msra.mxu0 0.0
    %6582 = vmatprep.subr.mxu0 0.0
    %6583 = vmatpush1.msra.mxu0 0.0
    %6584 = vmatprep.subr.mxu0 0.0
    %6585 = vmatpush1.msra.mxu0 0.0
    %6586 = vmatprep.subr.mxu0 0.0
    %6587 = vmatpush1.msra.mxu0 0.0
    %6588 = vmatprep.subr.mxu0 0.0
    %6589 = vmatpush1.msra.mxu0 0.0
    %6590 = vmatprep.subr.mxu0 0.0
    %6591 = vmatpush1.msra.mxu0 0.0
    %6592 = vmatprep.subr.mxu0 0.0
    %6593 = vmatpush1.msra.mxu0 0.0
    %6594 = vmatprep.subr.mxu0 0.0
    %6595 = vmatpush1.msra.mxu0 0.0
    %6596 = vmatprep.subr.mxu0 0.0
    %6597 = vmatpush1.msra.mxu0 0.0
    %6598 = vmatprep.subr.mxu0 0.0
    %6599 = vmatpush1.msra.mxu0 0.0
    %6600 = vmatprep.subr.mxu0 0.0
    %6601 = vmatpush1.msra.mxu0 0.0
    %6602 = vmatprep.subr.mxu0 0.0
    %6603 = vmatpush1.msra.mxu0 0.0
    %6604 = vmatprep.subr.mxu0 0.0
    %6605 = vmatpush1.msra.mxu0 0.0
    %6606 = vmatprep.subr.mxu0 0.0
    %6607 = vmatpush1.msra.mxu0 0.0
    %6608 = vmatprep.subr.mxu0 0.0
    %6609 = vmatpush1.msra.mxu0 0.0
    %6610 = vmatprep.subr.mxu0 0.0
    %6611 = vmatpush1.msra.mxu0 0.0
    %6612 = vmatprep.subr.mxu0 0.0
    %6613 = vmatpush1.msra.mxu0 0.0
    %6614 = vmatprep.subr.mxu0 0.0
    %6615 = vmatpush1.msra.mxu0 0.0
    %6616 = vmatprep.mubr.f32.mxu0 0.0
    %6617 = vmatmul.mubr.f32.gmra.mrb[0].mxu0 %v6547
    %v6618 = vpop.f32.mrb[0].mxu0
    %v6619 = vadd.f32 0.0, %v6618
    %v6620 = vpop.f32.mrb[0].mxu0
    %6621 = vmatprep.mubr.f32.mxu0 0.0
    %6622 = vmatmul.mubr.f32.gmra.mrb[0].mxu0 %v6550
    %v6623 = vpop.f32.mrb[0].mxu0
    %v6624 = vadd.f32 0.0, %v6623
    %v6625 = vpop.f32.mrb[0].mxu0
    %6626 = vdwg.mxu0
    %v6628 = vsel %vm832, %v6057, 0
    %v6631 = vsel %vm832, %v6059, 0
    %6633 = vmatprep.subr.mxu0 0.0
    %6634 = vmatpush1.msra.mxu0 %v5180
    %6635 = vmatprep.subr.mxu0 0.0
    %6636 = vmatpush1.msra.mxu0 %v5185
    %6637 = vmatprep.subr.mxu0 0.0
    %6638 = vmatpush1.msra.mxu0 0.0
    %6639 = vmatprep.subr.mxu0 0.0
    %6640 = vmatpush1.msra.mxu0 0.0
    %6641 = vmatprep.subr.mxu0 0.0
    %6642 = vmatpush1.msra.mxu0 0.0
    %6643 = vmatprep.subr.mxu0 0.0
    %6644 = vmatpush1.msra.mxu0 0.0
    %6645 = vmatprep.subr.mxu0 0.0
    %6646 = vmatpush1.msra.mxu0 0.0
    %6647 = vmatprep.subr.mxu0 0.0
    %6648 = vmatpush1.msra.mxu0 0.0
    %6649 = vmatprep.subr.mxu0 0.0
    %6650 = vmatpush1.msra.mxu0 0.0
    %6651 = vmatprep.subr.mxu0 0.0
    %6652 = vmatpush1.msra.mxu0 0.0
    %6653 = vmatprep.subr.mxu0 0.0
    %6654 = vmatpush1.msra.mxu0 0.0
    %6655 = vmatprep.subr.mxu0 0.0
    %6656 = vmatpush1.msra.mxu0 0.0
    %6657 = vmatprep.subr.mxu0 0.0
    %6658 = vmatpush1.msra.mxu0 0.0
    %6659 = vmatprep.subr.mxu0 0.0
    %6660 = vmatpush1.msra.mxu0 0.0
    %6661 = vmatprep.subr.mxu0 0.0
    %6662 = vmatpush1.msra.mxu0 0.0
    %6663 = vmatprep.subr.mxu0 0.0
    %6664 = vmatpush1.msra.mxu0 0.0
    %6665 = vmatprep.subr.mxu0 0.0
    %6666 = vmatpush1.msra.mxu0 0.0
    %6667 = vmatprep.subr.mxu0 0.0
    %6668 = vmatpush1.msra.mxu0 0.0
    %6669 = vmatprep.subr.mxu0 0.0
    %6670 = vmatpush1.msra.mxu0 0.0
    %6671 = vmatprep.subr.mxu0 0.0
    %6672 = vmatpush1.msra.mxu0 0.0
    %6673 = vmatprep.subr.mxu0 0.0
    %6674 = vmatpush1.msra.mxu0 0.0
    %6675 = vmatprep.subr.mxu0 0.0
    %6676 = vmatpush1.msra.mxu0 0.0
    %6677 = vmatprep.subr.mxu0 0.0
    %6678 = vmatpush1.msra.mxu0 0.0
    %6679 = vmatprep.subr.mxu0 0.0
    %6680 = vmatpush1.msra.mxu0 0.0
    %6681 = vmatprep.subr.mxu0 0.0
    %6682 = vmatpush1.msra.mxu0 0.0
    %6683 = vmatprep.subr.mxu0 0.0
    %6684 = vmatpush1.msra.mxu0 0.0
    %6685 = vmatprep.subr.mxu0 0.0
    %6686 = vmatpush1.msra.mxu0 0.0
    %6687 = vmatprep.subr.mxu0 0.0
    %6688 = vmatpush1.msra.mxu0 0.0
    %6689 = vmatprep.subr.mxu0 0.0
    %6690 = vmatpush1.msra.mxu0 0.0
    %6691 = vmatprep.subr.mxu0 0.0
    %6692 = vmatpush1.msra.mxu0 0.0
    %6693 = vmatprep.subr.mxu0 0.0
    %6694 = vmatpush1.msra.mxu0 0.0
    %6695 = vmatprep.subr.mxu0 0.0
    %6696 = vmatpush1.msra.mxu0 0.0
    %6697 = vmatprep.mubr.f32.mxu0 0.0
    %6698 = vmatmul.mubr.f32.gmra.mrb[0].mxu0 %v6628
    %v6699 = vpop.f32.mrb[0].mxu0
    %v6700 = vadd.f32 0.0, %v6699
    %v6701 = vpop.f32.mrb[0].mxu0
    %6702 = vmatprep.mubr.f32.mxu0 0.0
    %6703 = vmatmul.mubr.f32.gmra.mrb[0].mxu0 %v6631
    %v6704 = vpop.f32.mrb[0].mxu0
    %v6705 = vadd.f32 0.0, %v6704
    %v6706 = vpop.f32.mrb[0].mxu0
    %6707 = vdwg.mxu0
    %s6708 = scalar_lea.vmem %s7, 32
    %v6709 = vld [vmem:[%s6708] sm:$0xff]
    %v6710 = vld [vmem:[%s6708 + $0x8] sm:$0xff]
    %v6712 = vsel %vm832, %v6133, 0
    %v6715 = vsel %vm832, %v6138, 0
    %v6718 = vsel %vm832, %v6214, 0
    %v6721 = vsel %vm832, %v6219, 0
    %v6724 = vsel %vm832, %v6295, 0
    %v6727 = vsel %vm832, %v6300, 0
    %v6730 = vsel %vm832, %v6376, 0
    %v6733 = vsel %vm832, %v6381, 0
    %v6736 = vsel %vm832, %v6457, 0
    %v6739 = vsel %vm832, %v6462, 0
    %v6742 = vsel %vm832, %v6538, 0
    %v6745 = vsel %vm832, %v6543, 0
    %v6748 = vsel %vm832, %v6619, 0
    %v6751 = vsel %vm832, %v6624, 0
    %v6754 = vsel %vm832, %v6700, 0
    %v6757 = vsel %vm832, %v6705, 0
    %6759 = vmatprep.subr.mxu0 0.0
    %6760 = vmatpush1.msra.mxu0 %v6709
    %6761 = vmatprep.subr.mxu0 0.0
    %6762 = vmatpush1.msra.mxu0 %v6710
    %6763 = vmatprep.subr.mxu0 0.0
    %6764 = vmatpush1.msra.mxu0 0.0
    %6765 = vmatprep.subr.mxu0 0.0
    %6766 = vmatpush1.msra.mxu0 0.0
    %6767 = vmatprep.subr.mxu0 0.0
    %6768 = vmatpush1.msra.mxu0 0.0
    %6769 = vmatprep.subr.mxu0 0.0
    %6770 = vmatpush1.msra.mxu0 0.0
    %6771 = vmatprep.subr.mxu0 0.0
    %6772 = vmatpush1.msra.mxu0 0.0
    %6773 = vmatprep.subr.mxu0 0.0
    %6774 = vmatpush1.msra.mxu0 0.0
    %6775 = vmatprep.subr.mxu0 0.0
    %6776 = vmatpush1.msra.mxu0 0.0
    %6777 = vmatprep.subr.mxu0 0.0
    %6778 = vmatpush1.msra.mxu0 0.0
    %6779 = vmatprep.subr.mxu0 0.0
    %6780 = vmatpush1.msra.mxu0 0.0
    %6781 = vmatprep.subr.mxu0 0.0
    %6782 = vmatpush1.msra.mxu0 0.0
    %6783 = vmatprep.subr.mxu0 0.0
    %6784 = vmatpush1.msra.mxu0 0.0
    %6785 = vmatprep.subr.mxu0 0.0
    %6786 = vmatpush1.msra.mxu0 0.0
    %6787 = vmatprep.subr.mxu0 0.0
    %6788 = vmatpush1.msra.mxu0 0.0
    %6789 = vmatprep.subr.mxu0 0.0
    %6790 = vmatpush1.msra.mxu0 0.0
    %6791 = vmatprep.subr.mxu0 0.0
    %6792 = vmatpush1.msra.mxu0 0.0
    %6793 = vmatprep.subr.mxu0 0.0
    %6794 = vmatpush1.msra.mxu0 0.0
    %6795 = vmatprep.subr.mxu0 0.0
    %6796 = vmatpush1.msra.mxu0 0.0
    %6797 = vmatprep.subr.mxu0 0.0
    %6798 = vmatpush1.msra.mxu0 0.0
    %6799 = vmatprep.subr.mxu0 0.0
    %6800 = vmatpush1.msra.mxu0 0.0
    %6801 = vmatprep.subr.mxu0 0.0
    %6802 = vmatpush1.msra.mxu0 0.0
    %6803 = vmatprep.subr.mxu0 0.0
    %6804 = vmatpush1.msra.mxu0 0.0
    %6805 = vmatprep.subr.mxu0 0.0
    %6806 = vmatpush1.msra.mxu0 0.0
    %6807 = vmatprep.subr.mxu0 0.0
    %6808 = vmatpush1.msra.mxu0 0.0
    %6809 = vmatprep.subr.mxu0 0.0
    %6810 = vmatpush1.msra.mxu0 0.0
    %6811 = vmatprep.subr.mxu0 0.0
    %6812 = vmatpush1.msra.mxu0 0.0
    %6813 = vmatprep.subr.mxu0 0.0
    %6814 = vmatpush1.msra.mxu0 0.0
    %6815 = vmatprep.subr.mxu0 0.0
    %6816 = vmatpush1.msra.mxu0 0.0
    %6817 = vmatprep.subr.mxu0 0.0
    %6818 = vmatpush1.msra.mxu0 0.0
    %6819 = vmatprep.subr.mxu0 0.0
    %6820 = vmatpush1.msra.mxu0 0.0
    %6821 = vmatprep.subr.mxu0 0.0
    %6822 = vmatpush1.msra.mxu0 0.0
    %6823 = vmatprep.mubr.f32.mxu0 0.0
    %6824 = vmatmul.mubr.f32.gmra.mrb[0].mxu0 %v6712
    %v6825 = vpop.f32.mrb[0].mxu0
    %v6826 = vadd.f32 0.0, %v6825
    %v6827 = vpop.f32.mrb[0].mxu0
    %6828 = vmatprep.mubr.f32.mxu0 0.0
    %6829 = vmatmul.mubr.f32.gmra.mrb[0].mxu0 %v6715
    %v6830 = vpop.f32.mrb[0].mxu0
    %v6831 = vadd.f32 0.0, %v6830
    %v6832 = vpop.f32.mrb[0].mxu0
    %6833 = vmatprep.mubr.f32.mxu0 0.0
    %6834 = vmatmul.mubr.f32.gmra.mrb[0].mxu0 %v6718
    %v6835 = vpop.f32.mrb[0].mxu0
    %v6836 = vadd.f32 0.0, %v6835
    %v6837 = vpop.f32.mrb[0].mxu0
    %6838 = vmatprep.mubr.f32.mxu0 0.0
    %6839 = vmatmul.mubr.f32.gmra.mrb[0].mxu0 %v6721
    %v6840 = vpop.f32.mrb[0].mxu0
    %v6841 = vadd.f32 0.0, %v6840
    %v6842 = vpop.f32.mrb[0].mxu0
    %6843 = vmatprep.mubr.f32.mxu0 0.0
    %6844 = vmatmul.mubr.f32.gmra.mrb[0].mxu0 %v6724
    %v6845 = vpop.f32.mrb[0].mxu0
    %v6846 = vadd.f32 0.0, %v6845
    %v6847 = vpop.f32.mrb[0].mxu0
    %6848 = vmatprep.mubr.f32.mxu0 0.0
    %6849 = vmatmul.mubr.f32.gmra.mrb[0].mxu0 %v6727
    %v6850 = vpop.f32.mrb[0].mxu0
    %v6851 = vadd.f32 0.0, %v6850
    %v6852 = vpop.f32.mrb[0].mxu0
    %6853 = vmatprep.mubr.f32.mxu0 0.0
    %6854 = vmatmul.mubr.f32.gmra.mrb[0].mxu0 %v6730
    %v6855 = vpop.f32.mrb[0].mxu0
    %v6856 = vadd.f32 0.0, %v6855
    %v6857 = vpop.f32.mrb[0].mxu0
    %6858 = vmatprep.mubr.f32.mxu0 0.0
    %6859 = vmatmul.mubr.f32.gmra.mrb[0].mxu0 %v6733
    %v6860 = vpop.f32.mrb[0].mxu0
    %v6861 = vadd.f32 0.0, %v6860
    %v6862 = vpop.f32.mrb[0].mxu0
    %6863 = vmatprep.mubr.f32.mxu0 0.0
    %6864 = vmatmul.mubr.f32.gmra.mrb[0].mxu0 %v6736
    %v6865 = vpop.f32.mrb[0].mxu0
    %v6866 = vadd.f32 0.0, %v6865
    %v6867 = vpop.f32.mrb[0].mxu0
    %6868 = vmatprep.mubr.f32.mxu0 0.0
    %6869 = vmatmul.mubr.f32.gmra.mrb[0].mxu0 %v6739
    %v6870 = vpop.f32.mrb[0].mxu0
    %v6871 = vadd.f32 0.0, %v6870
    %v6872 = vpop.f32.mrb[0].mxu0
    %6873 = vmatprep.mubr.f32.mxu0 0.0
    %6874 = vmatmul.mubr.f32.gmra.mrb[0].mxu0 %v6742
    %v6875 = vpop.f32.mrb[0].mxu0
    %v6876 = vadd.f32 0.0, %v6875
    %v6877 = vpop.f32.mrb[0].mxu0
    %6878 = vmatprep.mubr.f32.mxu0 0.0
    %6879 = vmatmul.mubr.f32.gmra.mrb[0].mxu0 %v6745
    %v6880 = vpop.f32.mrb[0].mxu0
    %v6881 = vadd.f32 0.0, %v6880
    %v6882 = vpop.f32.mrb[0].mxu0
    %6883 = vmatprep.mubr.f32.mxu0 0.0
    %6884 = vmatmul.mubr.f32.gmra.mrb[0].mxu0 %v6748
    %v6885 = vpop.f32.mrb[0].mxu0
    %v6886 = vadd.f32 0.0, %v6885
    %v6887 = vpop.f32.mrb[0].mxu0
    %6888 = vmatprep.mubr.f32.mxu0 0.0
    %6889 = vmatmul.mubr.f32.gmra.mrb[0].mxu0 %v6751
    %v6890 = vpop.f32.mrb[0].mxu0
    %v6891 = vadd.f32 0.0, %v6890
    %v6892 = vpop.f32.mrb[0].mxu0
    %6893 = vmatprep.mubr.f32.mxu0 0.0
    %6894 = vmatmul.mubr.f32.gmra.mrb[0].mxu0 %v6754
    %v6895 = vpop.f32.mrb[0].mxu0
    %v6896 = vadd.f32 0.0, %v6895
    %v6897 = vpop.f32.mrb[0].mxu0
    %6898 = vmatprep.mubr.f32.mxu0 0.0
    %6899 = vmatmul.mubr.f32.gmra.mrb[0].mxu0 %v6757
    %v6900 = vpop.f32.mrb[0].mxu0
    %v6901 = vadd.f32 0.0, %v6900
    %v6902 = vpop.f32.mrb[0].mxu0
    %6903 = vdwg.mxu0
    %v6904 = vadd.f32 %v4648, %v6826
    %v6905 = vadd.f32 %v4653, %v6831
    %v6906 = vadd.f32 %v4658, %v6836
    %v6907 = vadd.f32 %v4663, %v6841
    %v6908 = vadd.f32 %v4668, %v6846
    %v6909 = vadd.f32 %v4673, %v6851
    %v6910 = vadd.f32 %v4678, %v6856
    %v6911 = vadd.f32 %v4683, %v6861
    %v6912 = vadd.f32 %v4688, %v6866
    %v6913 = vadd.f32 %v4693, %v6871
    %v6914 = vadd.f32 %v4698, %v6876
    %v6915 = vadd.f32 %v4703, %v6881
    %v6916 = vadd.f32 %v4708, %v6886
    %v6917 = vadd.f32 %v4713, %v6891
    %v6918 = vadd.f32 %v4718, %v6896
    %v6919 = vadd.f32 %v4723, %v6901
    %s6920 = scalar_lea.vmem %s4, 192
    %v6921 = vld [vmem:[%s6920] sm:$0xff]
    %v6922 = vld [vmem:[%s6920 + $0x8] sm:$0xff]
    %v6923 = vld [vmem:[%s6920 + $0x10] sm:$0xff]
    %v6924 = vld [vmem:[%s6920 + $0x18] sm:$0xff]
    %v6925 = vld [vmem:[%s6920 + $0x20] sm:$0xff]
    %v6926 = vld [vmem:[%s6920 + $0x28] sm:$0xff]
    %v6927 = vld [vmem:[%s6920 + $0x30] sm:$0xff]
    %v6928 = vld [vmem:[%s6920 + $0x38] sm:$0xff]
    %6929 = vmatprep.subr.mxu0 0.0
    %6930 = vmatpush1.msra.mxu0 %v6921
    %6931 = vmatprep.subr.mxu0 0.0
    %6932 = vmatpush1.msra.mxu0 %v6922
    %6933 = vmatprep.subr.mxu0 0.0
    %6934 = vmatpush1.msra.mxu0 %v6923
    %6935 = vmatprep.subr.mxu0 0.0
    %6936 = vmatpush1.msra.mxu0 %v6924
    %6937 = vmatprep.subr.mxu0 0.0
    %6938 = vmatpush1.msra.mxu0 %v6925
    %6939 = vmatprep.subr.mxu0 0.0
    %6940 = vmatpush1.msra.mxu0 %v6926
    %6941 = vmatprep.subr.mxu0 0.0
    %6942 = vmatpush1.msra.mxu0 %v6927
    %6943 = vmatprep.subr.mxu0 0.0
    %6944 = vmatpush1.msra.mxu0 %v6928
    %6945 = vmatprep.subr.mxu0 0.0
    %6946 = vmatpush1.msra.mxu0 0.0
    %6947 = vmatprep.subr.mxu0 0.0
    %6948 = vmatpush1.msra.mxu0 0.0
    %6949 = vmatprep.subr.mxu0 0.0
    %6950 = vmatpush1.msra.mxu0 0.0
    %6951 = vmatprep.subr.mxu0 0.0
    %6952 = vmatpush1.msra.mxu0 0.0
    %6953 = vmatprep.subr.mxu0 0.0
    %6954 = vmatpush1.msra.mxu0 0.0
    %6955 = vmatprep.subr.mxu0 0.0
    %6956 = vmatpush1.msra.mxu0 0.0
    %6957 = vmatprep.subr.mxu0 0.0
    %6958 = vmatpush1.msra.mxu0 0.0
    %6959 = vmatprep.subr.mxu0 0.0
    %6960 = vmatpush1.msra.mxu0 0.0
    %6961 = vmatprep.subr.mxu0 0.0
    %6962 = vmatpush1.msra.mxu0 0.0
    %6963 = vmatprep.subr.mxu0 0.0
    %6964 = vmatpush1.msra.mxu0 0.0
    %6965 = vmatprep.subr.mxu0 0.0
    %6966 = vmatpush1.msra.mxu0 0.0
    %6967 = vmatprep.subr.mxu0 0.0
    %6968 = vmatpush1.msra.mxu0 0.0
    %6969 = vmatprep.subr.mxu0 0.0
    %6970 = vmatpush1.msra.mxu0 0.0
    %6971 = vmatprep.subr.mxu0 0.0
    %6972 = vmatpush1.msra.mxu0 0.0
    %6973 = vmatprep.subr.mxu0 0.0
    %6974 = vmatpush1.msra.mxu0 0.0
    %6975 = vmatprep.subr.mxu0 0.0
    %6976 = vmatpush1.msra.mxu0 0.0
    %6977 = vmatprep.subr.mxu0 0.0
    %6978 = vmatpush1.msra.mxu0 0.0
    %6979 = vmatprep.subr.mxu0 0.0
    %6980 = vmatpush1.msra.mxu0 0.0
    %6981 = vmatprep.subr.mxu0 0.0
    %6982 = vmatpush1.msra.mxu0 0.0
    %6983 = vmatprep.subr.mxu0 0.0
    %6984 = vmatpush1.msra.mxu0 0.0
    %6985 = vmatprep.subr.mxu0 0.0
    %6986 = vmatpush1.msra.mxu0 0.0
    %6987 = vmatprep.subr.mxu0 0.0
    %6988 = vmatpush1.msra.mxu0 0.0
    %6989 = vmatprep.subr.mxu0 0.0
    %6990 = vmatpush1.msra.mxu0 0.0
    %6991 = vmatprep.subr.mxu0 0.0
    %6992 = vmatpush1.msra.mxu0 0.0
    %6993 = vmatprep.mubr.f32.mxu0 0.0
    %6994 = vmatmul.mubr.f32.gmra.mrb[0].mxu0 %v334
    %v6995 = vpop.f32.mrb[0].mxu0
    %v6996 = vadd.f32 0.0, %v6995
    %v6997 = vpop.f32.mrb[0].mxu0
    %6998 = vmatprep.mubr.f32.mxu0 0.0
    %6999 = vmatmul.mubr.f32.gmra.mrb[0].mxu0 %v337
    %v7000 = vpop.f32.mrb[0].mxu0
    %v7001 = vadd.f32 0.0, %v7000
    %v7002 = vpop.f32.mrb[0].mxu0
    %7003 = vmatprep.mubr.f32.mxu0 0.0
    %7004 = vmatmul.mubr.f32.gmra.mrb[0].mxu0 %v340
    %v7005 = vpop.f32.mrb[0].mxu0
    %v7006 = vadd.f32 0.0, %v7005
    %v7007 = vpop.f32.mrb[0].mxu0
    %7008 = vmatprep.mubr.f32.mxu0 0.0
    %7009 = vmatmul.mubr.f32.gmra.mrb[0].mxu0 %v343
    %v7010 = vpop.f32.mrb[0].mxu0
    %v7011 = vadd.f32 0.0, %v7010
    %v7012 = vpop.f32.mrb[0].mxu0
    %7013 = vmatprep.mubr.f32.mxu0 0.0
    %7014 = vmatmul.mubr.f32.gmra.mrb[0].mxu0 %v346
    %v7015 = vpop.f32.mrb[0].mxu0
    %v7016 = vadd.f32 0.0, %v7015
    %v7017 = vpop.f32.mrb[0].mxu0
    %7018 = vmatprep.mubr.f32.mxu0 0.0
    %7019 = vmatmul.mubr.f32.gmra.mrb[0].mxu0 %v349
    %v7020 = vpop.f32.mrb[0].mxu0
    %v7021 = vadd.f32 0.0, %v7020
    %v7022 = vpop.f32.mrb[0].mxu0
    %7023 = vmatprep.mubr.f32.mxu0 0.0
    %7024 = vmatmul.mubr.f32.gmra.mrb[0].mxu0 %v352
    %v7025 = vpop.f32.mrb[0].mxu0
    %v7026 = vadd.f32 0.0, %v7025
    %v7027 = vpop.f32.mrb[0].mxu0
    %7028 = vmatprep.mubr.f32.mxu0 0.0
    %7029 = vmatmul.mubr.f32.gmra.mrb[0].mxu0 %v355
    %v7030 = vpop.f32.mrb[0].mxu0
    %v7031 = vadd.f32 0.0, %v7030
    %v7032 = vpop.f32.mrb[0].mxu0
    %7033 = vmatprep.mubr.f32.mxu0 0.0
    %7034 = vmatmul.mubr.f32.gmra.mrb[0].mxu0 %v358
    %v7035 = vpop.f32.mrb[0].mxu0
    %v7036 = vadd.f32 0.0, %v7035
    %v7037 = vpop.f32.mrb[0].mxu0
    %7038 = vmatprep.mubr.f32.mxu0 0.0
    %7039 = vmatmul.mubr.f32.gmra.mrb[0].mxu0 %v361
    %v7040 = vpop.f32.mrb[0].mxu0
    %v7041 = vadd.f32 0.0, %v7040
    %v7042 = vpop.f32.mrb[0].mxu0
    %7043 = vmatprep.mubr.f32.mxu0 0.0
    %7044 = vmatmul.mubr.f32.gmra.mrb[0].mxu0 %v364
    %v7045 = vpop.f32.mrb[0].mxu0
    %v7046 = vadd.f32 0.0, %v7045
    %v7047 = vpop.f32.mrb[0].mxu0
    %7048 = vmatprep.mubr.f32.mxu0 0.0
    %7049 = vmatmul.mubr.f32.gmra.mrb[0].mxu0 %v367
    %v7050 = vpop.f32.mrb[0].mxu0
    %v7051 = vadd.f32 0.0, %v7050
    %v7052 = vpop.f32.mrb[0].mxu0
    %7053 = vmatprep.mubr.f32.mxu0 0.0
    %7054 = vmatmul.mubr.f32.gmra.mrb[0].mxu0 %v370
    %v7055 = vpop.f32.mrb[0].mxu0
    %v7056 = vadd.f32 0.0, %v7055
    %v7057 = vpop.f32.mrb[0].mxu0
    %7058 = vmatprep.mubr.f32.mxu0 0.0
    %7059 = vmatmul.mubr.f32.gmra.mrb[0].mxu0 %v373
    %v7060 = vpop.f32.mrb[0].mxu0
    %v7061 = vadd.f32 0.0, %v7060
    %v7062 = vpop.f32.mrb[0].mxu0
    %7063 = vmatprep.mubr.f32.mxu0 0.0
    %7064 = vmatmul.mubr.f32.gmra.mrb[0].mxu0 %v376
    %v7065 = vpop.f32.mrb[0].mxu0
    %v7066 = vadd.f32 0.0, %v7065
    %v7067 = vpop.f32.mrb[0].mxu0
    %7068 = vmatprep.mubr.f32.mxu0 0.0
    %7069 = vmatmul.mubr.f32.gmra.mrb[0].mxu0 %v379
    %v7070 = vpop.f32.mrb[0].mxu0
    %v7071 = vadd.f32 0.0, %v7070
    %v7072 = vpop.f32.mrb[0].mxu0
    %7073 = vdwg.mxu0
    %s7074 = scalar_lea.vmem %s5, 192
    %v7075 = vld [vmem:[%s7074] sm:$0xff]
    %v7076 = vld [vmem:[%s7074 + $0x8] sm:$0xff]
    %v7077 = vld [vmem:[%s7074 + $0x10] sm:$0xff]
    %v7078 = vld [vmem:[%s7074 + $0x18] sm:$0xff]
    %v7079 = vld [vmem:[%s7074 + $0x20] sm:$0xff]
    %v7080 = vld [vmem:[%s7074 + $0x28] sm:$0xff]
    %v7081 = vld [vmem:[%s7074 + $0x30] sm:$0xff]
    %v7082 = vld [vmem:[%s7074 + $0x38] sm:$0xff]
    %7083 = vmatprep.subr.mxu0 0.0
    %7084 = vmatpush1.msra.mxu0 %v7075
    %7085 = vmatprep.subr.mxu0 0.0
    %7086 = vmatpush1.msra.mxu0 %v7076
    %7087 = vmatprep.subr.mxu0 0.0
    %7088 = vmatpush1.msra.mxu0 %v7077
    %7089 = vmatprep.subr.mxu0 0.0
    %7090 = vmatpush1.msra.mxu0 %v7078
    %7091 = vmatprep.subr.mxu0 0.0
    %7092 = vmatpush1.msra.mxu0 %v7079
    %7093 = vmatprep.subr.mxu0 0.0
    %7094 = vmatpush1.msra.mxu0 %v7080
    %7095 = vmatprep.subr.mxu0 0.0
    %7096 = vmatpush1.msra.mxu0 %v7081
    %7097 = vmatprep.subr.mxu0 0.0
    %7098 = vmatpush1.msra.mxu0 %v7082
    %7099 = vmatprep.subr.mxu0 0.0
    %7100 = vmatpush1.msra.mxu0 0.0
    %7101 = vmatprep.subr.mxu0 0.0
    %7102 = vmatpush1.msra.mxu0 0.0
    %7103 = vmatprep.subr.mxu0 0.0
    %7104 = vmatpush1.msra.mxu0 0.0
    %7105 = vmatprep.subr.mxu0 0.0
    %7106 = vmatpush1.msra.mxu0 0.0
    %7107 = vmatprep.subr.mxu0 0.0
    %7108 = vmatpush1.msra.mxu0 0.0
    %7109 = vmatprep.subr.mxu0 0.0
    %7110 = vmatpush1.msra.mxu0 0.0
    %7111 = vmatprep.subr.mxu0 0.0
    %7112 = vmatpush1.msra.mxu0 0.0
    %7113 = vmatprep.subr.mxu0 0.0
    %7114 = vmatpush1.msra.mxu0 0.0
    %7115 = vmatprep.subr.mxu0 0.0
    %7116 = vmatpush1.msra.mxu0 0.0
    %7117 = vmatprep.subr.mxu0 0.0
    %7118 = vmatpush1.msra.mxu0 0.0
    %7119 = vmatprep.subr.mxu0 0.0
    %7120 = vmatpush1.msra.mxu0 0.0
    %7121 = vmatprep.subr.mxu0 0.0
    %7122 = vmatpush1.msra.mxu0 0.0
    %7123 = vmatprep.subr.mxu0 0.0
    %7124 = vmatpush1.msra.mxu0 0.0
    %7125 = vmatprep.subr.mxu0 0.0
    %7126 = vmatpush1.msra.mxu0 0.0
    %7127 = vmatprep.subr.mxu0 0.0
    %7128 = vmatpush1.msra.mxu0 0.0
    %7129 = vmatprep.subr.mxu0 0.0
    %7130 = vmatpush1.msra.mxu0 0.0
    %7131 = vmatprep.subr.mxu0 0.0
    %7132 = vmatpush1.msra.mxu0 0.0
    %7133 = vmatprep.subr.mxu0 0.0
    %7134 = vmatpush1.msra.mxu0 0.0
    %7135 = vmatprep.subr.mxu0 0.0
    %7136 = vmatpush1.msra.mxu0 0.0
    %7137 = vmatprep.subr.mxu0 0.0
    %7138 = vmatpush1.msra.mxu0 0.0
    %7139 = vmatprep.subr.mxu0 0.0
    %7140 = vmatpush1.msra.mxu0 0.0
    %7141 = vmatprep.subr.mxu0 0.0
    %7142 = vmatpush1.msra.mxu0 0.0
    %7143 = vmatprep.subr.mxu0 0.0
    %7144 = vmatpush1.msra.mxu0 0.0
    %7145 = vmatprep.subr.mxu0 0.0
    %7146 = vmatpush1.msra.mxu0 0.0
    %7147 = vmatprep.mubr.f32.mxu0 0.0
    %7148 = vmatmul.mubr.f32.gmra.mrb[0].mxu0 %v334
    %v7149 = vpop.f32.mrb[0].mxu0
    %v7150 = vadd.f32 0.0, %v7149
    %v7151 = vpop.f32.mrb[0].mxu0
    %7152 = vmatprep.mubr.f32.mxu0 0.0
    %7153 = vmatmul.mubr.f32.gmra.mrb[0].mxu0 %v337
    %v7154 = vpop.f32.mrb[0].mxu0
    %v7155 = vadd.f32 0.0, %v7154
    %v7156 = vpop.f32.mrb[0].mxu0
    %7157 = vmatprep.mubr.f32.mxu0 0.0
    %7158 = vmatmul.mubr.f32.gmra.mrb[0].mxu0 %v340
    %v7159 = vpop.f32.mrb[0].mxu0
    %v7160 = vadd.f32 0.0, %v7159
    %v7161 = vpop.f32.mrb[0].mxu0
    %7162 = vmatprep.mubr.f32.mxu0 0.0
    %7163 = vmatmul.mubr.f32.gmra.mrb[0].mxu0 %v343
    %v7164 = vpop.f32.mrb[0].mxu0
    %v7165 = vadd.f32 0.0, %v7164
    %v7166 = vpop.f32.mrb[0].mxu0
    %7167 = vmatprep.mubr.f32.mxu0 0.0
    %7168 = vmatmul.mubr.f32.gmra.mrb[0].mxu0 %v346
    %v7169 = vpop.f32.mrb[0].mxu0
    %v7170 = vadd.f32 0.0, %v7169
    %v7171 = vpop.f32.mrb[0].mxu0
    %7172 = vmatprep.mubr.f32.mxu0 0.0
    %7173 = vmatmul.mubr.f32.gmra.mrb[0].mxu0 %v349
    %v7174 = vpop.f32.mrb[0].mxu0
    %v7175 = vadd.f32 0.0, %v7174
    %v7176 = vpop.f32.mrb[0].mxu0
    %7177 = vmatprep.mubr.f32.mxu0 0.0
    %7178 = vmatmul.mubr.f32.gmra.mrb[0].mxu0 %v352
    %v7179 = vpop.f32.mrb[0].mxu0
    %v7180 = vadd.f32 0.0, %v7179
    %v7181 = vpop.f32.mrb[0].mxu0
    %7182 = vmatprep.mubr.f32.mxu0 0.0
    %7183 = vmatmul.mubr.f32.gmra.mrb[0].mxu0 %v355
    %v7184 = vpop.f32.mrb[0].mxu0
    %v7185 = vadd.f32 0.0, %v7184
    %v7186 = vpop.f32.mrb[0].mxu0
    %7187 = vmatprep.mubr.f32.mxu0 0.0
    %7188 = vmatmul.mubr.f32.gmra.mrb[0].mxu0 %v358
    %v7189 = vpop.f32.mrb[0].mxu0
    %v7190 = vadd.f32 0.0, %v7189
    %v7191 = vpop.f32.mrb[0].mxu0
    %7192 = vmatprep.mubr.f32.mxu0 0.0
    %7193 = vmatmul.mubr.f32.gmra.mrb[0].mxu0 %v361
    %v7194 = vpop.f32.mrb[0].mxu0
    %v7195 = vadd.f32 0.0, %v7194
    %v7196 = vpop.f32.mrb[0].mxu0
    %7197 = vmatprep.mubr.f32.mxu0 0.0
    %7198 = vmatmul.mubr.f32.gmra.mrb[0].mxu0 %v364
    %v7199 = vpop.f32.mrb[0].mxu0
    %v7200 = vadd.f32 0.0, %v7199
    %v7201 = vpop.f32.mrb[0].mxu0
    %7202 = vmatprep.mubr.f32.mxu0 0.0
    %7203 = vmatmul.mubr.f32.gmra.mrb[0].mxu0 %v367
    %v7204 = vpop.f32.mrb[0].mxu0
    %v7205 = vadd.f32 0.0, %v7204
    %v7206 = vpop.f32.mrb[0].mxu0
    %7207 = vmatprep.mubr.f32.mxu0 0.0
    %7208 = vmatmul.mubr.f32.gmra.mrb[0].mxu0 %v370
    %v7209 = vpop.f32.mrb[0].mxu0
    %v7210 = vadd.f32 0.0, %v7209
    %v7211 = vpop.f32.mrb[0].mxu0
    %7212 = vmatprep.mubr.f32.mxu0 0.0
    %7213 = vmatmul.mubr.f32.gmra.mrb[0].mxu0 %v373
    %v7214 = vpop.f32.mrb[0].mxu0
    %v7215 = vadd.f32 0.0, %v7214
    %v7216 = vpop.f32.mrb[0].mxu0
    %7217 = vmatprep.mubr.f32.mxu0 0.0
    %7218 = vmatmul.mubr.f32.gmra.mrb[0].mxu0 %v376
    %v7219 = vpop.f32.mrb[0].mxu0
    %v7220 = vadd.f32 0.0, %v7219
    %v7221 = vpop.f32.mrb[0].mxu0
    %7222 = vmatprep.mubr.f32.mxu0 0.0
    %7223 = vmatmul.mubr.f32.gmra.mrb[0].mxu0 %v379
    %v7224 = vpop.f32.mrb[0].mxu0
    %v7225 = vadd.f32 0.0, %v7224
    %v7226 = vpop.f32.mrb[0].mxu0
    %7227 = vdwg.mxu0
    %s7228 = scalar_lea.vmem %s6, 192
    %v7229 = vld [vmem:[%s7228] sm:$0xff]
    %v7230 = vld [vmem:[%s7228 + $0x8] sm:$0xff]
    %v7231 = vld [vmem:[%s7228 + $0x10] sm:$0xff]
    %v7232 = vld [vmem:[%s7228 + $0x18] sm:$0xff]
    %v7233 = vld [vmem:[%s7228 + $0x20] sm:$0xff]
    %v7234 = vld [vmem:[%s7228 + $0x28] sm:$0xff]
    %v7235 = vld [vmem:[%s7228 + $0x30] sm:$0xff]
    %v7236 = vld [vmem:[%s7228 + $0x38] sm:$0xff]
    %7237 = vmatprep.subr.mxu0 0.0
    %7238 = vmatpush1.msra.mxu0 %v7229
    %7239 = vmatprep.subr.mxu0 0.0
    %7240 = vmatpush1.msra.mxu0 %v7230
    %7241 = vmatprep.subr.mxu0 0.0
    %7242 = vmatpush1.msra.mxu0 %v7231
    %7243 = vmatprep.subr.mxu0 0.0
    %7244 = vmatpush1.msra.mxu0 %v7232
    %7245 = vmatprep.subr.mxu0 0.0
    %7246 = vmatpush1.msra.mxu0 %v7233
    %7247 = vmatprep.subr.mxu0 0.0
    %7248 = vmatpush1.msra.mxu0 %v7234
    %7249 = vmatprep.subr.mxu0 0.0
    %7250 = vmatpush1.msra.mxu0 %v7235
    %7251 = vmatprep.subr.mxu0 0.0
    %7252 = vmatpush1.msra.mxu0 %v7236
    %7253 = vmatprep.subr.mxu0 0.0
    %7254 = vmatpush1.msra.mxu0 0.0
    %7255 = vmatprep.subr.mxu0 0.0
    %7256 = vmatpush1.msra.mxu0 0.0
    %7257 = vmatprep.subr.mxu0 0.0
    %7258 = vmatpush1.msra.mxu0 0.0
    %7259 = vmatprep.subr.mxu0 0.0
    %7260 = vmatpush1.msra.mxu0 0.0
    %7261 = vmatprep.subr.mxu0 0.0
    %7262 = vmatpush1.msra.mxu0 0.0
    %7263 = vmatprep.subr.mxu0 0.0
    %7264 = vmatpush1.msra.mxu0 0.0
    %7265 = vmatprep.subr.mxu0 0.0
    %7266 = vmatpush1.msra.mxu0 0.0
    %7267 = vmatprep.subr.mxu0 0.0
    %7268 = vmatpush1.msra.mxu0 0.0
    %7269 = vmatprep.subr.mxu0 0.0
    %7270 = vmatpush1.msra.mxu0 0.0
    %7271 = vmatprep.subr.mxu0 0.0
    %7272 = vmatpush1.msra.mxu0 0.0
    %7273 = vmatprep.subr.mxu0 0.0
    %7274 = vmatpush1.msra.mxu0 0.0
    %7275 = vmatprep.subr.mxu0 0.0
    %7276 = vmatpush1.msra.mxu0 0.0
    %7277 = vmatprep.subr.mxu0 0.0
    %7278 = vmatpush1.msra.mxu0 0.0
    %7279 = vmatprep.subr.mxu0 0.0
    %7280 = vmatpush1.msra.mxu0 0.0
    %7281 = vmatprep.subr.mxu0 0.0
    %7282 = vmatpush1.msra.mxu0 0.0
    %7283 = vmatprep.subr.mxu0 0.0
    %7284 = vmatpush1.msra.mxu0 0.0
    %7285 = vmatprep.subr.mxu0 0.0
    %7286 = vmatpush1.msra.mxu0 0.0
    %7287 = vmatprep.subr.mxu0 0.0
    %7288 = vmatpush1.msra.mxu0 0.0
    %7289 = vmatprep.subr.mxu0 0.0
    %7290 = vmatpush1.msra.mxu0 0.0
    %7291 = vmatprep.subr.mxu0 0.0
    %7292 = vmatpush1.msra.mxu0 0.0
    %7293 = vmatprep.subr.mxu0 0.0
    %7294 = vmatpush1.msra.mxu0 0.0
    %7295 = vmatprep.subr.mxu0 0.0
    %7296 = vmatpush1.msra.mxu0 0.0
    %7297 = vmatprep.subr.mxu0 0.0
    %7298 = vmatpush1.msra.mxu0 0.0
    %7299 = vmatprep.subr.mxu0 0.0
    %7300 = vmatpush1.msra.mxu0 0.0
    %7301 = vmatprep.mubr.f32.mxu0 0.0
    %7302 = vmatmul.mubr.f32.gmra.mrb[0].mxu0 %v334
    %v7303 = vpop.f32.mrb[0].mxu0
    %v7304 = vadd.f32 0.0, %v7303
    %v7305 = vpop.f32.mrb[0].mxu0
    %7306 = vmatprep.mubr.f32.mxu0 0.0
    %7307 = vmatmul.mubr.f32.gmra.mrb[0].mxu0 %v337
    %v7308 = vpop.f32.mrb[0].mxu0
    %v7309 = vadd.f32 0.0, %v7308
    %v7310 = vpop.f32.mrb[0].mxu0
    %7311 = vmatprep.mubr.f32.mxu0 0.0
    %7312 = vmatmul.mubr.f32.gmra.mrb[0].mxu0 %v340
    %v7313 = vpop.f32.mrb[0].mxu0
    %v7314 = vadd.f32 0.0, %v7313
    %v7315 = vpop.f32.mrb[0].mxu0
    %7316 = vmatprep.mubr.f32.mxu0 0.0
    %7317 = vmatmul.mubr.f32.gmra.mrb[0].mxu0 %v343
    %v7318 = vpop.f32.mrb[0].mxu0
    %v7319 = vadd.f32 0.0, %v7318
    %v7320 = vpop.f32.mrb[0].mxu0
    %7321 = vmatprep.mubr.f32.mxu0 0.0
    %7322 = vmatmul.mubr.f32.gmra.mrb[0].mxu0 %v346
    %v7323 = vpop.f32.mrb[0].mxu0
    %v7324 = vadd.f32 0.0, %v7323
    %v7325 = vpop.f32.mrb[0].mxu0
    %7326 = vmatprep.mubr.f32.mxu0 0.0
    %7327 = vmatmul.mubr.f32.gmra.mrb[0].mxu0 %v349
    %v7328 = vpop.f32.mrb[0].mxu0
    %v7329 = vadd.f32 0.0, %v7328
    %v7330 = vpop.f32.mrb[0].mxu0
    %7331 = vmatprep.mubr.f32.mxu0 0.0
    %7332 = vmatmul.mubr.f32.gmra.mrb[0].mxu0 %v352
    %v7333 = vpop.f32.mrb[0].mxu0
    %v7334 = vadd.f32 0.0, %v7333
    %v7335 = vpop.f32.mrb[0].mxu0
    %7336 = vmatprep.mubr.f32.mxu0 0.0
    %7337 = vmatmul.mubr.f32.gmra.mrb[0].mxu0 %v355
    %v7338 = vpop.f32.mrb[0].mxu0
    %v7339 = vadd.f32 0.0, %v7338
    %v7340 = vpop.f32.mrb[0].mxu0
    %7341 = vmatprep.mubr.f32.mxu0 0.0
    %7342 = vmatmul.mubr.f32.gmra.mrb[0].mxu0 %v358
    %v7343 = vpop.f32.mrb[0].mxu0
    %v7344 = vadd.f32 0.0, %v7343
    %v7345 = vpop.f32.mrb[0].mxu0
    %7346 = vmatprep.mubr.f32.mxu0 0.0
    %7347 = vmatmul.mubr.f32.gmra.mrb[0].mxu0 %v361
    %v7348 = vpop.f32.mrb[0].mxu0
    %v7349 = vadd.f32 0.0, %v7348
    %v7350 = vpop.f32.mrb[0].mxu0
    %7351 = vmatprep.mubr.f32.mxu0 0.0
    %7352 = vmatmul.mubr.f32.gmra.mrb[0].mxu0 %v364
    %v7353 = vpop.f32.mrb[0].mxu0
    %v7354 = vadd.f32 0.0, %v7353
    %v7355 = vpop.f32.mrb[0].mxu0
    %7356 = vmatprep.mubr.f32.mxu0 0.0
    %7357 = vmatmul.mubr.f32.gmra.mrb[0].mxu0 %v367
    %v7358 = vpop.f32.mrb[0].mxu0
    %v7359 = vadd.f32 0.0, %v7358
    %v7360 = vpop.f32.mrb[0].mxu0
    %7361 = vmatprep.mubr.f32.mxu0 0.0
    %7362 = vmatmul.mubr.f32.gmra.mrb[0].mxu0 %v370
    %v7363 = vpop.f32.mrb[0].mxu0
    %v7364 = vadd.f32 0.0, %v7363
    %v7365 = vpop.f32.mrb[0].mxu0
    %7366 = vmatprep.mubr.f32.mxu0 0.0
    %7367 = vmatmul.mubr.f32.gmra.mrb[0].mxu0 %v373
    %v7368 = vpop.f32.mrb[0].mxu0
    %v7369 = vadd.f32 0.0, %v7368
    %v7370 = vpop.f32.mrb[0].mxu0
    %7371 = vmatprep.mubr.f32.mxu0 0.0
    %7372 = vmatmul.mubr.f32.gmra.mrb[0].mxu0 %v376
    %v7373 = vpop.f32.mrb[0].mxu0
    %v7374 = vadd.f32 0.0, %v7373
    %v7375 = vpop.f32.mrb[0].mxu0
    %7376 = vmatprep.mubr.f32.mxu0 0.0
    %7377 = vmatmul.mubr.f32.gmra.mrb[0].mxu0 %v379
    %v7378 = vpop.f32.mrb[0].mxu0
    %v7379 = vadd.f32 0.0, %v7378
    %v7380 = vpop.f32.mrb[0].mxu0
    %7381 = vdwg.mxu0
    %v7383 = vsel %vm832, %v6996, 0
    %v7386 = vsel %vm832, %v7001, 0
    %v7389 = vsel %vm832, %v7150, 0
    %v7392 = vsel %vm832, %v7155, 0
    %7394 = vmatprep.subr.mxu0 0.0
    %7395 = vmatpush1.xpose.msra.mxu0 %v7389
    %7396 = vmatprep.subr.mxu0 0.0
    %7397 = vmatpush1.xpose.msra.mxu0 %v7392
    %7398 = vmatprep.subr.mxu0 0.0
    %7399 = vmatpush1.xpose.msra.mxu0 0.0
    %7400 = vmatprep.subr.mxu0 0.0
    %7401 = vmatpush1.xpose.msra.mxu0 0.0
    %7402 = vmatprep.subr.mxu0 0.0
    %7403 = vmatpush1.xpose.msra.mxu0 0.0
    %7404 = vmatprep.subr.mxu0 0.0
    %7405 = vmatpush1.xpose.msra.mxu0 0.0
    %7406 = vmatprep.subr.mxu0 0.0
    %7407 = vmatpush1.xpose.msra.mxu0 0.0
    %7408 = vmatprep.subr.mxu0 0.0
    %7409 = vmatpush1.xpose.msra.mxu0 0.0
    %7410 = vmatprep.subr.mxu0 0.0
    %7411 = vmatpush1.xpose.msra.mxu0 0.0
    %7412 = vmatprep.subr.mxu0 0.0
    %7413 = vmatpush1.xpose.msra.mxu0 0.0
    %7414 = vmatprep.subr.mxu0 0.0
    %7415 = vmatpush1.xpose.msra.mxu0 0.0
    %7416 = vmatprep.subr.mxu0 0.0
    %7417 = vmatpush1.xpose.msra.mxu0 0.0
    %7418 = vmatprep.subr.mxu0 0.0
    %7419 = vmatpush1.xpose.msra.mxu0 0.0
    %7420 = vmatprep.subr.mxu0 0.0
    %7421 = vmatpush1.xpose.msra.mxu0 0.0
    %7422 = vmatprep.subr.mxu0 0.0
    %7423 = vmatpush1.xpose.msra.mxu0 0.0
    %7424 = vmatprep.subr.mxu0 0.0
    %7425 = vmatpush1.xpose.msra.mxu0 0.0
    %7426 = vmatprep.subr.mxu0 0.0
    %7427 = vmatpush1.xpose.msra.mxu0 0.0
    %7428 = vmatprep.subr.mxu0 0.0
    %7429 = vmatpush1.xpose.msra.mxu0 0.0
    %7430 = vmatprep.subr.mxu0 0.0
    %7431 = vmatpush1.xpose.msra.mxu0 0.0
    %7432 = vmatprep.subr.mxu0 0.0
    %7433 = vmatpush1.xpose.msra.mxu0 0.0
    %7434 = vmatprep.subr.mxu0 0.0
    %7435 = vmatpush1.xpose.msra.mxu0 0.0
    %7436 = vmatprep.subr.mxu0 0.0
    %7437 = vmatpush1.xpose.msra.mxu0 0.0
    %7438 = vmatprep.subr.mxu0 0.0
    %7439 = vmatpush1.xpose.msra.mxu0 0.0
    %7440 = vmatprep.subr.mxu0 0.0
    %7441 = vmatpush1.xpose.msra.mxu0 0.0
    %7442 = vmatprep.subr.mxu0 0.0
    %7443 = vmatpush1.xpose.msra.mxu0 0.0
    %7444 = vmatprep.subr.mxu0 0.0
    %7445 = vmatpush1.xpose.msra.mxu0 0.0
    %7446 = vmatprep.subr.mxu0 0.0
    %7447 = vmatpush1.xpose.msra.mxu0 0.0
    %7448 = vmatprep.subr.mxu0 0.0
    %7449 = vmatpush1.xpose.msra.mxu0 0.0
    %7450 = vmatprep.subr.mxu0 0.0
    %7451 = vmatpush1.xpose.msra.mxu0 0.0
    %7452 = vmatprep.subr.mxu0 0.0
    %7453 = vmatpush1.xpose.msra.mxu0 0.0
    %7454 = vmatprep.subr.mxu0 0.0
    %7455 = vmatpush1.xpose.msra.mxu0 0.0
    %7456 = vmatprep.subr.mxu0 0.0
    %7457 = vmatpush1.xpose.msra.mxu0 0.0
    %7458 = vmatprep.mubr.f32.mxu0 0.0
    %7459 = vmatmul.mubr.f32.gmra.mrb[0].mxu0 %v7383
    %v7460 = vpop.f32.mrb[0].mxu0
    %v7461 = vadd.f32 %v323, %v7460
    %v7462 = vpop.f32.mrb[0].mxu0
    %7463 = vmatprep.mubr.f32.mxu0 0.0
    %7464 = vmatmul.mubr.f32.gmra.mrb[0].mxu0 %v7386
    %v7465 = vpop.f32.mrb[0].mxu0
    %v7466 = vadd.f32 %v324, %v7465
    %v7467 = vpop.f32.mrb[0].mxu0
    %7468 = vdwg.mxu0
    %v7470 = vsel %vm832, %v7006, 0
    %v7473 = vsel %vm832, %v7011, 0
    %v7476 = vsel %vm832, %v7160, 0
    %v7479 = vsel %vm832, %v7165, 0
    %7481 = vmatprep.subr.mxu0 0.0
    %7482 = vmatpush1.xpose.msra.mxu0 %v7476
    %7483 = vmatprep.subr.mxu0 0.0
    %7484 = vmatpush1.xpose.msra.mxu0 %v7479
    %7485 = vmatprep.subr.mxu0 0.0
    %7486 = vmatpush1.xpose.msra.mxu0 0.0
    %7487 = vmatprep.subr.mxu0 0.0
    %7488 = vmatpush1.xpose.msra.mxu0 0.0
    %7489 = vmatprep.subr.mxu0 0.0
    %7490 = vmatpush1.xpose.msra.mxu0 0.0
    %7491 = vmatprep.subr.mxu0 0.0
    %7492 = vmatpush1.xpose.msra.mxu0 0.0
    %7493 = vmatprep.subr.mxu0 0.0
    %7494 = vmatpush1.xpose.msra.mxu0 0.0
    %7495 = vmatprep.subr.mxu0 0.0
    %7496 = vmatpush1.xpose.msra.mxu0 0.0
    %7497 = vmatprep.subr.mxu0 0.0
    %7498 = vmatpush1.xpose.msra.mxu0 0.0
    %7499 = vmatprep.subr.mxu0 0.0
    %7500 = vmatpush1.xpose.msra.mxu0 0.0
    %7501 = vmatprep.subr.mxu0 0.0
    %7502 = vmatpush1.xpose.msra.mxu0 0.0
    %7503 = vmatprep.subr.mxu0 0.0
    %7504 = vmatpush1.xpose.msra.mxu0 0.0
    %7505 = vmatprep.subr.mxu0 0.0
    %7506 = vmatpush1.xpose.msra.mxu0 0.0
    %7507 = vmatprep.subr.mxu0 0.0
    %7508 = vmatpush1.xpose.msra.mxu0 0.0
    %7509 = vmatprep.subr.mxu0 0.0
    %7510 = vmatpush1.xpose.msra.mxu0 0.0
    %7511 = vmatprep.subr.mxu0 0.0
    %7512 = vmatpush1.xpose.msra.mxu0 0.0
    %7513 = vmatprep.subr.mxu0 0.0
    %7514 = vmatpush1.xpose.msra.mxu0 0.0
    %7515 = vmatprep.subr.mxu0 0.0
    %7516 = vmatpush1.xpose.msra.mxu0 0.0
    %7517 = vmatprep.subr.mxu0 0.0
    %7518 = vmatpush1.xpose.msra.mxu0 0.0
    %7519 = vmatprep.subr.mxu0 0.0
    %7520 = vmatpush1.xpose.msra.mxu0 0.0
    %7521 = vmatprep.subr.mxu0 0.0
    %7522 = vmatpush1.xpose.msra.mxu0 0.0
    %7523 = vmatprep.subr.mxu0 0.0
    %7524 = vmatpush1.xpose.msra.mxu0 0.0
    %7525 = vmatprep.subr.mxu0 0.0
    %7526 = vmatpush1.xpose.msra.mxu0 0.0
    %7527 = vmatprep.subr.mxu0 0.0
    %7528 = vmatpush1.xpose.msra.mxu0 0.0
    %7529 = vmatprep.subr.mxu0 0.0
    %7530 = vmatpush1.xpose.msra.mxu0 0.0
    %7531 = vmatprep.subr.mxu0 0.0
    %7532 = vmatpush1.xpose.msra.mxu0 0.0
    %7533 = vmatprep.subr.mxu0 0.0
    %7534 = vmatpush1.xpose.msra.mxu0 0.0
    %7535 = vmatprep.subr.mxu0 0.0
    %7536 = vmatpush1.xpose.msra.mxu0 0.0
    %7537 = vmatprep.subr.mxu0 0.0
    %7538 = vmatpush1.xpose.msra.mxu0 0.0
    %7539 = vmatprep.subr.mxu0 0.0
    %7540 = vmatpush1.xpose.msra.mxu0 0.0
    %7541 = vmatprep.subr.mxu0 0.0
    %7542 = vmatpush1.xpose.msra.mxu0 0.0
    %7543 = vmatprep.subr.mxu0 0.0
    %7544 = vmatpush1.xpose.msra.mxu0 0.0
    %7545 = vmatprep.mubr.f32.mxu0 0.0
    %7546 = vmatmul.mubr.f32.gmra.mrb[0].mxu0 %v7470
    %v7547 = vpop.f32.mrb[0].mxu0
    %v7548 = vadd.f32 %v323, %v7547
    %v7549 = vpop.f32.mrb[0].mxu0
    %7550 = vmatprep.mubr.f32.mxu0 0.0
    %7551 = vmatmul.mubr.f32.gmra.mrb[0].mxu0 %v7473
    %v7552 = vpop.f32.mrb[0].mxu0
    %v7553 = vadd.f32 %v324, %v7552
    %v7554 = vpop.f32.mrb[0].mxu0
    %7555 = vdwg.mxu0
    %v7557 = vsel %vm832, %v7016, 0
    %v7560 = vsel %vm832, %v7021, 0
    %v7563 = vsel %vm832, %v7170, 0
    %v7566 = vsel %vm832, %v7175, 0
    %7568 = vmatprep.subr.mxu0 0.0
    %7569 = vmatpush1.xpose.msra.mxu0 %v7563
    %7570 = vmatprep.subr.mxu0 0.0
    %7571 = vmatpush1.xpose.msra.mxu0 %v7566
    %7572 = vmatprep.subr.mxu0 0.0
    %7573 = vmatpush1.xpose.msra.mxu0 0.0
    %7574 = vmatprep.subr.mxu0 0.0
    %7575 = vmatpush1.xpose.msra.mxu0 0.0
    %7576 = vmatprep.subr.mxu0 0.0
    %7577 = vmatpush1.xpose.msra.mxu0 0.0
    %7578 = vmatprep.subr.mxu0 0.0
    %7579 = vmatpush1.xpose.msra.mxu0 0.0
    %7580 = vmatprep.subr.mxu0 0.0
    %7581 = vmatpush1.xpose.msra.mxu0 0.0
    %7582 = vmatprep.subr.mxu0 0.0
    %7583 = vmatpush1.xpose.msra.mxu0 0.0
    %7584 = vmatprep.subr.mxu0 0.0
    %7585 = vmatpush1.xpose.msra.mxu0 0.0
    %7586 = vmatprep.subr.mxu0 0.0
    %7587 = vmatpush1.xpose.msra.mxu0 0.0
    %7588 = vmatprep.subr.mxu0 0.0
    %7589 = vmatpush1.xpose.msra.mxu0 0.0
    %7590 = vmatprep.subr.mxu0 0.0
    %7591 = vmatpush1.xpose.msra.mxu0 0.0
    %7592 = vmatprep.subr.mxu0 0.0
    %7593 = vmatpush1.xpose.msra.mxu0 0.0
    %7594 = vmatprep.subr.mxu0 0.0
    %7595 = vmatpush1.xpose.msra.mxu0 0.0
    %7596 = vmatprep.subr.mxu0 0.0
    %7597 = vmatpush1.xpose.msra.mxu0 0.0
    %7598 = vmatprep.subr.mxu0 0.0
    %7599 = vmatpush1.xpose.msra.mxu0 0.0
    %7600 = vmatprep.subr.mxu0 0.0
    %7601 = vmatpush1.xpose.msra.mxu0 0.0
    %7602 = vmatprep.subr.mxu0 0.0
    %7603 = vmatpush1.xpose.msra.mxu0 0.0
    %7604 = vmatprep.subr.mxu0 0.0
    %7605 = vmatpush1.xpose.msra.mxu0 0.0
    %7606 = vmatprep.subr.mxu0 0.0
    %7607 = vmatpush1.xpose.msra.mxu0 0.0
    %7608 = vmatprep.subr.mxu0 0.0
    %7609 = vmatpush1.xpose.msra.mxu0 0.0
    %7610 = vmatprep.subr.mxu0 0.0
    %7611 = vmatpush1.xpose.msra.mxu0 0.0
    %7612 = vmatprep.subr.mxu0 0.0
    %7613 = vmatpush1.xpose.msra.mxu0 0.0
    %7614 = vmatprep.subr.mxu0 0.0
    %7615 = vmatpush1.xpose.msra.mxu0 0.0
    %7616 = vmatprep.subr.mxu0 0.0
    %7617 = vmatpush1.xpose.msra.mxu0 0.0
    %7618 = vmatprep.subr.mxu0 0.0
    %7619 = vmatpush1.xpose.msra.mxu0 0.0
    %7620 = vmatprep.subr.mxu0 0.0
    %7621 = vmatpush1.xpose.msra.mxu0 0.0
    %7622 = vmatprep.subr.mxu0 0.0
    %7623 = vmatpush1.xpose.msra.mxu0 0.0
    %7624 = vmatprep.subr.mxu0 0.0
    %7625 = vmatpush1.xpose.msra.mxu0 0.0
    %7626 = vmatprep.subr.mxu0 0.0
    %7627 = vmatpush1.xpose.msra.mxu0 0.0
    %7628 = vmatprep.subr.mxu0 0.0
    %7629 = vmatpush1.xpose.msra.mxu0 0.0
    %7630 = vmatprep.subr.mxu0 0.0
    %7631 = vmatpush1.xpose.msra.mxu0 0.0
    %7632 = vmatprep.mubr.f32.mxu0 0.0
    %7633 = vmatmul.mubr.f32.gmra.mrb[0].mxu0 %v7557
    %v7634 = vpop.f32.mrb[0].mxu0
    %v7635 = vadd.f32 %v323, %v7634
    %v7636 = vpop.f32.mrb[0].mxu0
    %7637 = vmatprep.mubr.f32.mxu0 0.0
    %7638 = vmatmul.mubr.f32.gmra.mrb[0].mxu0 %v7560
    %v7639 = vpop.f32.mrb[0].mxu0
    %v7640 = vadd.f32 %v324, %v7639
    %v7641 = vpop.f32.mrb[0].mxu0
    %7642 = vdwg.mxu0
    %v7644 = vsel %vm832, %v7026, 0
    %v7647 = vsel %vm832, %v7031, 0
    %v7650 = vsel %vm832, %v7180, 0
    %v7653 = vsel %vm832, %v7185, 0
    %7655 = vmatprep.subr.mxu0 0.0
    %7656 = vmatpush1.xpose.msra.mxu0 %v7650
    %7657 = vmatprep.subr.mxu0 0.0
    %7658 = vmatpush1.xpose.msra.mxu0 %v7653
    %7659 = vmatprep.subr.mxu0 0.0
    %7660 = vmatpush1.xpose.msra.mxu0 0.0
    %7661 = vmatprep.subr.mxu0 0.0
    %7662 = vmatpush1.xpose.msra.mxu0 0.0
    %7663 = vmatprep.subr.mxu0 0.0
    %7664 = vmatpush1.xpose.msra.mxu0 0.0
    %7665 = vmatprep.subr.mxu0 0.0
    %7666 = vmatpush1.xpose.msra.mxu0 0.0
    %7667 = vmatprep.subr.mxu0 0.0
    %7668 = vmatpush1.xpose.msra.mxu0 0.0
    %7669 = vmatprep.subr.mxu0 0.0
    %7670 = vmatpush1.xpose.msra.mxu0 0.0
    %7671 = vmatprep.subr.mxu0 0.0
    %7672 = vmatpush1.xpose.msra.mxu0 0.0
    %7673 = vmatprep.subr.mxu0 0.0
    %7674 = vmatpush1.xpose.msra.mxu0 0.0
    %7675 = vmatprep.subr.mxu0 0.0
    %7676 = vmatpush1.xpose.msra.mxu0 0.0
    %7677 = vmatprep.subr.mxu0 0.0
    %7678 = vmatpush1.xpose.msra.mxu0 0.0
    %7679 = vmatprep.subr.mxu0 0.0
    %7680 = vmatpush1.xpose.msra.mxu0 0.0
    %7681 = vmatprep.subr.mxu0 0.0
    %7682 = vmatpush1.xpose.msra.mxu0 0.0
    %7683 = vmatprep.subr.mxu0 0.0
    %7684 = vmatpush1.xpose.msra.mxu0 0.0
    %7685 = vmatprep.subr.mxu0 0.0
    %7686 = vmatpush1.xpose.msra.mxu0 0.0
    %7687 = vmatprep.subr.mxu0 0.0
    %7688 = vmatpush1.xpose.msra.mxu0 0.0
    %7689 = vmatprep.subr.mxu0 0.0
    %7690 = vmatpush1.xpose.msra.mxu0 0.0
    %7691 = vmatprep.subr.mxu0 0.0
    %7692 = vmatpush1.xpose.msra.mxu0 0.0
    %7693 = vmatprep.subr.mxu0 0.0
    %7694 = vmatpush1.xpose.msra.mxu0 0.0
    %7695 = vmatprep.subr.mxu0 0.0
    %7696 = vmatpush1.xpose.msra.mxu0 0.0
    %7697 = vmatprep.subr.mxu0 0.0
    %7698 = vmatpush1.xpose.msra.mxu0 0.0
    %7699 = vmatprep.subr.mxu0 0.0
    %7700 = vmatpush1.xpose.msra.mxu0 0.0
    %7701 = vmatprep.subr.mxu0 0.0
    %7702 = vmatpush1.xpose.msra.mxu0 0.0
    %7703 = vmatprep.subr.mxu0 0.0
    %7704 = vmatpush1.xpose.msra.mxu0 0.0
    %7705 = vmatprep.subr.mxu0 0.0
    %7706 = vmatpush1.xpose.msra.mxu0 0.0
    %7707 = vmatprep.subr.mxu0 0.0
    %7708 = vmatpush1.xpose.msra.mxu0 0.0
    %7709 = vmatprep.subr.mxu0 0.0
    %7710 = vmatpush1.xpose.msra.mxu0 0.0
    %7711 = vmatprep.subr.mxu0 0.0
    %7712 = vmatpush1.xpose.msra.mxu0 0.0
    %7713 = vmatprep.subr.mxu0 0.0
    %7714 = vmatpush1.xpose.msra.mxu0 0.0
    %7715 = vmatprep.subr.mxu0 0.0
    %7716 = vmatpush1.xpose.msra.mxu0 0.0
    %7717 = vmatprep.subr.mxu0 0.0
    %7718 = vmatpush1.xpose.msra.mxu0 0.0
    %7719 = vmatprep.mubr.f32.mxu0 0.0
    %7720 = vmatmul.mubr.f32.gmra.mrb[0].mxu0 %v7644
    %v7721 = vpop.f32.mrb[0].mxu0
    %v7722 = vadd.f32 %v323, %v7721
    %v7723 = vpop.f32.mrb[0].mxu0
    %7724 = vmatprep.mubr.f32.mxu0 0.0
    %7725 = vmatmul.mubr.f32.gmra.mrb[0].mxu0 %v7647
    %v7726 = vpop.f32.mrb[0].mxu0
    %v7727 = vadd.f32 %v324, %v7726
    %v7728 = vpop.f32.mrb[0].mxu0
    %7729 = vdwg.mxu0
    %v7731 = vsel %vm832, %v7036, 0
    %v7734 = vsel %vm832, %v7041, 0
    %v7737 = vsel %vm832, %v7190, 0
    %v7740 = vsel %vm832, %v7195, 0
    %7742 = vmatprep.subr.mxu0 0.0
    %7743 = vmatpush1.xpose.msra.mxu0 %v7737
    %7744 = vmatprep.subr.mxu0 0.0
    %7745 = vmatpush1.xpose.msra.mxu0 %v7740
    %7746 = vmatprep.subr.mxu0 0.0
    %7747 = vmatpush1.xpose.msra.mxu0 0.0
    %7748 = vmatprep.subr.mxu0 0.0
    %7749 = vmatpush1.xpose.msra.mxu0 0.0
    %7750 = vmatprep.subr.mxu0 0.0
    %7751 = vmatpush1.xpose.msra.mxu0 0.0
    %7752 = vmatprep.subr.mxu0 0.0
    %7753 = vmatpush1.xpose.msra.mxu0 0.0
    %7754 = vmatprep.subr.mxu0 0.0
    %7755 = vmatpush1.xpose.msra.mxu0 0.0
    %7756 = vmatprep.subr.mxu0 0.0
    %7757 = vmatpush1.xpose.msra.mxu0 0.0
    %7758 = vmatprep.subr.mxu0 0.0
    %7759 = vmatpush1.xpose.msra.mxu0 0.0
    %7760 = vmatprep.subr.mxu0 0.0
    %7761 = vmatpush1.xpose.msra.mxu0 0.0
    %7762 = vmatprep.subr.mxu0 0.0
    %7763 = vmatpush1.xpose.msra.mxu0 0.0
    %7764 = vmatprep.subr.mxu0 0.0
    %7765 = vmatpush1.xpose.msra.mxu0 0.0
    %7766 = vmatprep.subr.mxu0 0.0
    %7767 = vmatpush1.xpose.msra.mxu0 0.0
    %7768 = vmatprep.subr.mxu0 0.0
    %7769 = vmatpush1.xpose.msra.mxu0 0.0
    %7770 = vmatprep.subr.mxu0 0.0
    %7771 = vmatpush1.xpose.msra.mxu0 0.0
    %7772 = vmatprep.subr.mxu0 0.0
    %7773 = vmatpush1.xpose.msra.mxu0 0.0
    %7774 = vmatprep.subr.mxu0 0.0
    %7775 = vmatpush1.xpose.msra.mxu0 0.0
    %7776 = vmatprep.subr.mxu0 0.0
    %7777 = vmatpush1.xpose.msra.mxu0 0.0
    %7778 = vmatprep.subr.mxu0 0.0
    %7779 = vmatpush1.xpose.msra.mxu0 0.0
    %7780 = vmatprep.subr.mxu0 0.0
    %7781 = vmatpush1.xpose.msra.mxu0 0.0
    %7782 = vmatprep.subr.mxu0 0.0
    %7783 = vmatpush1.xpose.msra.mxu0 0.0
    %7784 = vmatprep.subr.mxu0 0.0
    %7785 = vmatpush1.xpose.msra.mxu0 0.0
    %7786 = vmatprep.subr.mxu0 0.0
    %7787 = vmatpush1.xpose.msra.mxu0 0.0
    %7788 = vmatprep.subr.mxu0 0.0
    %7789 = vmatpush1.xpose.msra.mxu0 0.0
    %7790 = vmatprep.subr.mxu0 0.0
    %7791 = vmatpush1.xpose.msra.mxu0 0.0
    %7792 = vmatprep.subr.mxu0 0.0
    %7793 = vmatpush1.xpose.msra.mxu0 0.0
    %7794 = vmatprep.subr.mxu0 0.0
    %7795 = vmatpush1.xpose.msra.mxu0 0.0
    %7796 = vmatprep.subr.mxu0 0.0
    %7797 = vmatpush1.xpose.msra.mxu0 0.0
    %7798 = vmatprep.subr.mxu0 0.0
    %7799 = vmatpush1.xpose.msra.mxu0 0.0
    %7800 = vmatprep.subr.mxu0 0.0
    %7801 = vmatpush1.xpose.msra.mxu0 0.0
    %7802 = vmatprep.subr.mxu0 0.0
    %7803 = vmatpush1.xpose.msra.mxu0 0.0
    %7804 = vmatprep.subr.mxu0 0.0
    %7805 = vmatpush1.xpose.msra.mxu0 0.0
    %7806 = vmatprep.mubr.f32.mxu0 0.0
    %7807 = vmatmul.mubr.f32.gmra.mrb[0].mxu0 %v7731
    %v7808 = vpop.f32.mrb[0].mxu0
    %v7809 = vadd.f32 %v323, %v7808
    %v7810 = vpop.f32.mrb[0].mxu0
    %7811 = vmatprep.mubr.f32.mxu0 0.0
    %7812 = vmatmul.mubr.f32.gmra.mrb[0].mxu0 %v7734
    %v7813 = vpop.f32.mrb[0].mxu0
    %v7814 = vadd.f32 %v324, %v7813
    %v7815 = vpop.f32.mrb[0].mxu0
    %7816 = vdwg.mxu0
    %v7818 = vsel %vm832, %v7046, 0
    %v7821 = vsel %vm832, %v7051, 0
    %v7824 = vsel %vm832, %v7200, 0
    %v7827 = vsel %vm832, %v7205, 0
    %7829 = vmatprep.subr.mxu0 0.0
    %7830 = vmatpush1.xpose.msra.mxu0 %v7824
    %7831 = vmatprep.subr.mxu0 0.0
    %7832 = vmatpush1.xpose.msra.mxu0 %v7827
    %7833 = vmatprep.subr.mxu0 0.0
    %7834 = vmatpush1.xpose.msra.mxu0 0.0
    %7835 = vmatprep.subr.mxu0 0.0
    %7836 = vmatpush1.xpose.msra.mxu0 0.0
    %7837 = vmatprep.subr.mxu0 0.0
    %7838 = vmatpush1.xpose.msra.mxu0 0.0
    %7839 = vmatprep.subr.mxu0 0.0
    %7840 = vmatpush1.xpose.msra.mxu0 0.0
    %7841 = vmatprep.subr.mxu0 0.0
    %7842 = vmatpush1.xpose.msra.mxu0 0.0
    %7843 = vmatprep.subr.mxu0 0.0
    %7844 = vmatpush1.xpose.msra.mxu0 0.0
    %7845 = vmatprep.subr.mxu0 0.0
    %7846 = vmatpush1.xpose.msra.mxu0 0.0
    %7847 = vmatprep.subr.mxu0 0.0
    %7848 = vmatpush1.xpose.msra.mxu0 0.0
    %7849 = vmatprep.subr.mxu0 0.0
    %7850 = vmatpush1.xpose.msra.mxu0 0.0
    %7851 = vmatprep.subr.mxu0 0.0
    %7852 = vmatpush1.xpose.msra.mxu0 0.0
    %7853 = vmatprep.subr.mxu0 0.0
    %7854 = vmatpush1.xpose.msra.mxu0 0.0
    %7855 = vmatprep.subr.mxu0 0.0
    %7856 = vmatpush1.xpose.msra.mxu0 0.0
    %7857 = vmatprep.subr.mxu0 0.0
    %7858 = vmatpush1.xpose.msra.mxu0 0.0
    %7859 = vmatprep.subr.mxu0 0.0
    %7860 = vmatpush1.xpose.msra.mxu0 0.0
    %7861 = vmatprep.subr.mxu0 0.0
    %7862 = vmatpush1.xpose.msra.mxu0 0.0
    %7863 = vmatprep.subr.mxu0 0.0
    %7864 = vmatpush1.xpose.msra.mxu0 0.0
    %7865 = vmatprep.subr.mxu0 0.0
    %7866 = vmatpush1.xpose.msra.mxu0 0.0
    %7867 = vmatprep.subr.mxu0 0.0
    %7868 = vmatpush1.xpose.msra.mxu0 0.0
    %7869 = vmatprep.subr.mxu0 0.0
    %7870 = vmatpush1.xpose.msra.mxu0 0.0
    %7871 = vmatprep.subr.mxu0 0.0
    %7872 = vmatpush1.xpose.msra.mxu0 0.0
    %7873 = vmatprep.subr.mxu0 0.0
    %7874 = vmatpush1.xpose.msra.mxu0 0.0
    %7875 = vmatprep.subr.mxu0 0.0
    %7876 = vmatpush1.xpose.msra.mxu0 0.0
    %7877 = vmatprep.subr.mxu0 0.0
    %7878 = vmatpush1.xpose.msra.mxu0 0.0
    %7879 = vmatprep.subr.mxu0 0.0
    %7880 = vmatpush1.xpose.msra.mxu0 0.0
    %7881 = vmatprep.subr.mxu0 0.0
    %7882 = vmatpush1.xpose.msra.mxu0 0.0
    %7883 = vmatprep.subr.mxu0 0.0
    %7884 = vmatpush1.xpose.msra.mxu0 0.0
    %7885 = vmatprep.subr.mxu0 0.0
    %7886 = vmatpush1.xpose.msra.mxu0 0.0
    %7887 = vmatprep.subr.mxu0 0.0
    %7888 = vmatpush1.xpose.msra.mxu0 0.0
    %7889 = vmatprep.subr.mxu0 0.0
    %7890 = vmatpush1.xpose.msra.mxu0 0.0
    %7891 = vmatprep.subr.mxu0 0.0
    %7892 = vmatpush1.xpose.msra.mxu0 0.0
    %7893 = vmatprep.mubr.f32.mxu0 0.0
    %7894 = vmatmul.mubr.f32.gmra.mrb[0].mxu0 %v7818
    %v7895 = vpop.f32.mrb[0].mxu0
    %v7896 = vadd.f32 %v323, %v7895
    %v7897 = vpop.f32.mrb[0].mxu0
    %7898 = vmatprep.mubr.f32.mxu0 0.0
    %7899 = vmatmul.mubr.f32.gmra.mrb[0].mxu0 %v7821
    %v7900 = vpop.f32.mrb[0].mxu0
    %v7901 = vadd.f32 %v324, %v7900
    %v7902 = vpop.f32.mrb[0].mxu0
    %7903 = vdwg.mxu0
    %v7905 = vsel %vm832, %v7056, 0
    %v7908 = vsel %vm832, %v7061, 0
    %v7911 = vsel %vm832, %v7210, 0
    %v7914 = vsel %vm832, %v7215, 0
    %7916 = vmatprep.subr.mxu0 0.0
    %7917 = vmatpush1.xpose.msra.mxu0 %v7911
    %7918 = vmatprep.subr.mxu0 0.0
    %7919 = vmatpush1.xpose.msra.mxu0 %v7914
    %7920 = vmatprep.subr.mxu0 0.0
    %7921 = vmatpush1.xpose.msra.mxu0 0.0
    %7922 = vmatprep.subr.mxu0 0.0
    %7923 = vmatpush1.xpose.msra.mxu0 0.0
    %7924 = vmatprep.subr.mxu0 0.0
    %7925 = vmatpush1.xpose.msra.mxu0 0.0
    %7926 = vmatprep.subr.mxu0 0.0
    %7927 = vmatpush1.xpose.msra.mxu0 0.0
    %7928 = vmatprep.subr.mxu0 0.0
    %7929 = vmatpush1.xpose.msra.mxu0 0.0
    %7930 = vmatprep.subr.mxu0 0.0
    %7931 = vmatpush1.xpose.msra.mxu0 0.0
    %7932 = vmatprep.subr.mxu0 0.0
    %7933 = vmatpush1.xpose.msra.mxu0 0.0
    %7934 = vmatprep.subr.mxu0 0.0
    %7935 = vmatpush1.xpose.msra.mxu0 0.0
    %7936 = vmatprep.subr.mxu0 0.0
    %7937 = vmatpush1.xpose.msra.mxu0 0.0
    %7938 = vmatprep.subr.mxu0 0.0
    %7939 = vmatpush1.xpose.msra.mxu0 0.0
    %7940 = vmatprep.subr.mxu0 0.0
    %7941 = vmatpush1.xpose.msra.mxu0 0.0
    %7942 = vmatprep.subr.mxu0 0.0
    %7943 = vmatpush1.xpose.msra.mxu0 0.0
    %7944 = vmatprep.subr.mxu0 0.0
    %7945 = vmatpush1.xpose.msra.mxu0 0.0
    %7946 = vmatprep.subr.mxu0 0.0
    %7947 = vmatpush1.xpose.msra.mxu0 0.0
    %7948 = vmatprep.subr.mxu0 0.0
    %7949 = vmatpush1.xpose.msra.mxu0 0.0
    %7950 = vmatprep.subr.mxu0 0.0
    %7951 = vmatpush1.xpose.msra.mxu0 0.0
    %7952 = vmatprep.subr.mxu0 0.0
    %7953 = vmatpush1.xpose.msra.mxu0 0.0
    %7954 = vmatprep.subr.mxu0 0.0
    %7955 = vmatpush1.xpose.msra.mxu0 0.0
    %7956 = vmatprep.subr.mxu0 0.0
    %7957 = vmatpush1.xpose.msra.mxu0 0.0
    %7958 = vmatprep.subr.mxu0 0.0
    %7959 = vmatpush1.xpose.msra.mxu0 0.0
    %7960 = vmatprep.subr.mxu0 0.0
    %7961 = vmatpush1.xpose.msra.mxu0 0.0
    %7962 = vmatprep.subr.mxu0 0.0
    %7963 = vmatpush1.xpose.msra.mxu0 0.0
    %7964 = vmatprep.subr.mxu0 0.0
    %7965 = vmatpush1.xpose.msra.mxu0 0.0
    %7966 = vmatprep.subr.mxu0 0.0
    %7967 = vmatpush1.xpose.msra.mxu0 0.0
    %7968 = vmatprep.subr.mxu0 0.0
    %7969 = vmatpush1.xpose.msra.mxu0 0.0
    %7970 = vmatprep.subr.mxu0 0.0
    %7971 = vmatpush1.xpose.msra.mxu0 0.0
    %7972 = vmatprep.subr.mxu0 0.0
    %7973 = vmatpush1.xpose.msra.mxu0 0.0
    %7974 = vmatprep.subr.mxu0 0.0
    %7975 = vmatpush1.xpose.msra.mxu0 0.0
    %7976 = vmatprep.subr.mxu0 0.0
    %7977 = vmatpush1.xpose.msra.mxu0 0.0
    %7978 = vmatprep.subr.mxu0 0.0
    %7979 = vmatpush1.xpose.msra.mxu0 0.0
    %7980 = vmatprep.mubr.f32.mxu0 0.0
    %7981 = vmatmul.mubr.f32.gmra.mrb[0].mxu0 %v7905
    %v7982 = vpop.f32.mrb[0].mxu0
    %v7983 = vadd.f32 %v323, %v7982
    %v7984 = vpop.f32.mrb[0].mxu0
    %7985 = vmatprep.mubr.f32.mxu0 0.0
    %7986 = vmatmul.mubr.f32.gmra.mrb[0].mxu0 %v7908
    %v7987 = vpop.f32.mrb[0].mxu0
    %v7988 = vadd.f32 %v324, %v7987
    %v7989 = vpop.f32.mrb[0].mxu0
    %7990 = vdwg.mxu0
    %v7992 = vsel %vm832, %v7066, 0
    %v7995 = vsel %vm832, %v7071, 0
    %v7998 = vsel %vm832, %v7220, 0
    %v8001 = vsel %vm832, %v7225, 0
    %8003 = vmatprep.subr.mxu0 0.0
    %8004 = vmatpush1.xpose.msra.mxu0 %v7998
    %8005 = vmatprep.subr.mxu0 0.0
    %8006 = vmatpush1.xpose.msra.mxu0 %v8001
    %8007 = vmatprep.subr.mxu0 0.0
    %8008 = vmatpush1.xpose.msra.mxu0 0.0
    %8009 = vmatprep.subr.mxu0 0.0
    %8010 = vmatpush1.xpose.msra.mxu0 0.0
    %8011 = vmatprep.subr.mxu0 0.0
    %8012 = vmatpush1.xpose.msra.mxu0 0.0
    %8013 = vmatprep.subr.mxu0 0.0
    %8014 = vmatpush1.xpose.msra.mxu0 0.0
    %8015 = vmatprep.subr.mxu0 0.0
    %8016 = vmatpush1.xpose.msra.mxu0 0.0
    %8017 = vmatprep.subr.mxu0 0.0
    %8018 = vmatpush1.xpose.msra.mxu0 0.0
    %8019 = vmatprep.subr.mxu0 0.0
    %8020 = vmatpush1.xpose.msra.mxu0 0.0
    %8021 = vmatprep.subr.mxu0 0.0
    %8022 = vmatpush1.xpose.msra.mxu0 0.0
    %8023 = vmatprep.subr.mxu0 0.0
    %8024 = vmatpush1.xpose.msra.mxu0 0.0
    %8025 = vmatprep.subr.mxu0 0.0
    %8026 = vmatpush1.xpose.msra.mxu0 0.0
    %8027 = vmatprep.subr.mxu0 0.0
    %8028 = vmatpush1.xpose.msra.mxu0 0.0
    %8029 = vmatprep.subr.mxu0 0.0
    %8030 = vmatpush1.xpose.msra.mxu0 0.0
    %8031 = vmatprep.subr.mxu0 0.0
    %8032 = vmatpush1.xpose.msra.mxu0 0.0
    %8033 = vmatprep.subr.mxu0 0.0
    %8034 = vmatpush1.xpose.msra.mxu0 0.0
    %8035 = vmatprep.subr.mxu0 0.0
    %8036 = vmatpush1.xpose.msra.mxu0 0.0
    %8037 = vmatprep.subr.mxu0 0.0
    %8038 = vmatpush1.xpose.msra.mxu0 0.0
    %8039 = vmatprep.subr.mxu0 0.0
    %8040 = vmatpush1.xpose.msra.mxu0 0.0
    %8041 = vmatprep.subr.mxu0 0.0
    %8042 = vmatpush1.xpose.msra.mxu0 0.0
    %8043 = vmatprep.subr.mxu0 0.0
    %8044 = vmatpush1.xpose.msra.mxu0 0.0
    %8045 = vmatprep.subr.mxu0 0.0
    %8046 = vmatpush1.xpose.msra.mxu0 0.0
    %8047 = vmatprep.subr.mxu0 0.0
    %8048 = vmatpush1.xpose.msra.mxu0 0.0
    %8049 = vmatprep.subr.mxu0 0.0
    %8050 = vmatpush1.xpose.msra.mxu0 0.0
    %8051 = vmatprep.subr.mxu0 0.0
    %8052 = vmatpush1.xpose.msra.mxu0 0.0
    %8053 = vmatprep.subr.mxu0 0.0
    %8054 = vmatpush1.xpose.msra.mxu0 0.0
    %8055 = vmatprep.subr.mxu0 0.0
    %8056 = vmatpush1.xpose.msra.mxu0 0.0
    %8057 = vmatprep.subr.mxu0 0.0
    %8058 = vmatpush1.xpose.msra.mxu0 0.0
    %8059 = vmatprep.subr.mxu0 0.0
    %8060 = vmatpush1.xpose.msra.mxu0 0.0
    %8061 = vmatprep.subr.mxu0 0.0
    %8062 = vmatpush1.xpose.msra.mxu0 0.0
    %8063 = vmatprep.subr.mxu0 0.0
    %8064 = vmatpush1.xpose.msra.mxu0 0.0
    %8065 = vmatprep.subr.mxu0 0.0
    %8066 = vmatpush1.xpose.msra.mxu0 0.0
    %8067 = vmatprep.mubr.f32.mxu0 0.0
    %8068 = vmatmul.mubr.f32.gmra.mrb[0].mxu0 %v7992
    %v8069 = vpop.f32.mrb[0].mxu0
    %v8070 = vadd.f32 %v323, %v8069
    %v8071 = vpop.f32.mrb[0].mxu0
    %8072 = vmatprep.mubr.f32.mxu0 0.0
    %8073 = vmatmul.mubr.f32.gmra.mrb[0].mxu0 %v7995
    %v8074 = vpop.f32.mrb[0].mxu0
    %v8075 = vadd.f32 %v324, %v8074
    %v8076 = vpop.f32.mrb[0].mxu0
    %8077 = vdwg.mxu0
    %v8078 = vsel %vm832, %v7461, -inf
    %8079 = vmax.xlane.f32.xlu0 %v8078
    %v8080 = vpop.xlane.xlu0 %8079
    %v8081 = vsel %vm832, %v7466, -inf
    %8082 = vmax.xlane.f32.xlu0 %v8081
    %v8083 = vpop.xlane.xlu0 %8082
    %v8084 = vsel %vm832, %v7548, -inf
    %8085 = vmax.xlane.f32.xlu0 %v8084
    %v8086 = vpop.xlane.xlu0 %8085
    %v8087 = vsel %vm832, %v7553, -inf
    %8088 = vmax.xlane.f32.xlu0 %v8087
    %v8089 = vpop.xlane.xlu0 %8088
    %v8090 = vsel %vm832, %v7635, -inf
    %8091 = vmax.xlane.f32.xlu0 %v8090
    %v8092 = vpop.xlane.xlu0 %8091
    %v8093 = vsel %vm832, %v7640, -inf
    %8094 = vmax.xlane.f32.xlu0 %v8093
    %v8095 = vpop.xlane.xlu0 %8094
    %v8096 = vsel %vm832, %v7722, -inf
    %8097 = vmax.xlane.f32.xlu0 %v8096
    %v8098 = vpop.xlane.xlu0 %8097
    %v8099 = vsel %vm832, %v7727, -inf
    %8100 = vmax.xlane.f32.xlu0 %v8099
    %v8101 = vpop.xlane.xlu0 %8100
    %v8102 = vsel %vm832, %v7809, -inf
    %8103 = vmax.xlane.f32.xlu0 %v8102
    %v8104 = vpop.xlane.xlu0 %8103
    %v8105 = vsel %vm832, %v7814, -inf
    %8106 = vmax.xlane.f32.xlu0 %v8105
    %v8107 = vpop.xlane.xlu0 %8106
    %v8108 = vsel %vm832, %v7896, -inf
    %8109 = vmax.xlane.f32.xlu0 %v8108
    %v8110 = vpop.xlane.xlu0 %8109
    %v8111 = vsel %vm832, %v7901, -inf
    %8112 = vmax.xlane.f32.xlu0 %v8111
    %v8113 = vpop.xlane.xlu0 %8112
    %v8114 = vsel %vm832, %v7983, -inf
    %8115 = vmax.xlane.f32.xlu0 %v8114
    %v8116 = vpop.xlane.xlu0 %8115
    %v8117 = vsel %vm832, %v7988, -inf
    %8118 = vmax.xlane.f32.xlu0 %v8117
    %v8119 = vpop.xlane.xlu0 %8118
    %v8120 = vsel %vm832, %v8070, -inf
    %8121 = vmax.xlane.f32.xlu0 %v8120
    %v8122 = vpop.xlane.xlu0 %8121
    %v8123 = vsel %vm832, %v8075, -inf
    %8124 = vmax.xlane.f32.xlu0 %v8123
    %v8125 = vpop.xlane.xlu0 %8124
    %v8126 = vsub.f32 %v7461, %v8080
    %v8127 = vsub.f32 %v7466, %v8083
    %v8128 = vsub.f32 %v7548, %v8086
    %v8129 = vsub.f32 %v7553, %v8089
    %v8130 = vsub.f32 %v7635, %v8092
    %v8131 = vsub.f32 %v7640, %v8095
    %v8132 = vsub.f32 %v7722, %v8098
    %v8133 = vsub.f32 %v7727, %v8101
    %v8134 = vsub.f32 %v7809, %v8104
    %v8135 = vsub.f32 %v7814, %v8107
    %v8136 = vsub.f32 %v7896, %v8110
    %v8137 = vsub.f32 %v7901, %v8113
    %v8138 = vsub.f32 %v7983, %v8116
    %v8139 = vsub.f32 %v7988, %v8119
    %v8140 = vsub.f32 %v8070, %v8122
    %v8141 = vsub.f32 %v8075, %v8125
    %v8142 = vmul.f32 %v8126, 1.442695
    %v8143 = vpow.pop %v8142
    %v8144 = vmul.f32 %v8127, 1.442695
    %v8145 = vpow.pop %v8144
    %v8146 = vmul.f32 %v8128, 1.442695
    %v8147 = vpow.pop %v8146
    %v8148 = vmul.f32 %v8129, 1.442695
    %v8149 = vpow.pop %v8148
    %v8150 = vmul.f32 %v8130, 1.442695
    %v8151 = vpow.pop %v8150
    %v8152 = vmul.f32 %v8131, 1.442695
    %v8153 = vpow.pop %v8152
    %v8154 = vmul.f32 %v8132, 1.442695
    %v8155 = vpow.pop %v8154
    %v8156 = vmul.f32 %v8133, 1.442695
    %v8157 = vpow.pop %v8156
    %v8158 = vmul.f32 %v8134, 1.442695
    %v8159 = vpow.pop %v8158
    %v8160 = vmul.f32 %v8135, 1.442695
    %v8161 = vpow.pop %v8160
    %v8162 = vmul.f32 %v8136, 1.442695
    %v8163 = vpow.pop %v8162
    %v8164 = vmul.f32 %v8137, 1.442695
    %v8165 = vpow.pop %v8164
    %v8166 = vmul.f32 %v8138, 1.442695
    %v8167 = vpow.pop %v8166
    %v8168 = vmul.f32 %v8139, 1.442695
    %v8169 = vpow.pop %v8168
    %v8170 = vmul.f32 %v8140, 1.442695
    %v8171 = vpow.pop %v8170
    %v8172 = vmul.f32 %v8141, 1.442695
    %v8173 = vpow.pop %v8172
    %v8174 = vsel %vm832, %v8143, 0.0
    %8175 = vadd.xlane.f32.xlu0 %v8174
    %v8176 = vpop.xlane.xlu0 %8175
    %v8177 = vsel %vm832, %v8145, 0.0
    %8178 = vadd.xlane.f32.xlu0 %v8177
    %v8179 = vpop.xlane.xlu0 %8178
    %v8180 = vsel %vm832, %v8147, 0.0
    %8181 = vadd.xlane.f32.xlu0 %v8180
    %v8182 = vpop.xlane.xlu0 %8181
    %v8183 = vsel %vm832, %v8149, 0.0
    %8184 = vadd.xlane.f32.xlu0 %v8183
    %v8185 = vpop.xlane.xlu0 %8184
    %v8186 = vsel %vm832, %v8151, 0.0
    %8187 = vadd.xlane.f32.xlu0 %v8186
    %v8188 = vpop.xlane.xlu0 %8187
    %v8189 = vsel %vm832, %v8153, 0.0
    %8190 = vadd.xlane.f32.xlu0 %v8189
    %v8191 = vpop.xlane.xlu0 %8190
    %v8192 = vsel %vm832, %v8155, 0.0
    %8193 = vadd.xlane.f32.xlu0 %v8192
    %v8194 = vpop.xlane.xlu0 %8193
    %v8195 = vsel %vm832, %v8157, 0.0
    %8196 = vadd.xlane.f32.xlu0 %v8195
    %v8197 = vpop.xlane.xlu0 %8196
    %v8198 = vsel %vm832, %v8159, 0.0
    %8199 = vadd.xlane.f32.xlu0 %v8198
    %v8200 = vpop.xlane.xlu0 %8199
    %v8201 = vsel %vm832, %v8161, 0.0
    %8202 = vadd.xlane.f32.xlu0 %v8201
    %v8203 = vpop.xlane.xlu0 %8202
    %v8204 = vsel %vm832, %v8163, 0.0
    %8205 = vadd.xlane.f32.xlu0 %v8204
    %v8206 = vpop.xlane.xlu0 %8205
    %v8207 = vsel %vm832, %v8165, 0.0
    %8208 = vadd.xlane.f32.xlu0 %v8207
    %v8209 = vpop.xlane.xlu0 %8208
    %v8210 = vsel %vm832, %v8167, 0.0
    %8211 = vadd.xlane.f32.xlu0 %v8210
    %v8212 = vpop.xlane.xlu0 %8211
    %v8213 = vsel %vm832, %v8169, 0.0
    %8214 = vadd.xlane.f32.xlu0 %v8213
    %v8215 = vpop.xlane.xlu0 %8214
    %v8216 = vsel %vm832, %v8171, 0.0
    %8217 = vadd.xlane.f32.xlu0 %v8216
    %v8218 = vpop.xlane.xlu0 %8217
    %v8219 = vsel %vm832, %v8173, 0.0
    %8220 = vadd.xlane.f32.xlu0 %v8219
    %v8221 = vpop.xlane.xlu0 %8220
    %v8222 = vrcp.pop %v8176
    %v8223 = vmul.f32 %v8143, %v8222
    %v8224 = vrcp.pop %v8179
    %v8225 = vmul.f32 %v8145, %v8224
    %v8226 = vrcp.pop %v8182
    %v8227 = vmul.f32 %v8147, %v8226
    %v8228 = vrcp.pop %v8185
    %v8229 = vmul.f32 %v8149, %v8228
    %v8230 = vrcp.pop %v8188
    %v8231 = vmul.f32 %v8151, %v8230
    %v8232 = vrcp.pop %v8191
    %v8233 = vmul.f32 %v8153, %v8232
    %v8234 = vrcp.pop %v8194
    %v8235 = vmul.f32 %v8155, %v8234
    %v8236 = vrcp.pop %v8197
    %v8237 = vmul.f32 %v8157, %v8236
    %v8238 = vrcp.pop %v8200
    %v8239 = vmul.f32 %v8159, %v8238
    %v8240 = vrcp.pop %v8203
    %v8241 = vmul.f32 %v8161, %v8240
    %v8242 = vrcp.pop %v8206
    %v8243 = vmul.f32 %v8163, %v8242
    %v8244 = vrcp.pop %v8209
    %v8245 = vmul.f32 %v8165, %v8244
    %v8246 = vrcp.pop %v8212
    %v8247 = vmul.f32 %v8167, %v8246
    %v8248 = vrcp.pop %v8215
    %v8249 = vmul.f32 %v8169, %v8248
    %v8250 = vrcp.pop %v8218
    %v8251 = vmul.f32 %v8171, %v8250
    %v8252 = vrcp.pop %v8221
    %v8253 = vmul.f32 %v8173, %v8252
    %v8255 = vsel %vm832, %v8223, 0
    %v8258 = vsel %vm832, %v8225, 0
    %8260 = vmatprep.subr.mxu0 0.0
    %8261 = vmatpush1.msra.mxu0 %v7304
    %8262 = vmatprep.subr.mxu0 0.0
    %8263 = vmatpush1.msra.mxu0 %v7309
    %8264 = vmatprep.subr.mxu0 0.0
    %8265 = vmatpush1.msra.mxu0 0.0
    %8266 = vmatprep.subr.mxu0 0.0
    %8267 = vmatpush1.msra.mxu0 0.0
    %8268 = vmatprep.subr.mxu0 0.0
    %8269 = vmatpush1.msra.mxu0 0.0
    %8270 = vmatprep.subr.mxu0 0.0
    %8271 = vmatpush1.msra.mxu0 0.0
    %8272 = vmatprep.subr.mxu0 0.0
    %8273 = vmatpush1.msra.mxu0 0.0
    %8274 = vmatprep.subr.mxu0 0.0
    %8275 = vmatpush1.msra.mxu0 0.0
    %8276 = vmatprep.subr.mxu0 0.0
    %8277 = vmatpush1.msra.mxu0 0.0
    %8278 = vmatprep.subr.mxu0 0.0
    %8279 = vmatpush1.msra.mxu0 0.0
    %8280 = vmatprep.subr.mxu0 0.0
    %8281 = vmatpush1.msra.mxu0 0.0
    %8282 = vmatprep.subr.mxu0 0.0
    %8283 = vmatpush1.msra.mxu0 0.0
    %8284 = vmatprep.subr.mxu0 0.0
    %8285 = vmatpush1.msra.mxu0 0.0
    %8286 = vmatprep.subr.mxu0 0.0
    %8287 = vmatpush1.msra.mxu0 0.0
    %8288 = vmatprep.subr.mxu0 0.0
    %8289 = vmatpush1.msra.mxu0 0.0
    %8290 = vmatprep.subr.mxu0 0.0
    %8291 = vmatpush1.msra.mxu0 0.0
    %8292 = vmatprep.subr.mxu0 0.0
    %8293 = vmatpush1.msra.mxu0 0.0
    %8294 = vmatprep.subr.mxu0 0.0
    %8295 = vmatpush1.msra.mxu0 0.0
    %8296 = vmatprep.subr.mxu0 0.0
    %8297 = vmatpush1.msra.mxu0 0.0
    %8298 = vmatprep.subr.mxu0 0.0
    %8299 = vmatpush1.msra.mxu0 0.0
    %8300 = vmatprep.subr.mxu0 0.0
    %8301 = vmatpush1.msra.mxu0 0.0
    %8302 = vmatprep.subr.mxu0 0.0
    %8303 = vmatpush1.msra.mxu0 0.0
    %8304 = vmatprep.subr.mxu0 0.0
    %8305 = vmatpush1.msra.mxu0 0.0
    %8306 = vmatprep.subr.mxu0 0.0
    %8307 = vmatpush1.msra.mxu0 0.0
    %8308 = vmatprep.subr.mxu0 0.0
    %8309 = vmatpush1.msra.mxu0 0.0
    %8310 = vmatprep.subr.mxu0 0.0
    %8311 = vmatpush1.msra.mxu0 0.0
    %8312 = vmatprep.subr.mxu0 0.0
    %8313 = vmatpush1.msra.mxu0 0.0
    %8314 = vmatprep.subr.mxu0 0.0
    %8315 = vmatpush1.msra.mxu0 0.0
    %8316 = vmatprep.subr.mxu0 0.0
    %8317 = vmatpush1.msra.mxu0 0.0
    %8318 = vmatprep.subr.mxu0 0.0
    %8319 = vmatpush1.msra.mxu0 0.0
    %8320 = vmatprep.subr.mxu0 0.0
    %8321 = vmatpush1.msra.mxu0 0.0
    %8322 = vmatprep.subr.mxu0 0.0
    %8323 = vmatpush1.msra.mxu0 0.0
    %8324 = vmatprep.mubr.f32.mxu0 0.0
    %8325 = vmatmul.mubr.f32.gmra.mrb[0].mxu0 %v8255
    %v8326 = vpop.f32.mrb[0].mxu0
    %v8327 = vadd.f32 0.0, %v8326
    %v8328 = vpop.f32.mrb[0].mxu0
    %8329 = vmatprep.mubr.f32.mxu0 0.0
    %8330 = vmatmul.mubr.f32.gmra.mrb[0].mxu0 %v8258
    %v8331 = vpop.f32.mrb[0].mxu0
    %v8332 = vadd.f32 0.0, %v8331
    %v8333 = vpop.f32.mrb[0].mxu0
    %8334 = vdwg.mxu0
    %v8336 = vsel %vm832, %v8227, 0
    %v8339 = vsel %vm832, %v8229, 0
    %8341 = vmatprep.subr.mxu0 0.0
    %8342 = vmatpush1.msra.mxu0 %v7314
    %8343 = vmatprep.subr.mxu0 0.0
    %8344 = vmatpush1.msra.mxu0 %v7319
    %8345 = vmatprep.subr.mxu0 0.0
    %8346 = vmatpush1.msra.mxu0 0.0
    %8347 = vmatprep.subr.mxu0 0.0
    %8348 = vmatpush1.msra.mxu0 0.0
    %8349 = vmatprep.subr.mxu0 0.0
    %8350 = vmatpush1.msra.mxu0 0.0
    %8351 = vmatprep.subr.mxu0 0.0
    %8352 = vmatpush1.msra.mxu0 0.0
    %8353 = vmatprep.subr.mxu0 0.0
    %8354 = vmatpush1.msra.mxu0 0.0
    %8355 = vmatprep.subr.mxu0 0.0
    %8356 = vmatpush1.msra.mxu0 0.0
    %8357 = vmatprep.subr.mxu0 0.0
    %8358 = vmatpush1.msra.mxu0 0.0
    %8359 = vmatprep.subr.mxu0 0.0
    %8360 = vmatpush1.msra.mxu0 0.0
    %8361 = vmatprep.subr.mxu0 0.0
    %8362 = vmatpush1.msra.mxu0 0.0
    %8363 = vmatprep.subr.mxu0 0.0
    %8364 = vmatpush1.msra.mxu0 0.0
    %8365 = vmatprep.subr.mxu0 0.0
    %8366 = vmatpush1.msra.mxu0 0.0
    %8367 = vmatprep.subr.mxu0 0.0
    %8368 = vmatpush1.msra.mxu0 0.0
    %8369 = vmatprep.subr.mxu0 0.0
    %8370 = vmatpush1.msra.mxu0 0.0
    %8371 = vmatprep.subr.mxu0 0.0
    %8372 = vmatpush1.msra.mxu0 0.0
    %8373 = vmatprep.subr.mxu0 0.0
    %8374 = vmatpush1.msra.mxu0 0.0
    %8375 = vmatprep.subr.mxu0 0.0
    %8376 = vmatpush1.msra.mxu0 0.0
    %8377 = vmatprep.subr.mxu0 0.0
    %8378 = vmatpush1.msra.mxu0 0.0
    %8379 = vmatprep.subr.mxu0 0.0
    %8380 = vmatpush1.msra.mxu0 0.0
    %8381 = vmatprep.subr.mxu0 0.0
    %8382 = vmatpush1.msra.mxu0 0.0
    %8383 = vmatprep.subr.mxu0 0.0
    %8384 = vmatpush1.msra.mxu0 0.0
    %8385 = vmatprep.subr.mxu0 0.0
    %8386 = vmatpush1.msra.mxu0 0.0
    %8387 = vmatprep.subr.mxu0 0.0
    %8388 = vmatpush1.msra.mxu0 0.0
    %8389 = vmatprep.subr.mxu0 0.0
    %8390 = vmatpush1.msra.mxu0 0.0
    %8391 = vmatprep.subr.mxu0 0.0
    %8392 = vmatpush1.msra.mxu0 0.0
    %8393 = vmatprep.subr.mxu0 0.0
    %8394 = vmatpush1.msra.mxu0 0.0
    %8395 = vmatprep.subr.mxu0 0.0
    %8396 = vmatpush1.msra.mxu0 0.0
    %8397 = vmatprep.subr.mxu0 0.0
    %8398 = vmatpush1.msra.mxu0 0.0
    %8399 = vmatprep.subr.mxu0 0.0
    %8400 = vmatpush1.msra.mxu0 0.0
    %8401 = vmatprep.subr.mxu0 0.0
    %8402 = vmatpush1.msra.mxu0 0.0
    %8403 = vmatprep.subr.mxu0 0.0
    %8404 = vmatpush1.msra.mxu0 0.0
    %8405 = vmatprep.mubr.f32.mxu0 0.0
    %8406 = vmatmul.mubr.f32.gmra.mrb[0].mxu0 %v8336
    %v8407 = vpop.f32.mrb[0].mxu0
    %v8408 = vadd.f32 0.0, %v8407
    %v8409 = vpop.f32.mrb[0].mxu0
    %8410 = vmatprep.mubr.f32.mxu0 0.0
    %8411 = vmatmul.mubr.f32.gmra.mrb[0].mxu0 %v8339
    %v8412 = vpop.f32.mrb[0].mxu0
    %v8413 = vadd.f32 0.0, %v8412
    %v8414 = vpop.f32.mrb[0].mxu0
    %8415 = vdwg.mxu0
    %v8417 = vsel %vm832, %v8231, 0
    %v8420 = vsel %vm832, %v8233, 0
    %8422 = vmatprep.subr.mxu0 0.0
    %8423 = vmatpush1.msra.mxu0 %v7324
    %8424 = vmatprep.subr.mxu0 0.0
    %8425 = vmatpush1.msra.mxu0 %v7329
    %8426 = vmatprep.subr.mxu0 0.0
    %8427 = vmatpush1.msra.mxu0 0.0
    %8428 = vmatprep.subr.mxu0 0.0
    %8429 = vmatpush1.msra.mxu0 0.0
    %8430 = vmatprep.subr.mxu0 0.0
    %8431 = vmatpush1.msra.mxu0 0.0
    %8432 = vmatprep.subr.mxu0 0.0
    %8433 = vmatpush1.msra.mxu0 0.0
    %8434 = vmatprep.subr.mxu0 0.0
    %8435 = vmatpush1.msra.mxu0 0.0
    %8436 = vmatprep.subr.mxu0 0.0
    %8437 = vmatpush1.msra.mxu0 0.0
    %8438 = vmatprep.subr.mxu0 0.0
    %8439 = vmatpush1.msra.mxu0 0.0
    %8440 = vmatprep.subr.mxu0 0.0
    %8441 = vmatpush1.msra.mxu0 0.0
    %8442 = vmatprep.subr.mxu0 0.0
    %8443 = vmatpush1.msra.mxu0 0.0
    %8444 = vmatprep.subr.mxu0 0.0
    %8445 = vmatpush1.msra.mxu0 0.0
    %8446 = vmatprep.subr.mxu0 0.0
    %8447 = vmatpush1.msra.mxu0 0.0
    %8448 = vmatprep.subr.mxu0 0.0
    %8449 = vmatpush1.msra.mxu0 0.0
    %8450 = vmatprep.subr.mxu0 0.0
    %8451 = vmatpush1.msra.mxu0 0.0
    %8452 = vmatprep.subr.mxu0 0.0
    %8453 = vmatpush1.msra.mxu0 0.0
    %8454 = vmatprep.subr.mxu0 0.0
    %8455 = vmatpush1.msra.mxu0 0.0
    %8456 = vmatprep.subr.mxu0 0.0
    %8457 = vmatpush1.msra.mxu0 0.0
    %8458 = vmatprep.subr.mxu0 0.0
    %8459 = vmatpush1.msra.mxu0 0.0
    %8460 = vmatprep.subr.mxu0 0.0
    %8461 = vmatpush1.msra.mxu0 0.0
    %8462 = vmatprep.subr.mxu0 0.0
    %8463 = vmatpush1.msra.mxu0 0.0
    %8464 = vmatprep.subr.mxu0 0.0
    %8465 = vmatpush1.msra.mxu0 0.0
    %8466 = vmatprep.subr.mxu0 0.0
    %8467 = vmatpush1.msra.mxu0 0.0
    %8468 = vmatprep.subr.mxu0 0.0
    %8469 = vmatpush1.msra.mxu0 0.0
    %8470 = vmatprep.subr.mxu0 0.0
    %8471 = vmatpush1.msra.mxu0 0.0
    %8472 = vmatprep.subr.mxu0 0.0
    %8473 = vmatpush1.msra.mxu0 0.0
    %8474 = vmatprep.subr.mxu0 0.0
    %8475 = vmatpush1.msra.mxu0 0.0
    %8476 = vmatprep.subr.mxu0 0.0
    %8477 = vmatpush1.msra.mxu0 0.0
    %8478 = vmatprep.subr.mxu0 0.0
    %8479 = vmatpush1.msra.mxu0 0.0
    %8480 = vmatprep.subr.mxu0 0.0
    %8481 = vmatpush1.msra.mxu0 0.0
    %8482 = vmatprep.subr.mxu0 0.0
    %8483 = vmatpush1.msra.mxu0 0.0
    %8484 = vmatprep.subr.mxu0 0.0
    %8485 = vmatpush1.msra.mxu0 0.0
    %8486 = vmatprep.mubr.f32.mxu0 0.0
    %8487 = vmatmul.mubr.f32.gmra.mrb[0].mxu0 %v8417
    %v8488 = vpop.f32.mrb[0].mxu0
    %v8489 = vadd.f32 0.0, %v8488
    %v8490 = vpop.f32.mrb[0].mxu0
    %8491 = vmatprep.mubr.f32.mxu0 0.0
    %8492 = vmatmul.mubr.f32.gmra.mrb[0].mxu0 %v8420
    %v8493 = vpop.f32.mrb[0].mxu0
    %v8494 = vadd.f32 0.0, %v8493
    %v8495 = vpop.f32.mrb[0].mxu0
    %8496 = vdwg.mxu0
    %v8498 = vsel %vm832, %v8235, 0
    %v8501 = vsel %vm832, %v8237, 0
    %8503 = vmatprep.subr.mxu0 0.0
    %8504 = vmatpush1.msra.mxu0 %v7334
    %8505 = vmatprep.subr.mxu0 0.0
    %8506 = vmatpush1.msra.mxu0 %v7339
    %8507 = vmatprep.subr.mxu0 0.0
    %8508 = vmatpush1.msra.mxu0 0.0
    %8509 = vmatprep.subr.mxu0 0.0
    %8510 = vmatpush1.msra.mxu0 0.0
    %8511 = vmatprep.subr.mxu0 0.0
    %8512 = vmatpush1.msra.mxu0 0.0
    %8513 = vmatprep.subr.mxu0 0.0
    %8514 = vmatpush1.msra.mxu0 0.0
    %8515 = vmatprep.subr.mxu0 0.0
    %8516 = vmatpush1.msra.mxu0 0.0
    %8517 = vmatprep.subr.mxu0 0.0
    %8518 = vmatpush1.msra.mxu0 0.0
    %8519 = vmatprep.subr.mxu0 0.0
    %8520 = vmatpush1.msra.mxu0 0.0
    %8521 = vmatprep.subr.mxu0 0.0
    %8522 = vmatpush1.msra.mxu0 0.0
    %8523 = vmatprep.subr.mxu0 0.0
    %8524 = vmatpush1.msra.mxu0 0.0
    %8525 = vmatprep.subr.mxu0 0.0
    %8526 = vmatpush1.msra.mxu0 0.0
    %8527 = vmatprep.subr.mxu0 0.0
    %8528 = vmatpush1.msra.mxu0 0.0
    %8529 = vmatprep.subr.mxu0 0.0
    %8530 = vmatpush1.msra.mxu0 0.0
    %8531 = vmatprep.subr.mxu0 0.0
    %8532 = vmatpush1.msra.mxu0 0.0
    %8533 = vmatprep.subr.mxu0 0.0
    %8534 = vmatpush1.msra.mxu0 0.0
    %8535 = vmatprep.subr.mxu0 0.0
    %8536 = vmatpush1.msra.mxu0 0.0
    %8537 = vmatprep.subr.mxu0 0.0
    %8538 = vmatpush1.msra.mxu0 0.0
    %8539 = vmatprep.subr.mxu0 0.0
    %8540 = vmatpush1.msra.mxu0 0.0
    %8541 = vmatprep.subr.mxu0 0.0
    %8542 = vmatpush1.msra.mxu0 0.0
    %8543 = vmatprep.subr.mxu0 0.0
    %8544 = vmatpush1.msra.mxu0 0.0
    %8545 = vmatprep.subr.mxu0 0.0
    %8546 = vmatpush1.msra.mxu0 0.0
    %8547 = vmatprep.subr.mxu0 0.0
    %8548 = vmatpush1.msra.mxu0 0.0
    %8549 = vmatprep.subr.mxu0 0.0
    %8550 = vmatpush1.msra.mxu0 0.0
    %8551 = vmatprep.subr.mxu0 0.0
    %8552 = vmatpush1.msra.mxu0 0.0
    %8553 = vmatprep.subr.mxu0 0.0
    %8554 = vmatpush1.msra.mxu0 0.0
    %8555 = vmatprep.subr.mxu0 0.0
    %8556 = vmatpush1.msra.mxu0 0.0
    %8557 = vmatprep.subr.mxu0 0.0
    %8558 = vmatpush1.msra.mxu0 0.0
    %8559 = vmatprep.subr.mxu0 0.0
    %8560 = vmatpush1.msra.mxu0 0.0
    %8561 = vmatprep.subr.mxu0 0.0
    %8562 = vmatpush1.msra.mxu0 0.0
    %8563 = vmatprep.subr.mxu0 0.0
    %8564 = vmatpush1.msra.mxu0 0.0
    %8565 = vmatprep.subr.mxu0 0.0
    %8566 = vmatpush1.msra.mxu0 0.0
    %8567 = vmatprep.mubr.f32.mxu0 0.0
    %8568 = vmatmul.mubr.f32.gmra.mrb[0].mxu0 %v8498
    %v8569 = vpop.f32.mrb[0].mxu0
    %v8570 = vadd.f32 0.0, %v8569
    %v8571 = vpop.f32.mrb[0].mxu0
    %8572 = vmatprep.mubr.f32.mxu0 0.0
    %8573 = vmatmul.mubr.f32.gmra.mrb[0].mxu0 %v8501
    %v8574 = vpop.f32.mrb[0].mxu0
    %v8575 = vadd.f32 0.0, %v8574
    %v8576 = vpop.f32.mrb[0].mxu0
    %8577 = vdwg.mxu0
    %v8579 = vsel %vm832, %v8239, 0
    %v8582 = vsel %vm832, %v8241, 0
    %8584 = vmatprep.subr.mxu0 0.0
    %8585 = vmatpush1.msra.mxu0 %v7344
    %8586 = vmatprep.subr.mxu0 0.0
    %8587 = vmatpush1.msra.mxu0 %v7349
    %8588 = vmatprep.subr.mxu0 0.0
    %8589 = vmatpush1.msra.mxu0 0.0
    %8590 = vmatprep.subr.mxu0 0.0
    %8591 = vmatpush1.msra.mxu0 0.0
    %8592 = vmatprep.subr.mxu0 0.0
    %8593 = vmatpush1.msra.mxu0 0.0
    %8594 = vmatprep.subr.mxu0 0.0
    %8595 = vmatpush1.msra.mxu0 0.0
    %8596 = vmatprep.subr.mxu0 0.0
    %8597 = vmatpush1.msra.mxu0 0.0
    %8598 = vmatprep.subr.mxu0 0.0
    %8599 = vmatpush1.msra.mxu0 0.0
    %8600 = vmatprep.subr.mxu0 0.0
    %8601 = vmatpush1.msra.mxu0 0.0
    %8602 = vmatprep.subr.mxu0 0.0
    %8603 = vmatpush1.msra.mxu0 0.0
    %8604 = vmatprep.subr.mxu0 0.0
    %8605 = vmatpush1.msra.mxu0 0.0
    %8606 = vmatprep.subr.mxu0 0.0
    %8607 = vmatpush1.msra.mxu0 0.0
    %8608 = vmatprep.subr.mxu0 0.0
    %8609 = vmatpush1.msra.mxu0 0.0
    %8610 = vmatprep.subr.mxu0 0.0
    %8611 = vmatpush1.msra.mxu0 0.0
    %8612 = vmatprep.subr.mxu0 0.0
    %8613 = vmatpush1.msra.mxu0 0.0
    %8614 = vmatprep.subr.mxu0 0.0
    %8615 = vmatpush1.msra.mxu0 0.0
    %8616 = vmatprep.subr.mxu0 0.0
    %8617 = vmatpush1.msra.mxu0 0.0
    %8618 = vmatprep.subr.mxu0 0.0
    %8619 = vmatpush1.msra.mxu0 0.0
    %8620 = vmatprep.subr.mxu0 0.0
    %8621 = vmatpush1.msra.mxu0 0.0
    %8622 = vmatprep.subr.mxu0 0.0
    %8623 = vmatpush1.msra.mxu0 0.0
    %8624 = vmatprep.subr.mxu0 0.0
    %8625 = vmatpush1.msra.mxu0 0.0
    %8626 = vmatprep.subr.mxu0 0.0
    %8627 = vmatpush1.msra.mxu0 0.0
    %8628 = vmatprep.subr.mxu0 0.0
    %8629 = vmatpush1.msra.mxu0 0.0
    %8630 = vmatprep.subr.mxu0 0.0
    %8631 = vmatpush1.msra.mxu0 0.0
    %8632 = vmatprep.subr.mxu0 0.0
    %8633 = vmatpush1.msra.mxu0 0.0
    %8634 = vmatprep.subr.mxu0 0.0
    %8635 = vmatpush1.msra.mxu0 0.0
    %8636 = vmatprep.subr.mxu0 0.0
    %8637 = vmatpush1.msra.mxu0 0.0
    %8638 = vmatprep.subr.mxu0 0.0
    %8639 = vmatpush1.msra.mxu0 0.0
    %8640 = vmatprep.subr.mxu0 0.0
    %8641 = vmatpush1.msra.mxu0 0.0
    %8642 = vmatprep.subr.mxu0 0.0
    %8643 = vmatpush1.msra.mxu0 0.0
    %8644 = vmatprep.subr.mxu0 0.0
    %8645 = vmatpush1.msra.mxu0 0.0
    %8646 = vmatprep.subr.mxu0 0.0
    %8647 = vmatpush1.msra.mxu0 0.0
    %8648 = vmatprep.mubr.f32.mxu0 0.0
    %8649 = vmatmul.mubr.f32.gmra.mrb[0].mxu0 %v8579
    %v8650 = vpop.f32.mrb[0].mxu0
    %v8651 = vadd.f32 0.0, %v8650
    %v8652 = vpop.f32.mrb[0].mxu0
    %8653 = vmatprep.mubr.f32.mxu0 0.0
    %8654 = vmatmul.mubr.f32.gmra.mrb[0].mxu0 %v8582
    %v8655 = vpop.f32.mrb[0].mxu0
    %v8656 = vadd.f32 0.0, %v8655
    %v8657 = vpop.f32.mrb[0].mxu0
    %8658 = vdwg.mxu0
    %v8660 = vsel %vm832, %v8243, 0
    %v8663 = vsel %vm832, %v8245, 0
    %8665 = vmatprep.subr.mxu0 0.0
    %8666 = vmatpush1.msra.mxu0 %v7354
    %8667 = vmatprep.subr.mxu0 0.0
    %8668 = vmatpush1.msra.mxu0 %v7359
    %8669 = vmatprep.subr.mxu0 0.0
    %8670 = vmatpush1.msra.mxu0 0.0
    %8671 = vmatprep.subr.mxu0 0.0
    %8672 = vmatpush1.msra.mxu0 0.0
    %8673 = vmatprep.subr.mxu0 0.0
    %8674 = vmatpush1.msra.mxu0 0.0
    %8675 = vmatprep.subr.mxu0 0.0
    %8676 = vmatpush1.msra.mxu0 0.0
    %8677 = vmatprep.subr.mxu0 0.0
    %8678 = vmatpush1.msra.mxu0 0.0
    %8679 = vmatprep.subr.mxu0 0.0
    %8680 = vmatpush1.msra.mxu0 0.0
    %8681 = vmatprep.subr.mxu0 0.0
    %8682 = vmatpush1.msra.mxu0 0.0
    %8683 = vmatprep.subr.mxu0 0.0
    %8684 = vmatpush1.msra.mxu0 0.0
    %8685 = vmatprep.subr.mxu0 0.0
    %8686 = vmatpush1.msra.mxu0 0.0
    %8687 = vmatprep.subr.mxu0 0.0
    %8688 = vmatpush1.msra.mxu0 0.0
    %8689 = vmatprep.subr.mxu0 0.0
    %8690 = vmatpush1.msra.mxu0 0.0
    %8691 = vmatprep.subr.mxu0 0.0
    %8692 = vmatpush1.msra.mxu0 0.0
    %8693 = vmatprep.subr.mxu0 0.0
    %8694 = vmatpush1.msra.mxu0 0.0
    %8695 = vmatprep.subr.mxu0 0.0
    %8696 = vmatpush1.msra.mxu0 0.0
    %8697 = vmatprep.subr.mxu0 0.0
    %8698 = vmatpush1.msra.mxu0 0.0
    %8699 = vmatprep.subr.mxu0 0.0
    %8700 = vmatpush1.msra.mxu0 0.0
    %8701 = vmatprep.subr.mxu0 0.0
    %8702 = vmatpush1.msra.mxu0 0.0
    %8703 = vmatprep.subr.mxu0 0.0
    %8704 = vmatpush1.msra.mxu0 0.0
    %8705 = vmatprep.subr.mxu0 0.0
    %8706 = vmatpush1.msra.mxu0 0.0
    %8707 = vmatprep.subr.mxu0 0.0
    %8708 = vmatpush1.msra.mxu0 0.0
    %8709 = vmatprep.subr.mxu0 0.0
    %8710 = vmatpush1.msra.mxu0 0.0
    %8711 = vmatprep.subr.mxu0 0.0
    %8712 = vmatpush1.msra.mxu0 0.0
    %8713 = vmatprep.subr.mxu0 0.0
    %8714 = vmatpush1.msra.mxu0 0.0
    %8715 = vmatprep.subr.mxu0 0.0
    %8716 = vmatpush1.msra.mxu0 0.0
    %8717 = vmatprep.subr.mxu0 0.0
    %8718 = vmatpush1.msra.mxu0 0.0
    %8719 = vmatprep.subr.mxu0 0.0
    %8720 = vmatpush1.msra.mxu0 0.0
    %8721 = vmatprep.subr.mxu0 0.0
    %8722 = vmatpush1.msra.mxu0 0.0
    %8723 = vmatprep.subr.mxu0 0.0
    %8724 = vmatpush1.msra.mxu0 0.0
    %8725 = vmatprep.subr.mxu0 0.0
    %8726 = vmatpush1.msra.mxu0 0.0
    %8727 = vmatprep.subr.mxu0 0.0
    %8728 = vmatpush1.msra.mxu0 0.0
    %8729 = vmatprep.mubr.f32.mxu0 0.0
    %8730 = vmatmul.mubr.f32.gmra.mrb[0].mxu0 %v8660
    %v8731 = vpop.f32.mrb[0].mxu0
    %v8732 = vadd.f32 0.0, %v8731
    %v8733 = vpop.f32.mrb[0].mxu0
    %8734 = vmatprep.mubr.f32.mxu0 0.0
    %8735 = vmatmul.mubr.f32.gmra.mrb[0].mxu0 %v8663
    %v8736 = vpop.f32.mrb[0].mxu0
    %v8737 = vadd.f32 0.0, %v8736
    %v8738 = vpop.f32.mrb[0].mxu0
    %8739 = vdwg.mxu0
    %v8741 = vsel %vm832, %v8247, 0
    %v8744 = vsel %vm832, %v8249, 0
    %8746 = vmatprep.subr.mxu0 0.0
    %8747 = vmatpush1.msra.mxu0 %v7364
    %8748 = vmatprep.subr.mxu0 0.0
    %8749 = vmatpush1.msra.mxu0 %v7369
    %8750 = vmatprep.subr.mxu0 0.0
    %8751 = vmatpush1.msra.mxu0 0.0
    %8752 = vmatprep.subr.mxu0 0.0
    %8753 = vmatpush1.msra.mxu0 0.0
    %8754 = vmatprep.subr.mxu0 0.0
    %8755 = vmatpush1.msra.mxu0 0.0
    %8756 = vmatprep.subr.mxu0 0.0
    %8757 = vmatpush1.msra.mxu0 0.0
    %8758 = vmatprep.subr.mxu0 0.0
    %8759 = vmatpush1.msra.mxu0 0.0
    %8760 = vmatprep.subr.mxu0 0.0
    %8761 = vmatpush1.msra.mxu0 0.0
    %8762 = vmatprep.subr.mxu0 0.0
    %8763 = vmatpush1.msra.mxu0 0.0
    %8764 = vmatprep.subr.mxu0 0.0
    %8765 = vmatpush1.msra.mxu0 0.0
    %8766 = vmatprep.subr.mxu0 0.0
    %8767 = vmatpush1.msra.mxu0 0.0
    %8768 = vmatprep.subr.mxu0 0.0
    %8769 = vmatpush1.msra.mxu0 0.0
    %8770 = vmatprep.subr.mxu0 0.0
    %8771 = vmatpush1.msra.mxu0 0.0
    %8772 = vmatprep.subr.mxu0 0.0
    %8773 = vmatpush1.msra.mxu0 0.0
    %8774 = vmatprep.subr.mxu0 0.0
    %8775 = vmatpush1.msra.mxu0 0.0
    %8776 = vmatprep.subr.mxu0 0.0
    %8777 = vmatpush1.msra.mxu0 0.0
    %8778 = vmatprep.subr.mxu0 0.0
    %8779 = vmatpush1.msra.mxu0 0.0
    %8780 = vmatprep.subr.mxu0 0.0
    %8781 = vmatpush1.msra.mxu0 0.0
    %8782 = vmatprep.subr.mxu0 0.0
    %8783 = vmatpush1.msra.mxu0 0.0
    %8784 = vmatprep.subr.mxu0 0.0
    %8785 = vmatpush1.msra.mxu0 0.0
    %8786 = vmatprep.subr.mxu0 0.0
    %8787 = vmatpush1.msra.mxu0 0.0
    %8788 = vmatprep.subr.mxu0 0.0
    %8789 = vmatpush1.msra.mxu0 0.0
    %8790 = vmatprep.subr.mxu0 0.0
    %8791 = vmatpush1.msra.mxu0 0.0
    %8792 = vmatprep.subr.mxu0 0.0
    %8793 = vmatpush1.msra.mxu0 0.0
    %8794 = vmatprep.subr.mxu0 0.0
    %8795 = vmatpush1.msra.mxu0 0.0
    %8796 = vmatprep.subr.mxu0 0.0
    %8797 = vmatpush1.msra.mxu0 0.0
    %8798 = vmatprep.subr.mxu0 0.0
    %8799 = vmatpush1.msra.mxu0 0.0
    %8800 = vmatprep.subr.mxu0 0.0
    %8801 = vmatpush1.msra.mxu0 0.0
    %8802 = vmatprep.subr.mxu0 0.0
    %8803 = vmatpush1.msra.mxu0 0.0
    %8804 = vmatprep.subr.mxu0 0.0
    %8805 = vmatpush1.msra.mxu0 0.0
    %8806 = vmatprep.subr.mxu0 0.0
    %8807 = vmatpush1.msra.mxu0 0.0
    %8808 = vmatprep.subr.mxu0 0.0
    %8809 = vmatpush1.msra.mxu0 0.0
    %8810 = vmatprep.mubr.f32.mxu0 0.0
    %8811 = vmatmul.mubr.f32.gmra.mrb[0].mxu0 %v8741
    %v8812 = vpop.f32.mrb[0].mxu0
    %v8813 = vadd.f32 0.0, %v8812
    %v8814 = vpop.f32.mrb[0].mxu0
    %8815 = vmatprep.mubr.f32.mxu0 0.0
    %8816 = vmatmul.mubr.f32.gmra.mrb[0].mxu0 %v8744
    %v8817 = vpop.f32.mrb[0].mxu0
    %v8818 = vadd.f32 0.0, %v8817
    %v8819 = vpop.f32.mrb[0].mxu0
    %8820 = vdwg.mxu0
    %v8822 = vsel %vm832, %v8251, 0
    %v8825 = vsel %vm832, %v8253, 0
    %8827 = vmatprep.subr.mxu0 0.0
    %8828 = vmatpush1.msra.mxu0 %v7374
    %8829 = vmatprep.subr.mxu0 0.0
    %8830 = vmatpush1.msra.mxu0 %v7379
    %8831 = vmatprep.subr.mxu0 0.0
    %8832 = vmatpush1.msra.mxu0 0.0
    %8833 = vmatprep.subr.mxu0 0.0
    %8834 = vmatpush1.msra.mxu0 0.0
    %8835 = vmatprep.subr.mxu0 0.0
    %8836 = vmatpush1.msra.mxu0 0.0
    %8837 = vmatprep.subr.mxu0 0.0
    %8838 = vmatpush1.msra.mxu0 0.0
    %8839 = vmatprep.subr.mxu0 0.0
    %8840 = vmatpush1.msra.mxu0 0.0
    %8841 = vmatprep.subr.mxu0 0.0
    %8842 = vmatpush1.msra.mxu0 0.0
    %8843 = vmatprep.subr.mxu0 0.0
    %8844 = vmatpush1.msra.mxu0 0.0
    %8845 = vmatprep.subr.mxu0 0.0
    %8846 = vmatpush1.msra.mxu0 0.0
    %8847 = vmatprep.subr.mxu0 0.0
    %8848 = vmatpush1.msra.mxu0 0.0
    %8849 = vmatprep.subr.mxu0 0.0
    %8850 = vmatpush1.msra.mxu0 0.0
    %8851 = vmatprep.subr.mxu0 0.0
    %8852 = vmatpush1.msra.mxu0 0.0
    %8853 = vmatprep.subr.mxu0 0.0
    %8854 = vmatpush1.msra.mxu0 0.0
    %8855 = vmatprep.subr.mxu0 0.0
    %8856 = vmatpush1.msra.mxu0 0.0
    %8857 = vmatprep.subr.mxu0 0.0
    %8858 = vmatpush1.msra.mxu0 0.0
    %8859 = vmatprep.subr.mxu0 0.0
    %8860 = vmatpush1.msra.mxu0 0.0
    %8861 = vmatprep.subr.mxu0 0.0
    %8862 = vmatpush1.msra.mxu0 0.0
    %8863 = vmatprep.subr.mxu0 0.0
    %8864 = vmatpush1.msra.mxu0 0.0
    %8865 = vmatprep.subr.mxu0 0.0
    %8866 = vmatpush1.msra.mxu0 0.0
    %8867 = vmatprep.subr.mxu0 0.0
    %8868 = vmatpush1.msra.mxu0 0.0
    %8869 = vmatprep.subr.mxu0 0.0
    %8870 = vmatpush1.msra.mxu0 0.0
    %8871 = vmatprep.subr.mxu0 0.0
    %8872 = vmatpush1.msra.mxu0 0.0
    %8873 = vmatprep.subr.mxu0 0.0
    %8874 = vmatpush1.msra.mxu0 0.0
    %8875 = vmatprep.subr.mxu0 0.0
    %8876 = vmatpush1.msra.mxu0 0.0
    %8877 = vmatprep.subr.mxu0 0.0
    %8878 = vmatpush1.msra.mxu0 0.0
    %8879 = vmatprep.subr.mxu0 0.0
    %8880 = vmatpush1.msra.mxu0 0.0
    %8881 = vmatprep.subr.mxu0 0.0
    %8882 = vmatpush1.msra.mxu0 0.0
    %8883 = vmatprep.subr.mxu0 0.0
    %8884 = vmatpush1.msra.mxu0 0.0
    %8885 = vmatprep.subr.mxu0 0.0
    %8886 = vmatpush1.msra.mxu0 0.0
    %8887 = vmatprep.subr.mxu0 0.0
    %8888 = vmatpush1.msra.mxu0 0.0
    %8889 = vmatprep.subr.mxu0 0.0
    %8890 = vmatpush1.msra.mxu0 0.0
    %8891 = vmatprep.mubr.f32.mxu0 0.0
    %8892 = vmatmul.mubr.f32.gmra.mrb[0].mxu0 %v8822
    %v8893 = vpop.f32.mrb[0].mxu0
    %v8894 = vadd.f32 0.0, %v8893
    %v8895 = vpop.f32.mrb[0].mxu0
    %8896 = vmatprep.mubr.f32.mxu0 0.0
    %8897 = vmatmul.mubr.f32.gmra.mrb[0].mxu0 %v8825
    %v8898 = vpop.f32.mrb[0].mxu0
    %v8899 = vadd.f32 0.0, %v8898
    %v8900 = vpop.f32.mrb[0].mxu0
    %8901 = vdwg.mxu0
    %s8902 = scalar_lea.vmem %s7, 48
    %v8903 = vld [vmem:[%s8902] sm:$0xff]
    %v8904 = vld [vmem:[%s8902 + $0x8] sm:$0xff]
    %v8906 = vsel %vm832, %v8327, 0
    %v8909 = vsel %vm832, %v8332, 0
    %v8912 = vsel %vm832, %v8408, 0
    %v8915 = vsel %vm832, %v8413, 0
    %v8918 = vsel %vm832, %v8489, 0
    %v8921 = vsel %vm832, %v8494, 0
    %v8924 = vsel %vm832, %v8570, 0
    %v8927 = vsel %vm832, %v8575, 0
    %v8930 = vsel %vm832, %v8651, 0
    %v8933 = vsel %vm832, %v8656, 0
    %v8936 = vsel %vm832, %v8732, 0
    %v8939 = vsel %vm832, %v8737, 0
    %v8942 = vsel %vm832, %v8813, 0
    %v8945 = vsel %vm832, %v8818, 0
    %v8948 = vsel %vm832, %v8894, 0
    %v8951 = vsel %vm832, %v8899, 0
    %8953 = vmatprep.subr.mxu0 0.0
    %8954 = vmatpush1.msra.mxu0 %v8903
    %8955 = vmatprep.subr.mxu0 0.0
    %8956 = vmatpush1.msra.mxu0 %v8904
    %8957 = vmatprep.subr.mxu0 0.0
    %8958 = vmatpush1.msra.mxu0 0.0
    %8959 = vmatprep.subr.mxu0 0.0
    %8960 = vmatpush1.msra.mxu0 0.0
    %8961 = vmatprep.subr.mxu0 0.0
    %8962 = vmatpush1.msra.mxu0 0.0
    %8963 = vmatprep.subr.mxu0 0.0
    %8964 = vmatpush1.msra.mxu0 0.0
    %8965 = vmatprep.subr.mxu0 0.0
    %8966 = vmatpush1.msra.mxu0 0.0
    %8967 = vmatprep.subr.mxu0 0.0
    %8968 = vmatpush1.msra.mxu0 0.0
    %8969 = vmatprep.subr.mxu0 0.0
    %8970 = vmatpush1.msra.mxu0 0.0
    %8971 = vmatprep.subr.mxu0 0.0
    %8972 = vmatpush1.msra.mxu0 0.0
    %8973 = vmatprep.subr.mxu0 0.0
    %8974 = vmatpush1.msra.mxu0 0.0
    %8975 = vmatprep.subr.mxu0 0.0
    %8976 = vmatpush1.msra.mxu0 0.0
    %8977 = vmatprep.subr.mxu0 0.0
    %8978 = vmatpush1.msra.mxu0 0.0
    %8979 = vmatprep.subr.mxu0 0.0
    %8980 = vmatpush1.msra.mxu0 0.0
    %8981 = vmatprep.subr.mxu0 0.0
    %8982 = vmatpush1.msra.mxu0 0.0
    %8983 = vmatprep.subr.mxu0 0.0
    %8984 = vmatpush1.msra.mxu0 0.0
    %8985 = vmatprep.subr.mxu0 0.0
    %8986 = vmatpush1.msra.mxu0 0.0
    %8987 = vmatprep.subr.mxu0 0.0
    %8988 = vmatpush1.msra.mxu0 0.0
    %8989 = vmatprep.subr.mxu0 0.0
    %8990 = vmatpush1.msra.mxu0 0.0
    %8991 = vmatprep.subr.mxu0 0.0
    %8992 = vmatpush1.msra.mxu0 0.0
    %8993 = vmatprep.subr.mxu0 0.0
    %8994 = vmatpush1.msra.mxu0 0.0
    %8995 = vmatprep.subr.mxu0 0.0
    %8996 = vmatpush1.msra.mxu0 0.0
    %8997 = vmatprep.subr.mxu0 0.0
    %8998 = vmatpush1.msra.mxu0 0.0
    %8999 = vmatprep.subr.mxu0 0.0
    %9000 = vmatpush1.msra.mxu0 0.0
    %9001 = vmatprep.subr.mxu0 0.0
    %9002 = vmatpush1.msra.mxu0 0.0
    %9003 = vmatprep.subr.mxu0 0.0
    %9004 = vmatpush1.msra.mxu0 0.0
    %9005 = vmatprep.subr.mxu0 0.0
    %9006 = vmatpush1.msra.mxu0 0.0
    %9007 = vmatprep.subr.mxu0 0.0
    %9008 = vmatpush1.msra.mxu0 0.0
    %9009 = vmatprep.subr.mxu0 0.0
    %9010 = vmatpush1.msra.mxu0 0.0
    %9011 = vmatprep.subr.mxu0 0.0
    %9012 = vmatpush1.msra.mxu0 0.0
    %9013 = vmatprep.subr.mxu0 0.0
    %9014 = vmatpush1.msra.mxu0 0.0
    %9015 = vmatprep.subr.mxu0 0.0
    %9016 = vmatpush1.msra.mxu0 0.0
    %9017 = vmatprep.mubr.f32.mxu0 0.0
    %9018 = vmatmul.mubr.f32.gmra.mrb[0].mxu0 %v8906
    %v9019 = vpop.f32.mrb[0].mxu0
    %v9020 = vadd.f32 0.0, %v9019
    %v9021 = vpop.f32.mrb[0].mxu0
    %9022 = vmatprep.mubr.f32.mxu0 0.0
    %9023 = vmatmul.mubr.f32.gmra.mrb[0].mxu0 %v8909
    %v9024 = vpop.f32.mrb[0].mxu0
    %v9025 = vadd.f32 0.0, %v9024
    %v9026 = vpop.f32.mrb[0].mxu0
    %9027 = vmatprep.mubr.f32.mxu0 0.0
    %9028 = vmatmul.mubr.f32.gmra.mrb[0].mxu0 %v8912
    %v9029 = vpop.f32.mrb[0].mxu0
    %v9030 = vadd.f32 0.0, %v9029
    %v9031 = vpop.f32.mrb[0].mxu0
    %9032 = vmatprep.mubr.f32.mxu0 0.0
    %9033 = vmatmul.mubr.f32.gmra.mrb[0].mxu0 %v8915
    %v9034 = vpop.f32.mrb[0].mxu0
    %v9035 = vadd.f32 0.0, %v9034
    %v9036 = vpop.f32.mrb[0].mxu0
    %9037 = vmatprep.mubr.f32.mxu0 0.0
    %9038 = vmatmul.mubr.f32.gmra.mrb[0].mxu0 %v8918
    %v9039 = vpop.f32.mrb[0].mxu0
    %v9040 = vadd.f32 0.0, %v9039
    %v9041 = vpop.f32.mrb[0].mxu0
    %9042 = vmatprep.mubr.f32.mxu0 0.0
    %9043 = vmatmul.mubr.f32.gmra.mrb[0].mxu0 %v8921
    %v9044 = vpop.f32.mrb[0].mxu0
    %v9045 = vadd.f32 0.0, %v9044
    %v9046 = vpop.f32.mrb[0].mxu0
    %9047 = vmatprep.mubr.f32.mxu0 0.0
    %9048 = vmatmul.mubr.f32.gmra.mrb[0].mxu0 %v8924
    %v9049 = vpop.f32.mrb[0].mxu0
    %v9050 = vadd.f32 0.0, %v9049
    %v9051 = vpop.f32.mrb[0].mxu0
    %9052 = vmatprep.mubr.f32.mxu0 0.0
    %9053 = vmatmul.mubr.f32.gmra.mrb[0].mxu0 %v8927
    %v9054 = vpop.f32.mrb[0].mxu0
    %v9055 = vadd.f32 0.0, %v9054
    %v9056 = vpop.f32.mrb[0].mxu0
    %9057 = vmatprep.mubr.f32.mxu0 0.0
    %9058 = vmatmul.mubr.f32.gmra.mrb[0].mxu0 %v8930
    %v9059 = vpop.f32.mrb[0].mxu0
    %v9060 = vadd.f32 0.0, %v9059
    %v9061 = vpop.f32.mrb[0].mxu0
    %9062 = vmatprep.mubr.f32.mxu0 0.0
    %9063 = vmatmul.mubr.f32.gmra.mrb[0].mxu0 %v8933
    %v9064 = vpop.f32.mrb[0].mxu0
    %v9065 = vadd.f32 0.0, %v9064
    %v9066 = vpop.f32.mrb[0].mxu0
    %9067 = vmatprep.mubr.f32.mxu0 0.0
    %9068 = vmatmul.mubr.f32.gmra.mrb[0].mxu0 %v8936
    %v9069 = vpop.f32.mrb[0].mxu0
    %v9070 = vadd.f32 0.0, %v9069
    %v9071 = vpop.f32.mrb[0].mxu0
    %9072 = vmatprep.mubr.f32.mxu0 0.0
    %9073 = vmatmul.mubr.f32.gmra.mrb[0].mxu0 %v8939
    %v9074 = vpop.f32.mrb[0].mxu0
    %v9075 = vadd.f32 0.0, %v9074
    %v9076 = vpop.f32.mrb[0].mxu0
    %9077 = vmatprep.mubr.f32.mxu0 0.0
    %9078 = vmatmul.mubr.f32.gmra.mrb[0].mxu0 %v8942
    %v9079 = vpop.f32.mrb[0].mxu0
    %v9080 = vadd.f32 0.0, %v9079
    %v9081 = vpop.f32.mrb[0].mxu0
    %9082 = vmatprep.mubr.f32.mxu0 0.0
    %9083 = vmatmul.mubr.f32.gmra.mrb[0].mxu0 %v8945
    %v9084 = vpop.f32.mrb[0].mxu0
    %v9085 = vadd.f32 0.0, %v9084
    %v9086 = vpop.f32.mrb[0].mxu0
    %9087 = vmatprep.mubr.f32.mxu0 0.0
    %9088 = vmatmul.mubr.f32.gmra.mrb[0].mxu0 %v8948
    %v9089 = vpop.f32.mrb[0].mxu0
    %v9090 = vadd.f32 0.0, %v9089
    %v9091 = vpop.f32.mrb[0].mxu0
    %9092 = vmatprep.mubr.f32.mxu0 0.0
    %9093 = vmatmul.mubr.f32.gmra.mrb[0].mxu0 %v8951
    %v9094 = vpop.f32.mrb[0].mxu0
    %v9095 = vadd.f32 0.0, %v9094
    %v9096 = vpop.f32.mrb[0].mxu0
    %9097 = vdwg.mxu0
    %v9098 = vadd.f32 %v6904, %v9020
    %v9099 = vadd.f32 %v6905, %v9025
    %v9100 = vadd.f32 %v6906, %v9030
    %v9101 = vadd.f32 %v6907, %v9035
    %v9102 = vadd.f32 %v6908, %v9040
    %v9103 = vadd.f32 %v6909, %v9045
    %v9104 = vadd.f32 %v6910, %v9050
    %v9105 = vadd.f32 %v6911, %v9055
    %v9106 = vadd.f32 %v6912, %v9060
    %v9107 = vadd.f32 %v6913, %v9065
    %v9108 = vadd.f32 %v6914, %v9070
    %v9109 = vadd.f32 %v6915, %v9075
    %v9110 = vadd.f32 %v6916, %v9080
    %v9111 = vadd.f32 %v6917, %v9085
    %v9112 = vadd.f32 %v6918, %v9090
    %v9113 = vadd.f32 %v6919, %v9095
    %v9114 = vadd.f32 %v51, %v9098
    %v9115 = vadd.f32 %v52, %v9099
    %v9116 = vadd.f32 %v53, %v9100
    %v9117 = vadd.f32 %v54, %v9101
    %v9118 = vadd.f32 %v55, %v9102
    %v9119 = vadd.f32 %v56, %v9103
    %v9120 = vadd.f32 %v57, %v9104
    %v9121 = vadd.f32 %v58, %v9105
    %v9122 = vadd.f32 %v59, %v9106
    %v9123 = vadd.f32 %v60, %v9107
    %v9124 = vadd.f32 %v61, %v9108
    %v9125 = vadd.f32 %v62, %v9109
    %v9126 = vadd.f32 %v63, %v9110
    %v9127 = vadd.f32 %v64, %v9111
    %v9128 = vadd.f32 %v65, %v9112
    %v9129 = vadd.f32 %v66, %v9113
    %v9130 = vld [vmem:[%s8] sm:$0x1]
    %v9132 = vlaneseq
    %v9133 = vshrl.u32 %v9132, 7
    %v9134 = vsub.s32 0, %v9133
    %v9135 = vrot.slane %v9130, %v9134
    %v9137 = vadd.f32 %v9114, %v9135
    %v9138 = vadd.f32 %v9115, %v9135
    %v9139 = vadd.f32 %v9116, %v9135
    %v9140 = vadd.f32 %v9117, %v9135
    %v9141 = vadd.f32 %v9118, %v9135
    %v9142 = vadd.f32 %v9119, %v9135
    %v9143 = vadd.f32 %v9120, %v9135
    %v9144 = vadd.f32 %v9121, %v9135
    %v9145 = vadd.f32 %v9122, %v9135
    %v9146 = vadd.f32 %v9123, %v9135
    %v9147 = vadd.f32 %v9124, %v9135
    %v9148 = vadd.f32 %v9125, %v9135
    %v9149 = vadd.f32 %v9126, %v9135
    %v9150 = vadd.f32 %v9127, %v9135
    %v9151 = vadd.f32 %v9128, %v9135
    %v9152 = vadd.f32 %v9129, %v9135
    %v9153 = vld [vmem:[%s9] sm:$0x1]
    %v9154 = vld [vmem:[%s10] sm:$0x1]
    %v9155 = vsel %vm69, %v9137, 0.0
    %9156 = vadd.xlane.f32.xlu0 %v9155
    %v9157 = vpop.xlane.xlu0 %9156
    %v9158 = vsel %vm69, %v9138, 0.0
    %9159 = vadd.xlane.f32.xlu0 %v9158
    %v9160 = vpop.xlane.xlu0 %9159
    %v9161 = vsel %vm69, %v9139, 0.0
    %9162 = vadd.xlane.f32.xlu0 %v9161
    %v9163 = vpop.xlane.xlu0 %9162
    %v9164 = vsel %vm69, %v9140, 0.0
    %9165 = vadd.xlane.f32.xlu0 %v9164
    %v9166 = vpop.xlane.xlu0 %9165
    %v9167 = vsel %vm69, %v9141, 0.0
    %9168 = vadd.xlane.f32.xlu0 %v9167
    %v9169 = vpop.xlane.xlu0 %9168
    %v9170 = vsel %vm69, %v9142, 0.0
    %9171 = vadd.xlane.f32.xlu0 %v9170
    %v9172 = vpop.xlane.xlu0 %9171
    %v9173 = vsel %vm69, %v9143, 0.0
    %9174 = vadd.xlane.f32.xlu0 %v9173
    %v9175 = vpop.xlane.xlu0 %9174
    %v9176 = vsel %vm69, %v9144, 0.0
    %9177 = vadd.xlane.f32.xlu0 %v9176
    %v9178 = vpop.xlane.xlu0 %9177
    %v9179 = vsel %vm69, %v9145, 0.0
    %9180 = vadd.xlane.f32.xlu0 %v9179
    %v9181 = vpop.xlane.xlu0 %9180
    %v9182 = vsel %vm69, %v9146, 0.0
    %9183 = vadd.xlane.f32.xlu0 %v9182
    %v9184 = vpop.xlane.xlu0 %9183
    %v9185 = vsel %vm69, %v9147, 0.0
    %9186 = vadd.xlane.f32.xlu0 %v9185
    %v9187 = vpop.xlane.xlu0 %9186
    %v9188 = vsel %vm69, %v9148, 0.0
    %9189 = vadd.xlane.f32.xlu0 %v9188
    %v9190 = vpop.xlane.xlu0 %9189
    %v9191 = vsel %vm69, %v9149, 0.0
    %9192 = vadd.xlane.f32.xlu0 %v9191
    %v9193 = vpop.xlane.xlu0 %9192
    %v9194 = vsel %vm69, %v9150, 0.0
    %9195 = vadd.xlane.f32.xlu0 %v9194
    %v9196 = vpop.xlane.xlu0 %9195
    %v9197 = vsel %vm69, %v9151, 0.0
    %9198 = vadd.xlane.f32.xlu0 %v9197
    %v9199 = vpop.xlane.xlu0 %9198
    %v9200 = vsel %vm69, %v9152, 0.0
    %9201 = vadd.xlane.f32.xlu0 %v9200
    %v9202 = vpop.xlane.xlu0 %9201
    %v9203 = vmul.f32 %v9157, %v118
    %v9204 = vmul.f32 %v9160, %v118
    %v9205 = vmul.f32 %v9163, %v118
    %v9206 = vmul.f32 %v9166, %v118
    %v9207 = vmul.f32 %v9169, %v118
    %v9208 = vmul.f32 %v9172, %v118
    %v9209 = vmul.f32 %v9175, %v118
    %v9210 = vmul.f32 %v9178, %v118
    %v9211 = vmul.f32 %v9181, %v118
    %v9212 = vmul.f32 %v9184, %v118
    %v9213 = vmul.f32 %v9187, %v118
    %v9214 = vmul.f32 %v9190, %v118
    %v9215 = vmul.f32 %v9193, %v118
    %v9216 = vmul.f32 %v9196, %v118
    %v9217 = vmul.f32 %v9199, %v118
    %v9218 = vmul.f32 %v9202, %v118
    %v9219 = vsub.f32 %v9137, %v9203
    %v9220 = vsub.f32 %v9138, %v9204
    %v9221 = vsub.f32 %v9139, %v9205
    %v9222 = vsub.f32 %v9140, %v9206
    %v9223 = vsub.f32 %v9141, %v9207
    %v9224 = vsub.f32 %v9142, %v9208
    %v9225 = vsub.f32 %v9143, %v9209
    %v9226 = vsub.f32 %v9144, %v9210
    %v9227 = vsub.f32 %v9145, %v9211
    %v9228 = vsub.f32 %v9146, %v9212
    %v9229 = vsub.f32 %v9147, %v9213
    %v9230 = vsub.f32 %v9148, %v9214
    %v9231 = vsub.f32 %v9149, %v9215
    %v9232 = vsub.f32 %v9150, %v9216
    %v9233 = vsub.f32 %v9151, %v9217
    %v9234 = vsub.f32 %v9152, %v9218
    %v9235 = vmul.f32 %v9219, %v9219
    %v9236 = vmul.f32 %v9220, %v9220
    %v9237 = vmul.f32 %v9221, %v9221
    %v9238 = vmul.f32 %v9222, %v9222
    %v9239 = vmul.f32 %v9223, %v9223
    %v9240 = vmul.f32 %v9224, %v9224
    %v9241 = vmul.f32 %v9225, %v9225
    %v9242 = vmul.f32 %v9226, %v9226
    %v9243 = vmul.f32 %v9227, %v9227
    %v9244 = vmul.f32 %v9228, %v9228
    %v9245 = vmul.f32 %v9229, %v9229
    %v9246 = vmul.f32 %v9230, %v9230
    %v9247 = vmul.f32 %v9231, %v9231
    %v9248 = vmul.f32 %v9232, %v9232
    %v9249 = vmul.f32 %v9233, %v9233
    %v9250 = vmul.f32 %v9234, %v9234
    %v9251 = vsel %vm69, %v9235, 0.0
    %9252 = vadd.xlane.f32.xlu0 %v9251
    %v9253 = vpop.xlane.xlu0 %9252
    %v9254 = vsel %vm69, %v9236, 0.0
    %9255 = vadd.xlane.f32.xlu0 %v9254
    %v9256 = vpop.xlane.xlu0 %9255
    %v9257 = vsel %vm69, %v9237, 0.0
    %9258 = vadd.xlane.f32.xlu0 %v9257
    %v9259 = vpop.xlane.xlu0 %9258
    %v9260 = vsel %vm69, %v9238, 0.0
    %9261 = vadd.xlane.f32.xlu0 %v9260
    %v9262 = vpop.xlane.xlu0 %9261
    %v9263 = vsel %vm69, %v9239, 0.0
    %9264 = vadd.xlane.f32.xlu0 %v9263
    %v9265 = vpop.xlane.xlu0 %9264
    %v9266 = vsel %vm69, %v9240, 0.0
    %9267 = vadd.xlane.f32.xlu0 %v9266
    %v9268 = vpop.xlane.xlu0 %9267
    %v9269 = vsel %vm69, %v9241, 0.0
    %9270 = vadd.xlane.f32.xlu0 %v9269
    %v9271 = vpop.xlane.xlu0 %9270
    %v9272 = vsel %vm69, %v9242, 0.0
    %9273 = vadd.xlane.f32.xlu0 %v9272
    %v9274 = vpop.xlane.xlu0 %9273
    %v9275 = vsel %vm69, %v9243, 0.0
    %9276 = vadd.xlane.f32.xlu0 %v9275
    %v9277 = vpop.xlane.xlu0 %9276
    %v9278 = vsel %vm69, %v9244, 0.0
    %9279 = vadd.xlane.f32.xlu0 %v9278
    %v9280 = vpop.xlane.xlu0 %9279
    %v9281 = vsel %vm69, %v9245, 0.0
    %9282 = vadd.xlane.f32.xlu0 %v9281
    %v9283 = vpop.xlane.xlu0 %9282
    %v9284 = vsel %vm69, %v9246, 0.0
    %9285 = vadd.xlane.f32.xlu0 %v9284
    %v9286 = vpop.xlane.xlu0 %9285
    %v9287 = vsel %vm69, %v9247, 0.0
    %9288 = vadd.xlane.f32.xlu0 %v9287
    %v9289 = vpop.xlane.xlu0 %9288
    %v9290 = vsel %vm69, %v9248, 0.0
    %9291 = vadd.xlane.f32.xlu0 %v9290
    %v9292 = vpop.xlane.xlu0 %9291
    %v9293 = vsel %vm69, %v9249, 0.0
    %9294 = vadd.xlane.f32.xlu0 %v9293
    %v9295 = vpop.xlane.xlu0 %9294
    %v9296 = vsel %vm69, %v9250, 0.0
    %9297 = vadd.xlane.f32.xlu0 %v9296
    %v9298 = vpop.xlane.xlu0 %9297
    %v9299 = vmul.f32 %v9253, %v118
    %v9300 = vmul.f32 %v9256, %v118
    %v9301 = vmul.f32 %v9259, %v118
    %v9302 = vmul.f32 %v9262, %v118
    %v9303 = vmul.f32 %v9265, %v118
    %v9304 = vmul.f32 %v9268, %v118
    %v9305 = vmul.f32 %v9271, %v118
    %v9306 = vmul.f32 %v9274, %v118
    %v9307 = vmul.f32 %v9277, %v118
    %v9308 = vmul.f32 %v9280, %v118
    %v9309 = vmul.f32 %v9283, %v118
    %v9310 = vmul.f32 %v9286, %v118
    %v9311 = vmul.f32 %v9289, %v118
    %v9312 = vmul.f32 %v9292, %v118
    %v9313 = vmul.f32 %v9295, %v118
    %v9314 = vmul.f32 %v9298, %v118
    %v9315 = vadd.f32 %v9299, 1e-05
    %v9316 = vadd.f32 %v9300, 1e-05
    %v9317 = vadd.f32 %v9301, 1e-05
    %v9318 = vadd.f32 %v9302, 1e-05
    %v9319 = vadd.f32 %v9303, 1e-05
    %v9320 = vadd.f32 %v9304, 1e-05
    %v9321 = vadd.f32 %v9305, 1e-05
    %v9322 = vadd.f32 %v9306, 1e-05
    %v9323 = vadd.f32 %v9307, 1e-05
    %v9324 = vadd.f32 %v9308, 1e-05
    %v9325 = vadd.f32 %v9309, 1e-05
    %v9326 = vadd.f32 %v9310, 1e-05
    %v9327 = vadd.f32 %v9311, 1e-05
    %v9328 = vadd.f32 %v9312, 1e-05
    %v9329 = vadd.f32 %v9313, 1e-05
    %v9330 = vadd.f32 %v9314, 1e-05
    %v9331 = vrsqrt.pop %v9315
    %v9332 = vrsqrt.pop %v9316
    %v9333 = vrsqrt.pop %v9317
    %v9334 = vrsqrt.pop %v9318
    %v9335 = vrsqrt.pop %v9319
    %v9336 = vrsqrt.pop %v9320
    %v9337 = vrsqrt.pop %v9321
    %v9338 = vrsqrt.pop %v9322
    %v9339 = vrsqrt.pop %v9323
    %v9340 = vrsqrt.pop %v9324
    %v9341 = vrsqrt.pop %v9325
    %v9342 = vrsqrt.pop %v9326
    %v9343 = vrsqrt.pop %v9327
    %v9344 = vrsqrt.pop %v9328
    %v9345 = vrsqrt.pop %v9329
    %v9346 = vrsqrt.pop %v9330
    %v9347 = vmul.f32 %v9219, %v9331
    %v9348 = vmul.f32 %v9220, %v9332
    %v9349 = vmul.f32 %v9221, %v9333
    %v9350 = vmul.f32 %v9222, %v9334
    %v9351 = vmul.f32 %v9223, %v9335
    %v9352 = vmul.f32 %v9224, %v9336
    %v9353 = vmul.f32 %v9225, %v9337
    %v9354 = vmul.f32 %v9226, %v9338
    %v9355 = vmul.f32 %v9227, %v9339
    %v9356 = vmul.f32 %v9228, %v9340
    %v9357 = vmul.f32 %v9229, %v9341
    %v9358 = vmul.f32 %v9230, %v9342
    %v9359 = vmul.f32 %v9231, %v9343
    %v9360 = vmul.f32 %v9232, %v9344
    %v9361 = vmul.f32 %v9233, %v9345
    %v9362 = vmul.f32 %v9234, %v9346
    %v9364 = vlaneseq
    %v9365 = vshrl.u32 %v9364, 7
    %v9366 = vsub.s32 0, %v9365
    %v9367 = vrot.slane %v9153, %v9366
    %v9369 = vmul.f32 %v9347, %v9367
    %v9370 = vmul.f32 %v9348, %v9367
    %v9371 = vmul.f32 %v9349, %v9367
    %v9372 = vmul.f32 %v9350, %v9367
    %v9373 = vmul.f32 %v9351, %v9367
    %v9374 = vmul.f32 %v9352, %v9367
    %v9375 = vmul.f32 %v9353, %v9367
    %v9376 = vmul.f32 %v9354, %v9367
    %v9377 = vmul.f32 %v9355, %v9367
    %v9378 = vmul.f32 %v9356, %v9367
    %v9379 = vmul.f32 %v9357, %v9367
    %v9380 = vmul.f32 %v9358, %v9367
    %v9381 = vmul.f32 %v9359, %v9367
    %v9382 = vmul.f32 %v9360, %v9367
    %v9383 = vmul.f32 %v9361, %v9367
    %v9384 = vmul.f32 %v9362, %v9367
    %v9386 = vlaneseq
    %v9387 = vshrl.u32 %v9386, 7
    %v9388 = vsub.s32 0, %v9387
    %v9389 = vrot.slane %v9154, %v9388
    %v9391 = vadd.f32 %v9369, %v9389
    %v9392 = vadd.f32 %v9370, %v9389
    %v9393 = vadd.f32 %v9371, %v9389
    %v9394 = vadd.f32 %v9372, %v9389
    %v9395 = vadd.f32 %v9373, %v9389
    %v9396 = vadd.f32 %v9374, %v9389
    %v9397 = vadd.f32 %v9375, %v9389
    %v9398 = vadd.f32 %v9376, %v9389
    %v9399 = vadd.f32 %v9377, %v9389
    %v9400 = vadd.f32 %v9378, %v9389
    %v9401 = vadd.f32 %v9379, %v9389
    %v9402 = vadd.f32 %v9380, %v9389
    %v9403 = vadd.f32 %v9381, %v9389
    %v9404 = vadd.f32 %v9382, %v9389
    %v9405 = vadd.f32 %v9383, %v9389
    %v9406 = vadd.f32 %v9384, %v9389
    %v9407 = vld [vmem:[%s11] sm:$0xff]
    %v9408 = vld [vmem:[%s11 + $0x8] sm:$0xff]
    %v9409 = vld [vmem:[%s11 + $0x10] sm:$0xff]
    %v9410 = vld [vmem:[%s11 + $0x18] sm:$0xff]
    %v9411 = vld [vmem:[%s11 + $0x20] sm:$0xff]
    %v9412 = vld [vmem:[%s11 + $0x28] sm:$0xff]
    %v9413 = vld [vmem:[%s11 + $0x30] sm:$0xff]
    %v9414 = vld [vmem:[%s11 + $0x38] sm:$0xff]
    %v9415 = vld [vmem:[%s11 + $0x40] sm:$0xff]
    %v9416 = vld [vmem:[%s11 + $0x48] sm:$0xff]
    %v9417 = vld [vmem:[%s11 + $0x50] sm:$0xff]
    %v9418 = vld [vmem:[%s11 + $0x58] sm:$0xff]
    %v9419 = vld [vmem:[%s11 + $0x60] sm:$0xff]
    %v9420 = vld [vmem:[%s11 + $0x68] sm:$0xff]
    %v9421 = vld [vmem:[%s11 + $0x70] sm:$0xff]
    %v9422 = vld [vmem:[%s11 + $0x78] sm:$0xff]
    %v9423 = vld [vmem:[%s12] sm:$0x3]
    %v9425 = vlaneseq
    %v9426 = vshrl.u32 %v9425, 7
    %v9427 = vsub.s32 0, %v9426
    %v9428 = vrot.slane %v9423, %v9427
    %v9429 = vlaneseq
    %v9430 = vshrl.u32 %v9429, 7
    %v9431 = vsub.s32 1, %v9430
    %v9432 = vrot.slane %v9423, %v9431
    %v9436 = vsel %vm69, %v9391, 0
    %v9439 = vsel %vm69, %v9392, 0
    %v9442 = vsel %vm69, %v9393, 0
    %v9445 = vsel %vm69, %v9394, 0
    %v9448 = vsel %vm69, %v9395, 0
    %v9451 = vsel %vm69, %v9396, 0
    %v9454 = vsel %vm69, %v9397, 0
    %v9457 = vsel %vm69, %v9398, 0
    %v9460 = vsel %vm69, %v9399, 0
    %v9463 = vsel %vm69, %v9400, 0
    %v9466 = vsel %vm69, %v9401, 0
    %v9469 = vsel %vm69, %v9402, 0
    %v9472 = vsel %vm69, %v9403, 0
    %v9475 = vsel %vm69, %v9404, 0
    %v9478 = vsel %vm69, %v9405, 0
    %v9481 = vsel %vm69, %v9406, 0
    %9483 = vmatprep.subr.mxu0 %v9408
    %9484 = vmatpush1.msra.mxu0 %v9407
    %9485 = vmatprep.subr.mxu0 %v9410
    %9486 = vmatpush1.msra.mxu0 %v9409
    %9487 = vmatprep.subr.mxu0 %v9412
    %9488 = vmatpush1.msra.mxu0 %v9411
    %9489 = vmatprep.subr.mxu0 %v9414
    %9490 = vmatpush1.msra.mxu0 %v9413
    %9491 = vmatprep.subr.mxu0 %v9416
    %9492 = vmatpush1.msra.mxu0 %v9415
    %9493 = vmatprep.subr.mxu0 %v9418
    %9494 = vmatpush1.msra.mxu0 %v9417
    %9495 = vmatprep.subr.mxu0 %v9420
    %9496 = vmatpush1.msra.mxu0 %v9419
    %9497 = vmatprep.subr.mxu0 %v9422
    %9498 = vmatpush1.msra.mxu0 %v9421
    %9499 = vmatprep.subr.mxu0 0.0
    %9500 = vmatpush1.msra.mxu0 0.0
    %9501 = vmatprep.subr.mxu0 0.0
    %9502 = vmatpush1.msra.mxu0 0.0
    %9503 = vmatprep.subr.mxu0 0.0
    %9504 = vmatpush1.msra.mxu0 0.0
    %9505 = vmatprep.subr.mxu0 0.0
    %9506 = vmatpush1.msra.mxu0 0.0
    %9507 = vmatprep.subr.mxu0 0.0
    %9508 = vmatpush1.msra.mxu0 0.0
    %9509 = vmatprep.subr.mxu0 0.0
    %9510 = vmatpush1.msra.mxu0 0.0
    %9511 = vmatprep.subr.mxu0 0.0
    %9512 = vmatpush1.msra.mxu0 0.0
    %9513 = vmatprep.subr.mxu0 0.0
    %9514 = vmatpush1.msra.mxu0 0.0
    %9515 = vmatprep.subr.mxu0 0.0
    %9516 = vmatpush1.msra.mxu0 0.0
    %9517 = vmatprep.subr.mxu0 0.0
    %9518 = vmatpush1.msra.mxu0 0.0
    %9519 = vmatprep.subr.mxu0 0.0
    %9520 = vmatpush1.msra.mxu0 0.0
    %9521 = vmatprep.subr.mxu0 0.0
    %9522 = vmatpush1.msra.mxu0 0.0
    %9523 = vmatprep.subr.mxu0 0.0
    %9524 = vmatpush1.msra.mxu0 0.0
    %9525 = vmatprep.subr.mxu0 0.0
    %9526 = vmatpush1.msra.mxu0 0.0
    %9527 = vmatprep.subr.mxu0 0.0
    %9528 = vmatpush1.msra.mxu0 0.0
    %9529 = vmatprep.subr.mxu0 0.0
    %9530 = vmatpush1.msra.mxu0 0.0
    %9531 = vmatprep.subr.mxu0 0.0
    %9532 = vmatpush1.msra.mxu0 0.0
    %9533 = vmatprep.subr.mxu0 0.0
    %9534 = vmatpush1.msra.mxu0 0.0
    %9535 = vmatprep.subr.mxu0 0.0
    %9536 = vmatpush1.msra.mxu0 0.0
    %9537 = vmatprep.subr.mxu0 0.0
    %9538 = vmatpush1.msra.mxu0 0.0
    %9539 = vmatprep.subr.mxu0 0.0
    %9540 = vmatpush1.msra.mxu0 0.0
    %9541 = vmatprep.subr.mxu0 0.0
    %9542 = vmatpush1.msra.mxu0 0.0
    %9543 = vmatprep.subr.mxu0 0.0
    %9544 = vmatpush1.msra.mxu0 0.0
    %9545 = vmatprep.subr.mxu0 0.0
    %9546 = vmatpush1.msra.mxu0 0.0
    %9547 = vmatprep.mubr.f32.mxu0 0.0
    %9548 = vmatmul.mubr.f32.gmra.mrb[0].mxu0 %v9436
    %v9549 = vpop.f32.mrb[0].mxu0
    %v9550 = vadd.f32 %v9428, %v9549
    %v9551 = vpop.f32.mrb[0].mxu0
    %v9552 = vadd.f32 %v9432, %v9551
    %9553 = vmatprep.mubr.f32.mxu0 0.0
    %9554 = vmatmul.mubr.f32.gmra.mrb[0].mxu0 %v9439
    %v9555 = vpop.f32.mrb[0].mxu0
    %v9556 = vadd.f32 %v9428, %v9555
    %v9557 = vpop.f32.mrb[0].mxu0
    %v9558 = vadd.f32 %v9432, %v9557
    %9559 = vmatprep.mubr.f32.mxu0 0.0
    %9560 = vmatmul.mubr.f32.gmra.mrb[0].mxu0 %v9442
    %v9561 = vpop.f32.mrb[0].mxu0
    %v9562 = vadd.f32 %v9428, %v9561
    %v9563 = vpop.f32.mrb[0].mxu0
    %v9564 = vadd.f32 %v9432, %v9563
    %9565 = vmatprep.mubr.f32.mxu0 0.0
    %9566 = vmatmul.mubr.f32.gmra.mrb[0].mxu0 %v9445
    %v9567 = vpop.f32.mrb[0].mxu0
    %v9568 = vadd.f32 %v9428, %v9567
    %v9569 = vpop.f32.mrb[0].mxu0
    %v9570 = vadd.f32 %v9432, %v9569
    %9571 = vmatprep.mubr.f32.mxu0 0.0
    %9572 = vmatmul.mubr.f32.gmra.mrb[0].mxu0 %v9448
    %v9573 = vpop.f32.mrb[0].mxu0
    %v9574 = vadd.f32 %v9428, %v9573
    %v9575 = vpop.f32.mrb[0].mxu0
    %v9576 = vadd.f32 %v9432, %v9575
    %9577 = vmatprep.mubr.f32.mxu0 0.0
    %9578 = vmatmul.mubr.f32.gmra.mrb[0].mxu0 %v9451
    %v9579 = vpop.f32.mrb[0].mxu0
    %v9580 = vadd.f32 %v9428, %v9579
    %v9581 = vpop.f32.mrb[0].mxu0
    %v9582 = vadd.f32 %v9432, %v9581
    %9583 = vmatprep.mubr.f32.mxu0 0.0
    %9584 = vmatmul.mubr.f32.gmra.mrb[0].mxu0 %v9454
    %v9585 = vpop.f32.mrb[0].mxu0
    %v9586 = vadd.f32 %v9428, %v9585
    %v9587 = vpop.f32.mrb[0].mxu0
    %v9588 = vadd.f32 %v9432, %v9587
    %9589 = vmatprep.mubr.f32.mxu0 0.0
    %9590 = vmatmul.mubr.f32.gmra.mrb[0].mxu0 %v9457
    %v9591 = vpop.f32.mrb[0].mxu0
    %v9592 = vadd.f32 %v9428, %v9591
    %v9593 = vpop.f32.mrb[0].mxu0
    %v9594 = vadd.f32 %v9432, %v9593
    %9595 = vmatprep.mubr.f32.mxu0 0.0
    %9596 = vmatmul.mubr.f32.gmra.mrb[0].mxu0 %v9460
    %v9597 = vpop.f32.mrb[0].mxu0
    %v9598 = vadd.f32 %v9428, %v9597
    %v9599 = vpop.f32.mrb[0].mxu0
    %v9600 = vadd.f32 %v9432, %v9599
    %9601 = vmatprep.mubr.f32.mxu0 0.0
    %9602 = vmatmul.mubr.f32.gmra.mrb[0].mxu0 %v9463
    %v9603 = vpop.f32.mrb[0].mxu0
    %v9604 = vadd.f32 %v9428, %v9603
    %v9605 = vpop.f32.mrb[0].mxu0
    %v9606 = vadd.f32 %v9432, %v9605
    %9607 = vmatprep.mubr.f32.mxu0 0.0
    %9608 = vmatmul.mubr.f32.gmra.mrb[0].mxu0 %v9466
    %v9609 = vpop.f32.mrb[0].mxu0
    %v9610 = vadd.f32 %v9428, %v9609
    %v9611 = vpop.f32.mrb[0].mxu0
    %v9612 = vadd.f32 %v9432, %v9611
    %9613 = vmatprep.mubr.f32.mxu0 0.0
    %9614 = vmatmul.mubr.f32.gmra.mrb[0].mxu0 %v9469
    %v9615 = vpop.f32.mrb[0].mxu0
    %v9616 = vadd.f32 %v9428, %v9615
    %v9617 = vpop.f32.mrb[0].mxu0
    %v9618 = vadd.f32 %v9432, %v9617
    %9619 = vmatprep.mubr.f32.mxu0 0.0
    %9620 = vmatmul.mubr.f32.gmra.mrb[0].mxu0 %v9472
    %v9621 = vpop.f32.mrb[0].mxu0
    %v9622 = vadd.f32 %v9428, %v9621
    %v9623 = vpop.f32.mrb[0].mxu0
    %v9624 = vadd.f32 %v9432, %v9623
    %9625 = vmatprep.mubr.f32.mxu0 0.0
    %9626 = vmatmul.mubr.f32.gmra.mrb[0].mxu0 %v9475
    %v9627 = vpop.f32.mrb[0].mxu0
    %v9628 = vadd.f32 %v9428, %v9627
    %v9629 = vpop.f32.mrb[0].mxu0
    %v9630 = vadd.f32 %v9432, %v9629
    %9631 = vmatprep.mubr.f32.mxu0 0.0
    %9632 = vmatmul.mubr.f32.gmra.mrb[0].mxu0 %v9478
    %v9633 = vpop.f32.mrb[0].mxu0
    %v9634 = vadd.f32 %v9428, %v9633
    %v9635 = vpop.f32.mrb[0].mxu0
    %v9636 = vadd.f32 %v9432, %v9635
    %9637 = vmatprep.mubr.f32.mxu0 0.0
    %9638 = vmatmul.mubr.f32.gmra.mrb[0].mxu0 %v9481
    %v9639 = vpop.f32.mrb[0].mxu0
    %v9640 = vadd.f32 %v9428, %v9639
    %v9641 = vpop.f32.mrb[0].mxu0
    %v9642 = vadd.f32 %v9432, %v9641
    %9643 = vdwg.mxu0
    %v9644 = vmax.f32 %v9550, 0.0
    %v9645 = vmax.f32 %v9552, 0.0
    %v9646 = vmax.f32 %v9556, 0.0
    %v9647 = vmax.f32 %v9558, 0.0
    %v9648 = vmax.f32 %v9562, 0.0
    %v9649 = vmax.f32 %v9564, 0.0
    %v9650 = vmax.f32 %v9568, 0.0
    %v9651 = vmax.f32 %v9570, 0.0
    %v9652 = vmax.f32 %v9574, 0.0
    %v9653 = vmax.f32 %v9576, 0.0
    %v9654 = vmax.f32 %v9580, 0.0
    %v9655 = vmax.f32 %v9582, 0.0
    %v9656 = vmax.f32 %v9586, 0.0
    %v9657 = vmax.f32 %v9588, 0.0
    %v9658 = vmax.f32 %v9592, 0.0
    %v9659 = vmax.f32 %v9594, 0.0
    %v9660 = vmax.f32 %v9598, 0.0
    %v9661 = vmax.f32 %v9600, 0.0
    %v9662 = vmax.f32 %v9604, 0.0
    %v9663 = vmax.f32 %v9606, 0.0
    %v9664 = vmax.f32 %v9610, 0.0
    %v9665 = vmax.f32 %v9612, 0.0
    %v9666 = vmax.f32 %v9616, 0.0
    %v9667 = vmax.f32 %v9618, 0.0
    %v9668 = vmax.f32 %v9622, 0.0
    %v9669 = vmax.f32 %v9624, 0.0
    %v9670 = vmax.f32 %v9628, 0.0
    %v9671 = vmax.f32 %v9630, 0.0
    %v9672 = vmax.f32 %v9634, 0.0
    %v9673 = vmax.f32 %v9636, 0.0
    %v9674 = vmax.f32 %v9640, 0.0
    %v9675 = vmax.f32 %v9642, 0.0
    %v9676 = vld [vmem:[%s13] sm:$0xff]
    %v9677 = vld [vmem:[%s13 + $0x8] sm:$0xff]
    %v9678 = vld [vmem:[%s13 + $0x10] sm:$0xff]
    %v9679 = vld [vmem:[%s13 + $0x18] sm:$0xff]
    %v9680 = vld [vmem:[%s13 + $0x20] sm:$0xff]
    %v9681 = vld [vmem:[%s13 + $0x28] sm:$0xff]
    %v9682 = vld [vmem:[%s13 + $0x30] sm:$0xff]
    %v9683 = vld [vmem:[%s13 + $0x38] sm:$0xff]
    %v9684 = vld [vmem:[%s13 + $0x40] sm:$0xff]
    %v9685 = vld [vmem:[%s13 + $0x48] sm:$0xff]
    %v9686 = vld [vmem:[%s13 + $0x50] sm:$0xff]
    %v9687 = vld [vmem:[%s13 + $0x58] sm:$0xff]
    %v9688 = vld [vmem:[%s13 + $0x60] sm:$0xff]
    %v9689 = vld [vmem:[%s13 + $0x68] sm:$0xff]
    %v9690 = vld [vmem:[%s13 + $0x70] sm:$0xff]
    %v9691 = vld [vmem:[%s13 + $0x78] sm:$0xff]
    %v9692 = vld [vmem:[%s13 + $0x80] sm:$0xff]
    %v9693 = vld [vmem:[%s13 + $0x88] sm:$0xff]
    %v9694 = vld [vmem:[%s13 + $0x90] sm:$0xff]
    %v9695 = vld [vmem:[%s13 + $0x98] sm:$0xff]
    %v9696 = vld [vmem:[%s13 + $0xa0] sm:$0xff]
    %v9697 = vld [vmem:[%s13 + $0xa8] sm:$0xff]
    %v9698 = vld [vmem:[%s13 + $0xb0] sm:$0xff]
    %v9699 = vld [vmem:[%s13 + $0xb8] sm:$0xff]
    %v9700 = vld [vmem:[%s13 + $0xc0] sm:$0xff]
    %v9701 = vld [vmem:[%s13 + $0xc8] sm:$0xff]
    %v9702 = vld [vmem:[%s13 + $0xd0] sm:$0xff]
    %v9703 = vld [vmem:[%s13 + $0xd8] sm:$0xff]
    %v9704 = vld [vmem:[%s13 + $0xe0] sm:$0xff]
    %v9705 = vld [vmem:[%s13 + $0xe8] sm:$0xff]
    %v9706 = vld [vmem:[%s13 + $0xf0] sm:$0xff]
    %v9707 = vld [vmem:[%s13 + $0xf8] sm:$0xff]
    %v9708 = vld [vmem:[%s14] sm:$0x1]
    %v9710 = vlaneseq
    %v9711 = vshrl.u32 %v9710, 7
    %v9712 = vsub.s32 0, %v9711
    %v9713 = vrot.slane %v9708, %v9712
    %9715 = vmatprep.subr.mxu0 0.0
    %9716 = vmatpush1.msra.mxu0 %v9676
    %9717 = vmatprep.subr.mxu0 0.0
    %9718 = vmatpush1.msra.mxu0 %v9677
    %9719 = vmatprep.subr.mxu0 0.0
    %9720 = vmatpush1.msra.mxu0 %v9678
    %9721 = vmatprep.subr.mxu0 0.0
    %9722 = vmatpush1.msra.mxu0 %v9679
    %9723 = vmatprep.subr.mxu0 0.0
    %9724 = vmatpush1.msra.mxu0 %v9680
    %9725 = vmatprep.subr.mxu0 0.0
    %9726 = vmatpush1.msra.mxu0 %v9681
    %9727 = vmatprep.subr.mxu0 0.0
    %9728 = vmatpush1.msra.mxu0 %v9682
    %9729 = vmatprep.subr.mxu0 0.0
    %9730 = vmatpush1.msra.mxu0 %v9683
    %9731 = vmatprep.subr.mxu0 0.0
    %9732 = vmatpush1.msra.mxu0 %v9684
    %9733 = vmatprep.subr.mxu0 0.0
    %9734 = vmatpush1.msra.mxu0 %v9685
    %9735 = vmatprep.subr.mxu0 0.0
    %9736 = vmatpush1.msra.mxu0 %v9686
    %9737 = vmatprep.subr.mxu0 0.0
    %9738 = vmatpush1.msra.mxu0 %v9687
    %9739 = vmatprep.subr.mxu0 0.0
    %9740 = vmatpush1.msra.mxu0 %v9688
    %9741 = vmatprep.subr.mxu0 0.0
    %9742 = vmatpush1.msra.mxu0 %v9689
    %9743 = vmatprep.subr.mxu0 0.0
    %9744 = vmatpush1.msra.mxu0 %v9690
    %9745 = vmatprep.subr.mxu0 0.0
    %9746 = vmatpush1.msra.mxu0 %v9691
    %9747 = vmatprep.subr.mxu0 0.0
    %9748 = vmatpush1.msra.mxu0 %v9692
    %9749 = vmatprep.subr.mxu0 0.0
    %9750 = vmatpush1.msra.mxu0 %v9693
    %9751 = vmatprep.subr.mxu0 0.0
    %9752 = vmatpush1.msra.mxu0 %v9694
    %9753 = vmatprep.subr.mxu0 0.0
    %9754 = vmatpush1.msra.mxu0 %v9695
    %9755 = vmatprep.subr.mxu0 0.0
    %9756 = vmatpush1.msra.mxu0 %v9696
    %9757 = vmatprep.subr.mxu0 0.0
    %9758 = vmatpush1.msra.mxu0 %v9697
    %9759 = vmatprep.subr.mxu0 0.0
    %9760 = vmatpush1.msra.mxu0 %v9698
    %9761 = vmatprep.subr.mxu0 0.0
    %9762 = vmatpush1.msra.mxu0 %v9699
    %9763 = vmatprep.subr.mxu0 0.0
    %9764 = vmatpush1.msra.mxu0 %v9700
    %9765 = vmatprep.subr.mxu0 0.0
    %9766 = vmatpush1.msra.mxu0 %v9701
    %9767 = vmatprep.subr.mxu0 0.0
    %9768 = vmatpush1.msra.mxu0 %v9702
    %9769 = vmatprep.subr.mxu0 0.0
    %9770 = vmatpush1.msra.mxu0 %v9703
    %9771 = vmatprep.subr.mxu0 0.0
    %9772 = vmatpush1.msra.mxu0 %v9704
    %9773 = vmatprep.subr.mxu0 0.0
    %9774 = vmatpush1.msra.mxu0 %v9705
    %9775 = vmatprep.subr.mxu0 0.0
    %9776 = vmatpush1.msra.mxu0 %v9706
    %9777 = vmatprep.subr.mxu0 0.0
    %9778 = vmatpush1.msra.mxu0 %v9707
    %9779 = vmatprep.mubr.f32.mxu0 %v9645
    %9780 = vmatmul.mubr.f32.gmra.mrb[0].mxu0 %v9644
    %v9781 = vpop.f32.mrb[0].mxu0
    %v9782 = vadd.f32 %v9713, %v9781
    %v9783 = vpop.f32.mrb[0].mxu0
    %9784 = vmatprep.mubr.f32.mxu0 %v9647
    %9785 = vmatmul.mubr.f32.gmra.mrb[0].mxu0 %v9646
    %v9786 = vpop.f32.mrb[0].mxu0
    %v9787 = vadd.f32 %v9713, %v9786
    %v9788 = vpop.f32.mrb[0].mxu0
    %9789 = vmatprep.mubr.f32.mxu0 %v9649
    %9790 = vmatmul.mubr.f32.gmra.mrb[0].mxu0 %v9648
    %v9791 = vpop.f32.mrb[0].mxu0
    %v9792 = vadd.f32 %v9713, %v9791
    %v9793 = vpop.f32.mrb[0].mxu0
    %9794 = vmatprep.mubr.f32.mxu0 %v9651
    %9795 = vmatmul.mubr.f32.gmra.mrb[0].mxu0 %v9650
    %v9796 = vpop.f32.mrb[0].mxu0
    %v9797 = vadd.f32 %v9713, %v9796
    %v9798 = vpop.f32.mrb[0].mxu0
    %9799 = vmatprep.mubr.f32.mxu0 %v9653
    %9800 = vmatmul.mubr.f32.gmra.mrb[0].mxu0 %v9652
    %v9801 = vpop.f32.mrb[0].mxu0
    %v9802 = vadd.f32 %v9713, %v9801
    %v9803 = vpop.f32.mrb[0].mxu0
    %9804 = vmatprep.mubr.f32.mxu0 %v9655
    %9805 = vmatmul.mubr.f32.gmra.mrb[0].mxu0 %v9654
    %v9806 = vpop.f32.mrb[0].mxu0
    %v9807 = vadd.f32 %v9713, %v9806
    %v9808 = vpop.f32.mrb[0].mxu0
    %9809 = vmatprep.mubr.f32.mxu0 %v9657
    %9810 = vmatmul.mubr.f32.gmra.mrb[0].mxu0 %v9656
    %v9811 = vpop.f32.mrb[0].mxu0
    %v9812 = vadd.f32 %v9713, %v9811
    %v9813 = vpop.f32.mrb[0].mxu0
    %9814 = vmatprep.mubr.f32.mxu0 %v9659
    %9815 = vmatmul.mubr.f32.gmra.mrb[0].mxu0 %v9658
    %v9816 = vpop.f32.mrb[0].mxu0
    %v9817 = vadd.f32 %v9713, %v9816
    %v9818 = vpop.f32.mrb[0].mxu0
    %9819 = vmatprep.mubr.f32.mxu0 %v9661
    %9820 = vmatmul.mubr.f32.gmra.mrb[0].mxu0 %v9660
    %v9821 = vpop.f32.mrb[0].mxu0
    %v9822 = vadd.f32 %v9713, %v9821
    %v9823 = vpop.f32.mrb[0].mxu0
    %9824 = vmatprep.mubr.f32.mxu0 %v9663
    %9825 = vmatmul.mubr.f32.gmra.mrb[0].mxu0 %v9662
    %v9826 = vpop.f32.mrb[0].mxu0
    %v9827 = vadd.f32 %v9713, %v9826
    %v9828 = vpop.f32.mrb[0].mxu0
    %9829 = vmatprep.mubr.f32.mxu0 %v9665
    %9830 = vmatmul.mubr.f32.gmra.mrb[0].mxu0 %v9664
    %v9831 = vpop.f32.mrb[0].mxu0
    %v9832 = vadd.f32 %v9713, %v9831
    %v9833 = vpop.f32.mrb[0].mxu0
    %9834 = vmatprep.mubr.f32.mxu0 %v9667
    %9835 = vmatmul.mubr.f32.gmra.mrb[0].mxu0 %v9666
    %v9836 = vpop.f32.mrb[0].mxu0
    %v9837 = vadd.f32 %v9713, %v9836
    %v9838 = vpop.f32.mrb[0].mxu0
    %9839 = vmatprep.mubr.f32.mxu0 %v9669
    %9840 = vmatmul.mubr.f32.gmra.mrb[0].mxu0 %v9668
    %v9841 = vpop.f32.mrb[0].mxu0
    %v9842 = vadd.f32 %v9713, %v9841
    %v9843 = vpop.f32.mrb[0].mxu0
    %9844 = vmatprep.mubr.f32.mxu0 %v9671
    %9845 = vmatmul.mubr.f32.gmra.mrb[0].mxu0 %v9670
    %v9846 = vpop.f32.mrb[0].mxu0
    %v9847 = vadd.f32 %v9713, %v9846
    %v9848 = vpop.f32.mrb[0].mxu0
    %9849 = vmatprep.mubr.f32.mxu0 %v9673
    %9850 = vmatmul.mubr.f32.gmra.mrb[0].mxu0 %v9672
    %v9851 = vpop.f32.mrb[0].mxu0
    %v9852 = vadd.f32 %v9713, %v9851
    %v9853 = vpop.f32.mrb[0].mxu0
    %9854 = vmatprep.mubr.f32.mxu0 %v9675
    %9855 = vmatmul.mubr.f32.gmra.mrb[0].mxu0 %v9674
    %v9856 = vpop.f32.mrb[0].mxu0
    %v9857 = vadd.f32 %v9713, %v9856
    %v9858 = vpop.f32.mrb[0].mxu0
    %9859 = vdwg.mxu0
    %v9860 = vadd.f32 %v9137, %v9782
    %v9861 = vadd.f32 %v9138, %v9787
    %v9862 = vadd.f32 %v9139, %v9792
    %v9863 = vadd.f32 %v9140, %v9797
    %v9864 = vadd.f32 %v9141, %v9802
    %v9865 = vadd.f32 %v9142, %v9807
    %v9866 = vadd.f32 %v9143, %v9812
    %v9867 = vadd.f32 %v9144, %v9817
    %v9868 = vadd.f32 %v9145, %v9822
    %v9869 = vadd.f32 %v9146, %v9827
    %v9870 = vadd.f32 %v9147, %v9832
    %v9871 = vadd.f32 %v9148, %v9837
    %v9872 = vadd.f32 %v9149, %v9842
    %v9873 = vadd.f32 %v9150, %v9847
    %v9874 = vadd.f32 %v9151, %v9852
    %v9875 = vadd.f32 %v9152, %v9857
    %9876 = vst.msk [vmem:[#allocation2] sm:$0xff] %vm69, %v9860
    %9877 = vst.msk [vmem:[#allocation2 + $0x8] sm:$0xff] %vm69, %v9861
    %9878 = vst.msk [vmem:[#allocation2 + $0x10] sm:$0xff] %vm69, %v9862
    %9879 = vst.msk [vmem:[#allocation2 + $0x18] sm:$0xff] %vm69, %v9863
    %9880 = vst.msk [vmem:[#allocation2 + $0x20] sm:$0xff] %vm69, %v9864
    %9881 = vst.msk [vmem:[#allocation2 + $0x28] sm:$0xff] %vm69, %v9865
    %9882 = vst.msk [vmem:[#allocation2 + $0x30] sm:$0xff] %vm69, %v9866
    %9883 = vst.msk [vmem:[#allocation2 + $0x38] sm:$0xff] %vm69, %v9867
    %9884 = vst.msk [vmem:[#allocation2 + $0x40] sm:$0xff] %vm69, %v9868
    %9885 = vst.msk [vmem:[#allocation2 + $0x48] sm:$0xff] %vm69, %v9869
    %9886 = vst.msk [vmem:[#allocation2 + $0x50] sm:$0xff] %vm69, %v9870
    %9887 = vst.msk [vmem:[#allocation2 + $0x58] sm:$0xff] %vm69, %v9871
    %9888 = vst.msk [vmem:[#allocation2 + $0x60] sm:$0xff] %vm69, %v9872
    %9889 = vst.msk [vmem:[#allocation2 + $0x68] sm:$0xff] %vm69, %v9873
    %9890 = vst.msk [vmem:[#allocation2 + $0x70] sm:$0xff] %vm69, %v9874
    %9891 = vst.msk [vmem:[#allocation2 + $0x78] sm:$0xff] %vm69, %v9875
    // Predicated region
    $region62: #{block_forward.1} parent=1 // pred_check
      _
    $region63: #{block_forward.1} parent=1 // pred_check_branch
      %9893 = sbr.rel (0) target = $region65
    $region64: #{block_forward.1} parent=1 // pred_region
      %s9895 = ssub.s32 2048, 2048
      %9896 = vsyncadd [#allocation3], %s9895
      %s9897 = sshll.u32 [#allocation2], 4
      %s9898 = int_to_ptr.vmem [resolvable:$true] %s9897
      %9903 = dma.vmem_to_hbm [thread:$0]  %s9898, 2048, %s15, [#allocation3], 128, 128, 8
    $region65: #{block_forward.1} parent=1 // pred_fallthru
      _
    // Predicated region
    $region66: #{block_forward.1} parent=1 // pred_check
      _
    $region67: #{block_forward.1} parent=1 // pred_check_branch
      %9905 = sbr.rel (0) target = $region69
    $region68: #{block_forward.1} parent=1 // pred_region
      %9906 = dma.done [#allocation3], 2048
    $region69: #{block_forward.1} parent=1 // pred_fallthru
      _
    %9907 = vsyncpa [#allocation3], 1

</llo_original>
